<compile_context>
chip_gen: v7x
topology: tpu7x:2x2x1
jax: 0.10.0
libtpu: 0.0.40
codegen_flags: <defaults>
</compile_context>

<pallas_src>
import functools

import jax
import jax.numpy as jnp
from jax import lax
from jax.experimental import pallas as pl
from jax.experimental.pallas import tpu as pltpu

_EPS = 1e-5  # nn.GroupNorm default eps


def _silu(v):
    # x * sigmoid(x); exp and the approximate reciprocal both use the EUP slot.
    return v * pl.reciprocal(1.0 + jnp.exp(-v), approx=True)


def _resnet_block_kernel(x_ref, scale_ref, shift_ref,
                         g1_ref, be1_ref, gavg_in_ref, w1_ref, b1_ref,
                         g2_ref, be2_ref, gavg_out_ref, w2_ref, b2_ref,
                         *rest, H, W, use_res_proj):
    if use_res_proj:
        wr_ref, br_ref, o_ref, pad1_ref, pad2_ref, acc_ref = rest
    else:
        wr_ref, br_ref = None, None
        o_ref, pad1_ref, pad2_ref, acc_ref = rest

    HW = H * W
    Cin = x_ref.shape[2]
    Cout = o_ref.shape[2]
    inv_hw = 1.0 / float(HW)

    def group_norm_affine(tokens, gavg_ref, gamma_ref, beta_ref,
                          extra_scale=None, extra_shift=None):
        # One-pass stats: per-channel E[x], E[x^2]; a (C, C) group-averaging
        # matmul broadcasts group stats back per channel (all 2D, MXU friendly).
        # Note: E[x^2]-mean^2 is fine in f32 at these magnitudes (review note).
        ch_mean = jnp.sum(tokens, axis=0, keepdims=True) * inv_hw           # (1, C)
        ch_msq = jnp.sum(tokens * tokens, axis=0, keepdims=True) * inv_hw   # (1, C)
        mean = jnp.dot(ch_mean, gavg_ref[...], preferred_element_type=jnp.float32)
        ex2 = jnp.dot(ch_msq, gavg_ref[...], preferred_element_type=jnp.float32)
        var = ex2 - mean * mean
        scale = lax.rsqrt(var + _EPS) * gamma_ref[...]
        offset = beta_ref[...] - mean * scale
        if extra_scale is not None:
            # Fold time-embedding (scale+1, shift) into the same per-channel FMA.
            scale = scale * extra_scale
            offset = offset * extra_scale + extra_shift
        return tokens * scale + offset                                      # 1 FMA pass

    def conv3x3(act_tokens, cin, pad_ref, w_taps_ref, acc_init=None):
        # Zero ONLY the 1-element halo (perimeter); interior is overwritten below.
        z_row = jnp.zeros((1, pad_ref.shape[1], cin), pad_ref.dtype)
        pad_ref[0:1, :, :] = z_row
        pad_ref[H + 1:H + 2, :, :] = z_row
        z_col = jnp.zeros((H + 2, 1, cin), pad_ref.dtype)
        pad_ref[:, 0:1, :] = z_col
        pad_ref[:, W + 1:W + 2, :] = z_col
        pad_ref[1:H + 1, 1:W + 1, :] = act_tokens.reshape(H, W, cin)

        if acc_init is not None:
            acc_ref[...] = acc_init
        # 9 shifted windows -> bf16 MXU matmuls accumulated into VMEM f32 scratch.
        for t in range(9):
            di, dj = divmod(t, 3)
            win = pad_ref[di:di + H, dj:dj + W, :].reshape(HW, cin)
            part = jnp.dot(win.astype(jnp.bfloat16), w_taps_ref[t],
                           preferred_element_type=jnp.float32)
            if t == 0 and acc_init is None:
                acc_ref[...] = part
            else:
                acc_ref[...] += part
        return acc_ref[...]

    x = x_ref[0].astype(jnp.float32)                                        # (HW, Cin)

    # ---- block1: GroupNorm -> SiLU -> Conv3x3 --------------------------------
    a1 = _silu(group_norm_affine(x, gavg_in_ref, g1_ref, be1_ref))
    h = conv3x3(a1, Cin, pad1_ref, w1_ref) + b1_ref[...]                    # (HW, Cout)

    # ---- residual path (identity fast path when Cin == Cout) -----------------
    if use_res_proj:
        res = jnp.dot(x.astype(jnp.bfloat16), wr_ref[...],
                      preferred_element_type=jnp.float32) + br_ref[...]
    else:
        res = x

    # ---- block2: GroupNorm -> (scale+1, shift) -> SiLU -> Conv3x3 ------------
    a2 = _silu(group_norm_affine(h, gavg_out_ref, g2_ref, be2_ref,
                                 extra_scale=scale_ref[0],
                                 extra_shift=shift_ref[0]))
    # Seed the accumulator with residual + bias so neither stays live in vregs.
    out = conv3x3(a2, Cout, pad2_ref, w2_ref, acc_init=res + b2_ref[...])

    o_ref[0] = out.astype(o_ref.dtype)


def _group_avg_matrix(channels, groups):
    per = channels // groups
    gid = jnp.arange(channels) // per
    return (gid[:, None] == gid[None, :]).astype(jnp.float32) / float(per)


def _resnet_block_pallas(x_tok, scale, shift, g1, be1, gavg_in, w1_taps, b1,
                         g2, be2, gavg_out, w2_taps, b2, wr_mat, br,
                         *, H, W, use_res_proj, out_dtype):
    N, HW, Cin = x_tok.shape
    Cout = b1.shape[1]
    Wp = ((W + 2 + 7) // 8) * 8     # pad-scratch row stride rounded to 8 sublanes

    def param_spec(shape):
        zeros = (0,) * len(shape)
        return pl.BlockSpec(shape, lambda n: zeros)

    in_specs = [
        pl.BlockSpec((1, HW, Cin), lambda n: (n, 0, 0)),       # x tokens (per batch)
        pl.BlockSpec((1, 1, Cout), lambda n: (n, 0, 0)),       # scale (+1 pre-added)
        pl.BlockSpec((1, 1, Cout), lambda n: (n, 0, 0)),       # shift
        param_spec((1, Cin)), param_spec((1, Cin)), param_spec((Cin, Cin)),
        param_spec((9, Cin, Cout)), param_spec((1, Cout)),
        param_spec((1, Cout)), param_spec((1, Cout)), param_spec((Cout, Cout)),
        param_spec((9, Cout, Cout)), param_spec((1, Cout)),
    ]
    args = [x_tok, scale, shift, g1, be1, gavg_in, w1_taps, b1,
            g2, be2, gavg_out, w2_taps, b2]
    if use_res_proj:
        in_specs += [param_spec((Cin, Cout)), param_spec((1, Cout))]
        args += [wr_mat, br]

    out_spec = pl.BlockSpec((1, HW, Cout), lambda n: (n, 0, 0))

    flops = N * HW * 2 * (9 * Cin * Cout + 9 * Cout * Cout
                          + (Cin * Cout if use_res_proj else 0))
    transcendentals = N * HW * (Cin + Cout)
    bytes_accessed = (4 * N * HW * (Cin + Cout)
                      + 2 * (9 * Cin * Cout + 9 * Cout * Cout)
                      + (2 * Cin * Cout if use_res_proj else 0))

    scratch = [
        pltpu.VMEM((H + 2, Wp, Cin), jnp.float32),     # padded activations, block1
        pltpu.VMEM((H + 2, Wp, Cout), jnp.float32),    # padded activations, block2
        pltpu.VMEM((HW, Cout), jnp.float32),           # conv accumulator (reused)
    ]

    # Explicit scoped-VMEM limit derived from the per-step working set.
    scratch_bytes = 4 * ((H + 2) * Wp * (Cin + Cout) + HW * Cout)
    io_bytes = 2 * 4 * (HW * Cin + HW * Cout + 2 * Cout)          # double-buffered
    param_bytes = 2 * (2 * 9 * Cout * (Cin + Cout)
                       + 4 * (Cin * Cin + Cout * Cout)
                       + 4 * (2 * Cin + 6 * Cout)
                       + (2 * Cin * Cout + 4 * Cout if use_res_proj else 0))
    vmem_limit = int(min(max(2 * (scratch_bytes + io_bytes + param_bytes),
                             32 * 1024 * 1024),
                         64 * 1024 * 1024))

    kernel = functools.partial(_resnet_block_kernel, H=H, W=W,
                               use_res_proj=use_res_proj)

    return pl.pallas_call(
        kernel,
        out_shape=jax.ShapeDtypeStruct((N, HW, Cout), out_dtype),
        grid_spec=pltpu.PrefetchScalarGridSpec(
            num_scalar_prefetch=0,
            grid=(N,),
            in_specs=in_specs,
            out_specs=out_spec,
            scratch_shapes=scratch,
        ),
        compiler_params=pltpu.CompilerParams(
            dimension_semantics=("parallel",),
            vmem_limit_bytes=vmem_limit),
        cost_estimate=pl.CostEstimate(
            flops=int(flops), transcendentals=int(transcendentals),
            bytes_accessed=int(bytes_accessed)),
    )(*args)


class ResnetBlockPallas:
    """JAX/Pallas port of ResnetBlock (module defaults: no cross-attn, no GCA)."""

    def __init__(self, key, dim, dim_out, *, time_cond_dim=None, groups=8):
        assert dim % groups == 0 and dim_out % groups == 0
        self.dim, self.dim_out, self.groups = dim, dim_out, groups
        self.use_res_proj = dim != dim_out

        def conv_init(k, cout, cin, ksz):
            kw, kb = jax.random.split(k)
            bound = (cin * ksz * ksz) ** -0.5
            w = jax.random.uniform(kw, (cout, cin, ksz, ksz), jnp.float32, -bound, bound)
            b = jax.random.uniform(kb, (cout,), jnp.float32, -bound, bound)
            return w, b

        k1, k2, k3, k4 = jax.random.split(key, 4)
        self.gn1_g = jnp.ones((dim,), jnp.float32)
        self.gn1_b = jnp.zeros((dim,), jnp.float32)
        self.w1, self.b1 = conv_init(k1, dim_out, dim, 3)
        self.gn2_g = jnp.ones((dim_out,), jnp.float32)
        self.gn2_b = jnp.zeros((dim_out,), jnp.float32)
        self.w2, self.b2 = conv_init(k2, dim_out, dim_out, 3)
        if self.use_res_proj:
            self.wr, self.br = conv_init(k3, dim_out, dim, 1)
        else:
            self.wr, self.br = None, None
        if time_cond_dim is not None:
            kt_w, kt_b = jax.random.split(k4)
            bound = time_cond_dim ** -0.5
            self.wt = jax.random.uniform(kt_w, (dim_out * 2, time_cond_dim),
                                         jnp.float32, -bound, bound)
            self.bt = jax.random.uniform(kt_b, (dim_out * 2,), jnp.float32, -bound, bound)
        else:
            self.wt, self.bt = None, None

    def __call__(self, x_nchw, time_emb=None):
        N, C, H, W = x_nchw.shape
        assert C == self.dim
        Cout, G = self.dim_out, self.groups
        # W % 8 == 0 keeps in-kernel (H,W,C)<->(HW,C) reshapes pure re-tilings.

        # NCHW -> flat (N, H*W, C) tokens (channels on lanes); reshapes are
        # wrapper-side XLA metadata, the kernel sees lane-dense 2D slabs.
        x_tok = jnp.transpose(x_nchw, (0, 2, 3, 1)).reshape(N, H * W, C)

        # Time conditioning: SiLU -> Linear (tiny matmul, plain JAX).
        if self.wt is not None and time_emb is not None:
            ss = jax.nn.silu(time_emb) @ self.wt.T + self.bt           # (N, 2*Cout)
            scale = ss[:, :Cout] + 1.0                                 # +1 pre-added
            shift = ss[:, Cout:]
        else:
            scale = jnp.ones((N, Cout), jnp.float32)
            shift = jnp.zeros((N, Cout), jnp.float32)
        scale = scale.reshape(N, 1, Cout).astype(jnp.float32)
        shift = shift.reshape(N, 1, Cout).astype(jnp.float32)

        # Per-tap conv weights as bf16 (Cin, Cout) matrices, tap order [ki, kj].
        w1_taps = jnp.transpose(self.w1, (2, 3, 1, 0)).reshape(9, C, Cout).astype(jnp.bfloat16)
        w2_taps = jnp.transpose(self.w2, (2, 3, 1, 0)).reshape(9, Cout, Cout).astype(jnp.bfloat16)
        if self.use_res_proj:
            wr_mat = jnp.transpose(self.wr[:, :, 0, 0], (1, 0)).astype(jnp.bfloat16)
            br = self.br.reshape(1, Cout)
        else:
            wr_mat, br = None, None

        out_tok = _resnet_block_pallas(
            x_tok, scale, shift,
            self.gn1_g.reshape(1, C), self.gn1_b.reshape(1, C),
            _group_avg_matrix(C, G),
            w1_taps, self.b1.reshape(1, Cout),
            self.gn2_g.reshape(1, Cout), self.gn2_b.reshape(1, Cout),
            _group_avg_matrix(Cout, G),
            w2_taps, self.b2.reshape(1, Cout),
            wr_mat, br,
            H=H, W=W, use_res_proj=self.use_res_proj, out_dtype=x_nchw.dtype)
        return jnp.transpose(out_tok.reshape(N, H, W, Cout), (0, 3, 1, 2))  # NCHW


def _reference(x_nchw, layer, time_emb=None):
    """Pure-JAX reference (lax conv + explicit GroupNorm) for correctness checking."""
    G = layer.groups

    def gn(x, gamma, beta):
        N, C, H, W = x.shape
        xg = x.reshape(N, G, C // G, H, W)
        mean = xg.mean(axis=(2, 3, 4), keepdims=True)
        var = ((xg - mean) ** 2).mean(axis=(2, 3, 4), keepdims=True)
        xn = ((xg - mean) / jnp.sqrt(var + _EPS)).reshape(N, C, H, W)
        return xn * gamma[None, :, None, None] + beta[None, :, None, None]

    def conv(x, w, b, pad):
        y = lax.conv_general_dilated(x, w, (1, 1), ((pad, pad), (pad, pad)),
                                     dimension_numbers=("NCHW", "OIHW", "NCHW"))
        return y + b[None, :, None, None]

    h = jax.nn.silu(gn(x_nchw, layer.gn1_g, layer.gn1_b))
    h = conv(h, layer.w1, layer.b1, 1)
    h2 = gn(h, layer.gn2_g, layer.gn2_b)
    if layer.wt is not None and time_emb is not None:
        ssv = jax.nn.silu(time_emb) @ layer.wt.T + layer.bt
        scale = ssv[:, :layer.dim_out][:, :, None, None]
        shift = ssv[:, layer.dim_out:][:, :, None, None]
        h2 = h2 * (scale + 1.0) + shift
    h2 = jax.nn.silu(h2)
    h2 = conv(h2, layer.w2, layer.b2, 1)
    res = conv(x_nchw, layer.wr, layer.br, 0) if layer.use_res_proj else x_nchw
    return h2 + res


if __name__ == "__main__":
    key = jax.random.PRNGKey(0)
    k_params, k_params2, k_x, k_t = jax.random.split(key, 4)

    N, H, W = 2, 16, 16
    dim, dim_out, groups = 8, 32, 8          # dim must be divisible by groups=8
    time_cond_dim = 16

    # Case 1: channel projection (dim != dim_out) + time-embedding scale/shift.
    block = ResnetBlockPallas(k_params, dim, dim_out,
                              time_cond_dim=time_cond_dim, groups=groups)
    x = jax.random.normal(k_x, (N, dim, H, W), jnp.float32)          # NCHW
    t = jax.random.normal(k_t, (N, time_cond_dim), jnp.float32)      # time embedding

    out = jax.block_until_ready(block(x, t))
    assert out.shape == (N, dim_out, H, W), out.shape
    ref = _reference(x, block, t)
    err = float(jnp.max(jnp.abs(out - ref)))
    # bf16 MXU operands + approx-reciprocal SiLU vs. a pure-f32 reference.
    assert jnp.allclose(out, ref, atol=5e-2, rtol=5e-2), err

    # Case 2: dim == dim_out exercises the identity-residual fast path
    # (no 1x1 projection matmul) and the no-time-embedding default.
    block2 = ResnetBlockPallas(k_params2, dim_out, dim_out, groups=groups)
    x2 = jax.random.normal(k_x, (N, dim_out, H, W), jnp.float32)
    out2 = jax.block_until_ready(block2(x2))
    assert out2.shape == (N, dim_out, H, W), out2.shape
    ref2 = _reference(x2, block2)
    err2 = float(jnp.max(jnp.abs(out2 - ref2)))
    assert jnp.allclose(out2, ref2, atol=5e-2, rtol=5e-2), err2

    print("KERNEL_OK")
</pallas_src>

<mosaic_0001>
module attributes {stable_mosaic.version = 11 : i64} {
  func.func @_resnet_block_kernel(%arg0: i32, %arg1: memref<1x256x8xf32, #tpu.memory_space<vmem>>, %arg2: memref<1x1x32xf32, #tpu.memory_space<vmem>>, %arg3: memref<1x1x32xf32, #tpu.memory_space<vmem>>, %arg4: memref<1x8xf32, #tpu.memory_space<vmem>>, %arg5: memref<1x8xf32, #tpu.memory_space<vmem>>, %arg6: memref<8x8xf32, #tpu.memory_space<vmem>>, %arg7: memref<9x8x32xbf16, #tpu.memory_space<vmem>>, %arg8: memref<1x32xf32, #tpu.memory_space<vmem>>, %arg9: memref<1x32xf32, #tpu.memory_space<vmem>>, %arg10: memref<1x32xf32, #tpu.memory_space<vmem>>, %arg11: memref<32x32xf32, #tpu.memory_space<vmem>>, %arg12: memref<9x32x32xbf16, #tpu.memory_space<vmem>>, %arg13: memref<1x32xf32, #tpu.memory_space<vmem>>, %arg14: memref<8x32xbf16, #tpu.memory_space<vmem>>, %arg15: memref<1x32xf32, #tpu.memory_space<vmem>>, %arg16: memref<1x256x32xf32, #tpu.memory_space<vmem>>, %arg17: memref<18x24x8xf32, #tpu.memory_space<vmem>>, %arg18: memref<18x24x32xf32, #tpu.memory_space<vmem>>, %arg19: memref<256x32xf32, #tpu.memory_space<vmem>>) attributes {dimension_semantics = [#tpu.dimension_semantics<parallel>], iteration_bounds = array<i64: 2>, scalar_prefetch = 0 : i64, scratch_operands = 3 : i64, tpu.core_type = #tpu.core_type<tc>, window_params = [{transform_indices = @transform_0, window_bounds = array<i64: 1, 256, 8>}, {transform_indices = @transform_1, window_bounds = array<i64: 1, 1, 32>}, {transform_indices = @transform_2, window_bounds = array<i64: 1, 1, 32>}, {pipeline_mode = #tpu.pipeline_mode<synchronous>, transform_indices = @transform_3, window_bounds = array<i64: 1, 8>}, {pipeline_mode = #tpu.pipeline_mode<synchronous>, transform_indices = @transform_4, window_bounds = array<i64: 1, 8>}, {pipeline_mode = #tpu.pipeline_mode<synchronous>, transform_indices = @transform_5, window_bounds = array<i64: 8, 8>}, {pipeline_mode = #tpu.pipeline_mode<synchronous>, transform_indices = @transform_6, window_bounds = array<i64: 9, 8, 32>}, {pipeline_mode = #tpu.pipeline_mode<synchronous>, transform_indices = @transform_7, window_bounds = array<i64: 1, 32>}, {pipeline_mode = #tpu.pipeline_mode<synchronous>, transform_indices = @transform_8, window_bounds = array<i64: 1, 32>}, {pipeline_mode = #tpu.pipeline_mode<synchronous>, transform_indices = @transform_9, window_bounds = array<i64: 1, 32>}, {pipeline_mode = #tpu.pipeline_mode<synchronous>, transform_indices = @transform_10, window_bounds = array<i64: 32, 32>}, {pipeline_mode = #tpu.pipeline_mode<synchronous>, transform_indices = @transform_11, window_bounds = array<i64: 9, 32, 32>}, {pipeline_mode = #tpu.pipeline_mode<synchronous>, transform_indices = @transform_12, window_bounds = array<i64: 1, 32>}, {pipeline_mode = #tpu.pipeline_mode<synchronous>, transform_indices = @transform_13, window_bounds = array<i64: 8, 32>}, {pipeline_mode = #tpu.pipeline_mode<synchronous>, transform_indices = @transform_14, window_bounds = array<i64: 1, 32>}, {transform_indices = @transform_15, window_bounds = array<i64: 1, 256, 32>}]} {
    %c0 = arith.constant 0 : index
    %c0_0 = arith.constant 0 : index
    %c0_1 = arith.constant 0 : index
    %0 = vector.load %arg1[%c0, %c0_0, %c0_1] : memref<1x256x8xf32, #tpu.memory_space<vmem>>, vector<1x256x8xf32>
    %1 = vector.shape_cast %0 : vector<1x256x8xf32> to vector<256x8xf32>
    %cst = arith.constant dense<0.000000e+00> : vector<8xf32>
    %2 = vector.multi_reduction <add>, %1, %cst [0] : vector<256x8xf32> to vector<8xf32>
    %3 = vector.shape_cast %2 : vector<8xf32> to vector<1x8xf32>
    %cst_2 = arith.constant 3.906250e-03 : f32
    %4 = vector.broadcast %cst_2 : f32 to vector<1x8xf32>
    %5 = arith.mulf %3, %4 : vector<1x8xf32>
    %6 = arith.mulf %1, %1 : vector<256x8xf32>
    %cst_3 = arith.constant dense<0.000000e+00> : vector<8xf32>
    %7 = vector.multi_reduction <add>, %6, %cst_3 [0] : vector<256x8xf32> to vector<8xf32>
    %8 = vector.shape_cast %7 : vector<8xf32> to vector<1x8xf32>
    %cst_4 = arith.constant 3.906250e-03 : f32
    %9 = vector.broadcast %cst_4 : f32 to vector<1x8xf32>
    %10 = arith.mulf %8, %9 : vector<1x8xf32>
    %c0_5 = arith.constant 0 : index
    %c0_6 = arith.constant 0 : index
    %11 = vector.load %arg6[%c0_5, %c0_6] : memref<8x8xf32, #tpu.memory_space<vmem>>, vector<8x8xf32>
    %cst_7 = arith.constant dense<0.000000e+00> : vector<1x8xf32>
    %12 = tpu.matmul %5, %11, %cst_7 {dimension_numbers = #tpu.dot_dimension_numbers<[1], [0], [0], [1], [0, 0, 1, 1], [], []>} : vector<1x8xf32>, vector<8x8xf32>, vector<1x8xf32> -> vector<1x8xf32>
    %c0_8 = arith.constant 0 : index
    %c0_9 = arith.constant 0 : index
    %13 = vector.load %arg6[%c0_8, %c0_9] : memref<8x8xf32, #tpu.memory_space<vmem>>, vector<8x8xf32>
    %cst_10 = arith.constant dense<0.000000e+00> : vector<1x8xf32>
    %14 = tpu.matmul %10, %13, %cst_10 {dimension_numbers = #tpu.dot_dimension_numbers<[1], [0], [0], [1], [0, 0, 1, 1], [], []>} : vector<1x8xf32>, vector<8x8xf32>, vector<1x8xf32> -> vector<1x8xf32>
    %15 = arith.mulf %12, %12 : vector<1x8xf32>
    %16 = arith.subf %14, %15 : vector<1x8xf32>
    %cst_11 = arith.constant 9.99999974E-6 : f32
    %17 = vector.broadcast %cst_11 : f32 to vector<1x8xf32>
    %18 = arith.addf %16, %17 : vector<1x8xf32>
    %19 = math.rsqrt %18 : vector<1x8xf32>
    %c0_12 = arith.constant 0 : index
    %c0_13 = arith.constant 0 : index
    %20 = vector.load %arg4[%c0_12, %c0_13] : memref<1x8xf32, #tpu.memory_space<vmem>>, vector<1x8xf32>
    %21 = arith.mulf %19, %20 : vector<1x8xf32>
    %c0_14 = arith.constant 0 : index
    %c0_15 = arith.constant 0 : index
    %22 = vector.load %arg5[%c0_14, %c0_15] : memref<1x8xf32, #tpu.memory_space<vmem>>, vector<1x8xf32>
    %23 = arith.mulf %12, %21 : vector<1x8xf32>
    %24 = arith.subf %22, %23 : vector<1x8xf32>
    %25 = vector.broadcast %21 : vector<1x8xf32> to vector<256x8xf32>
    %26 = arith.mulf %1, %25 : vector<256x8xf32>
    %27 = vector.broadcast %24 : vector<1x8xf32> to vector<256x8xf32>
    %28 = arith.addf %26, %27 : vector<256x8xf32>
    %cst_16 = arith.constant 0.000000e+00 : f32
    %29 = vector.broadcast %cst_16 : f32 to vector<256x8xf32>
    %30 = arith.subf %29, %28 : vector<256x8xf32>
    %31 = math.exp %30 : vector<256x8xf32>
    %cst_17 = arith.constant 1.000000e+00 : f32
    %32 = vector.broadcast %cst_17 : f32 to vector<256x8xf32>
    %33 = arith.addf %32, %31 : vector<256x8xf32>
    %34 = tpu.reciprocal %33 {approx = true} : vector<256x8xf32> -> vector<256x8xf32>
    %35 = arith.mulf %28, %34 : vector<256x8xf32>
    %cst_18 = arith.constant 0.000000e+00 : f32
    %36 = vector.broadcast %cst_18 : f32 to vector<1x24x8xf32>
    %c0_19 = arith.constant 0 : index
    %c0_20 = arith.constant 0 : index
    %c0_21 = arith.constant 0 : index
    %37 = vector.load %arg17[%c0_19, %c0_20, %c0_21] : memref<18x24x8xf32, #tpu.memory_space<vmem>>, vector<1x24x8xf32>
    tpu.vector_store %arg17[%c0_19, %c0_20, %c0_21], %36 {strides = array<i32>} : memref<18x24x8xf32, #tpu.memory_space<vmem>>, vector<1x24x8xf32>,
    %c17 = arith.constant 17 : index
    %c0_22 = arith.constant 0 : index
    %c0_23 = arith.constant 0 : index
    %38 = vector.load %arg17[%c17, %c0_22, %c0_23] : memref<18x24x8xf32, #tpu.memory_space<vmem>>, vector<1x24x8xf32>
    tpu.vector_store %arg17[%c17, %c0_22, %c0_23], %36 {strides = array<i32>} : memref<18x24x8xf32, #tpu.memory_space<vmem>>, vector<1x24x8xf32>,
    %cst_24 = arith.constant 0.000000e+00 : f32
    %39 = vector.broadcast %cst_24 : f32 to vector<18x1x8xf32>
    %c0_25 = arith.constant 0 : index
    %c0_26 = arith.constant 0 : index
    %c0_27 = arith.constant 0 : index
    %40 = vector.load %arg17[%c0_25, %c0_26, %c0_27] : memref<18x24x8xf32, #tpu.memory_space<vmem>>, vector<18x1x8xf32>
    tpu.vector_store %arg17[%c0_25, %c0_26, %c0_27], %39 {strides = array<i32>} : memref<18x24x8xf32, #tpu.memory_space<vmem>>, vector<18x1x8xf32>,
    %c0_28 = arith.constant 0 : index
    %c17_29 = arith.constant 17 : index
    %c0_30 = arith.constant 0 : index
    %41 = vector.load %arg17[%c0_28, %c17_29, %c0_30] : memref<18x24x8xf32, #tpu.memory_space<vmem>>, vector<18x1x8xf32>
    tpu.vector_store %arg17[%c0_28, %c17_29, %c0_30], %39 {strides = array<i32>} : memref<18x24x8xf32, #tpu.memory_space<vmem>>, vector<18x1x8xf32>,
    %42 = vector.shape_cast %35 : vector<256x8xf32> to vector<16x16x8xf32>
    %c1 = arith.constant 1 : index
    %c1_31 = arith.constant 1 : index
    %c0_32 = arith.constant 0 : index
    %43 = vector.load %arg17[%c1, %c1_31, %c0_32] : memref<18x24x8xf32, #tpu.memory_space<vmem>>, vector<16x16x8xf32>
    tpu.vector_store %arg17[%c1, %c1_31, %c0_32], %42 {strides = array<i32>} : memref<18x24x8xf32, #tpu.memory_space<vmem>>, vector<16x16x8xf32>,
    %c0_33 = arith.constant 0 : index
    %c0_34 = arith.constant 0 : index
    %c0_35 = arith.constant 0 : index
    %44 = vector.load %arg17[%c0_33, %c0_34, %c0_35] : memref<18x24x8xf32, #tpu.memory_space<vmem>>, vector<16x16x8xf32>
    %45 = vector.shape_cast %44 : vector<16x16x8xf32> to vector<256x8xf32>
    %46 = arith.truncf %45 : vector<256x8xf32> to vector<256x8xbf16>
    %c0_36 = arith.constant 0 : index
    %c0_37 = arith.constant 0 : index
    %c0_38 = arith.constant 0 : index
    %47 = vector.load %arg7[%c0_36, %c0_37, %c0_38] : memref<9x8x32xbf16, #tpu.memory_space<vmem>>, vector<1x8x32xbf16>
    %48 = vector.shape_cast %47 : vector<1x8x32xbf16> to vector<8x32xbf16>
    %cst_39 = arith.constant dense<0.000000e+00> : vector<256x32xf32>
    %49 = tpu.matmul %46, %48, %cst_39 {dimension_numbers = #tpu.dot_dimension_numbers<[1], [0], [0], [1], [0, 0, 1, 1], [], []>} : vector<256x8xbf16>, vector<8x32xbf16>, vector<256x32xf32> -> vector<256x32xf32>
    %c0_40 = arith.constant 0 : index
    %c0_41 = arith.constant 0 : index
    %50 = vector.load %arg19[%c0_40, %c0_41] : memref<256x32xf32, #tpu.memory_space<vmem>>, vector<256x32xf32>
    tpu.vector_store %arg19[%c0_40, %c0_41], %49 {strides = array<i32>} : memref<256x32xf32, #tpu.memory_space<vmem>>, vector<256x32xf32>,
    %c0_42 = arith.constant 0 : index
    %c1_43 = arith.constant 1 : index
    %c0_44 = arith.constant 0 : index
    %51 = vector.load %arg17[%c0_42, %c1_43, %c0_44] : memref<18x24x8xf32, #tpu.memory_space<vmem>>, vector<16x16x8xf32>
    %52 = vector.shape_cast %51 : vector<16x16x8xf32> to vector<256x8xf32>
    %53 = arith.truncf %52 : vector<256x8xf32> to vector<256x8xbf16>
    %c1_45 = arith.constant 1 : index
    %c0_46 = arith.constant 0 : index
    %c0_47 = arith.constant 0 : index
    %54 = vector.load %arg7[%c1_45, %c0_46, %c0_47] : memref<9x8x32xbf16, #tpu.memory_space<vmem>>, vector<1x8x32xbf16>
    %55 = vector.shape_cast %54 : vector<1x8x32xbf16> to vector<8x32xbf16>
    %cst_48 = arith.constant dense<0.000000e+00> : vector<256x32xf32>
    %56 = tpu.matmul %53, %55, %cst_48 {dimension_numbers = #tpu.dot_dimension_numbers<[1], [0], [0], [1], [0, 0, 1, 1], [], []>} : vector<256x8xbf16>, vector<8x32xbf16>, vector<256x32xf32> -> vector<256x32xf32>
    %c0_49 = arith.constant 0 : index
    %c0_50 = arith.constant 0 : index
    %57 = vector.load %arg19[%c0_49, %c0_50] : memref<256x32xf32, #tpu.memory_space<vmem>>, vector<256x32xf32>
    %58 = arith.addf %57, %56 : vector<256x32xf32>
    %c0_51 = arith.constant 0 : index
    %c0_52 = arith.constant 0 : index
    %59 = vector.load %arg19[%c0_51, %c0_52] : memref<256x32xf32, #tpu.memory_space<vmem>>, vector<256x32xf32>
    tpu.vector_store %arg19[%c0_51, %c0_52], %58 {strides = array<i32>} : memref<256x32xf32, #tpu.memory_space<vmem>>, vector<256x32xf32>,
    %c0_53 = arith.constant 0 : index
    %c2 = arith.constant 2 : index
    %c0_54 = arith.constant 0 : index
    %60 = vector.load %arg17[%c0_53, %c2, %c0_54] : memref<18x24x8xf32, #tpu.memory_space<vmem>>, vector<16x16x8xf32>
    %61 = vector.shape_cast %60 : vector<16x16x8xf32> to vector<256x8xf32>
    %62 = arith.truncf %61 : vector<256x8xf32> to vector<256x8xbf16>
    %c2_55 = arith.constant 2 : index
    %c0_56 = arith.constant 0 : index
    %c0_57 = arith.constant 0 : index
    %63 = vector.load %arg7[%c2_55, %c0_56, %c0_57] : memref<9x8x32xbf16, #tpu.memory_space<vmem>>, vector<1x8x32xbf16>
    %64 = vector.shape_cast %63 : vector<1x8x32xbf16> to vector<8x32xbf16>
    %cst_58 = arith.constant dense<0.000000e+00> : vector<256x32xf32>
    %65 = tpu.matmul %62, %64, %cst_58 {dimension_numbers = #tpu.dot_dimension_numbers<[1], [0], [0], [1], [0, 0, 1, 1], [], []>} : vector<256x8xbf16>, vector<8x32xbf16>, vector<256x32xf32> -> vector<256x32xf32>
    %c0_59 = arith.constant 0 : index
    %c0_60 = arith.constant 0 : index
    %66 = vector.load %arg19[%c0_59, %c0_60] : memref<256x32xf32, #tpu.memory_space<vmem>>, vector<256x32xf32>
    %67 = arith.addf %66, %65 : vector<256x32xf32>
    %c0_61 = arith.constant 0 : index
    %c0_62 = arith.constant 0 : index
    %68 = vector.load %arg19[%c0_61, %c0_62] : memref<256x32xf32, #tpu.memory_space<vmem>>, vector<256x32xf32>
    tpu.vector_store %arg19[%c0_61, %c0_62], %67 {strides = array<i32>} : memref<256x32xf32, #tpu.memory_space<vmem>>, vector<256x32xf32>,
    %c1_63 = arith.constant 1 : index
    %c0_64 = arith.constant 0 : index
    %c0_65 = arith.constant 0 : index
    %69 = vector.load %arg17[%c1_63, %c0_64, %c0_65] : memref<18x24x8xf32, #tpu.memory_space<vmem>>, vector<16x16x8xf32>
    %70 = vector.shape_cast %69 : vector<16x16x8xf32> to vector<256x8xf32>
    %71 = arith.truncf %70 : vector<256x8xf32> to vector<256x8xbf16>
    %c3 = arith.constant 3 : index
    %c0_66 = arith.constant 0 : index
    %c0_67 = arith.constant 0 : index
    %72 = vector.load %arg7[%c3, %c0_66, %c0_67] : memref<9x8x32xbf16, #tpu.memory_space<vmem>>, vector<1x8x32xbf16>
    %73 = vector.shape_cast %72 : vector<1x8x32xbf16> to vector<8x32xbf16>
    %cst_68 = arith.constant dense<0.000000e+00> : vector<256x32xf32>
    %74 = tpu.matmul %71, %73, %cst_68 {dimension_numbers = #tpu.dot_dimension_numbers<[1], [0], [0], [1], [0, 0, 1, 1], [], []>} : vector<256x8xbf16>, vector<8x32xbf16>, vector<256x32xf32> -> vector<256x32xf32>
    %c0_69 = arith.constant 0 : index
    %c0_70 = arith.constant 0 : index
    %75 = vector.load %arg19[%c0_69, %c0_70] : memref<256x32xf32, #tpu.memory_space<vmem>>, vector<256x32xf32>
    %76 = arith.addf %75, %74 : vector<256x32xf32>
    %c0_71 = arith.constant 0 : index
    %c0_72 = arith.constant 0 : index
    %77 = vector.load %arg19[%c0_71, %c0_72] : memref<256x32xf32, #tpu.memory_space<vmem>>, vector<256x32xf32>
    tpu.vector_store %arg19[%c0_71, %c0_72], %76 {strides = array<i32>} : memref<256x32xf32, #tpu.memory_space<vmem>>, vector<256x32xf32>,
    %c1_73 = arith.constant 1 : index
    %c1_74 = arith.constant 1 : index
    %c0_75 = arith.constant 0 : index
    %78 = vector.load %arg17[%c1_73, %c1_74, %c0_75] : memref<18x24x8xf32, #tpu.memory_space<vmem>>, vector<16x16x8xf32>
    %79 = vector.shape_cast %78 : vector<16x16x8xf32> to vector<256x8xf32>
    %80 = arith.truncf %79 : vector<256x8xf32> to vector<256x8xbf16>
    %c4 = arith.constant 4 : index
    %c0_76 = arith.constant 0 : index
    %c0_77 = arith.constant 0 : index
    %81 = vector.load %arg7[%c4, %c0_76, %c0_77] : memref<9x8x32xbf16, #tpu.memory_space<vmem>>, vector<1x8x32xbf16>
    %82 = vector.shape_cast %81 : vector<1x8x32xbf16> to vector<8x32xbf16>
    %cst_78 = arith.constant dense<0.000000e+00> : vector<256x32xf32>
    %83 = tpu.matmul %80, %82, %cst_78 {dimension_numbers = #tpu.dot_dimension_numbers<[1], [0], [0], [1], [0, 0, 1, 1], [], []>} : vector<256x8xbf16>, vector<8x32xbf16>, vector<256x32xf32> -> vector<256x32xf32>
    %c0_79 = arith.constant 0 : index
    %c0_80 = arith.constant 0 : index
    %84 = vector.load %arg19[%c0_79, %c0_80] : memref<256x32xf32, #tpu.memory_space<vmem>>, vector<256x32xf32>
    %85 = arith.addf %84, %83 : vector<256x32xf32>
    %c0_81 = arith.constant 0 : index
    %c0_82 = arith.constant 0 : index
    %86 = vector.load %arg19[%c0_81, %c0_82] : memref<256x32xf32, #tpu.memory_space<vmem>>, vector<256x32xf32>
    tpu.vector_store %arg19[%c0_81, %c0_82], %85 {strides = array<i32>} : memref<256x32xf32, #tpu.memory_space<vmem>>, vector<256x32xf32>,
    %c1_83 = arith.constant 1 : index
    %c2_84 = arith.constant 2 : index
    %c0_85 = arith.constant 0 : index
    %87 = vector.load %arg17[%c1_83, %c2_84, %c0_85] : memref<18x24x8xf32, #tpu.memory_space<vmem>>, vector<16x16x8xf32>
    %88 = vector.shape_cast %87 : vector<16x16x8xf32> to vector<256x8xf32>
    %89 = arith.truncf %88 : vector<256x8xf32> to vector<256x8xbf16>
    %c5 = arith.constant 5 : index
    %c0_86 = arith.constant 0 : index
    %c0_87 = arith.constant 0 : index
    %90 = vector.load %arg7[%c5, %c0_86, %c0_87] : memref<9x8x32xbf16, #tpu.memory_space<vmem>>, vector<1x8x32xbf16>
    %91 = vector.shape_cast %90 : vector<1x8x32xbf16> to vector<8x32xbf16>
    %cst_88 = arith.constant dense<0.000000e+00> : vector<256x32xf32>
    %92 = tpu.matmul %89, %91, %cst_88 {dimension_numbers = #tpu.dot_dimension_numbers<[1], [0], [0], [1], [0, 0, 1, 1], [], []>} : vector<256x8xbf16>, vector<8x32xbf16>, vector<256x32xf32> -> vector<256x32xf32>
    %c0_89 = arith.constant 0 : index
    %c0_90 = arith.constant 0 : index
    %93 = vector.load %arg19[%c0_89, %c0_90] : memref<256x32xf32, #tpu.memory_space<vmem>>, vector<256x32xf32>
    %94 = arith.addf %93, %92 : vector<256x32xf32>
    %c0_91 = arith.constant 0 : index
    %c0_92 = arith.constant 0 : index
    %95 = vector.load %arg19[%c0_91, %c0_92] : memref<256x32xf32, #tpu.memory_space<vmem>>, vector<256x32xf32>
    tpu.vector_store %arg19[%c0_91, %c0_92], %94 {strides = array<i32>} : memref<256x32xf32, #tpu.memory_space<vmem>>, vector<256x32xf32>,
    %c2_93 = arith.constant 2 : index
    %c0_94 = arith.constant 0 : index
    %c0_95 = arith.constant 0 : index
    %96 = vector.load %arg17[%c2_93, %c0_94, %c0_95] : memref<18x24x8xf32, #tpu.memory_space<vmem>>, vector<16x16x8xf32>
    %97 = vector.shape_cast %96 : vector<16x16x8xf32> to vector<256x8xf32>
    %98 = arith.truncf %97 : vector<256x8xf32> to vector<256x8xbf16>
    %c6 = arith.constant 6 : index
    %c0_96 = arith.constant 0 : index
    %c0_97 = arith.constant 0 : index
    %99 = vector.load %arg7[%c6, %c0_96, %c0_97] : memref<9x8x32xbf16, #tpu.memory_space<vmem>>, vector<1x8x32xbf16>
    %100 = vector.shape_cast %99 : vector<1x8x32xbf16> to vector<8x32xbf16>
    %cst_98 = arith.constant dense<0.000000e+00> : vector<256x32xf32>
    %101 = tpu.matmul %98, %100, %cst_98 {dimension_numbers = #tpu.dot_dimension_numbers<[1], [0], [0], [1], [0, 0, 1, 1], [], []>} : vector<256x8xbf16>, vector<8x32xbf16>, vector<256x32xf32> -> vector<256x32xf32>
    %c0_99 = arith.constant 0 : index
    %c0_100 = arith.constant 0 : index
    %102 = vector.load %arg19[%c0_99, %c0_100] : memref<256x32xf32, #tpu.memory_space<vmem>>, vector<256x32xf32>
    %103 = arith.addf %102, %101 : vector<256x32xf32>
    %c0_101 = arith.constant 0 : index
    %c0_102 = arith.constant 0 : index
    %104 = vector.load %arg19[%c0_101, %c0_102] : memref<256x32xf32, #tpu.memory_space<vmem>>, vector<256x32xf32>
    tpu.vector_store %arg19[%c0_101, %c0_102], %103 {strides = array<i32>} : memref<256x32xf32, #tpu.memory_space<vmem>>, vector<256x32xf32>,
    %c2_103 = arith.constant 2 : index
    %c1_104 = arith.constant 1 : index
    %c0_105 = arith.constant 0 : index
    %105 = vector.load %arg17[%c2_103, %c1_104, %c0_105] : memref<18x24x8xf32, #tpu.memory_space<vmem>>, vector<16x16x8xf32>
    %106 = vector.shape_cast %105 : vector<16x16x8xf32> to vector<256x8xf32>
    %107 = arith.truncf %106 : vector<256x8xf32> to vector<256x8xbf16>
    %c7 = arith.constant 7 : index
    %c0_106 = arith.constant 0 : index
    %c0_107 = arith.constant 0 : index
    %108 = vector.load %arg7[%c7, %c0_106, %c0_107] : memref<9x8x32xbf16, #tpu.memory_space<vmem>>, vector<1x8x32xbf16>
    %109 = vector.shape_cast %108 : vector<1x8x32xbf16> to vector<8x32xbf16>
    %cst_108 = arith.constant dense<0.000000e+00> : vector<256x32xf32>
    %110 = tpu.matmul %107, %109, %cst_108 {dimension_numbers = #tpu.dot_dimension_numbers<[1], [0], [0], [1], [0, 0, 1, 1], [], []>} : vector<256x8xbf16>, vector<8x32xbf16>, vector<256x32xf32> -> vector<256x32xf32>
    %c0_109 = arith.constant 0 : index
    %c0_110 = arith.constant 0 : index
    %111 = vector.load %arg19[%c0_109, %c0_110] : memref<256x32xf32, #tpu.memory_space<vmem>>, vector<256x32xf32>
    %112 = arith.addf %111, %110 : vector<256x32xf32>
    %c0_111 = arith.constant 0 : index
    %c0_112 = arith.constant 0 : index
    %113 = vector.load %arg19[%c0_111, %c0_112] : memref<256x32xf32, #tpu.memory_space<vmem>>, vector<256x32xf32>
    tpu.vector_store %arg19[%c0_111, %c0_112], %112 {strides = array<i32>} : memref<256x32xf32, #tpu.memory_space<vmem>>, vector<256x32xf32>,
    %c2_113 = arith.constant 2 : index
    %c2_114 = arith.constant 2 : index
    %c0_115 = arith.constant 0 : index
    %114 = vector.load %arg17[%c2_113, %c2_114, %c0_115] : memref<18x24x8xf32, #tpu.memory_space<vmem>>, vector<16x16x8xf32>
    %115 = vector.shape_cast %114 : vector<16x16x8xf32> to vector<256x8xf32>
    %116 = arith.truncf %115 : vector<256x8xf32> to vector<256x8xbf16>
    %c8 = arith.constant 8 : index
    %c0_116 = arith.constant 0 : index
    %c0_117 = arith.constant 0 : index
    %117 = vector.load %arg7[%c8, %c0_116, %c0_117] : memref<9x8x32xbf16, #tpu.memory_space<vmem>>, vector<1x8x32xbf16>
    %118 = vector.shape_cast %117 : vector<1x8x32xbf16> to vector<8x32xbf16>
    %cst_118 = arith.constant dense<0.000000e+00> : vector<256x32xf32>
    %119 = tpu.matmul %116, %118, %cst_118 {dimension_numbers = #tpu.dot_dimension_numbers<[1], [0], [0], [1], [0, 0, 1, 1], [], []>} : vector<256x8xbf16>, vector<8x32xbf16>, vector<256x32xf32> -> vector<256x32xf32>
    %c0_119 = arith.constant 0 : index
    %c0_120 = arith.constant 0 : index
    %120 = vector.load %arg19[%c0_119, %c0_120] : memref<256x32xf32, #tpu.memory_space<vmem>>, vector<256x32xf32>
    %121 = arith.addf %120, %119 : vector<256x32xf32>
    %c0_121 = arith.constant 0 : index
    %c0_122 = arith.constant 0 : index
    %122 = vector.load %arg19[%c0_121, %c0_122] : memref<256x32xf32, #tpu.memory_space<vmem>>, vector<256x32xf32>
    tpu.vector_store %arg19[%c0_121, %c0_122], %121 {strides = array<i32>} : memref<256x32xf32, #tpu.memory_space<vmem>>, vector<256x32xf32>,
    %c0_123 = arith.constant 0 : index
    %c0_124 = arith.constant 0 : index
    %123 = vector.load %arg19[%c0_123, %c0_124] : memref<256x32xf32, #tpu.memory_space<vmem>>, vector<256x32xf32>
    %c0_125 = arith.constant 0 : index
    %c0_126 = arith.constant 0 : index
    %124 = vector.load %arg8[%c0_125, %c0_126] : memref<1x32xf32, #tpu.memory_space<vmem>>, vector<1x32xf32>
    %125 = vector.broadcast %124 : vector<1x32xf32> to vector<256x32xf32>
    %126 = arith.addf %123, %125 : vector<256x32xf32>
    %127 = arith.truncf %1 : vector<256x8xf32> to vector<256x8xbf16>
    %c0_127 = arith.constant 0 : index
    %c0_128 = arith.constant 0 : index
    %128 = vector.load %arg14[%c0_127, %c0_128] : memref<8x32xbf16, #tpu.memory_space<vmem>>, vector<8x32xbf16>
    %cst_129 = arith.constant dense<0.000000e+00> : vector<256x32xf32>
    %129 = tpu.matmul %127, %128, %cst_129 {dimension_numbers = #tpu.dot_dimension_numbers<[1], [0], [0], [1], [0, 0, 1, 1], [], []>} : vector<256x8xbf16>, vector<8x32xbf16>, vector<256x32xf32> -> vector<256x32xf32>
    %c0_130 = arith.constant 0 : index
    %c0_131 = arith.constant 0 : index
    %130 = vector.load %arg15[%c0_130, %c0_131] : memref<1x32xf32, #tpu.memory_space<vmem>>, vector<1x32xf32>
    %131 = vector.broadcast %130 : vector<1x32xf32> to vector<256x32xf32>
    %132 = arith.addf %129, %131 : vector<256x32xf32>
    %c0_132 = arith.constant 0 : index
    %c0_133 = arith.constant 0 : index
    %c0_134 = arith.constant 0 : index
    %133 = vector.load %arg2[%c0_132, %c0_133, %c0_134] : memref<1x1x32xf32, #tpu.memory_space<vmem>>, vector<1x1x32xf32>
    %134 = vector.shape_cast %133 : vector<1x1x32xf32> to vector<1x32xf32>
    %c0_135 = arith.constant 0 : index
    %c0_136 = arith.constant 0 : index
    %c0_137 = arith.constant 0 : index
    %135 = vector.load %arg3[%c0_135, %c0_136, %c0_137] : memref<1x1x32xf32, #tpu.memory_space<vmem>>, vector<1x1x32xf32>
    %136 = vector.shape_cast %135 : vector<1x1x32xf32> to vector<1x32xf32>
    %cst_138 = arith.constant dense<0.000000e+00> : vector<32xf32>
    %137 = vector.multi_reduction <add>, %126, %cst_138 [0] : vector<256x32xf32> to vector<32xf32>
    %138 = vector.shape_cast %137 : vector<32xf32> to vector<1x32xf32>
    %cst_139 = arith.constant 3.906250e-03 : f32
    %139 = vector.broadcast %cst_139 : f32 to vector<1x32xf32>
    %140 = arith.mulf %138, %139 : vector<1x32xf32>
    %141 = arith.mulf %126, %126 : vector<256x32xf32>
    %cst_140 = arith.constant dense<0.000000e+00> : vector<32xf32>
    %142 = vector.multi_reduction <add>, %141, %cst_140 [0] : vector<256x32xf32> to vector<32xf32>
    %143 = vector.shape_cast %142 : vector<32xf32> to vector<1x32xf32>
    %cst_141 = arith.constant 3.906250e-03 : f32
    %144 = vector.broadcast %cst_141 : f32 to vector<1x32xf32>
    %145 = arith.mulf %143, %144 : vector<1x32xf32>
    %c0_142 = arith.constant 0 : index
    %c0_143 = arith.constant 0 : index
    %146 = vector.load %arg11[%c0_142, %c0_143] : memref<32x32xf32, #tpu.memory_space<vmem>>, vector<32x32xf32>
    %cst_144 = arith.constant dense<0.000000e+00> : vector<1x32xf32>
    %147 = tpu.matmul %140, %146, %cst_144 {dimension_numbers = #tpu.dot_dimension_numbers<[1], [0], [0], [1], [0, 0, 1, 1], [], []>} : vector<1x32xf32>, vector<32x32xf32>, vector<1x32xf32> -> vector<1x32xf32>
    %c0_145 = arith.constant 0 : index
    %c0_146 = arith.constant 0 : index
    %148 = vector.load %arg11[%c0_145, %c0_146] : memref<32x32xf32, #tpu.memory_space<vmem>>, vector<32x32xf32>
    %cst_147 = arith.constant dense<0.000000e+00> : vector<1x32xf32>
    %149 = tpu.matmul %145, %148, %cst_147 {dimension_numbers = #tpu.dot_dimension_numbers<[1], [0], [0], [1], [0, 0, 1, 1], [], []>} : vector<1x32xf32>, vector<32x32xf32>, vector<1x32xf32> -> vector<1x32xf32>
    %150 = arith.mulf %147, %147 : vector<1x32xf32>
    %151 = arith.subf %149, %150 : vector<1x32xf32>
    %cst_148 = arith.constant 9.99999974E-6 : f32
    %152 = vector.broadcast %cst_148 : f32 to vector<1x32xf32>
    %153 = arith.addf %151, %152 : vector<1x32xf32>
    %154 = math.rsqrt %153 : vector<1x32xf32>
    %c0_149 = arith.constant 0 : index
    %c0_150 = arith.constant 0 : index
    %155 = vector.load %arg9[%c0_149, %c0_150] : memref<1x32xf32, #tpu.memory_space<vmem>>, vector<1x32xf32>
    %156 = arith.mulf %154, %155 : vector<1x32xf32>
    %c0_151 = arith.constant 0 : index
    %c0_152 = arith.constant 0 : index
    %157 = vector.load %arg10[%c0_151, %c0_152] : memref<1x32xf32, #tpu.memory_space<vmem>>, vector<1x32xf32>
    %158 = arith.mulf %147, %156 : vector<1x32xf32>
    %159 = arith.subf %157, %158 : vector<1x32xf32>
    %160 = arith.mulf %156, %134 : vector<1x32xf32>
    %161 = arith.mulf %159, %134 : vector<1x32xf32>
    %162 = arith.addf %161, %136 : vector<1x32xf32>
    %163 = vector.broadcast %160 : vector<1x32xf32> to vector<256x32xf32>
    %164 = arith.mulf %126, %163 : vector<256x32xf32>
    %165 = vector.broadcast %162 : vector<1x32xf32> to vector<256x32xf32>
    %166 = arith.addf %164, %165 : vector<256x32xf32>
    %cst_153 = arith.constant 0.000000e+00 : f32
    %167 = vector.broadcast %cst_153 : f32 to vector<256x32xf32>
    %168 = arith.subf %167, %166 : vector<256x32xf32>
    %169 = math.exp %168 : vector<256x32xf32>
    %cst_154 = arith.constant 1.000000e+00 : f32
    %170 = vector.broadcast %cst_154 : f32 to vector<256x32xf32>
    %171 = arith.addf %170, %169 : vector<256x32xf32>
    %172 = tpu.reciprocal %171 {approx = true} : vector<256x32xf32> -> vector<256x32xf32>
    %173 = arith.mulf %166, %172 : vector<256x32xf32>
    %c0_155 = arith.constant 0 : index
    %c0_156 = arith.constant 0 : index
    %174 = vector.load %arg13[%c0_155, %c0_156] : memref<1x32xf32, #tpu.memory_space<vmem>>, vector<1x32xf32>
    %175 = vector.broadcast %174 : vector<1x32xf32> to vector<256x32xf32>
    %176 = arith.addf %132, %175 : vector<256x32xf32>
    %cst_157 = arith.constant 0.000000e+00 : f32
    %177 = vector.broadcast %cst_157 : f32 to vector<1x24x32xf32>
    %c0_158 = arith.constant 0 : index
    %c0_159 = arith.constant 0 : index
    %c0_160 = arith.constant 0 : index
    %178 = vector.load %arg18[%c0_158, %c0_159, %c0_160] : memref<18x24x32xf32, #tpu.memory_space<vmem>>, vector<1x24x32xf32>
    tpu.vector_store %arg18[%c0_158, %c0_159, %c0_160], %177 {strides = array<i32>} : memref<18x24x32xf32, #tpu.memory_space<vmem>>, vector<1x24x32xf32>,
    %c17_161 = arith.constant 17 : index
    %c0_162 = arith.constant 0 : index
    %c0_163 = arith.constant 0 : index
    %179 = vector.load %arg18[%c17_161, %c0_162, %c0_163] : memref<18x24x32xf32, #tpu.memory_space<vmem>>, vector<1x24x32xf32>
    tpu.vector_store %arg18[%c17_161, %c0_162, %c0_163], %177 {strides = array<i32>} : memref<18x24x32xf32, #tpu.memory_space<vmem>>, vector<1x24x32xf32>,
    %cst_164 = arith.constant 0.000000e+00 : f32
    %180 = vector.broadcast %cst_164 : f32 to vector<18x1x32xf32>
    %c0_165 = arith.constant 0 : index
    %c0_166 = arith.constant 0 : index
    %c0_167 = arith.constant 0 : index
    %181 = vector.load %arg18[%c0_165, %c0_166, %c0_167] : memref<18x24x32xf32, #tpu.memory_space<vmem>>, vector<18x1x32xf32>
    tpu.vector_store %arg18[%c0_165, %c0_166, %c0_167], %180 {strides = array<i32>} : memref<18x24x32xf32, #tpu.memory_space<vmem>>, vector<18x1x32xf32>,
    %c0_168 = arith.constant 0 : index
    %c17_169 = arith.constant 17 : index
    %c0_170 = arith.constant 0 : index
    %182 = vector.load %arg18[%c0_168, %c17_169, %c0_170] : memref<18x24x32xf32, #tpu.memory_space<vmem>>, vector<18x1x32xf32>
    tpu.vector_store %arg18[%c0_168, %c17_169, %c0_170], %180 {strides = array<i32>} : memref<18x24x32xf32, #tpu.memory_space<vmem>>, vector<18x1x32xf32>,
    %183 = vector.shape_cast %173 : vector<256x32xf32> to vector<16x16x32xf32>
    %c1_171 = arith.constant 1 : index
    %c1_172 = arith.constant 1 : index
    %c0_173 = arith.constant 0 : index
    %184 = vector.load %arg18[%c1_171, %c1_172, %c0_173] : memref<18x24x32xf32, #tpu.memory_space<vmem>>, vector<16x16x32xf32>
    tpu.vector_store %arg18[%c1_171, %c1_172, %c0_173], %183 {strides = array<i32>} : memref<18x24x32xf32, #tpu.memory_space<vmem>>, vector<16x16x32xf32>,
    %c0_174 = arith.constant 0 : index
    %c0_175 = arith.constant 0 : index
    %185 = vector.load %arg19[%c0_174, %c0_175] : memref<256x32xf32, #tpu.memory_space<vmem>>, vector<256x32xf32>
    tpu.vector_store %arg19[%c0_174, %c0_175], %176 {strides = array<i32>} : memref<256x32xf32, #tpu.memory_space<vmem>>, vector<256x32xf32>,
    %c0_176 = arith.constant 0 : index
    %c0_177 = arith.constant 0 : index
    %c0_178 = arith.constant 0 : index
    %186 = vector.load %arg18[%c0_176, %c0_177, %c0_178] : memref<18x24x32xf32, #tpu.memory_space<vmem>>, vector<16x16x32xf32>
    %187 = vector.shape_cast %186 : vector<16x16x32xf32> to vector<256x32xf32>
    %188 = arith.truncf %187 : vector<256x32xf32> to vector<256x32xbf16>
    %c0_179 = arith.constant 0 : index
    %c0_180 = arith.constant 0 : index
    %c0_181 = arith.constant 0 : index
    %189 = vector.load %arg12[%c0_179, %c0_180, %c0_181] : memref<9x32x32xbf16, #tpu.memory_space<vmem>>, vector<1x32x32xbf16>
    %190 = vector.shape_cast %189 : vector<1x32x32xbf16> to vector<32x32xbf16>
    %cst_182 = arith.constant dense<0.000000e+00> : vector<256x32xf32>
    %191 = tpu.matmul %188, %190, %cst_182 {dimension_numbers = #tpu.dot_dimension_numbers<[1], [0], [0], [1], [0, 0, 1, 1], [], []>} : vector<256x32xbf16>, vector<32x32xbf16>, vector<256x32xf32> -> vector<256x32xf32>
    %c0_183 = arith.constant 0 : index
    %c0_184 = arith.constant 0 : index
    %192 = vector.load %arg19[%c0_183, %c0_184] : memref<256x32xf32, #tpu.memory_space<vmem>>, vector<256x32xf32>
    %193 = arith.addf %192, %191 : vector<256x32xf32>
    %c0_185 = arith.constant 0 : index
    %c0_186 = arith.constant 0 : index
    %194 = vector.load %arg19[%c0_185, %c0_186] : memref<256x32xf32, #tpu.memory_space<vmem>>, vector<256x32xf32>
    tpu.vector_store %arg19[%c0_185, %c0_186], %193 {strides = array<i32>} : memref<256x32xf32, #tpu.memory_space<vmem>>, vector<256x32xf32>,
    %c0_187 = arith.constant 0 : index
    %c1_188 = arith.constant 1 : index
    %c0_189 = arith.constant 0 : index
    %195 = vector.load %arg18[%c0_187, %c1_188, %c0_189] : memref<18x24x32xf32, #tpu.memory_space<vmem>>, vector<16x16x32xf32>
    %196 = vector.shape_cast %195 : vector<16x16x32xf32> to vector<256x32xf32>
    %197 = arith.truncf %196 : vector<256x32xf32> to vector<256x32xbf16>
    %c1_190 = arith.constant 1 : index
    %c0_191 = arith.constant 0 : index
    %c0_192 = arith.constant 0 : index
    %198 = vector.load %arg12[%c1_190, %c0_191, %c0_192] : memref<9x32x32xbf16, #tpu.memory_space<vmem>>, vector<1x32x32xbf16>
    %199 = vector.shape_cast %198 : vector<1x32x32xbf16> to vector<32x32xbf16>
    %cst_193 = arith.constant dense<0.000000e+00> : vector<256x32xf32>
    %200 = tpu.matmul %197, %199, %cst_193 {dimension_numbers = #tpu.dot_dimension_numbers<[1], [0], [0], [1], [0, 0, 1, 1], [], []>} : vector<256x32xbf16>, vector<32x32xbf16>, vector<256x32xf32> -> vector<256x32xf32>
    %c0_194 = arith.constant 0 : index
    %c0_195 = arith.constant 0 : index
    %201 = vector.load %arg19[%c0_194, %c0_195] : memref<256x32xf32, #tpu.memory_space<vmem>>, vector<256x32xf32>
    %202 = arith.addf %201, %200 : vector<256x32xf32>
    %c0_196 = arith.constant 0 : index
    %c0_197 = arith.constant 0 : index
    %203 = vector.load %arg19[%c0_196, %c0_197] : memref<256x32xf32, #tpu.memory_space<vmem>>, vector<256x32xf32>
    tpu.vector_store %arg19[%c0_196, %c0_197], %202 {strides = array<i32>} : memref<256x32xf32, #tpu.memory_space<vmem>>, vector<256x32xf32>,
    %c0_198 = arith.constant 0 : index
    %c2_199 = arith.constant 2 : index
    %c0_200 = arith.constant 0 : index
    %204 = vector.load %arg18[%c0_198, %c2_199, %c0_200] : memref<18x24x32xf32, #tpu.memory_space<vmem>>, vector<16x16x32xf32>
    %205 = vector.shape_cast %204 : vector<16x16x32xf32> to vector<256x32xf32>
    %206 = arith.truncf %205 : vector<256x32xf32> to vector<256x32xbf16>
    %c2_201 = arith.constant 2 : index
    %c0_202 = arith.constant 0 : index
    %c0_203 = arith.constant 0 : index
    %207 = vector.load %arg12[%c2_201, %c0_202, %c0_203] : memref<9x32x32xbf16, #tpu.memory_space<vmem>>, vector<1x32x32xbf16>
    %208 = vector.shape_cast %207 : vector<1x32x32xbf16> to vector<32x32xbf16>
    %cst_204 = arith.constant dense<0.000000e+00> : vector<256x32xf32>
    %209 = tpu.matmul %206, %208, %cst_204 {dimension_numbers = #tpu.dot_dimension_numbers<[1], [0], [0], [1], [0, 0, 1, 1], [], []>} : vector<256x32xbf16>, vector<32x32xbf16>, vector<256x32xf32> -> vector<256x32xf32>
    %c0_205 = arith.constant 0 : index
    %c0_206 = arith.constant 0 : index
    %210 = vector.load %arg19[%c0_205, %c0_206] : memref<256x32xf32, #tpu.memory_space<vmem>>, vector<256x32xf32>
    %211 = arith.addf %210, %209 : vector<256x32xf32>
    %c0_207 = arith.constant 0 : index
    %c0_208 = arith.constant 0 : index
    %212 = vector.load %arg19[%c0_207, %c0_208] : memref<256x32xf32, #tpu.memory_space<vmem>>, vector<256x32xf32>
    tpu.vector_store %arg19[%c0_207, %c0_208], %211 {strides = array<i32>} : memref<256x32xf32, #tpu.memory_space<vmem>>, vector<256x32xf32>,
    %c1_209 = arith.constant 1 : index
    %c0_210 = arith.constant 0 : index
    %c0_211 = arith.constant 0 : index
    %213 = vector.load %arg18[%c1_209, %c0_210, %c0_211] : memref<18x24x32xf32, #tpu.memory_space<vmem>>, vector<16x16x32xf32>
    %214 = vector.shape_cast %213 : vector<16x16x32xf32> to vector<256x32xf32>
    %215 = arith.truncf %214 : vector<256x32xf32> to vector<256x32xbf16>
    %c3_212 = arith.constant 3 : index
    %c0_213 = arith.constant 0 : index
    %c0_214 = arith.constant 0 : index
    %216 = vector.load %arg12[%c3_212, %c0_213, %c0_214] : memref<9x32x32xbf16, #tpu.memory_space<vmem>>, vector<1x32x32xbf16>
    %217 = vector.shape_cast %216 : vector<1x32x32xbf16> to vector<32x32xbf16>
    %cst_215 = arith.constant dense<0.000000e+00> : vector<256x32xf32>
    %218 = tpu.matmul %215, %217, %cst_215 {dimension_numbers = #tpu.dot_dimension_numbers<[1], [0], [0], [1], [0, 0, 1, 1], [], []>} : vector<256x32xbf16>, vector<32x32xbf16>, vector<256x32xf32> -> vector<256x32xf32>
    %c0_216 = arith.constant 0 : index
    %c0_217 = arith.constant 0 : index
    %219 = vector.load %arg19[%c0_216, %c0_217] : memref<256x32xf32, #tpu.memory_space<vmem>>, vector<256x32xf32>
    %220 = arith.addf %219, %218 : vector<256x32xf32>
    %c0_218 = arith.constant 0 : index
    %c0_219 = arith.constant 0 : index
    %221 = vector.load %arg19[%c0_218, %c0_219] : memref<256x32xf32, #tpu.memory_space<vmem>>, vector<256x32xf32>
    tpu.vector_store %arg19[%c0_218, %c0_219], %220 {strides = array<i32>} : memref<256x32xf32, #tpu.memory_space<vmem>>, vector<256x32xf32>,
    %c1_220 = arith.constant 1 : index
    %c1_221 = arith.constant 1 : index
    %c0_222 = arith.constant 0 : index
    %222 = vector.load %arg18[%c1_220, %c1_221, %c0_222] : memref<18x24x32xf32, #tpu.memory_space<vmem>>, vector<16x16x32xf32>
    %223 = vector.shape_cast %222 : vector<16x16x32xf32> to vector<256x32xf32>
    %224 = arith.truncf %223 : vector<256x32xf32> to vector<256x32xbf16>
    %c4_223 = arith.constant 4 : index
    %c0_224 = arith.constant 0 : index
    %c0_225 = arith.constant 0 : index
    %225 = vector.load %arg12[%c4_223, %c0_224, %c0_225] : memref<9x32x32xbf16, #tpu.memory_space<vmem>>, vector<1x32x32xbf16>
    %226 = vector.shape_cast %225 : vector<1x32x32xbf16> to vector<32x32xbf16>
    %cst_226 = arith.constant dense<0.000000e+00> : vector<256x32xf32>
    %227 = tpu.matmul %224, %226, %cst_226 {dimension_numbers = #tpu.dot_dimension_numbers<[1], [0], [0], [1], [0, 0, 1, 1], [], []>} : vector<256x32xbf16>, vector<32x32xbf16>, vector<256x32xf32> -> vector<256x32xf32>
    %c0_227 = arith.constant 0 : index
    %c0_228 = arith.constant 0 : index
    %228 = vector.load %arg19[%c0_227, %c0_228] : memref<256x32xf32, #tpu.memory_space<vmem>>, vector<256x32xf32>
    %229 = arith.addf %228, %227 : vector<256x32xf32>
    %c0_229 = arith.constant 0 : index
    %c0_230 = arith.constant 0 : index
    %230 = vector.load %arg19[%c0_229, %c0_230] : memref<256x32xf32, #tpu.memory_space<vmem>>, vector<256x32xf32>
    tpu.vector_store %arg19[%c0_229, %c0_230], %229 {strides = array<i32>} : memref<256x32xf32, #tpu.memory_space<vmem>>, vector<256x32xf32>,
    %c1_231 = arith.constant 1 : index
    %c2_232 = arith.constant 2 : index
    %c0_233 = arith.constant 0 : index
    %231 = vector.load %arg18[%c1_231, %c2_232, %c0_233] : memref<18x24x32xf32, #tpu.memory_space<vmem>>, vector<16x16x32xf32>
    %232 = vector.shape_cast %231 : vector<16x16x32xf32> to vector<256x32xf32>
    %233 = arith.truncf %232 : vector<256x32xf32> to vector<256x32xbf16>
    %c5_234 = arith.constant 5 : index
    %c0_235 = arith.constant 0 : index
    %c0_236 = arith.constant 0 : index
    %234 = vector.load %arg12[%c5_234, %c0_235, %c0_236] : memref<9x32x32xbf16, #tpu.memory_space<vmem>>, vector<1x32x32xbf16>
    %235 = vector.shape_cast %234 : vector<1x32x32xbf16> to vector<32x32xbf16>
    %cst_237 = arith.constant dense<0.000000e+00> : vector<256x32xf32>
    %236 = tpu.matmul %233, %235, %cst_237 {dimension_numbers = #tpu.dot_dimension_numbers<[1], [0], [0], [1], [0, 0, 1, 1], [], []>} : vector<256x32xbf16>, vector<32x32xbf16>, vector<256x32xf32> -> vector<256x32xf32>
    %c0_238 = arith.constant 0 : index
    %c0_239 = arith.constant 0 : index
    %237 = vector.load %arg19[%c0_238, %c0_239] : memref<256x32xf32, #tpu.memory_space<vmem>>, vector<256x32xf32>
    %238 = arith.addf %237, %236 : vector<256x32xf32>
    %c0_240 = arith.constant 0 : index
    %c0_241 = arith.constant 0 : index
    %239 = vector.load %arg19[%c0_240, %c0_241] : memref<256x32xf32, #tpu.memory_space<vmem>>, vector<256x32xf32>
    tpu.vector_store %arg19[%c0_240, %c0_241], %238 {strides = array<i32>} : memref<256x32xf32, #tpu.memory_space<vmem>>, vector<256x32xf32>,
    %c2_242 = arith.constant 2 : index
    %c0_243 = arith.constant 0 : index
    %c0_244 = arith.constant 0 : index
    %240 = vector.load %arg18[%c2_242, %c0_243, %c0_244] : memref<18x24x32xf32, #tpu.memory_space<vmem>>, vector<16x16x32xf32>
    %241 = vector.shape_cast %240 : vector<16x16x32xf32> to vector<256x32xf32>
    %242 = arith.truncf %241 : vector<256x32xf32> to vector<256x32xbf16>
    %c6_245 = arith.constant 6 : index
    %c0_246 = arith.constant 0 : index
    %c0_247 = arith.constant 0 : index
    %243 = vector.load %arg12[%c6_245, %c0_246, %c0_247] : memref<9x32x32xbf16, #tpu.memory_space<vmem>>, vector<1x32x32xbf16>
    %244 = vector.shape_cast %243 : vector<1x32x32xbf16> to vector<32x32xbf16>
    %cst_248 = arith.constant dense<0.000000e+00> : vector<256x32xf32>
    %245 = tpu.matmul %242, %244, %cst_248 {dimension_numbers = #tpu.dot_dimension_numbers<[1], [0], [0], [1], [0, 0, 1, 1], [], []>} : vector<256x32xbf16>, vector<32x32xbf16>, vector<256x32xf32> -> vector<256x32xf32>
    %c0_249 = arith.constant 0 : index
    %c0_250 = arith.constant 0 : index
    %246 = vector.load %arg19[%c0_249, %c0_250] : memref<256x32xf32, #tpu.memory_space<vmem>>, vector<256x32xf32>
    %247 = arith.addf %246, %245 : vector<256x32xf32>
    %c0_251 = arith.constant 0 : index
    %c0_252 = arith.constant 0 : index
    %248 = vector.load %arg19[%c0_251, %c0_252] : memref<256x32xf32, #tpu.memory_space<vmem>>, vector<256x32xf32>
    tpu.vector_store %arg19[%c0_251, %c0_252], %247 {strides = array<i32>} : memref<256x32xf32, #tpu.memory_space<vmem>>, vector<256x32xf32>,
    %c2_253 = arith.constant 2 : index
    %c1_254 = arith.constant 1 : index
    %c0_255 = arith.constant 0 : index
    %249 = vector.load %arg18[%c2_253, %c1_254, %c0_255] : memref<18x24x32xf32, #tpu.memory_space<vmem>>, vector<16x16x32xf32>
    %250 = vector.shape_cast %249 : vector<16x16x32xf32> to vector<256x32xf32>
    %251 = arith.truncf %250 : vector<256x32xf32> to vector<256x32xbf16>
    %c7_256 = arith.constant 7 : index
    %c0_257 = arith.constant 0 : index
    %c0_258 = arith.constant 0 : index
    %252 = vector.load %arg12[%c7_256, %c0_257, %c0_258] : memref<9x32x32xbf16, #tpu.memory_space<vmem>>, vector<1x32x32xbf16>
    %253 = vector.shape_cast %252 : vector<1x32x32xbf16> to vector<32x32xbf16>
    %cst_259 = arith.constant dense<0.000000e+00> : vector<256x32xf32>
    %254 = tpu.matmul %251, %253, %cst_259 {dimension_numbers = #tpu.dot_dimension_numbers<[1], [0], [0], [1], [0, 0, 1, 1], [], []>} : vector<256x32xbf16>, vector<32x32xbf16>, vector<256x32xf32> -> vector<256x32xf32>
    %c0_260 = arith.constant 0 : index
    %c0_261 = arith.constant 0 : index
    %255 = vector.load %arg19[%c0_260, %c0_261] : memref<256x32xf32, #tpu.memory_space<vmem>>, vector<256x32xf32>
    %256 = arith.addf %255, %254 : vector<256x32xf32>
    %c0_262 = arith.constant 0 : index
    %c0_263 = arith.constant 0 : index
    %257 = vector.load %arg19[%c0_262, %c0_263] : memref<256x32xf32, #tpu.memory_space<vmem>>, vector<256x32xf32>
    tpu.vector_store %arg19[%c0_262, %c0_263], %256 {strides = array<i32>} : memref<256x32xf32, #tpu.memory_space<vmem>>, vector<256x32xf32>,
    %c2_264 = arith.constant 2 : index
    %c2_265 = arith.constant 2 : index
    %c0_266 = arith.constant 0 : index
    %258 = vector.load %arg18[%c2_264, %c2_265, %c0_266] : memref<18x24x32xf32, #tpu.memory_space<vmem>>, vector<16x16x32xf32>
    %259 = vector.shape_cast %258 : vector<16x16x32xf32> to vector<256x32xf32>
    %260 = arith.truncf %259 : vector<256x32xf32> to vector<256x32xbf16>
    %c8_267 = arith.constant 8 : index
    %c0_268 = arith.constant 0 : index
    %c0_269 = arith.constant 0 : index
    %261 = vector.load %arg12[%c8_267, %c0_268, %c0_269] : memref<9x32x32xbf16, #tpu.memory_space<vmem>>, vector<1x32x32xbf16>
    %262 = vector.shape_cast %261 : vector<1x32x32xbf16> to vector<32x32xbf16>
    %cst_270 = arith.constant dense<0.000000e+00> : vector<256x32xf32>
    %263 = tpu.matmul %260, %262, %cst_270 {dimension_numbers = #tpu.dot_dimension_numbers<[1], [0], [0], [1], [0, 0, 1, 1], [], []>} : vector<256x32xbf16>, vector<32x32xbf16>, vector<256x32xf32> -> vector<256x32xf32>
    %c0_271 = arith.constant 0 : index
    %c0_272 = arith.constant 0 : index
    %264 = vector.load %arg19[%c0_271, %c0_272] : memref<256x32xf32, #tpu.memory_space<vmem>>, vector<256x32xf32>
    %265 = arith.addf %264, %263 : vector<256x32xf32>
    %c0_273 = arith.constant 0 : index
    %c0_274 = arith.constant 0 : index
    %266 = vector.load %arg19[%c0_273, %c0_274] : memref<256x32xf32, #tpu.memory_space<vmem>>, vector<256x32xf32>
    tpu.vector_store %arg19[%c0_273, %c0_274], %265 {strides = array<i32>} : memref<256x32xf32, #tpu.memory_space<vmem>>, vector<256x32xf32>,
    %c0_275 = arith.constant 0 : index
    %c0_276 = arith.constant 0 : index
    %267 = vector.load %arg19[%c0_275, %c0_276] : memref<256x32xf32, #tpu.memory_space<vmem>>, vector<256x32xf32>
    %c0_277 = arith.constant 0 : index
    %c0_278 = arith.constant 0 : index
    %c0_279 = arith.constant 0 : index
    %268 = vector.load %arg16[%c0_277, %c0_278, %c0_279] : memref<1x256x32xf32, #tpu.memory_space<vmem>>, vector<1x256x32xf32>
    %269 = vector.shape_cast %268 : vector<1x256x32xf32> to vector<256x32xf32>
    %270 = vector.shape_cast %267 : vector<256x32xf32> to vector<1x256x32xf32>
    tpu.vector_store %arg16[%c0_277, %c0_278, %c0_279], %270 {strides = array<i32>} : memref<1x256x32xf32, #tpu.memory_space<vmem>>, vector<1x256x32xf32>,
    return
  }
  func.func @transform_0(%arg0: i32) -> (i32, i32, i32) {
    %c0_i32 = arith.constant 0 : i32
    %c0_i32_0 = arith.constant 0 : i32
    %c0_i32_1 = arith.constant 0 : i32
    return %arg0, %c0_i32, %c0_i32_0 : i32, i32, i32
  }
  func.func @transform_1(%arg0: i32) -> (i32, i32, i32) {
    %c0_i32 = arith.constant 0 : i32
    %c0_i32_0 = arith.constant 0 : i32
    %c0_i32_1 = arith.constant 0 : i32
    return %arg0, %c0_i32, %c0_i32_0 : i32, i32, i32
  }
  func.func @transform_2(%arg0: i32) -> (i32, i32, i32) {
    %c0_i32 = arith.constant 0 : i32
    %c0_i32_0 = arith.constant 0 : i32
    %c0_i32_1 = arith.constant 0 : i32
    return %arg0, %c0_i32, %c0_i32_0 : i32, i32, i32
  }
  func.func @transform_3(%arg0: i32) -> (i32, i32) {
    %c0_i32 = arith.constant 0 : i32
    %c0_i32_0 = arith.constant 0 : i32
    %c0_i32_1 = arith.constant 0 : i32
    return %c0_i32, %c0_i32_0 : i32, i32
  }
  func.func @transform_4(%arg0: i32) -> (i32, i32) {
    %c0_i32 = arith.constant 0 : i32
    %c0_i32_0 = arith.constant 0 : i32
    %c0_i32_1 = arith.constant 0 : i32
    return %c0_i32, %c0_i32_0 : i32, i32
  }
  func.func @transform_5(%arg0: i32) -> (i32, i32) {
    %c0_i32 = arith.constant 0 : i32
    %c0_i32_0 = arith.constant 0 : i32
    %c0_i32_1 = arith.constant 0 : i32
    return %c0_i32, %c0_i32_0 : i32, i32
  }
  func.func @transform_6(%arg0: i32) -> (i32, i32, i32) {
    %c0_i32 = arith.constant 0 : i32
    %c0_i32_0 = arith.constant 0 : i32
    %c0_i32_1 = arith.constant 0 : i32
    %c0_i32_2 = arith.constant 0 : i32
    return %c0_i32, %c0_i32_0, %c0_i32_1 : i32, i32, i32
  }
  func.func @transform_7(%arg0: i32) -> (i32, i32) {
    %c0_i32 = arith.constant 0 : i32
    %c0_i32_0 = arith.constant 0 : i32
    %c0_i32_1 = arith.constant 0 : i32
    return %c0_i32, %c0_i32_0 : i32, i32
  }
  func.func @transform_8(%arg0: i32) -> (i32, i32) {
    %c0_i32 = arith.constant 0 : i32
    %c0_i32_0 = arith.constant 0 : i32
    %c0_i32_1 = arith.constant 0 : i32
    return %c0_i32, %c0_i32_0 : i32, i32
  }
  func.func @transform_9(%arg0: i32) -> (i32, i32) {
    %c0_i32 = arith.constant 0 : i32
    %c0_i32_0 = arith.constant 0 : i32
    %c0_i32_1 = arith.constant 0 : i32
    return %c0_i32, %c0_i32_0 : i32, i32
  }
  func.func @transform_10(%arg0: i32) -> (i32, i32) {
    %c0_i32 = arith.constant 0 : i32
    %c0_i32_0 = arith.constant 0 : i32
    %c0_i32_1 = arith.constant 0 : i32
    return %c0_i32, %c0_i32_0 : i32, i32
  }
  func.func @transform_11(%arg0: i32) -> (i32, i32, i32) {
    %c0_i32 = arith.constant 0 : i32
    %c0_i32_0 = arith.constant 0 : i32
    %c0_i32_1 = arith.constant 0 : i32
    %c0_i32_2 = arith.constant 0 : i32
    return %c0_i32, %c0_i32_0, %c0_i32_1 : i32, i32, i32
  }
  func.func @transform_12(%arg0: i32) -> (i32, i32) {
    %c0_i32 = arith.constant 0 : i32
    %c0_i32_0 = arith.constant 0 : i32
    %c0_i32_1 = arith.constant 0 : i32
    return %c0_i32, %c0_i32_0 : i32, i32
  }
  func.func @transform_13(%arg0: i32) -> (i32, i32) {
    %c0_i32 = arith.constant 0 : i32
    %c0_i32_0 = arith.constant 0 : i32
    %c0_i32_1 = arith.constant 0 : i32
    return %c0_i32, %c0_i32_0 : i32, i32
  }
  func.func @transform_14(%arg0: i32) -> (i32, i32) {
    %c0_i32 = arith.constant 0 : i32
    %c0_i32_0 = arith.constant 0 : i32
    %c0_i32_1 = arith.constant 0 : i32
    return %c0_i32, %c0_i32_0 : i32, i32
  }
  func.func @transform_15(%arg0: i32) -> (i32, i32, i32) {
    %c0_i32 = arith.constant 0 : i32
    %c0_i32_0 = arith.constant 0 : i32
    %c0_i32_1 = arith.constant 0 : i32
    return %arg0, %c0_i32, %c0_i32_0 : i32, i32, i32
  }
}

</mosaic_0001>

<llo_original>
// kernel: tpu_custom_call.1
$region0: #{tpu_custom_call.1}
  #allocation0 [shape = 'u32[]', space=smem, size = 0x4, offset = 0x4, fixed_abs, tag = 'smem constant byte address 0x4 - core index']
  #allocation1 [shape = 'u32[144,128]{1,0:T(1,128)}', space=vmem, size = 0x12000, scoped, tag = 'internal scratch']
  #allocation2 [shape = 'f32[18,24,8]{2,1,0:T(8,128)}', space=vmem, size = 0x36000, scoped, tag = 'scratch operand']
  #allocation3 [shape = 'f32[18,24,32]{2,1,0:T(8,128)}', space=vmem, size = 0x36000, scoped, tag = 'scratch operand']
  #allocation4 [shape = 'f32[256,32]{1,0:T(8,128)}', space=vmem, size = 0x20000, scoped, tag = 'scratch operand']
  %s0 = inlined_call_operand.vmem [shape: f32[2,256,8], index: 0, kind: input, shape index: {}]
  %s1 = inlined_call_operand.vmem [shape: f32[2,1,32], index: 1, kind: input, shape index: {}]
  %s2 = inlined_call_operand.vmem [shape: f32[2,1,32], index: 2, kind: input, shape index: {}]
  %s3 = inlined_call_operand.vmem [shape: f32[1,8], index: 3, kind: input, shape index: {}]
  %s4 = inlined_call_operand.vmem [shape: f32[1,8], index: 4, kind: input, shape index: {}]
  %s5 = inlined_call_operand.vmem [shape: f32[8,8], index: 5, kind: input, shape index: {}]
  %s6 = inlined_call_operand.vmem [shape: bf16[9,8,32], index: 6, kind: input, shape index: {}]
  %s7 = inlined_call_operand.vmem [shape: f32[1,32], index: 7, kind: input, shape index: {}]
  %s8 = inlined_call_operand.vmem [shape: f32[1,32], index: 8, kind: input, shape index: {}]
  %s9 = inlined_call_operand.vmem [shape: f32[1,32], index: 9, kind: input, shape index: {}]
  %s10 = inlined_call_operand.vmem [shape: f32[32,32], index: 10, kind: input, shape index: {}]
  %s11 = inlined_call_operand.vmem [shape: bf16[9,32,32], index: 11, kind: input, shape index: {}]
  %s12 = inlined_call_operand.vmem [shape: f32[1,32], index: 12, kind: input, shape index: {}]
  %s13 = inlined_call_operand.vmem [shape: bf16[8,32], index: 13, kind: input, shape index: {}]
  %s14 = inlined_call_operand.vmem [shape: f32[1,32], index: 14, kind: input, shape index: {}]
  %s15 = inlined_call_operand.vmem [shape: f32[2,256,32], index: 15, kind: output, shape index: {}]
  %s16 = sld [smem:[#allocation0]]
  $region93: #{tpu_custom_call.1} parent=0
    _
  %s18 = ssub.s32 1, %s16
  %s19 = scalar_select 0, %s18, %s16
  loop: start=0, step=1, limit=4
  $region2: #{tpu_custom_call.1} parent=0 // loop_pre_header
    _
  $region3: #{tpu_custom_call.1} parent=0 // loop_header
    %s21 = sphi 0, %s25
    %p22 = scmp.ge.s32.totalorder %s21, 4
    %s31 = sphi 0, %s33
    %s34 = sphi 0, %s31
    %s35 = sphi 0, %s34
    %s51 = sphi 0, %s35
    %s57 = sphi 0, %s59
    %s60 = sphi 0, %s57
    %s61 = sphi 0, %s60
    %s77 = sphi 0, %s61
    %s83 = sphi 0, %s85
    %s86 = sphi 0, %s83
    %s87 = sphi 0, %s86
    %s103 = sphi 0, %s87
    %s107 = sphi 0, %s107
    %s109 = sphi 0, %s107
    %s110 = sphi 0, %s109
    %s124 = sphi 0, %s110
    %s128 = sphi 0, %s128
    %s130 = sphi 0, %s128
    %s131 = sphi 0, %s130
    %s145 = sphi 0, %s131
    %s149 = sphi 0, %s149
    %s151 = sphi 0, %s149
    %s152 = sphi 0, %s151
    %s166 = sphi 0, %s152
    %s170 = sphi 0, %s170
    %s172 = sphi 0, %s170
    %s173 = sphi 0, %s172
    %s187 = sphi 0, %s173
    %s191 = sphi 0, %s191
    %s193 = sphi 0, %s191
    %s194 = sphi 0, %s193
    %s208 = sphi 0, %s194
    %s212 = sphi 0, %s212
    %s214 = sphi 0, %s212
    %s215 = sphi 0, %s214
    %s229 = sphi 0, %s215
    %s233 = sphi 0, %s233
    %s235 = sphi 0, %s233
    %s236 = sphi 0, %s235
    %s250 = sphi 0, %s236
    %s254 = sphi 0, %s254
    %s256 = sphi 0, %s254
    %s257 = sphi 0, %s256
    %s271 = sphi 0, %s257
    %s275 = sphi 0, %s275
    %s277 = sphi 0, %s275
    %s278 = sphi 0, %s277
    %s292 = sphi 0, %s278
    %s296 = sphi 0, %s296
    %s298 = sphi 0, %s296
    %s299 = sphi 0, %s298
    %s313 = sphi 0, %s299
    %s317 = sphi 0, %s317
    %s319 = sphi 0, %s317
    %s320 = sphi 0, %s319
    %s334 = sphi 0, %s320
    %s338 = sphi 0, %s338
    %s340 = sphi 0, %s338
    %s341 = sphi 0, %s340
    %s355 = sphi 0, %s341
    %s361 = sphi 0, %s363
    %s364 = sphi 0, %s361
    %s365 = sphi 0, %s364
    %s381 = sphi 0, %s365
  $region4: #{tpu_custom_call.1} parent=0 // loop_header_branch
    %24 = sbr.rel (%p22) target = $region8
  $region5: #{tpu_custom_call.1} parent=0 // loop_body
    %s26 = ssub.s32 %s21, 1
    %s27 = ssub.s32 %s21, 2
    %s28 = sadd.s32 %s21, 1
    %s29 = ssub.s32 %s21, %s28
    %p30 = scmp.eq.s32.totalorder %s29, 0
    %s32 = sadd.s32 %s31, 1
    %s33 = scalar_select %p30, %s31, %s32
    %p36 = pneg %p30
    %p37 = scmp.eq.s32.totalorder %s21, 1
    %p38 = por %p36, %p37
    %p39 = scmp.ne.s32.totalorder %s31, %s34
    %p40 = scmp.eq.s32.totalorder %s21, 0
    %p41 = por %p39, %p40
    %p42 = scmp.ne.s32.totalorder %s31, %s34
    %p43 = scmp.eq.s32.totalorder %s26, 1
    %p44 = por %p42, %p43
    %p45 = scmp.ne.s32.totalorder %s34, %s35
    %p46 = scmp.eq.s32.totalorder %s26, 0
    %p47 = por %p45, %p46
    %p48 = scmp.ne.s32.totalorder %s34, %s35
    %p49 = scmp.eq.s32.totalorder %s27, 1
    %p50 = por %p48, %p49
    %p52 = scmp.ne.s32.totalorder %s35, %s51
    %p53 = scmp.eq.s32.totalorder %s27, 0
    %p54 = por %p52, %p53
    %s55 = ssub.s32 %s21, %s28
    %p56 = scmp.eq.s32.totalorder %s55, 0
    %s58 = sadd.s32 %s57, 1
    %s59 = scalar_select %p56, %s57, %s58
    %p62 = pneg %p56
    %p63 = scmp.eq.s32.totalorder %s21, 1
    %p64 = por %p62, %p63
    %p65 = scmp.ne.s32.totalorder %s57, %s60
    %p66 = scmp.eq.s32.totalorder %s21, 0
    %p67 = por %p65, %p66
    %p68 = scmp.ne.s32.totalorder %s57, %s60
    %p69 = scmp.eq.s32.totalorder %s26, 1
    %p70 = por %p68, %p69
    %p71 = scmp.ne.s32.totalorder %s60, %s61
    %p72 = scmp.eq.s32.totalorder %s26, 0
    %p73 = por %p71, %p72
    %p74 = scmp.ne.s32.totalorder %s60, %s61
    %p75 = scmp.eq.s32.totalorder %s27, 1
    %p76 = por %p74, %p75
    %p78 = scmp.ne.s32.totalorder %s61, %s77
    %p79 = scmp.eq.s32.totalorder %s27, 0
    %p80 = por %p78, %p79
    %s81 = ssub.s32 %s21, %s28
    %p82 = scmp.eq.s32.totalorder %s81, 0
    %s84 = sadd.s32 %s83, 1
    %s85 = scalar_select %p82, %s83, %s84
    %p88 = pneg %p82
    %p89 = scmp.eq.s32.totalorder %s21, 1
    %p90 = por %p88, %p89
    %p91 = scmp.ne.s32.totalorder %s83, %s86
    %p92 = scmp.eq.s32.totalorder %s21, 0
    %p93 = por %p91, %p92
    %p94 = scmp.ne.s32.totalorder %s83, %s86
    %p95 = scmp.eq.s32.totalorder %s26, 1
    %p96 = por %p94, %p95
    %p97 = scmp.ne.s32.totalorder %s86, %s87
    %p98 = scmp.eq.s32.totalorder %s26, 0
    %p99 = por %p97, %p98
    %p100 = scmp.ne.s32.totalorder %s86, %s87
    %p101 = scmp.eq.s32.totalorder %s27, 1
    %p102 = por %p100, %p101
    %p104 = scmp.ne.s32.totalorder %s87, %s103
    %p105 = scmp.eq.s32.totalorder %s27, 0
    %p106 = por %p104, %p105
    %s108 = sadd.s32 %s107, 1
    %p111 = scmp.eq.s32.totalorder %s21, 1
    %p112 = scmp.ne.s32.totalorder %s107, %s109
    %p113 = scmp.eq.s32.totalorder %s21, 0
    %p114 = por %p112, %p113
    %p115 = scmp.ne.s32.totalorder %s107, %s109
    %p116 = scmp.eq.s32.totalorder %s26, 1
    %p117 = por %p115, %p116
    %p118 = scmp.ne.s32.totalorder %s109, %s110
    %p119 = scmp.eq.s32.totalorder %s26, 0
    %p120 = por %p118, %p119
    %p121 = scmp.ne.s32.totalorder %s109, %s110
    %p122 = scmp.eq.s32.totalorder %s27, 1
    %p123 = por %p121, %p122
    %p125 = scmp.ne.s32.totalorder %s110, %s124
    %p126 = scmp.eq.s32.totalorder %s27, 0
    %p127 = por %p125, %p126
    %s129 = sadd.s32 %s128, 1
    %p132 = scmp.eq.s32.totalorder %s21, 1
    %p133 = scmp.ne.s32.totalorder %s128, %s130
    %p134 = scmp.eq.s32.totalorder %s21, 0
    %p135 = por %p133, %p134
    %p136 = scmp.ne.s32.totalorder %s128, %s130
    %p137 = scmp.eq.s32.totalorder %s26, 1
    %p138 = por %p136, %p137
    %p139 = scmp.ne.s32.totalorder %s130, %s131
    %p140 = scmp.eq.s32.totalorder %s26, 0
    %p141 = por %p139, %p140
    %p142 = scmp.ne.s32.totalorder %s130, %s131
    %p143 = scmp.eq.s32.totalorder %s27, 1
    %p144 = por %p142, %p143
    %p146 = scmp.ne.s32.totalorder %s131, %s145
    %p147 = scmp.eq.s32.totalorder %s27, 0
    %p148 = por %p146, %p147
    %s150 = sadd.s32 %s149, 1
    %p153 = scmp.eq.s32.totalorder %s21, 1
    %p154 = scmp.ne.s32.totalorder %s149, %s151
    %p155 = scmp.eq.s32.totalorder %s21, 0
    %p156 = por %p154, %p155
    %p157 = scmp.ne.s32.totalorder %s149, %s151
    %p158 = scmp.eq.s32.totalorder %s26, 1
    %p159 = por %p157, %p158
    %p160 = scmp.ne.s32.totalorder %s151, %s152
    %p161 = scmp.eq.s32.totalorder %s26, 0
    %p162 = por %p160, %p161
    %p163 = scmp.ne.s32.totalorder %s151, %s152
    %p164 = scmp.eq.s32.totalorder %s27, 1
    %p165 = por %p163, %p164
    %p167 = scmp.ne.s32.totalorder %s152, %s166
    %p168 = scmp.eq.s32.totalorder %s27, 0
    %p169 = por %p167, %p168
    %s171 = sadd.s32 %s170, 1
    %p174 = scmp.eq.s32.totalorder %s21, 1
    %p175 = scmp.ne.s32.totalorder %s170, %s172
    %p176 = scmp.eq.s32.totalorder %s21, 0
    %p177 = por %p175, %p176
    %p178 = scmp.ne.s32.totalorder %s170, %s172
    %p179 = scmp.eq.s32.totalorder %s26, 1
    %p180 = por %p178, %p179
    %p181 = scmp.ne.s32.totalorder %s172, %s173
    %p182 = scmp.eq.s32.totalorder %s26, 0
    %p183 = por %p181, %p182
    %p184 = scmp.ne.s32.totalorder %s172, %s173
    %p185 = scmp.eq.s32.totalorder %s27, 1
    %p186 = por %p184, %p185
    %p188 = scmp.ne.s32.totalorder %s173, %s187
    %p189 = scmp.eq.s32.totalorder %s27, 0
    %p190 = por %p188, %p189
    %s192 = sadd.s32 %s191, 1
    %p195 = scmp.eq.s32.totalorder %s21, 1
    %p196 = scmp.ne.s32.totalorder %s191, %s193
    %p197 = scmp.eq.s32.totalorder %s21, 0
    %p198 = por %p196, %p197
    %p199 = scmp.ne.s32.totalorder %s191, %s193
    %p200 = scmp.eq.s32.totalorder %s26, 1
    %p201 = por %p199, %p200
    %p202 = scmp.ne.s32.totalorder %s193, %s194
    %p203 = scmp.eq.s32.totalorder %s26, 0
    %p204 = por %p202, %p203
    %p205 = scmp.ne.s32.totalorder %s193, %s194
    %p206 = scmp.eq.s32.totalorder %s27, 1
    %p207 = por %p205, %p206
    %p209 = scmp.ne.s32.totalorder %s194, %s208
    %p210 = scmp.eq.s32.totalorder %s27, 0
    %p211 = por %p209, %p210
    %s213 = sadd.s32 %s212, 1
    %p216 = scmp.eq.s32.totalorder %s21, 1
    %p217 = scmp.ne.s32.totalorder %s212, %s214
    %p218 = scmp.eq.s32.totalorder %s21, 0
    %p219 = por %p217, %p218
    %p220 = scmp.ne.s32.totalorder %s212, %s214
    %p221 = scmp.eq.s32.totalorder %s26, 1
    %p222 = por %p220, %p221
    %p223 = scmp.ne.s32.totalorder %s214, %s215
    %p224 = scmp.eq.s32.totalorder %s26, 0
    %p225 = por %p223, %p224
    %p226 = scmp.ne.s32.totalorder %s214, %s215
    %p227 = scmp.eq.s32.totalorder %s27, 1
    %p228 = por %p226, %p227
    %p230 = scmp.ne.s32.totalorder %s215, %s229
    %p231 = scmp.eq.s32.totalorder %s27, 0
    %p232 = por %p230, %p231
    %s234 = sadd.s32 %s233, 1
    %p237 = scmp.eq.s32.totalorder %s21, 1
    %p238 = scmp.ne.s32.totalorder %s233, %s235
    %p239 = scmp.eq.s32.totalorder %s21, 0
    %p240 = por %p238, %p239
    %p241 = scmp.ne.s32.totalorder %s233, %s235
    %p242 = scmp.eq.s32.totalorder %s26, 1
    %p243 = por %p241, %p242
    %p244 = scmp.ne.s32.totalorder %s235, %s236
    %p245 = scmp.eq.s32.totalorder %s26, 0
    %p246 = por %p244, %p245
    %p247 = scmp.ne.s32.totalorder %s235, %s236
    %p248 = scmp.eq.s32.totalorder %s27, 1
    %p249 = por %p247, %p248
    %p251 = scmp.ne.s32.totalorder %s236, %s250
    %p252 = scmp.eq.s32.totalorder %s27, 0
    %p253 = por %p251, %p252
    %s255 = sadd.s32 %s254, 1
    %p258 = scmp.eq.s32.totalorder %s21, 1
    %p259 = scmp.ne.s32.totalorder %s254, %s256
    %p260 = scmp.eq.s32.totalorder %s21, 0
    %p261 = por %p259, %p260
    %p262 = scmp.ne.s32.totalorder %s254, %s256
    %p263 = scmp.eq.s32.totalorder %s26, 1
    %p264 = por %p262, %p263
    %p265 = scmp.ne.s32.totalorder %s256, %s257
    %p266 = scmp.eq.s32.totalorder %s26, 0
    %p267 = por %p265, %p266
    %p268 = scmp.ne.s32.totalorder %s256, %s257
    %p269 = scmp.eq.s32.totalorder %s27, 1
    %p270 = por %p268, %p269
    %p272 = scmp.ne.s32.totalorder %s257, %s271
    %p273 = scmp.eq.s32.totalorder %s27, 0
    %p274 = por %p272, %p273
    %s276 = sadd.s32 %s275, 1
    %p279 = scmp.eq.s32.totalorder %s21, 1
    %p280 = scmp.ne.s32.totalorder %s275, %s277
    %p281 = scmp.eq.s32.totalorder %s21, 0
    %p282 = por %p280, %p281
    %p283 = scmp.ne.s32.totalorder %s275, %s277
    %p284 = scmp.eq.s32.totalorder %s26, 1
    %p285 = por %p283, %p284
    %p286 = scmp.ne.s32.totalorder %s277, %s278
    %p287 = scmp.eq.s32.totalorder %s26, 0
    %p288 = por %p286, %p287
    %p289 = scmp.ne.s32.totalorder %s277, %s278
    %p290 = scmp.eq.s32.totalorder %s27, 1
    %p291 = por %p289, %p290
    %p293 = scmp.ne.s32.totalorder %s278, %s292
    %p294 = scmp.eq.s32.totalorder %s27, 0
    %p295 = por %p293, %p294
    %s297 = sadd.s32 %s296, 1
    %p300 = scmp.eq.s32.totalorder %s21, 1
    %p301 = scmp.ne.s32.totalorder %s296, %s298
    %p302 = scmp.eq.s32.totalorder %s21, 0
    %p303 = por %p301, %p302
    %p304 = scmp.ne.s32.totalorder %s296, %s298
    %p305 = scmp.eq.s32.totalorder %s26, 1
    %p306 = por %p304, %p305
    %p307 = scmp.ne.s32.totalorder %s298, %s299
    %p308 = scmp.eq.s32.totalorder %s26, 0
    %p309 = por %p307, %p308
    %p310 = scmp.ne.s32.totalorder %s298, %s299
    %p311 = scmp.eq.s32.totalorder %s27, 1
    %p312 = por %p310, %p311
    %p314 = scmp.ne.s32.totalorder %s299, %s313
    %p315 = scmp.eq.s32.totalorder %s27, 0
    %p316 = por %p314, %p315
    %s318 = sadd.s32 %s317, 1
    %p321 = scmp.eq.s32.totalorder %s21, 1
    %p322 = scmp.ne.s32.totalorder %s317, %s319
    %p323 = scmp.eq.s32.totalorder %s21, 0
    %p324 = por %p322, %p323
    %p325 = scmp.ne.s32.totalorder %s317, %s319
    %p326 = scmp.eq.s32.totalorder %s26, 1
    %p327 = por %p325, %p326
    %p328 = scmp.ne.s32.totalorder %s319, %s320
    %p329 = scmp.eq.s32.totalorder %s26, 0
    %p330 = por %p328, %p329
    %p331 = scmp.ne.s32.totalorder %s319, %s320
    %p332 = scmp.eq.s32.totalorder %s27, 1
    %p333 = por %p331, %p332
    %p335 = scmp.ne.s32.totalorder %s320, %s334
    %p336 = scmp.eq.s32.totalorder %s27, 0
    %p337 = por %p335, %p336
    %s339 = sadd.s32 %s338, 1
    %p342 = scmp.eq.s32.totalorder %s21, 1
    %p343 = scmp.ne.s32.totalorder %s338, %s340
    %p344 = scmp.eq.s32.totalorder %s21, 0
    %p345 = por %p343, %p344
    %p346 = scmp.ne.s32.totalorder %s338, %s340
    %p347 = scmp.eq.s32.totalorder %s26, 1
    %p348 = por %p346, %p347
    %p349 = scmp.ne.s32.totalorder %s340, %s341
    %p350 = scmp.eq.s32.totalorder %s26, 0
    %p351 = por %p349, %p350
    %p352 = scmp.ne.s32.totalorder %s340, %s341
    %p353 = scmp.eq.s32.totalorder %s27, 1
    %p354 = por %p352, %p353
    %p356 = scmp.ne.s32.totalorder %s341, %s355
    %p357 = scmp.eq.s32.totalorder %s27, 0
    %p358 = por %p356, %p357
    %s359 = ssub.s32 %s21, %s28
    %p360 = scmp.eq.s32.totalorder %s359, 0
    %s362 = sadd.s32 %s361, 1
    %s363 = scalar_select %p360, %s361, %s362
    %p366 = pneg %p360
    %p367 = scmp.eq.s32.totalorder %s21, 1
    %p368 = por %p366, %p367
    %p369 = scmp.ne.s32.totalorder %s361, %s364
    %p370 = scmp.eq.s32.totalorder %s21, 0
    %p371 = por %p369, %p370
    %p372 = scmp.ne.s32.totalorder %s361, %s364
    %p373 = scmp.eq.s32.totalorder %s26, 1
    %p374 = por %p372, %p373
    %p375 = scmp.ne.s32.totalorder %s364, %s365
    %p376 = scmp.eq.s32.totalorder %s26, 0
    %p377 = por %p375, %p376
    %p378 = scmp.ne.s32.totalorder %s364, %s365
    %p379 = scmp.eq.s32.totalorder %s27, 1
    %p380 = por %p378, %p379
    %p382 = scmp.ne.s32.totalorder %s365, %s381
    %p383 = scmp.eq.s32.totalorder %s27, 0
    %p384 = por %p382, %p383
    %p385 = scmp.le.s32.totalorder 1, %s21
    %p386 = scmp.lt.s32.totalorder %s21, 3
    %p387 = pnand %p385, %p386
    %p388 = pneg %p387
    // Predicated region
    $region9: #{tpu_custom_call.1} parent=5 // pred_check
      _
    $region10: #{tpu_custom_call.1} parent=5 // pred_check_branch
      %390 = sbr.rel (%p387) target = $region12
    $region11: #{tpu_custom_call.1} parent=5 // pred_region
      %s391 = ssub.s32 %s21, 1
      // Predicated region
      $region13: #{tpu_custom_call.1} parent=11 // pred_check
        %p392 = pneg %p120
      $region14: #{tpu_custom_call.1} parent=11 // pred_check_branch
        %394 = sbr.rel (%p392) target = $region16
      $region15: #{tpu_custom_call.1} parent=11 // pred_region
        _
      $region16: #{tpu_custom_call.1} parent=11 // pred_fallthru
        _
      // Predicated region
      $region17: #{tpu_custom_call.1} parent=11 // pred_check
        %p395 = pneg %p141
      $region18: #{tpu_custom_call.1} parent=11 // pred_check_branch
        %397 = sbr.rel (%p395) target = $region20
      $region19: #{tpu_custom_call.1} parent=11 // pred_region
        _
      $region20: #{tpu_custom_call.1} parent=11 // pred_fallthru
        _
      // Predicated region
      $region21: #{tpu_custom_call.1} parent=11 // pred_check
        %p398 = pneg %p162
      $region22: #{tpu_custom_call.1} parent=11 // pred_check_branch
        %400 = sbr.rel (%p398) target = $region24
      $region23: #{tpu_custom_call.1} parent=11 // pred_region
        _
      $region24: #{tpu_custom_call.1} parent=11 // pred_fallthru
        _
      // Predicated region
      $region25: #{tpu_custom_call.1} parent=11 // pred_check
        %p401 = pneg %p183
      $region26: #{tpu_custom_call.1} parent=11 // pred_check_branch
        %403 = sbr.rel (%p401) target = $region28
      $region27: #{tpu_custom_call.1} parent=11 // pred_region
        _
      $region28: #{tpu_custom_call.1} parent=11 // pred_fallthru
        _
      // Predicated region
      $region29: #{tpu_custom_call.1} parent=11 // pred_check
        %p404 = pneg %p204
      $region30: #{tpu_custom_call.1} parent=11 // pred_check_branch
        %406 = sbr.rel (%p404) target = $region32
      $region31: #{tpu_custom_call.1} parent=11 // pred_region
        _
      $region32: #{tpu_custom_call.1} parent=11 // pred_fallthru
        _
      // Predicated region
      $region33: #{tpu_custom_call.1} parent=11 // pred_check
        %p407 = pneg %p225
      $region34: #{tpu_custom_call.1} parent=11 // pred_check_branch
        %409 = sbr.rel (%p407) target = $region36
      $region35: #{tpu_custom_call.1} parent=11 // pred_region
        _
      $region36: #{tpu_custom_call.1} parent=11 // pred_fallthru
        _
      // Predicated region
      $region37: #{tpu_custom_call.1} parent=11 // pred_check
        %p410 = pneg %p246
      $region38: #{tpu_custom_call.1} parent=11 // pred_check_branch
        %412 = sbr.rel (%p410) target = $region40
      $region39: #{tpu_custom_call.1} parent=11 // pred_region
        _
      $region40: #{tpu_custom_call.1} parent=11 // pred_fallthru
        _
      // Predicated region
      $region41: #{tpu_custom_call.1} parent=11 // pred_check
        %p413 = pneg %p267
      $region42: #{tpu_custom_call.1} parent=11 // pred_check_branch
        %415 = sbr.rel (%p413) target = $region44
      $region43: #{tpu_custom_call.1} parent=11 // pred_region
        _
      $region44: #{tpu_custom_call.1} parent=11 // pred_fallthru
        _
      // Predicated region
      $region45: #{tpu_custom_call.1} parent=11 // pred_check
        %p416 = pneg %p288
      $region46: #{tpu_custom_call.1} parent=11 // pred_check_branch
        %418 = sbr.rel (%p416) target = $region48
      $region47: #{tpu_custom_call.1} parent=11 // pred_region
        _
      $region48: #{tpu_custom_call.1} parent=11 // pred_fallthru
        _
      // Predicated region
      $region49: #{tpu_custom_call.1} parent=11 // pred_check
        %p419 = pneg %p309
      $region50: #{tpu_custom_call.1} parent=11 // pred_check_branch
        %421 = sbr.rel (%p419) target = $region52
      $region51: #{tpu_custom_call.1} parent=11 // pred_region
        _
      $region52: #{tpu_custom_call.1} parent=11 // pred_fallthru
        _
      // Predicated region
      $region53: #{tpu_custom_call.1} parent=11 // pred_check
        %p422 = pneg %p330
      $region54: #{tpu_custom_call.1} parent=11 // pred_check_branch
        %424 = sbr.rel (%p422) target = $region56
      $region55: #{tpu_custom_call.1} parent=11 // pred_region
        _
      $region56: #{tpu_custom_call.1} parent=11 // pred_fallthru
        _
      // Predicated region
      $region57: #{tpu_custom_call.1} parent=11 // pred_check
        %p425 = pneg %p351
      $region58: #{tpu_custom_call.1} parent=11 // pred_check_branch
        %427 = sbr.rel (%p425) target = $region60
      $region59: #{tpu_custom_call.1} parent=11 // pred_region
        _
      $region60: #{tpu_custom_call.1} parent=11 // pred_fallthru
        _
    $region12: #{tpu_custom_call.1} parent=5 // pred_fallthru
      _
    %p428 = scmp.lt.s32.totalorder %s21, 2
    // Predicated region
    $region61: #{tpu_custom_call.1} parent=5 // pred_check
      %p429 = pneg %p428
    $region62: #{tpu_custom_call.1} parent=5 // pred_check_branch
      %431 = sbr.rel (%p429) target = $region64
    $region63: #{tpu_custom_call.1} parent=5 // pred_region
      // Predicated region
      $region65: #{tpu_custom_call.1} parent=63 // pred_check
        %p432 = pneg %p41
      $region66: #{tpu_custom_call.1} parent=63 // pred_check_branch
        %434 = sbr.rel (%p432) target = $region68
      $region67: #{tpu_custom_call.1} parent=63 // pred_region
        %p435 = scmp.lt.s32.totalorder %s21, 1
        %s436 = scalar_select %p435, %s21, 1
        %s437 = smul.addr %s436, 32
        %s438 = smul.addr %s437, 8
        %s439 = scalar_lea.vmem %s0, %s438
      $region68: #{tpu_custom_call.1} parent=63 // pred_fallthru
        _
      // Predicated region
      $region69: #{tpu_custom_call.1} parent=63 // pred_check
        %p440 = pneg %p67
      $region70: #{tpu_custom_call.1} parent=63 // pred_check_branch
        %442 = sbr.rel (%p440) target = $region72
      $region71: #{tpu_custom_call.1} parent=63 // pred_region
        %p443 = scmp.lt.s32.totalorder %s21, 1
        %s444 = scalar_select %p443, %s21, 1
        %s445 = scalar_lea.vmem %s1, %s444
      $region72: #{tpu_custom_call.1} parent=63 // pred_fallthru
        _
      // Predicated region
      $region73: #{tpu_custom_call.1} parent=63 // pred_check
        %p446 = pneg %p93
      $region74: #{tpu_custom_call.1} parent=63 // pred_check_branch
        %448 = sbr.rel (%p446) target = $region76
      $region75: #{tpu_custom_call.1} parent=63 // pred_region
        %p449 = scmp.lt.s32.totalorder %s21, 1
        %s450 = scalar_select %p449, %s21, 1
        %s451 = scalar_lea.vmem %s2, %s450
      $region76: #{tpu_custom_call.1} parent=63 // pred_fallthru
        _
    $region64: #{tpu_custom_call.1} parent=5 // pred_fallthru
      _
    %p452 = scmp.le.s32.totalorder 1, %s21
    %p453 = scmp.lt.s32.totalorder %s21, 3
    %p454 = pnand %p452, %p453
    %p455 = pneg %p454
    // Predicated region
    $region77: #{tpu_custom_call.1} parent=5 // pred_check
      _
    $region78: #{tpu_custom_call.1} parent=5 // pred_check_branch
      %457 = sbr.rel (%p454) target = $region80
    $region79: #{tpu_custom_call.1} parent=5 // pred_region
      %s458 = ssub.s32 %s21, 1
      %p459 = scmp.lt.s32.totalorder %s26, 1
      %s460 = scalar_select %p459, %s26, 1
      %s461 = smul.addr %s460, 32
      %s462 = smul.addr %s461, 8
      %s463 = scalar_lea.vmem %s0, %s462
      %p464 = pneg %p47
      %p465 = pneg %p44
      %p466 = scmp.lt.s32.totalorder %s26, 1
      %s467 = scalar_select %p466, %s26, 1
      %s468 = scalar_lea.vmem %s1, %s467
      %p469 = pneg %p73
      %p470 = pneg %p70
      %p471 = scmp.lt.s32.totalorder %s26, 1
      %s472 = scalar_select %p471, %s26, 1
      %s473 = scalar_lea.vmem %s2, %s472
      %p474 = pneg %p99
      %p475 = pneg %p96
      %p476 = pneg %p120
      %p477 = pneg %p117
      %p478 = pneg %p141
      %p479 = pneg %p138
      %p480 = pneg %p162
      %p481 = pneg %p159
      %p482 = pneg %p183
      %p483 = pneg %p180
      %p484 = pneg %p204
      %p485 = pneg %p201
      %p486 = pneg %p225
      %p487 = pneg %p222
      %p488 = pneg %p246
      %p489 = pneg %p243
      %p490 = pneg %p267
      %p491 = pneg %p264
      %p492 = pneg %p288
      %p493 = pneg %p285
      %p494 = pneg %p309
      %p495 = pneg %p306
      %p496 = pneg %p330
      %p497 = pneg %p327
      %p498 = pneg %p351
      %p499 = pneg %p348
      %p500 = pneg %p377
      %p501 = pneg %p374
      %p502 = scmp.lt.s32.totalorder %s26, 1
      %s503 = scalar_select %p502, %s26, 1
      %s504 = smul.addr %s503, 32
      %s505 = smul.addr %s504, 8
      %s506 = scalar_lea.vmem %s15, %s505
      %p507 = scmp.lt.s32.totalorder %s26, 1
      %s508 = scalar_select %p507, %s26, 1
      %s509 = smul.addr %s508, 32
      %s510 = smul.addr %s509, 8
      %s511 = scalar_lea.vmem %s0, %s510
      %p512 = scmp.lt.s32.totalorder %s26, 1
      %s513 = scalar_select %p512, %s26, 1
      %s514 = scalar_lea.vmem %s1, %s513
      %p515 = scmp.lt.s32.totalorder %s26, 1
      %s516 = scalar_select %p515, %s26, 1
      %s517 = scalar_lea.vmem %s2, %s516
      %p518 = scmp.lt.s32.totalorder %s26, 1
      %s519 = scalar_select %p518, %s26, 1
      %s520 = smul.addr %s519, 32
      %s521 = smul.addr %s520, 8
      %s522 = scalar_lea.vmem %s15, %s521
      %v524 = vld [vmem:[%s511] sm:$0xff]
      %v525 = vld [vmem:[%s511 + $0x8] sm:$0xff]
      %v526 = vld [vmem:[%s511 + $0x10] sm:$0xff]
      %v527 = vld [vmem:[%s511 + $0x18] sm:$0xff]
      %v528 = vld [vmem:[%s511 + $0x20] sm:$0xff]
      %v529 = vld [vmem:[%s511 + $0x28] sm:$0xff]
      %v530 = vld [vmem:[%s511 + $0x30] sm:$0xff]
      %v531 = vld [vmem:[%s511 + $0x38] sm:$0xff]
      %v532 = vld [vmem:[%s511 + $0x40] sm:$0xff]
      %v533 = vld [vmem:[%s511 + $0x48] sm:$0xff]
      %v534 = vld [vmem:[%s511 + $0x50] sm:$0xff]
      %v535 = vld [vmem:[%s511 + $0x58] sm:$0xff]
      %v536 = vld [vmem:[%s511 + $0x60] sm:$0xff]
      %v537 = vld [vmem:[%s511 + $0x68] sm:$0xff]
      %v538 = vld [vmem:[%s511 + $0x70] sm:$0xff]
      %v539 = vld [vmem:[%s511 + $0x78] sm:$0xff]
      %v540 = vld [vmem:[%s511 + $0x80] sm:$0xff]
      %v541 = vld [vmem:[%s511 + $0x88] sm:$0xff]
      %v542 = vld [vmem:[%s511 + $0x90] sm:$0xff]
      %v543 = vld [vmem:[%s511 + $0x98] sm:$0xff]
      %v544 = vld [vmem:[%s511 + $0xa0] sm:$0xff]
      %v545 = vld [vmem:[%s511 + $0xa8] sm:$0xff]
      %v546 = vld [vmem:[%s511 + $0xb0] sm:$0xff]
      %v547 = vld [vmem:[%s511 + $0xb8] sm:$0xff]
      %v548 = vld [vmem:[%s511 + $0xc0] sm:$0xff]
      %v549 = vld [vmem:[%s511 + $0xc8] sm:$0xff]
      %v550 = vld [vmem:[%s511 + $0xd0] sm:$0xff]
      %v551 = vld [vmem:[%s511 + $0xd8] sm:$0xff]
      %v552 = vld [vmem:[%s511 + $0xe0] sm:$0xff]
      %v553 = vld [vmem:[%s511 + $0xe8] sm:$0xff]
      %v554 = vld [vmem:[%s511 + $0xf0] sm:$0xff]
      %v555 = vld [vmem:[%s511 + $0xf8] sm:$0xff]
      %vm556 = vcmask 64512
      %v557 = vsel %vm556, %v524, 0.0
      %v558 = vsel %vm556, %v525, 0.0
      %v559 = vadd.f32 %v557, %v558
      %v560 = vsel %vm556, %v526, 0.0
      %v561 = vadd.f32 %v559, %v560
      %v562 = vsel %vm556, %v527, 0.0
      %v563 = vadd.f32 %v561, %v562
      %v564 = vsel %vm556, %v528, 0.0
      %v565 = vadd.f32 %v563, %v564
      %v566 = vsel %vm556, %v529, 0.0
      %v567 = vadd.f32 %v565, %v566
      %v568 = vsel %vm556, %v530, 0.0
      %v569 = vadd.f32 %v567, %v568
      %v570 = vsel %vm556, %v531, 0.0
      %v571 = vadd.f32 %v569, %v570
      %v572 = vsel %vm556, %v532, 0.0
      %v573 = vadd.f32 %v571, %v572
      %v574 = vsel %vm556, %v533, 0.0
      %v575 = vadd.f32 %v573, %v574
      %v576 = vsel %vm556, %v534, 0.0
      %v577 = vadd.f32 %v575, %v576
      %v578 = vsel %vm556, %v535, 0.0
      %v579 = vadd.f32 %v577, %v578
      %v580 = vsel %vm556, %v536, 0.0
      %v581 = vadd.f32 %v579, %v580
      %v582 = vsel %vm556, %v537, 0.0
      %v583 = vadd.f32 %v581, %v582
      %v584 = vsel %vm556, %v538, 0.0
      %v585 = vadd.f32 %v583, %v584
      %v586 = vsel %vm556, %v539, 0.0
      %v587 = vadd.f32 %v585, %v586
      %v588 = vsel %vm556, %v540, 0.0
      %v589 = vadd.f32 %v587, %v588
      %v590 = vsel %vm556, %v541, 0.0
      %v591 = vadd.f32 %v589, %v590
      %v592 = vsel %vm556, %v542, 0.0
      %v593 = vadd.f32 %v591, %v592
      %v594 = vsel %vm556, %v543, 0.0
      %v595 = vadd.f32 %v593, %v594
      %v596 = vsel %vm556, %v544, 0.0
      %v597 = vadd.f32 %v595, %v596
      %v598 = vsel %vm556, %v545, 0.0
      %v599 = vadd.f32 %v597, %v598
      %v600 = vsel %vm556, %v546, 0.0
      %v601 = vadd.f32 %v599, %v600
      %v602 = vsel %vm556, %v547, 0.0
      %v603 = vadd.f32 %v601, %v602
      %v604 = vsel %vm556, %v548, 0.0
      %v605 = vadd.f32 %v603, %v604
      %v606 = vsel %vm556, %v549, 0.0
      %v607 = vadd.f32 %v605, %v606
      %v608 = vsel %vm556, %v550, 0.0
      %v609 = vadd.f32 %v607, %v608
      %v610 = vsel %vm556, %v551, 0.0
      %v611 = vadd.f32 %v609, %v610
      %v612 = vsel %vm556, %v552, 0.0
      %v613 = vadd.f32 %v611, %v612
      %v614 = vsel %vm556, %v553, 0.0
      %v615 = vadd.f32 %v613, %v614
      %v616 = vsel %vm556, %v554, 0.0
      %v617 = vadd.f32 %v615, %v616
      %v618 = vsel %vm556, %v555, 0.0
      %v619 = vadd.f32 %v617, %v618
      %v620 = vrot.slane %v619, 4
      %v621 = vadd.f32 %v619, %v620
      %v622 = vrot.slane %v621, 2
      %v623 = vadd.f32 %v621, %v622
      %v624 = vrot.slane %v623, 1
      %v625 = vadd.f32 %v623, %v624
      %v626 = vmul.f32 %v625, 0.00390625
      %v627 = vmul.f32 %v524, %v524
      %v628 = vmul.f32 %v525, %v525
      %v629 = vmul.f32 %v526, %v526
      %v630 = vmul.f32 %v527, %v527
      %v631 = vmul.f32 %v528, %v528
      %v632 = vmul.f32 %v529, %v529
      %v633 = vmul.f32 %v530, %v530
      %v634 = vmul.f32 %v531, %v531
      %v635 = vmul.f32 %v532, %v532
      %v636 = vmul.f32 %v533, %v533
      %v637 = vmul.f32 %v534, %v534
      %v638 = vmul.f32 %v535, %v535
      %v639 = vmul.f32 %v536, %v536
      %v640 = vmul.f32 %v537, %v537
      %v641 = vmul.f32 %v538, %v538
      %v642 = vmul.f32 %v539, %v539
      %v643 = vmul.f32 %v540, %v540
      %v644 = vmul.f32 %v541, %v541
      %v645 = vmul.f32 %v542, %v542
      %v646 = vmul.f32 %v543, %v543
      %v647 = vmul.f32 %v544, %v544
      %v648 = vmul.f32 %v545, %v545
      %v649 = vmul.f32 %v546, %v546
      %v650 = vmul.f32 %v547, %v547
      %v651 = vmul.f32 %v548, %v548
      %v652 = vmul.f32 %v549, %v549
      %v653 = vmul.f32 %v550, %v550
      %v654 = vmul.f32 %v551, %v551
      %v655 = vmul.f32 %v552, %v552
      %v656 = vmul.f32 %v553, %v553
      %v657 = vmul.f32 %v554, %v554
      %v658 = vmul.f32 %v555, %v555
      %v659 = vsel %vm556, %v627, 0.0
      %v660 = vsel %vm556, %v628, 0.0
      %v661 = vadd.f32 %v659, %v660
      %v662 = vsel %vm556, %v629, 0.0
      %v663 = vadd.f32 %v661, %v662
      %v664 = vsel %vm556, %v630, 0.0
      %v665 = vadd.f32 %v663, %v664
      %v666 = vsel %vm556, %v631, 0.0
      %v667 = vadd.f32 %v665, %v666
      %v668 = vsel %vm556, %v632, 0.0
      %v669 = vadd.f32 %v667, %v668
      %v670 = vsel %vm556, %v633, 0.0
      %v671 = vadd.f32 %v669, %v670
      %v672 = vsel %vm556, %v634, 0.0
      %v673 = vadd.f32 %v671, %v672
      %v674 = vsel %vm556, %v635, 0.0
      %v675 = vadd.f32 %v673, %v674
      %v676 = vsel %vm556, %v636, 0.0
      %v677 = vadd.f32 %v675, %v676
      %v678 = vsel %vm556, %v637, 0.0
      %v679 = vadd.f32 %v677, %v678
      %v680 = vsel %vm556, %v638, 0.0
      %v681 = vadd.f32 %v679, %v680
      %v682 = vsel %vm556, %v639, 0.0
      %v683 = vadd.f32 %v681, %v682
      %v684 = vsel %vm556, %v640, 0.0
      %v685 = vadd.f32 %v683, %v684
      %v686 = vsel %vm556, %v641, 0.0
      %v687 = vadd.f32 %v685, %v686
      %v688 = vsel %vm556, %v642, 0.0
      %v689 = vadd.f32 %v687, %v688
      %v690 = vsel %vm556, %v643, 0.0
      %v691 = vadd.f32 %v689, %v690
      %v692 = vsel %vm556, %v644, 0.0
      %v693 = vadd.f32 %v691, %v692
      %v694 = vsel %vm556, %v645, 0.0
      %v695 = vadd.f32 %v693, %v694
      %v696 = vsel %vm556, %v646, 0.0
      %v697 = vadd.f32 %v695, %v696
      %v698 = vsel %vm556, %v647, 0.0
      %v699 = vadd.f32 %v697, %v698
      %v700 = vsel %vm556, %v648, 0.0
      %v701 = vadd.f32 %v699, %v700
      %v702 = vsel %vm556, %v649, 0.0
      %v703 = vadd.f32 %v701, %v702
      %v704 = vsel %vm556, %v650, 0.0
      %v705 = vadd.f32 %v703, %v704
      %v706 = vsel %vm556, %v651, 0.0
      %v707 = vadd.f32 %v705, %v706
      %v708 = vsel %vm556, %v652, 0.0
      %v709 = vadd.f32 %v707, %v708
      %v710 = vsel %vm556, %v653, 0.0
      %v711 = vadd.f32 %v709, %v710
      %v712 = vsel %vm556, %v654, 0.0
      %v713 = vadd.f32 %v711, %v712
      %v714 = vsel %vm556, %v655, 0.0
      %v715 = vadd.f32 %v713, %v714
      %v716 = vsel %vm556, %v656, 0.0
      %v717 = vadd.f32 %v715, %v716
      %v718 = vsel %vm556, %v657, 0.0
      %v719 = vadd.f32 %v717, %v718
      %v720 = vsel %vm556, %v658, 0.0
      %v721 = vadd.f32 %v719, %v720
      %v722 = vrot.slane %v721, 4
      %v723 = vadd.f32 %v721, %v722
      %v724 = vrot.slane %v723, 2
      %v725 = vadd.f32 %v723, %v724
      %v726 = vrot.slane %v725, 1
      %v727 = vadd.f32 %v725, %v726
      %v728 = vmul.f32 %v727, 0.00390625
      %v729 = vld [vmem:[%s5] sm:$0xff]
      %v731 = vsel %vm556, %v626, 0
      %733 = vmatprep.subr.mxu0 0.0
      %734 = vmatpush1.msra.mxu0 %v729
      %735 = vmatprep.subr.mxu0 0.0
      %736 = vmatpush1.msra.mxu0 0.0
      %737 = vmatprep.subr.mxu0 0.0
      %738 = vmatpush1.msra.mxu0 0.0
      %739 = vmatprep.subr.mxu0 0.0
      %740 = vmatpush1.msra.mxu0 0.0
      %741 = vmatprep.subr.mxu0 0.0
      %742 = vmatpush1.msra.mxu0 0.0
      %743 = vmatprep.subr.mxu0 0.0
      %744 = vmatpush1.msra.mxu0 0.0
      %745 = vmatprep.subr.mxu0 0.0
      %746 = vmatpush1.msra.mxu0 0.0
      %747 = vmatprep.subr.mxu0 0.0
      %748 = vmatpush1.msra.mxu0 0.0
      %749 = vmatprep.subr.mxu0 0.0
      %750 = vmatpush1.msra.mxu0 0.0
      %751 = vmatprep.subr.mxu0 0.0
      %752 = vmatpush1.msra.mxu0 0.0
      %753 = vmatprep.subr.mxu0 0.0
      %754 = vmatpush1.msra.mxu0 0.0
      %755 = vmatprep.subr.mxu0 0.0
      %756 = vmatpush1.msra.mxu0 0.0
      %757 = vmatprep.subr.mxu0 0.0
      %758 = vmatpush1.msra.mxu0 0.0
      %759 = vmatprep.subr.mxu0 0.0
      %760 = vmatpush1.msra.mxu0 0.0
      %761 = vmatprep.subr.mxu0 0.0
      %762 = vmatpush1.msra.mxu0 0.0
      %763 = vmatprep.subr.mxu0 0.0
      %764 = vmatpush1.msra.mxu0 0.0
      %765 = vmatprep.subr.mxu0 0.0
      %766 = vmatpush1.msra.mxu0 0.0
      %767 = vmatprep.subr.mxu0 0.0
      %768 = vmatpush1.msra.mxu0 0.0
      %769 = vmatprep.subr.mxu0 0.0
      %770 = vmatpush1.msra.mxu0 0.0
      %771 = vmatprep.subr.mxu0 0.0
      %772 = vmatpush1.msra.mxu0 0.0
      %773 = vmatprep.subr.mxu0 0.0
      %774 = vmatpush1.msra.mxu0 0.0
      %775 = vmatprep.subr.mxu0 0.0
      %776 = vmatpush1.msra.mxu0 0.0
      %777 = vmatprep.subr.mxu0 0.0
      %778 = vmatpush1.msra.mxu0 0.0
      %779 = vmatprep.subr.mxu0 0.0
      %780 = vmatpush1.msra.mxu0 0.0
      %781 = vmatprep.subr.mxu0 0.0
      %782 = vmatpush1.msra.mxu0 0.0
      %783 = vmatprep.subr.mxu0 0.0
      %784 = vmatpush1.msra.mxu0 0.0
      %785 = vmatprep.subr.mxu0 0.0
      %786 = vmatpush1.msra.mxu0 0.0
      %787 = vmatprep.subr.mxu0 0.0
      %788 = vmatpush1.msra.mxu0 0.0
      %789 = vmatprep.subr.mxu0 0.0
      %790 = vmatpush1.msra.mxu0 0.0
      %791 = vmatprep.subr.mxu0 0.0
      %792 = vmatpush1.msra.mxu0 0.0
      %793 = vmatprep.subr.mxu0 0.0
      %794 = vmatpush1.msra.mxu0 0.0
      %795 = vmatprep.subr.mxu0 0.0
      %796 = vmatpush1.msra.mxu0 0.0
      %797 = vmatprep.mubr.f32.mxu0 0.0
      %798 = vmatmul.mubr.f32.gmra.mrb[0].mxu0 %v731
      %v799 = vpop.f32.mrb[0].mxu0
      %v800 = vadd.f32 0.0, %v799
      %v801 = vpop.f32.mrb[0].mxu0
      %802 = vdwg.mxu0
      %v804 = vsel %vm556, %v728, 0
      %806 = vmatprep.subr.mxu0 0.0
      %807 = vmatpush1.msra.mxu0 %v729
      %808 = vmatprep.subr.mxu0 0.0
      %809 = vmatpush1.msra.mxu0 0.0
      %810 = vmatprep.subr.mxu0 0.0
      %811 = vmatpush1.msra.mxu0 0.0
      %812 = vmatprep.subr.mxu0 0.0
      %813 = vmatpush1.msra.mxu0 0.0
      %814 = vmatprep.subr.mxu0 0.0
      %815 = vmatpush1.msra.mxu0 0.0
      %816 = vmatprep.subr.mxu0 0.0
      %817 = vmatpush1.msra.mxu0 0.0
      %818 = vmatprep.subr.mxu0 0.0
      %819 = vmatpush1.msra.mxu0 0.0
      %820 = vmatprep.subr.mxu0 0.0
      %821 = vmatpush1.msra.mxu0 0.0
      %822 = vmatprep.subr.mxu0 0.0
      %823 = vmatpush1.msra.mxu0 0.0
      %824 = vmatprep.subr.mxu0 0.0
      %825 = vmatpush1.msra.mxu0 0.0
      %826 = vmatprep.subr.mxu0 0.0
      %827 = vmatpush1.msra.mxu0 0.0
      %828 = vmatprep.subr.mxu0 0.0
      %829 = vmatpush1.msra.mxu0 0.0
      %830 = vmatprep.subr.mxu0 0.0
      %831 = vmatpush1.msra.mxu0 0.0
      %832 = vmatprep.subr.mxu0 0.0
      %833 = vmatpush1.msra.mxu0 0.0
      %834 = vmatprep.subr.mxu0 0.0
      %835 = vmatpush1.msra.mxu0 0.0
      %836 = vmatprep.subr.mxu0 0.0
      %837 = vmatpush1.msra.mxu0 0.0
      %838 = vmatprep.subr.mxu0 0.0
      %839 = vmatpush1.msra.mxu0 0.0
      %840 = vmatprep.subr.mxu0 0.0
      %841 = vmatpush1.msra.mxu0 0.0
      %842 = vmatprep.subr.mxu0 0.0
      %843 = vmatpush1.msra.mxu0 0.0
      %844 = vmatprep.subr.mxu0 0.0
      %845 = vmatpush1.msra.mxu0 0.0
      %846 = vmatprep.subr.mxu0 0.0
      %847 = vmatpush1.msra.mxu0 0.0
      %848 = vmatprep.subr.mxu0 0.0
      %849 = vmatpush1.msra.mxu0 0.0
      %850 = vmatprep.subr.mxu0 0.0
      %851 = vmatpush1.msra.mxu0 0.0
      %852 = vmatprep.subr.mxu0 0.0
      %853 = vmatpush1.msra.mxu0 0.0
      %854 = vmatprep.subr.mxu0 0.0
      %855 = vmatpush1.msra.mxu0 0.0
      %856 = vmatprep.subr.mxu0 0.0
      %857 = vmatpush1.msra.mxu0 0.0
      %858 = vmatprep.subr.mxu0 0.0
      %859 = vmatpush1.msra.mxu0 0.0
      %860 = vmatprep.subr.mxu0 0.0
      %861 = vmatpush1.msra.mxu0 0.0
      %862 = vmatprep.subr.mxu0 0.0
      %863 = vmatpush1.msra.mxu0 0.0
      %864 = vmatprep.subr.mxu0 0.0
      %865 = vmatpush1.msra.mxu0 0.0
      %866 = vmatprep.subr.mxu0 0.0
      %867 = vmatpush1.msra.mxu0 0.0
      %868 = vmatprep.subr.mxu0 0.0
      %869 = vmatpush1.msra.mxu0 0.0
      %870 = vmatprep.mubr.f32.mxu0 0.0
      %871 = vmatmul.mubr.f32.gmra.mrb[0].mxu0 %v804
      %v872 = vpop.f32.mrb[0].mxu0
      %v873 = vadd.f32 0.0, %v872
      %v874 = vpop.f32.mrb[0].mxu0
      %875 = vdwg.mxu0
      %v876 = vmul.f32 %v800, %v800
      %v877 = vsub.f32 %v873, %v876
      %v878 = vadd.f32 %v877, 1e-05
      %v879 = vrsqrt.pop %v878
      %v880 = vld [vmem:[%s3] sm:$0x1]
      %v881 = vmul.f32 %v879, %v880
      %v882 = vld [vmem:[%s4] sm:$0x1]
      %v883 = vmul.f32 %v800, %v881
      %v884 = vsub.f32 %v882, %v883
      %v885 = vlaneseq
      %v886 = vshrl.u32 %v885, 7
      %v887 = vsub.s32 0, %v886
      %v888 = vrot.slane %v881, %v887
      %v889 = vmul.f32 %v524, %v888
      %v890 = vmul.f32 %v525, %v888
      %v891 = vmul.f32 %v526, %v888
      %v892 = vmul.f32 %v527, %v888
      %v893 = vmul.f32 %v528, %v888
      %v894 = vmul.f32 %v529, %v888
      %v895 = vmul.f32 %v530, %v888
      %v896 = vmul.f32 %v531, %v888
      %v897 = vmul.f32 %v532, %v888
      %v898 = vmul.f32 %v533, %v888
      %v899 = vmul.f32 %v534, %v888
      %v900 = vmul.f32 %v535, %v888
      %v901 = vmul.f32 %v536, %v888
      %v902 = vmul.f32 %v537, %v888
      %v903 = vmul.f32 %v538, %v888
      %v904 = vmul.f32 %v539, %v888
      %v905 = vmul.f32 %v540, %v888
      %v906 = vmul.f32 %v541, %v888
      %v907 = vmul.f32 %v542, %v888
      %v908 = vmul.f32 %v543, %v888
      %v909 = vmul.f32 %v544, %v888
      %v910 = vmul.f32 %v545, %v888
      %v911 = vmul.f32 %v546, %v888
      %v912 = vmul.f32 %v547, %v888
      %v913 = vmul.f32 %v548, %v888
      %v914 = vmul.f32 %v549, %v888
      %v915 = vmul.f32 %v550, %v888
      %v916 = vmul.f32 %v551, %v888
      %v917 = vmul.f32 %v552, %v888
      %v918 = vmul.f32 %v553, %v888
      %v919 = vmul.f32 %v554, %v888
      %v920 = vmul.f32 %v555, %v888
      %v922 = vlaneseq
      %v923 = vshrl.u32 %v922, 7
      %v924 = vsub.s32 0, %v923
      %v925 = vrot.slane %v884, %v924
      %v927 = vadd.f32 %v889, %v925
      %v928 = vadd.f32 %v890, %v925
      %v929 = vadd.f32 %v891, %v925
      %v930 = vadd.f32 %v892, %v925
      %v931 = vadd.f32 %v893, %v925
      %v932 = vadd.f32 %v894, %v925
      %v933 = vadd.f32 %v895, %v925
      %v934 = vadd.f32 %v896, %v925
      %v935 = vadd.f32 %v897, %v925
      %v936 = vadd.f32 %v898, %v925
      %v937 = vadd.f32 %v899, %v925
      %v938 = vadd.f32 %v900, %v925
      %v939 = vadd.f32 %v901, %v925
      %v940 = vadd.f32 %v902, %v925
      %v941 = vadd.f32 %v903, %v925
      %v942 = vadd.f32 %v904, %v925
      %v943 = vadd.f32 %v905, %v925
      %v944 = vadd.f32 %v906, %v925
      %v945 = vadd.f32 %v907, %v925
      %v946 = vadd.f32 %v908, %v925
      %v947 = vadd.f32 %v909, %v925
      %v948 = vadd.f32 %v910, %v925
      %v949 = vadd.f32 %v911, %v925
      %v950 = vadd.f32 %v912, %v925
      %v951 = vadd.f32 %v913, %v925
      %v952 = vadd.f32 %v914, %v925
      %v953 = vadd.f32 %v915, %v925
      %v954 = vadd.f32 %v916, %v925
      %v955 = vadd.f32 %v917, %v925
      %v956 = vadd.f32 %v918, %v925
      %v957 = vadd.f32 %v919, %v925
      %v958 = vadd.f32 %v920, %v925
      %v959 = vsub.f32 0.0, %v927
      %v960 = vsub.f32 0.0, %v928
      %v961 = vsub.f32 0.0, %v929
      %v962 = vsub.f32 0.0, %v930
      %v963 = vsub.f32 0.0, %v931
      %v964 = vsub.f32 0.0, %v932
      %v965 = vsub.f32 0.0, %v933
      %v966 = vsub.f32 0.0, %v934
      %v967 = vsub.f32 0.0, %v935
      %v968 = vsub.f32 0.0, %v936
      %v969 = vsub.f32 0.0, %v937
      %v970 = vsub.f32 0.0, %v938
      %v971 = vsub.f32 0.0, %v939
      %v972 = vsub.f32 0.0, %v940
      %v973 = vsub.f32 0.0, %v941
      %v974 = vsub.f32 0.0, %v942
      %v975 = vsub.f32 0.0, %v943
      %v976 = vsub.f32 0.0, %v944
      %v977 = vsub.f32 0.0, %v945
      %v978 = vsub.f32 0.0, %v946
      %v979 = vsub.f32 0.0, %v947
      %v980 = vsub.f32 0.0, %v948
      %v981 = vsub.f32 0.0, %v949
      %v982 = vsub.f32 0.0, %v950
      %v983 = vsub.f32 0.0, %v951
      %v984 = vsub.f32 0.0, %v952
      %v985 = vsub.f32 0.0, %v953
      %v986 = vsub.f32 0.0, %v954
      %v987 = vsub.f32 0.0, %v955
      %v988 = vsub.f32 0.0, %v956
      %v989 = vsub.f32 0.0, %v957
      %v990 = vsub.f32 0.0, %v958
      %v991 = vmul.f32 %v959, 1.442695
      %v992 = vpow.pop %v991
      %v993 = vmul.f32 %v960, 1.442695
      %v994 = vpow.pop %v993
      %v995 = vmul.f32 %v961, 1.442695
      %v996 = vpow.pop %v995
      %v997 = vmul.f32 %v962, 1.442695
      %v998 = vpow.pop %v997
      %v999 = vmul.f32 %v963, 1.442695
      %v1000 = vpow.pop %v999
      %v1001 = vmul.f32 %v964, 1.442695
      %v1002 = vpow.pop %v1001
      %v1003 = vmul.f32 %v965, 1.442695
      %v1004 = vpow.pop %v1003
      %v1005 = vmul.f32 %v966, 1.442695
      %v1006 = vpow.pop %v1005
      %v1007 = vmul.f32 %v967, 1.442695
      %v1008 = vpow.pop %v1007
      %v1009 = vmul.f32 %v968, 1.442695
      %v1010 = vpow.pop %v1009
      %v1011 = vmul.f32 %v969, 1.442695
      %v1012 = vpow.pop %v1011
      %v1013 = vmul.f32 %v970, 1.442695
      %v1014 = vpow.pop %v1013
      %v1015 = vmul.f32 %v971, 1.442695
      %v1016 = vpow.pop %v1015
      %v1017 = vmul.f32 %v972, 1.442695
      %v1018 = vpow.pop %v1017
      %v1019 = vmul.f32 %v973, 1.442695
      %v1020 = vpow.pop %v1019
      %v1021 = vmul.f32 %v974, 1.442695
      %v1022 = vpow.pop %v1021
      %v1023 = vmul.f32 %v975, 1.442695
      %v1024 = vpow.pop %v1023
      %v1025 = vmul.f32 %v976, 1.442695
      %v1026 = vpow.pop %v1025
      %v1027 = vmul.f32 %v977, 1.442695
      %v1028 = vpow.pop %v1027
      %v1029 = vmul.f32 %v978, 1.442695
      %v1030 = vpow.pop %v1029
      %v1031 = vmul.f32 %v979, 1.442695
      %v1032 = vpow.pop %v1031
      %v1033 = vmul.f32 %v980, 1.442695
      %v1034 = vpow.pop %v1033
      %v1035 = vmul.f32 %v981, 1.442695
      %v1036 = vpow.pop %v1035
      %v1037 = vmul.f32 %v982, 1.442695
      %v1038 = vpow.pop %v1037
      %v1039 = vmul.f32 %v983, 1.442695
      %v1040 = vpow.pop %v1039
      %v1041 = vmul.f32 %v984, 1.442695
      %v1042 = vpow.pop %v1041
      %v1043 = vmul.f32 %v985, 1.442695
      %v1044 = vpow.pop %v1043
      %v1045 = vmul.f32 %v986, 1.442695
      %v1046 = vpow.pop %v1045
      %v1047 = vmul.f32 %v987, 1.442695
      %v1048 = vpow.pop %v1047
      %v1049 = vmul.f32 %v988, 1.442695
      %v1050 = vpow.pop %v1049
      %v1051 = vmul.f32 %v989, 1.442695
      %v1052 = vpow.pop %v1051
      %v1053 = vmul.f32 %v990, 1.442695
      %v1054 = vpow.pop %v1053
      %v1055 = vadd.f32 %v992, 1.0
      %v1056 = vadd.f32 %v994, 1.0
      %v1057 = vadd.f32 %v996, 1.0
      %v1058 = vadd.f32 %v998, 1.0
      %v1059 = vadd.f32 %v1000, 1.0
      %v1060 = vadd.f32 %v1002, 1.0
      %v1061 = vadd.f32 %v1004, 1.0
      %v1062 = vadd.f32 %v1006, 1.0
      %v1063 = vadd.f32 %v1008, 1.0
      %v1064 = vadd.f32 %v1010, 1.0
      %v1065 = vadd.f32 %v1012, 1.0
      %v1066 = vadd.f32 %v1014, 1.0
      %v1067 = vadd.f32 %v1016, 1.0
      %v1068 = vadd.f32 %v1018, 1.0
      %v1069 = vadd.f32 %v1020, 1.0
      %v1070 = vadd.f32 %v1022, 1.0
      %v1071 = vadd.f32 %v1024, 1.0
      %v1072 = vadd.f32 %v1026, 1.0
      %v1073 = vadd.f32 %v1028, 1.0
      %v1074 = vadd.f32 %v1030, 1.0
      %v1075 = vadd.f32 %v1032, 1.0
      %v1076 = vadd.f32 %v1034, 1.0
      %v1077 = vadd.f32 %v1036, 1.0
      %v1078 = vadd.f32 %v1038, 1.0
      %v1079 = vadd.f32 %v1040, 1.0
      %v1080 = vadd.f32 %v1042, 1.0
      %v1081 = vadd.f32 %v1044, 1.0
      %v1082 = vadd.f32 %v1046, 1.0
      %v1083 = vadd.f32 %v1048, 1.0
      %v1084 = vadd.f32 %v1050, 1.0
      %v1085 = vadd.f32 %v1052, 1.0
      %v1086 = vadd.f32 %v1054, 1.0
      %v1087 = vrcp.pop %v1055
      %v1088 = vrcp.pop %v1056
      %v1089 = vrcp.pop %v1057
      %v1090 = vrcp.pop %v1058
      %v1091 = vrcp.pop %v1059
      %v1092 = vrcp.pop %v1060
      %v1093 = vrcp.pop %v1061
      %v1094 = vrcp.pop %v1062
      %v1095 = vrcp.pop %v1063
      %v1096 = vrcp.pop %v1064
      %v1097 = vrcp.pop %v1065
      %v1098 = vrcp.pop %v1066
      %v1099 = vrcp.pop %v1067
      %v1100 = vrcp.pop %v1068
      %v1101 = vrcp.pop %v1069
      %v1102 = vrcp.pop %v1070
      %v1103 = vrcp.pop %v1071
      %v1104 = vrcp.pop %v1072
      %v1105 = vrcp.pop %v1073
      %v1106 = vrcp.pop %v1074
      %v1107 = vrcp.pop %v1075
      %v1108 = vrcp.pop %v1076
      %v1109 = vrcp.pop %v1077
      %v1110 = vrcp.pop %v1078
      %v1111 = vrcp.pop %v1079
      %v1112 = vrcp.pop %v1080
      %v1113 = vrcp.pop %v1081
      %v1114 = vrcp.pop %v1082
      %v1115 = vrcp.pop %v1083
      %v1116 = vrcp.pop %v1084
      %v1117 = vrcp.pop %v1085
      %v1118 = vrcp.pop %v1086
      %v1119 = vmul.f32 %v927, %v1087
      %v1120 = vmul.f32 %v928, %v1088
      %v1121 = vmul.f32 %v929, %v1089
      %v1122 = vmul.f32 %v930, %v1090
      %v1123 = vmul.f32 %v931, %v1091
      %v1124 = vmul.f32 %v932, %v1092
      %v1125 = vmul.f32 %v933, %v1093
      %v1126 = vmul.f32 %v934, %v1094
      %v1127 = vmul.f32 %v935, %v1095
      %v1128 = vmul.f32 %v936, %v1096
      %v1129 = vmul.f32 %v937, %v1097
      %v1130 = vmul.f32 %v938, %v1098
      %v1131 = vmul.f32 %v939, %v1099
      %v1132 = vmul.f32 %v940, %v1100
      %v1133 = vmul.f32 %v941, %v1101
      %v1134 = vmul.f32 %v942, %v1102
      %v1135 = vmul.f32 %v943, %v1103
      %v1136 = vmul.f32 %v944, %v1104
      %v1137 = vmul.f32 %v945, %v1105
      %v1138 = vmul.f32 %v946, %v1106
      %v1139 = vmul.f32 %v947, %v1107
      %v1140 = vmul.f32 %v948, %v1108
      %v1141 = vmul.f32 %v949, %v1109
      %v1142 = vmul.f32 %v950, %v1110
      %v1143 = vmul.f32 %v951, %v1111
      %v1144 = vmul.f32 %v952, %v1112
      %v1145 = vmul.f32 %v953, %v1113
      %v1146 = vmul.f32 %v954, %v1114
      %v1147 = vmul.f32 %v955, %v1115
      %v1148 = vmul.f32 %v956, %v1116
      %v1149 = vmul.f32 %v957, %v1117
      %v1150 = vmul.f32 %v958, %v1118
      %1151 = vst.msk [vmem:[#allocation2] sm:$0xff] %vm556, 0.0
      %1152 = vst.msk [vmem:[#allocation2 + $0x8] sm:$0xff] %vm556, 0.0
      %1153 = vst.msk [vmem:[#allocation2 + $0x10] sm:$0xff] %vm556, 0.0
      %s1154 = scalar_lea.vmem [#allocation2], 408
      %1155 = vst.msk [vmem:[%s1154] sm:$0xff] %vm556, 0.0
      %1156 = vst.msk [vmem:[%s1154 + $0x8] sm:$0xff] %vm556, 0.0
      %1157 = vst.msk [vmem:[%s1154 + $0x10] sm:$0xff] %vm556, 0.0
      %vm1158 = vcmask 57344
      %1159 = vst.msk [vmem:[#allocation2] sm:$0x1] %vm1158, 0.0
      %1160 = vst.msk [vmem:[#allocation2 + $0x18] sm:$0x1] %vm1158, 0.0
      %1161 = vst.msk [vmem:[#allocation2 + $0x30] sm:$0x1] %vm1158, 0.0
      %1162 = vst.msk [vmem:[#allocation2 + $0x48] sm:$0x1] %vm1158, 0.0
      %1163 = vst.msk [vmem:[#allocation2 + $0x60] sm:$0x1] %vm1158, 0.0
      %1164 = vst.msk [vmem:[#allocation2 + $0x78] sm:$0x1] %vm1158, 0.0
      %1165 = vst.msk [vmem:[#allocation2 + $0x90] sm:$0x1] %vm1158, 0.0
      %1166 = vst.msk [vmem:[#allocation2 + $0xa8] sm:$0x1] %vm1158, 0.0
      %1167 = vst.msk [vmem:[#allocation2 + $0xc0] sm:$0x1] %vm1158, 0.0
      %1168 = vst.msk [vmem:[#allocation2 + $0xd8] sm:$0x1] %vm1158, 0.0
      %1169 = vst.msk [vmem:[#allocation2 + $0xf0] sm:$0x1] %vm1158, 0.0
      %1170 = vst.msk [vmem:[#allocation2 + $0x108] sm:$0x1] %vm1158, 0.0
      %1171 = vst.msk [vmem:[#allocation2 + $0x120] sm:$0x1] %vm1158, 0.0
      %1172 = vst.msk [vmem:[#allocation2 + $0x138] sm:$0x1] %vm1158, 0.0
      %1173 = vst.msk [vmem:[#allocation2 + $0x150] sm:$0x1] %vm1158, 0.0
      %1174 = vst.msk [vmem:[#allocation2 + $0x168] sm:$0x1] %vm1158, 0.0
      %1175 = vst.msk [vmem:[#allocation2 + $0x180] sm:$0x1] %vm1158, 0.0
      %1176 = vst.msk [vmem:[#allocation2 + $0x198] sm:$0x1] %vm1158, 0.0
      %1177 = vst.msk [vmem:[#allocation2 + $0x11] sm:$0x1] %vm1158, 0.0
      %1178 = vst.msk [vmem:[#allocation2 + $0x29] sm:$0x1] %vm1158, 0.0
      %1179 = vst.msk [vmem:[#allocation2 + $0x41] sm:$0x1] %vm1158, 0.0
      %1180 = vst.msk [vmem:[#allocation2 + $0x59] sm:$0x1] %vm1158, 0.0
      %1181 = vst.msk [vmem:[#allocation2 + $0x71] sm:$0x1] %vm1158, 0.0
      %1182 = vst.msk [vmem:[#allocation2 + $0x89] sm:$0x1] %vm1158, 0.0
      %1183 = vst.msk [vmem:[#allocation2 + $0xa1] sm:$0x1] %vm1158, 0.0
      %1184 = vst.msk [vmem:[#allocation2 + $0xb9] sm:$0x1] %vm1158, 0.0
      %1185 = vst.msk [vmem:[#allocation2 + $0xd1] sm:$0x1] %vm1158, 0.0
      %1186 = vst.msk [vmem:[#allocation2 + $0xe9] sm:$0x1] %vm1158, 0.0
      %1187 = vst.msk [vmem:[#allocation2 + $0x101] sm:$0x1] %vm1158, 0.0
      %1188 = vst.msk [vmem:[#allocation2 + $0x119] sm:$0x1] %vm1158, 0.0
      %1189 = vst.msk [vmem:[#allocation2 + $0x131] sm:$0x1] %vm1158, 0.0
      %1190 = vst.msk [vmem:[#allocation2 + $0x149] sm:$0x1] %vm1158, 0.0
      %1191 = vst.msk [vmem:[#allocation2 + $0x161] sm:$0x1] %vm1158, 0.0
      %1192 = vst.msk [vmem:[#allocation2 + $0x179] sm:$0x1] %vm1158, 0.0
      %1193 = vst.msk [vmem:[#allocation2 + $0x191] sm:$0x1] %vm1158, 0.0
      %1194 = vst.msk [vmem:[#allocation2 + $0x1a9] sm:$0x1] %vm1158, 0.0
      %s1195 = scalar_lea.vmem [#allocation2], 24
      %1196 = vst.msk [vmem:[%s1195 + $0x1] sm:$0xff] %vm556, %v1119
      %1197 = vst.msk [vmem:[%s1195 + $0x9] sm:$0xff] %vm556, %v1120
      %1198 = vst.msk [vmem:[%s1195 + $0x19] sm:$0xff] %vm556, %v1121
      %1199 = vst.msk [vmem:[%s1195 + $0x21] sm:$0xff] %vm556, %v1122
      %1200 = vst.msk [vmem:[%s1195 + $0x31] sm:$0xff] %vm556, %v1123
      %1201 = vst.msk [vmem:[%s1195 + $0x39] sm:$0xff] %vm556, %v1124
      %1202 = vst.msk [vmem:[%s1195 + $0x49] sm:$0xff] %vm556, %v1125
      %1203 = vst.msk [vmem:[%s1195 + $0x51] sm:$0xff] %vm556, %v1126
      %1204 = vst.msk [vmem:[%s1195 + $0x61] sm:$0xff] %vm556, %v1127
      %1205 = vst.msk [vmem:[%s1195 + $0x69] sm:$0xff] %vm556, %v1128
      %1206 = vst.msk [vmem:[%s1195 + $0x79] sm:$0xff] %vm556, %v1129
      %1207 = vst.msk [vmem:[%s1195 + $0x81] sm:$0xff] %vm556, %v1130
      %1208 = vst.msk [vmem:[%s1195 + $0x91] sm:$0xff] %vm556, %v1131
      %1209 = vst.msk [vmem:[%s1195 + $0x99] sm:$0xff] %vm556, %v1132
      %1210 = vst.msk [vmem:[%s1195 + $0xa9] sm:$0xff] %vm556, %v1133
      %1211 = vst.msk [vmem:[%s1195 + $0xb1] sm:$0xff] %vm556, %v1134
      %1212 = vst.msk [vmem:[%s1195 + $0xc1] sm:$0xff] %vm556, %v1135
      %1213 = vst.msk [vmem:[%s1195 + $0xc9] sm:$0xff] %vm556, %v1136
      %1214 = vst.msk [vmem:[%s1195 + $0xd9] sm:$0xff] %vm556, %v1137
      %1215 = vst.msk [vmem:[%s1195 + $0xe1] sm:$0xff] %vm556, %v1138
      %1216 = vst.msk [vmem:[%s1195 + $0xf1] sm:$0xff] %vm556, %v1139
      %1217 = vst.msk [vmem:[%s1195 + $0xf9] sm:$0xff] %vm556, %v1140
      %1218 = vst.msk [vmem:[%s1195 + $0x109] sm:$0xff] %vm556, %v1141
      %1219 = vst.msk [vmem:[%s1195 + $0x111] sm:$0xff] %vm556, %v1142
      %1220 = vst.msk [vmem:[%s1195 + $0x121] sm:$0xff] %vm556, %v1143
      %1221 = vst.msk [vmem:[%s1195 + $0x129] sm:$0xff] %vm556, %v1144
      %1222 = vst.msk [vmem:[%s1195 + $0x139] sm:$0xff] %vm556, %v1145
      %1223 = vst.msk [vmem:[%s1195 + $0x141] sm:$0xff] %vm556, %v1146
      %1224 = vst.msk [vmem:[%s1195 + $0x151] sm:$0xff] %vm556, %v1147
      %1225 = vst.msk [vmem:[%s1195 + $0x159] sm:$0xff] %vm556, %v1148
      %1226 = vst.msk [vmem:[%s1195 + $0x169] sm:$0xff] %vm556, %v1149
      %1227 = vst.msk [vmem:[%s1195 + $0x171] sm:$0xff] %vm556, %v1150
      %v1228 = vld [vmem:[#allocation2] sm:$0xff]
      %v1229 = vld [vmem:[#allocation2 + $0x8] sm:$0xff]
      %v1230 = vld [vmem:[#allocation2 + $0x18] sm:$0xff]
      %v1231 = vld [vmem:[#allocation2 + $0x20] sm:$0xff]
      %v1232 = vld [vmem:[#allocation2 + $0x30] sm:$0xff]
      %v1233 = vld [vmem:[#allocation2 + $0x38] sm:$0xff]
      %v1234 = vld [vmem:[#allocation2 + $0x48] sm:$0xff]
      %v1235 = vld [vmem:[#allocation2 + $0x50] sm:$0xff]
      %v1236 = vld [vmem:[#allocation2 + $0x60] sm:$0xff]
      %v1237 = vld [vmem:[#allocation2 + $0x68] sm:$0xff]
      %v1238 = vld [vmem:[#allocation2 + $0x78] sm:$0xff]
      %v1239 = vld [vmem:[#allocation2 + $0x80] sm:$0xff]
      %v1240 = vld [vmem:[#allocation2 + $0x90] sm:$0xff]
      %v1241 = vld [vmem:[#allocation2 + $0x98] sm:$0xff]
      %v1242 = vld [vmem:[#allocation2 + $0xa8] sm:$0xff]
      %v1243 = vld [vmem:[#allocation2 + $0xb0] sm:$0xff]
      %v1244 = vld [vmem:[#allocation2 + $0xc0] sm:$0xff]
      %v1245 = vld [vmem:[#allocation2 + $0xc8] sm:$0xff]
      %v1246 = vld [vmem:[#allocation2 + $0xd8] sm:$0xff]
      %v1247 = vld [vmem:[#allocation2 + $0xe0] sm:$0xff]
      %v1248 = vld [vmem:[#allocation2 + $0xf0] sm:$0xff]
      %v1249 = vld [vmem:[#allocation2 + $0xf8] sm:$0xff]
      %v1250 = vld [vmem:[#allocation2 + $0x108] sm:$0xff]
      %v1251 = vld [vmem:[#allocation2 + $0x110] sm:$0xff]
      %v1252 = vld [vmem:[#allocation2 + $0x120] sm:$0xff]
      %v1253 = vld [vmem:[#allocation2 + $0x128] sm:$0xff]
      %v1254 = vld [vmem:[#allocation2 + $0x138] sm:$0xff]
      %v1255 = vld [vmem:[#allocation2 + $0x140] sm:$0xff]
      %v1256 = vld [vmem:[#allocation2 + $0x150] sm:$0xff]
      %v1257 = vld [vmem:[#allocation2 + $0x158] sm:$0xff]
      %v1258 = vld [vmem:[#allocation2 + $0x168] sm:$0xff]
      %v1259 = vld [vmem:[#allocation2 + $0x170] sm:$0xff]
      %v1260 = vpack.c.bf16 %v1229, %v1228
      %v1261 = vpack.c.bf16 %v1231, %v1230
      %v1262 = vpack.c.bf16 %v1233, %v1232
      %v1263 = vpack.c.bf16 %v1235, %v1234
      %v1264 = vpack.c.bf16 %v1237, %v1236
      %v1265 = vpack.c.bf16 %v1239, %v1238
      %v1266 = vpack.c.bf16 %v1241, %v1240
      %v1267 = vpack.c.bf16 %v1243, %v1242
      %v1268 = vpack.c.bf16 %v1245, %v1244
      %v1269 = vpack.c.bf16 %v1247, %v1246
      %v1270 = vpack.c.bf16 %v1249, %v1248
      %v1271 = vpack.c.bf16 %v1251, %v1250
      %v1272 = vpack.c.bf16 %v1253, %v1252
      %v1273 = vpack.c.bf16 %v1255, %v1254
      %v1274 = vpack.c.bf16 %v1257, %v1256
      %v1275 = vpack.c.bf16 %v1259, %v1258
      %v1276 = vld [vmem:[%s6] sm:$0xf]
      %v1278 = vsel %vm556, %v1260, 0
      %v1281 = vsel %vm556, %v1261, 0
      %v1284 = vsel %vm556, %v1262, 0
      %v1287 = vsel %vm556, %v1263, 0
      %v1290 = vsel %vm556, %v1264, 0
      %v1293 = vsel %vm556, %v1265, 0
      %v1296 = vsel %vm556, %v1266, 0
      %v1299 = vsel %vm556, %v1267, 0
      %v1302 = vsel %vm556, %v1268, 0
      %v1305 = vsel %vm556, %v1269, 0
      %v1308 = vsel %vm556, %v1270, 0
      %v1311 = vsel %vm556, %v1271, 0
      %v1314 = vsel %vm556, %v1272, 0
      %v1317 = vsel %vm556, %v1273, 0
      %v1320 = vsel %vm556, %v1274, 0
      %v1323 = vsel %vm556, %v1275, 0
      %vm1325 = vcmask 1043456
      %v1327 = vsel %vm1325, %v1276, 0
      %1329 = vmatprep.subr.bf16.mxu0 0
      %1330 = vmatpush1.bf16.msra.mxu0 %v1327
      %1331 = vmatprep.subr.bf16.mxu0 0
      %1332 = vmatpush1.bf16.msra.mxu0 0
      %1333 = vmatprep.subr.bf16.mxu0 0
      %1334 = vmatpush1.bf16.msra.mxu0 0
      %1335 = vmatprep.subr.bf16.mxu0 0
      %1336 = vmatpush1.bf16.msra.mxu0 0
      %1337 = vmatprep.subr.bf16.mxu0 0
      %1338 = vmatpush1.bf16.msra.mxu0 0
      %1339 = vmatprep.subr.bf16.mxu0 0
      %1340 = vmatpush1.bf16.msra.mxu0 0
      %1341 = vmatprep.subr.bf16.mxu0 0
      %1342 = vmatpush1.bf16.msra.mxu0 0
      %1343 = vmatprep.subr.bf16.mxu0 0
      %1344 = vmatpush1.bf16.msra.mxu0 0
      %1345 = vmatprep.subr.bf16.mxu0 0
      %1346 = vmatpush1.bf16.msra.mxu0 0
      %1347 = vmatprep.subr.bf16.mxu0 0
      %1348 = vmatpush1.bf16.msra.mxu0 0
      %1349 = vmatprep.subr.bf16.mxu0 0
      %1350 = vmatpush1.bf16.msra.mxu0 0
      %1351 = vmatprep.subr.bf16.mxu0 0
      %1352 = vmatpush1.bf16.msra.mxu0 0
      %1353 = vmatprep.subr.bf16.mxu0 0
      %1354 = vmatpush1.bf16.msra.mxu0 0
      %1355 = vmatprep.subr.bf16.mxu0 0
      %1356 = vmatpush1.bf16.msra.mxu0 0
      %1357 = vmatprep.subr.bf16.mxu0 0
      %1358 = vmatpush1.bf16.msra.mxu0 0
      %1359 = vmatprep.subr.bf16.mxu0 0
      %1360 = vmatpush1.bf16.msra.mxu0 0
      %1361 = vmatprep.mubr.bf16.mxu0 0
      %1362 = vmatmul.mubr.bf16.gmra.mrb[0].mxu0 %v1278
      %v1363 = vpop.f32.mrb[0].mxu0
      %v1364 = vadd.f32 0.0, %v1363
      %v1365 = vpop.f32.mrb[0].mxu0
      %v1366 = vpop.f32.mrb[0].mxu0
      %v1367 = vadd.f32 0.0, %v1366
      %v1368 = vpop.f32.mrb[0].mxu0
      %1369 = vmatprep.mubr.bf16.mxu0 0
      %1370 = vmatmul.mubr.bf16.gmra.mrb[0].mxu0 %v1281
      %v1371 = vpop.f32.mrb[0].mxu0
      %v1372 = vadd.f32 0.0, %v1371
      %v1373 = vpop.f32.mrb[0].mxu0
      %v1374 = vpop.f32.mrb[0].mxu0
      %v1375 = vadd.f32 0.0, %v1374
      %v1376 = vpop.f32.mrb[0].mxu0
      %1377 = vmatprep.mubr.bf16.mxu0 0
      %1378 = vmatmul.mubr.bf16.gmra.mrb[0].mxu0 %v1284
      %v1379 = vpop.f32.mrb[0].mxu0
      %v1380 = vadd.f32 0.0, %v1379
      %v1381 = vpop.f32.mrb[0].mxu0
      %v1382 = vpop.f32.mrb[0].mxu0
      %v1383 = vadd.f32 0.0, %v1382
      %v1384 = vpop.f32.mrb[0].mxu0
      %1385 = vmatprep.mubr.bf16.mxu0 0
      %1386 = vmatmul.mubr.bf16.gmra.mrb[0].mxu0 %v1287
      %v1387 = vpop.f32.mrb[0].mxu0
      %v1388 = vadd.f32 0.0, %v1387
      %v1389 = vpop.f32.mrb[0].mxu0
      %v1390 = vpop.f32.mrb[0].mxu0
      %v1391 = vadd.f32 0.0, %v1390
      %v1392 = vpop.f32.mrb[0].mxu0
      %1393 = vmatprep.mubr.bf16.mxu0 0
      %1394 = vmatmul.mubr.bf16.gmra.mrb[0].mxu0 %v1290
      %v1395 = vpop.f32.mrb[0].mxu0
      %v1396 = vadd.f32 0.0, %v1395
      %v1397 = vpop.f32.mrb[0].mxu0
      %v1398 = vpop.f32.mrb[0].mxu0
      %v1399 = vadd.f32 0.0, %v1398
      %v1400 = vpop.f32.mrb[0].mxu0
      %1401 = vmatprep.mubr.bf16.mxu0 0
      %1402 = vmatmul.mubr.bf16.gmra.mrb[0].mxu0 %v1293
      %v1403 = vpop.f32.mrb[0].mxu0
      %v1404 = vadd.f32 0.0, %v1403
      %v1405 = vpop.f32.mrb[0].mxu0
      %v1406 = vpop.f32.mrb[0].mxu0
      %v1407 = vadd.f32 0.0, %v1406
      %v1408 = vpop.f32.mrb[0].mxu0
      %1409 = vmatprep.mubr.bf16.mxu0 0
      %1410 = vmatmul.mubr.bf16.gmra.mrb[0].mxu0 %v1296
      %v1411 = vpop.f32.mrb[0].mxu0
      %v1412 = vadd.f32 0.0, %v1411
      %v1413 = vpop.f32.mrb[0].mxu0
      %v1414 = vpop.f32.mrb[0].mxu0
      %v1415 = vadd.f32 0.0, %v1414
      %v1416 = vpop.f32.mrb[0].mxu0
      %1417 = vmatprep.mubr.bf16.mxu0 0
      %1418 = vmatmul.mubr.bf16.gmra.mrb[0].mxu0 %v1299
      %v1419 = vpop.f32.mrb[0].mxu0
      %v1420 = vadd.f32 0.0, %v1419
      %v1421 = vpop.f32.mrb[0].mxu0
      %v1422 = vpop.f32.mrb[0].mxu0
      %v1423 = vadd.f32 0.0, %v1422
      %v1424 = vpop.f32.mrb[0].mxu0
      %1425 = vmatprep.mubr.bf16.mxu0 0
      %1426 = vmatmul.mubr.bf16.gmra.mrb[0].mxu0 %v1302
      %v1427 = vpop.f32.mrb[0].mxu0
      %v1428 = vadd.f32 0.0, %v1427
      %v1429 = vpop.f32.mrb[0].mxu0
      %v1430 = vpop.f32.mrb[0].mxu0
      %v1431 = vadd.f32 0.0, %v1430
      %v1432 = vpop.f32.mrb[0].mxu0
      %1433 = vmatprep.mubr.bf16.mxu0 0
      %1434 = vmatmul.mubr.bf16.gmra.mrb[0].mxu0 %v1305
      %v1435 = vpop.f32.mrb[0].mxu0
      %v1436 = vadd.f32 0.0, %v1435
      %v1437 = vpop.f32.mrb[0].mxu0
      %v1438 = vpop.f32.mrb[0].mxu0
      %v1439 = vadd.f32 0.0, %v1438
      %v1440 = vpop.f32.mrb[0].mxu0
      %1441 = vmatprep.mubr.bf16.mxu0 0
      %1442 = vmatmul.mubr.bf16.gmra.mrb[0].mxu0 %v1308
      %v1443 = vpop.f32.mrb[0].mxu0
      %v1444 = vadd.f32 0.0, %v1443
      %v1445 = vpop.f32.mrb[0].mxu0
      %v1446 = vpop.f32.mrb[0].mxu0
      %v1447 = vadd.f32 0.0, %v1446
      %v1448 = vpop.f32.mrb[0].mxu0
      %1449 = vmatprep.mubr.bf16.mxu0 0
      %1450 = vmatmul.mubr.bf16.gmra.mrb[0].mxu0 %v1311
      %v1451 = vpop.f32.mrb[0].mxu0
      %v1452 = vadd.f32 0.0, %v1451
      %v1453 = vpop.f32.mrb[0].mxu0
      %v1454 = vpop.f32.mrb[0].mxu0
      %v1455 = vadd.f32 0.0, %v1454
      %v1456 = vpop.f32.mrb[0].mxu0
      %1457 = vmatprep.mubr.bf16.mxu0 0
      %1458 = vmatmul.mubr.bf16.gmra.mrb[0].mxu0 %v1314
      %v1459 = vpop.f32.mrb[0].mxu0
      %v1460 = vadd.f32 0.0, %v1459
      %v1461 = vpop.f32.mrb[0].mxu0
      %v1462 = vpop.f32.mrb[0].mxu0
      %v1463 = vadd.f32 0.0, %v1462
      %v1464 = vpop.f32.mrb[0].mxu0
      %1465 = vmatprep.mubr.bf16.mxu0 0
      %1466 = vmatmul.mubr.bf16.gmra.mrb[0].mxu0 %v1317
      %v1467 = vpop.f32.mrb[0].mxu0
      %v1468 = vadd.f32 0.0, %v1467
      %v1469 = vpop.f32.mrb[0].mxu0
      %v1470 = vpop.f32.mrb[0].mxu0
      %v1471 = vadd.f32 0.0, %v1470
      %v1472 = vpop.f32.mrb[0].mxu0
      %1473 = vmatprep.mubr.bf16.mxu0 0
      %1474 = vmatmul.mubr.bf16.gmra.mrb[0].mxu0 %v1320
      %v1475 = vpop.f32.mrb[0].mxu0
      %v1476 = vadd.f32 0.0, %v1475
      %v1477 = vpop.f32.mrb[0].mxu0
      %v1478 = vpop.f32.mrb[0].mxu0
      %v1479 = vadd.f32 0.0, %v1478
      %v1480 = vpop.f32.mrb[0].mxu0
      %1481 = vmatprep.mubr.bf16.mxu0 0
      %1482 = vmatmul.mubr.bf16.gmra.mrb[0].mxu0 %v1323
      %v1483 = vpop.f32.mrb[0].mxu0
      %v1484 = vadd.f32 0.0, %v1483
      %v1485 = vpop.f32.mrb[0].mxu0
      %v1486 = vpop.f32.mrb[0].mxu0
      %v1487 = vadd.f32 0.0, %v1486
      %v1488 = vpop.f32.mrb[0].mxu0
      %1489 = vdwg.mxu0
      %vm1490 = vcmask 261120
      %1491 = vst.msk [vmem:[#allocation4] sm:$0xff] %vm1490, %v1364
      %1492 = vst.msk [vmem:[#allocation4 + $0x8] sm:$0xff] %vm1490, %v1367
      %1493 = vst.msk [vmem:[#allocation4 + $0x10] sm:$0xff] %vm1490, %v1372
      %1494 = vst.msk [vmem:[#allocation4 + $0x18] sm:$0xff] %vm1490, %v1375
      %1495 = vst.msk [vmem:[#allocation4 + $0x20] sm:$0xff] %vm1490, %v1380
      %1496 = vst.msk [vmem:[#allocation4 + $0x28] sm:$0xff] %vm1490, %v1383
      %1497 = vst.msk [vmem:[#allocation4 + $0x30] sm:$0xff] %vm1490, %v1388
      %1498 = vst.msk [vmem:[#allocation4 + $0x38] sm:$0xff] %vm1490, %v1391
      %1499 = vst.msk [vmem:[#allocation4 + $0x40] sm:$0xff] %vm1490, %v1396
      %1500 = vst.msk [vmem:[#allocation4 + $0x48] sm:$0xff] %vm1490, %v1399
      %1501 = vst.msk [vmem:[#allocation4 + $0x50] sm:$0xff] %vm1490, %v1404
      %1502 = vst.msk [vmem:[#allocation4 + $0x58] sm:$0xff] %vm1490, %v1407
      %1503 = vst.msk [vmem:[#allocation4 + $0x60] sm:$0xff] %vm1490, %v1412
      %1504 = vst.msk [vmem:[#allocation4 + $0x68] sm:$0xff] %vm1490, %v1415
      %1505 = vst.msk [vmem:[#allocation4 + $0x70] sm:$0xff] %vm1490, %v1420
      %1506 = vst.msk [vmem:[#allocation4 + $0x78] sm:$0xff] %vm1490, %v1423
      %1507 = vst.msk [vmem:[#allocation4 + $0x80] sm:$0xff] %vm1490, %v1428
      %1508 = vst.msk [vmem:[#allocation4 + $0x88] sm:$0xff] %vm1490, %v1431
      %1509 = vst.msk [vmem:[#allocation4 + $0x90] sm:$0xff] %vm1490, %v1436
      %1510 = vst.msk [vmem:[#allocation4 + $0x98] sm:$0xff] %vm1490, %v1439
      %1511 = vst.msk [vmem:[#allocation4 + $0xa0] sm:$0xff] %vm1490, %v1444
      %1512 = vst.msk [vmem:[#allocation4 + $0xa8] sm:$0xff] %vm1490, %v1447
      %1513 = vst.msk [vmem:[#allocation4 + $0xb0] sm:$0xff] %vm1490, %v1452
      %1514 = vst.msk [vmem:[#allocation4 + $0xb8] sm:$0xff] %vm1490, %v1455
      %1515 = vst.msk [vmem:[#allocation4 + $0xc0] sm:$0xff] %vm1490, %v1460
      %1516 = vst.msk [vmem:[#allocation4 + $0xc8] sm:$0xff] %vm1490, %v1463
      %1517 = vst.msk [vmem:[#allocation4 + $0xd0] sm:$0xff] %vm1490, %v1468
      %1518 = vst.msk [vmem:[#allocation4 + $0xd8] sm:$0xff] %vm1490, %v1471
      %1519 = vst.msk [vmem:[#allocation4 + $0xe0] sm:$0xff] %vm1490, %v1476
      %1520 = vst.msk [vmem:[#allocation4 + $0xe8] sm:$0xff] %vm1490, %v1479
      %1521 = vst.msk [vmem:[#allocation4 + $0xf0] sm:$0xff] %vm1490, %v1484
      %1522 = vst.msk [vmem:[#allocation4 + $0xf8] sm:$0xff] %vm1490, %v1487
      %v1523 = vld [vmem:[#allocation2 + $0x1] sm:$0xff]
      %v1524 = vld [vmem:[#allocation2 + $0x9] sm:$0xff]
      %v1525 = vld [vmem:[#allocation2 + $0x19] sm:$0xff]
      %v1526 = vld [vmem:[#allocation2 + $0x21] sm:$0xff]
      %v1527 = vld [vmem:[#allocation2 + $0x31] sm:$0xff]
      %v1528 = vld [vmem:[#allocation2 + $0x39] sm:$0xff]
      %v1529 = vld [vmem:[#allocation2 + $0x49] sm:$0xff]
      %v1530 = vld [vmem:[#allocation2 + $0x51] sm:$0xff]
      %v1531 = vld [vmem:[#allocation2 + $0x61] sm:$0xff]
      %v1532 = vld [vmem:[#allocation2 + $0x69] sm:$0xff]
      %v1533 = vld [vmem:[#allocation2 + $0x79] sm:$0xff]
      %v1534 = vld [vmem:[#allocation2 + $0x81] sm:$0xff]
      %v1535 = vld [vmem:[#allocation2 + $0x91] sm:$0xff]
      %v1536 = vld [vmem:[#allocation2 + $0x99] sm:$0xff]
      %v1537 = vld [vmem:[#allocation2 + $0xa9] sm:$0xff]
      %v1538 = vld [vmem:[#allocation2 + $0xb1] sm:$0xff]
      %v1539 = vld [vmem:[#allocation2 + $0xc1] sm:$0xff]
      %v1540 = vld [vmem:[#allocation2 + $0xc9] sm:$0xff]
      %v1541 = vld [vmem:[#allocation2 + $0xd9] sm:$0xff]
      %v1542 = vld [vmem:[#allocation2 + $0xe1] sm:$0xff]
      %v1543 = vld [vmem:[#allocation2 + $0xf1] sm:$0xff]
      %v1544 = vld [vmem:[#allocation2 + $0xf9] sm:$0xff]
      %v1545 = vld [vmem:[#allocation2 + $0x109] sm:$0xff]
      %v1546 = vld [vmem:[#allocation2 + $0x111] sm:$0xff]
      %v1547 = vld [vmem:[#allocation2 + $0x121] sm:$0xff]
      %v1548 = vld [vmem:[#allocation2 + $0x129] sm:$0xff]
      %v1549 = vld [vmem:[#allocation2 + $0x139] sm:$0xff]
      %v1550 = vld [vmem:[#allocation2 + $0x141] sm:$0xff]
      %v1551 = vld [vmem:[#allocation2 + $0x151] sm:$0xff]
      %v1552 = vld [vmem:[#allocation2 + $0x159] sm:$0xff]
      %v1553 = vld [vmem:[#allocation2 + $0x169] sm:$0xff]
      %v1554 = vld [vmem:[#allocation2 + $0x171] sm:$0xff]
      %v1555 = vpack.c.bf16 %v1524, %v1523
      %v1556 = vpack.c.bf16 %v1526, %v1525
      %v1557 = vpack.c.bf16 %v1528, %v1527
      %v1558 = vpack.c.bf16 %v1530, %v1529
      %v1559 = vpack.c.bf16 %v1532, %v1531
      %v1560 = vpack.c.bf16 %v1534, %v1533
      %v1561 = vpack.c.bf16 %v1536, %v1535
      %v1562 = vpack.c.bf16 %v1538, %v1537
      %v1563 = vpack.c.bf16 %v1540, %v1539
      %v1564 = vpack.c.bf16 %v1542, %v1541
      %v1565 = vpack.c.bf16 %v1544, %v1543
      %v1566 = vpack.c.bf16 %v1546, %v1545
      %v1567 = vpack.c.bf16 %v1548, %v1547
      %v1568 = vpack.c.bf16 %v1550, %v1549
      %v1569 = vpack.c.bf16 %v1552, %v1551
      %v1570 = vpack.c.bf16 %v1554, %v1553
      %s1571 = scalar_lea.vmem %s6, 4
      %v1572 = vld [vmem:[%s1571] sm:$0xf]
      %v1574 = vsel %vm556, %v1555, 0
      %v1577 = vsel %vm556, %v1556, 0
      %v1580 = vsel %vm556, %v1557, 0
      %v1583 = vsel %vm556, %v1558, 0
      %v1586 = vsel %vm556, %v1559, 0
      %v1589 = vsel %vm556, %v1560, 0
      %v1592 = vsel %vm556, %v1561, 0
      %v1595 = vsel %vm556, %v1562, 0
      %v1598 = vsel %vm556, %v1563, 0
      %v1601 = vsel %vm556, %v1564, 0
      %v1604 = vsel %vm556, %v1565, 0
      %v1607 = vsel %vm556, %v1566, 0
      %v1610 = vsel %vm556, %v1567, 0
      %v1613 = vsel %vm556, %v1568, 0
      %v1616 = vsel %vm556, %v1569, 0
      %v1619 = vsel %vm556, %v1570, 0
      %v1622 = vsel %vm1325, %v1572, 0
      %1624 = vmatprep.subr.bf16.mxu0 0
      %1625 = vmatpush1.bf16.msra.mxu0 %v1622
      %1626 = vmatprep.subr.bf16.mxu0 0
      %1627 = vmatpush1.bf16.msra.mxu0 0
      %1628 = vmatprep.subr.bf16.mxu0 0
      %1629 = vmatpush1.bf16.msra.mxu0 0
      %1630 = vmatprep.subr.bf16.mxu0 0
      %1631 = vmatpush1.bf16.msra.mxu0 0
      %1632 = vmatprep.subr.bf16.mxu0 0
      %1633 = vmatpush1.bf16.msra.mxu0 0
      %1634 = vmatprep.subr.bf16.mxu0 0
      %1635 = vmatpush1.bf16.msra.mxu0 0
      %1636 = vmatprep.subr.bf16.mxu0 0
      %1637 = vmatpush1.bf16.msra.mxu0 0
      %1638 = vmatprep.subr.bf16.mxu0 0
      %1639 = vmatpush1.bf16.msra.mxu0 0
      %1640 = vmatprep.subr.bf16.mxu0 0
      %1641 = vmatpush1.bf16.msra.mxu0 0
      %1642 = vmatprep.subr.bf16.mxu0 0
      %1643 = vmatpush1.bf16.msra.mxu0 0
      %1644 = vmatprep.subr.bf16.mxu0 0
      %1645 = vmatpush1.bf16.msra.mxu0 0
      %1646 = vmatprep.subr.bf16.mxu0 0
      %1647 = vmatpush1.bf16.msra.mxu0 0
      %1648 = vmatprep.subr.bf16.mxu0 0
      %1649 = vmatpush1.bf16.msra.mxu0 0
      %1650 = vmatprep.subr.bf16.mxu0 0
      %1651 = vmatpush1.bf16.msra.mxu0 0
      %1652 = vmatprep.subr.bf16.mxu0 0
      %1653 = vmatpush1.bf16.msra.mxu0 0
      %1654 = vmatprep.subr.bf16.mxu0 0
      %1655 = vmatpush1.bf16.msra.mxu0 0
      %1656 = vmatprep.mubr.bf16.mxu0 0
      %1657 = vmatmul.mubr.bf16.gmra.mrb[0].mxu0 %v1574
      %v1658 = vpop.f32.mrb[0].mxu0
      %v1659 = vadd.f32 0.0, %v1658
      %v1660 = vpop.f32.mrb[0].mxu0
      %v1661 = vpop.f32.mrb[0].mxu0
      %v1662 = vadd.f32 0.0, %v1661
      %v1663 = vpop.f32.mrb[0].mxu0
      %1664 = vmatprep.mubr.bf16.mxu0 0
      %1665 = vmatmul.mubr.bf16.gmra.mrb[0].mxu0 %v1577
      %v1666 = vpop.f32.mrb[0].mxu0
      %v1667 = vadd.f32 0.0, %v1666
      %v1668 = vpop.f32.mrb[0].mxu0
      %v1669 = vpop.f32.mrb[0].mxu0
      %v1670 = vadd.f32 0.0, %v1669
      %v1671 = vpop.f32.mrb[0].mxu0
      %1672 = vmatprep.mubr.bf16.mxu0 0
      %1673 = vmatmul.mubr.bf16.gmra.mrb[0].mxu0 %v1580
      %v1674 = vpop.f32.mrb[0].mxu0
      %v1675 = vadd.f32 0.0, %v1674
      %v1676 = vpop.f32.mrb[0].mxu0
      %v1677 = vpop.f32.mrb[0].mxu0
      %v1678 = vadd.f32 0.0, %v1677
      %v1679 = vpop.f32.mrb[0].mxu0
      %1680 = vmatprep.mubr.bf16.mxu0 0
      %1681 = vmatmul.mubr.bf16.gmra.mrb[0].mxu0 %v1583
      %v1682 = vpop.f32.mrb[0].mxu0
      %v1683 = vadd.f32 0.0, %v1682
      %v1684 = vpop.f32.mrb[0].mxu0
      %v1685 = vpop.f32.mrb[0].mxu0
      %v1686 = vadd.f32 0.0, %v1685
      %v1687 = vpop.f32.mrb[0].mxu0
      %1688 = vmatprep.mubr.bf16.mxu0 0
      %1689 = vmatmul.mubr.bf16.gmra.mrb[0].mxu0 %v1586
      %v1690 = vpop.f32.mrb[0].mxu0
      %v1691 = vadd.f32 0.0, %v1690
      %v1692 = vpop.f32.mrb[0].mxu0
      %v1693 = vpop.f32.mrb[0].mxu0
      %v1694 = vadd.f32 0.0, %v1693
      %v1695 = vpop.f32.mrb[0].mxu0
      %1696 = vmatprep.mubr.bf16.mxu0 0
      %1697 = vmatmul.mubr.bf16.gmra.mrb[0].mxu0 %v1589
      %v1698 = vpop.f32.mrb[0].mxu0
      %v1699 = vadd.f32 0.0, %v1698
      %v1700 = vpop.f32.mrb[0].mxu0
      %v1701 = vpop.f32.mrb[0].mxu0
      %v1702 = vadd.f32 0.0, %v1701
      %v1703 = vpop.f32.mrb[0].mxu0
      %1704 = vmatprep.mubr.bf16.mxu0 0
      %1705 = vmatmul.mubr.bf16.gmra.mrb[0].mxu0 %v1592
      %v1706 = vpop.f32.mrb[0].mxu0
      %v1707 = vadd.f32 0.0, %v1706
      %v1708 = vpop.f32.mrb[0].mxu0
      %v1709 = vpop.f32.mrb[0].mxu0
      %v1710 = vadd.f32 0.0, %v1709
      %v1711 = vpop.f32.mrb[0].mxu0
      %1712 = vmatprep.mubr.bf16.mxu0 0
      %1713 = vmatmul.mubr.bf16.gmra.mrb[0].mxu0 %v1595
      %v1714 = vpop.f32.mrb[0].mxu0
      %v1715 = vadd.f32 0.0, %v1714
      %v1716 = vpop.f32.mrb[0].mxu0
      %v1717 = vpop.f32.mrb[0].mxu0
      %v1718 = vadd.f32 0.0, %v1717
      %v1719 = vpop.f32.mrb[0].mxu0
      %1720 = vmatprep.mubr.bf16.mxu0 0
      %1721 = vmatmul.mubr.bf16.gmra.mrb[0].mxu0 %v1598
      %v1722 = vpop.f32.mrb[0].mxu0
      %v1723 = vadd.f32 0.0, %v1722
      %v1724 = vpop.f32.mrb[0].mxu0
      %v1725 = vpop.f32.mrb[0].mxu0
      %v1726 = vadd.f32 0.0, %v1725
      %v1727 = vpop.f32.mrb[0].mxu0
      %1728 = vmatprep.mubr.bf16.mxu0 0
      %1729 = vmatmul.mubr.bf16.gmra.mrb[0].mxu0 %v1601
      %v1730 = vpop.f32.mrb[0].mxu0
      %v1731 = vadd.f32 0.0, %v1730
      %v1732 = vpop.f32.mrb[0].mxu0
      %v1733 = vpop.f32.mrb[0].mxu0
      %v1734 = vadd.f32 0.0, %v1733
      %v1735 = vpop.f32.mrb[0].mxu0
      %1736 = vmatprep.mubr.bf16.mxu0 0
      %1737 = vmatmul.mubr.bf16.gmra.mrb[0].mxu0 %v1604
      %v1738 = vpop.f32.mrb[0].mxu0
      %v1739 = vadd.f32 0.0, %v1738
      %v1740 = vpop.f32.mrb[0].mxu0
      %v1741 = vpop.f32.mrb[0].mxu0
      %v1742 = vadd.f32 0.0, %v1741
      %v1743 = vpop.f32.mrb[0].mxu0
      %1744 = vmatprep.mubr.bf16.mxu0 0
      %1745 = vmatmul.mubr.bf16.gmra.mrb[0].mxu0 %v1607
      %v1746 = vpop.f32.mrb[0].mxu0
      %v1747 = vadd.f32 0.0, %v1746
      %v1748 = vpop.f32.mrb[0].mxu0
      %v1749 = vpop.f32.mrb[0].mxu0
      %v1750 = vadd.f32 0.0, %v1749
      %v1751 = vpop.f32.mrb[0].mxu0
      %1752 = vmatprep.mubr.bf16.mxu0 0
      %1753 = vmatmul.mubr.bf16.gmra.mrb[0].mxu0 %v1610
      %v1754 = vpop.f32.mrb[0].mxu0
      %v1755 = vadd.f32 0.0, %v1754
      %v1756 = vpop.f32.mrb[0].mxu0
      %v1757 = vpop.f32.mrb[0].mxu0
      %v1758 = vadd.f32 0.0, %v1757
      %v1759 = vpop.f32.mrb[0].mxu0
      %1760 = vmatprep.mubr.bf16.mxu0 0
      %1761 = vmatmul.mubr.bf16.gmra.mrb[0].mxu0 %v1613
      %v1762 = vpop.f32.mrb[0].mxu0
      %v1763 = vadd.f32 0.0, %v1762
      %v1764 = vpop.f32.mrb[0].mxu0
      %v1765 = vpop.f32.mrb[0].mxu0
      %v1766 = vadd.f32 0.0, %v1765
      %v1767 = vpop.f32.mrb[0].mxu0
      %1768 = vmatprep.mubr.bf16.mxu0 0
      %1769 = vmatmul.mubr.bf16.gmra.mrb[0].mxu0 %v1616
      %v1770 = vpop.f32.mrb[0].mxu0
      %v1771 = vadd.f32 0.0, %v1770
      %v1772 = vpop.f32.mrb[0].mxu0
      %v1773 = vpop.f32.mrb[0].mxu0
      %v1774 = vadd.f32 0.0, %v1773
      %v1775 = vpop.f32.mrb[0].mxu0
      %1776 = vmatprep.mubr.bf16.mxu0 0
      %1777 = vmatmul.mubr.bf16.gmra.mrb[0].mxu0 %v1619
      %v1778 = vpop.f32.mrb[0].mxu0
      %v1779 = vadd.f32 0.0, %v1778
      %v1780 = vpop.f32.mrb[0].mxu0
      %v1781 = vpop.f32.mrb[0].mxu0
      %v1782 = vadd.f32 0.0, %v1781
      %v1783 = vpop.f32.mrb[0].mxu0
      %1784 = vdwg.mxu0
      %v1785 = vld [vmem:[#allocation4] sm:$0xff]
      %v1786 = vld [vmem:[#allocation4 + $0x8] sm:$0xff]
      %v1787 = vld [vmem:[#allocation4 + $0x10] sm:$0xff]
      %v1788 = vld [vmem:[#allocation4 + $0x18] sm:$0xff]
      %v1789 = vld [vmem:[#allocation4 + $0x20] sm:$0xff]
      %v1790 = vld [vmem:[#allocation4 + $0x28] sm:$0xff]
      %v1791 = vld [vmem:[#allocation4 + $0x30] sm:$0xff]
      %v1792 = vld [vmem:[#allocation4 + $0x38] sm:$0xff]
      %v1793 = vld [vmem:[#allocation4 + $0x40] sm:$0xff]
      %v1794 = vld [vmem:[#allocation4 + $0x48] sm:$0xff]
      %v1795 = vld [vmem:[#allocation4 + $0x50] sm:$0xff]
      %v1796 = vld [vmem:[#allocation4 + $0x58] sm:$0xff]
      %v1797 = vld [vmem:[#allocation4 + $0x60] sm:$0xff]
      %v1798 = vld [vmem:[#allocation4 + $0x68] sm:$0xff]
      %v1799 = vld [vmem:[#allocation4 + $0x70] sm:$0xff]
      %v1800 = vld [vmem:[#allocation4 + $0x78] sm:$0xff]
      %v1801 = vld [vmem:[#allocation4 + $0x80] sm:$0xff]
      %v1802 = vld [vmem:[#allocation4 + $0x88] sm:$0xff]
      %v1803 = vld [vmem:[#allocation4 + $0x90] sm:$0xff]
      %v1804 = vld [vmem:[#allocation4 + $0x98] sm:$0xff]
      %v1805 = vld [vmem:[#allocation4 + $0xa0] sm:$0xff]
      %v1806 = vld [vmem:[#allocation4 + $0xa8] sm:$0xff]
      %v1807 = vld [vmem:[#allocation4 + $0xb0] sm:$0xff]
      %v1808 = vld [vmem:[#allocation4 + $0xb8] sm:$0xff]
      %v1809 = vld [vmem:[#allocation4 + $0xc0] sm:$0xff]
      %v1810 = vld [vmem:[#allocation4 + $0xc8] sm:$0xff]
      %v1811 = vld [vmem:[#allocation4 + $0xd0] sm:$0xff]
      %v1812 = vld [vmem:[#allocation4 + $0xd8] sm:$0xff]
      %v1813 = vld [vmem:[#allocation4 + $0xe0] sm:$0xff]
      %v1814 = vld [vmem:[#allocation4 + $0xe8] sm:$0xff]
      %v1815 = vld [vmem:[#allocation4 + $0xf0] sm:$0xff]
      %v1816 = vld [vmem:[#allocation4 + $0xf8] sm:$0xff]
      %v1817 = vadd.f32 %v1785, %v1659
      %v1818 = vadd.f32 %v1786, %v1662
      %v1819 = vadd.f32 %v1787, %v1667
      %v1820 = vadd.f32 %v1788, %v1670
      %v1821 = vadd.f32 %v1789, %v1675
      %v1822 = vadd.f32 %v1790, %v1678
      %v1823 = vadd.f32 %v1791, %v1683
      %v1824 = vadd.f32 %v1792, %v1686
      %v1825 = vadd.f32 %v1793, %v1691
      %v1826 = vadd.f32 %v1794, %v1694
      %v1827 = vadd.f32 %v1795, %v1699
      %v1828 = vadd.f32 %v1796, %v1702
      %v1829 = vadd.f32 %v1797, %v1707
      %v1830 = vadd.f32 %v1798, %v1710
      %v1831 = vadd.f32 %v1799, %v1715
      %v1832 = vadd.f32 %v1800, %v1718
      %v1833 = vadd.f32 %v1801, %v1723
      %v1834 = vadd.f32 %v1802, %v1726
      %v1835 = vadd.f32 %v1803, %v1731
      %v1836 = vadd.f32 %v1804, %v1734
      %v1837 = vadd.f32 %v1805, %v1739
      %v1838 = vadd.f32 %v1806, %v1742
      %v1839 = vadd.f32 %v1807, %v1747
      %v1840 = vadd.f32 %v1808, %v1750
      %v1841 = vadd.f32 %v1809, %v1755
      %v1842 = vadd.f32 %v1810, %v1758
      %v1843 = vadd.f32 %v1811, %v1763
      %v1844 = vadd.f32 %v1812, %v1766
      %v1845 = vadd.f32 %v1813, %v1771
      %v1846 = vadd.f32 %v1814, %v1774
      %v1847 = vadd.f32 %v1815, %v1779
      %v1848 = vadd.f32 %v1816, %v1782
      %1849 = vst.msk [vmem:[#allocation4] sm:$0xff] %vm1490, %v1817
      %1850 = vst.msk [vmem:[#allocation4 + $0x8] sm:$0xff] %vm1490, %v1818
      %1851 = vst.msk [vmem:[#allocation4 + $0x10] sm:$0xff] %vm1490, %v1819
      %1852 = vst.msk [vmem:[#allocation4 + $0x18] sm:$0xff] %vm1490, %v1820
      %1853 = vst.msk [vmem:[#allocation4 + $0x20] sm:$0xff] %vm1490, %v1821
      %1854 = vst.msk [vmem:[#allocation4 + $0x28] sm:$0xff] %vm1490, %v1822
      %1855 = vst.msk [vmem:[#allocation4 + $0x30] sm:$0xff] %vm1490, %v1823
      %1856 = vst.msk [vmem:[#allocation4 + $0x38] sm:$0xff] %vm1490, %v1824
      %1857 = vst.msk [vmem:[#allocation4 + $0x40] sm:$0xff] %vm1490, %v1825
      %1858 = vst.msk [vmem:[#allocation4 + $0x48] sm:$0xff] %vm1490, %v1826
      %1859 = vst.msk [vmem:[#allocation4 + $0x50] sm:$0xff] %vm1490, %v1827
      %1860 = vst.msk [vmem:[#allocation4 + $0x58] sm:$0xff] %vm1490, %v1828
      %1861 = vst.msk [vmem:[#allocation4 + $0x60] sm:$0xff] %vm1490, %v1829
      %1862 = vst.msk [vmem:[#allocation4 + $0x68] sm:$0xff] %vm1490, %v1830
      %1863 = vst.msk [vmem:[#allocation4 + $0x70] sm:$0xff] %vm1490, %v1831
      %1864 = vst.msk [vmem:[#allocation4 + $0x78] sm:$0xff] %vm1490, %v1832
      %1865 = vst.msk [vmem:[#allocation4 + $0x80] sm:$0xff] %vm1490, %v1833
      %1866 = vst.msk [vmem:[#allocation4 + $0x88] sm:$0xff] %vm1490, %v1834
      %1867 = vst.msk [vmem:[#allocation4 + $0x90] sm:$0xff] %vm1490, %v1835
      %1868 = vst.msk [vmem:[#allocation4 + $0x98] sm:$0xff] %vm1490, %v1836
      %1869 = vst.msk [vmem:[#allocation4 + $0xa0] sm:$0xff] %vm1490, %v1837
      %1870 = vst.msk [vmem:[#allocation4 + $0xa8] sm:$0xff] %vm1490, %v1838
      %1871 = vst.msk [vmem:[#allocation4 + $0xb0] sm:$0xff] %vm1490, %v1839
      %1872 = vst.msk [vmem:[#allocation4 + $0xb8] sm:$0xff] %vm1490, %v1840
      %1873 = vst.msk [vmem:[#allocation4 + $0xc0] sm:$0xff] %vm1490, %v1841
      %1874 = vst.msk [vmem:[#allocation4 + $0xc8] sm:$0xff] %vm1490, %v1842
      %1875 = vst.msk [vmem:[#allocation4 + $0xd0] sm:$0xff] %vm1490, %v1843
      %1876 = vst.msk [vmem:[#allocation4 + $0xd8] sm:$0xff] %vm1490, %v1844
      %1877 = vst.msk [vmem:[#allocation4 + $0xe0] sm:$0xff] %vm1490, %v1845
      %1878 = vst.msk [vmem:[#allocation4 + $0xe8] sm:$0xff] %vm1490, %v1846
      %1879 = vst.msk [vmem:[#allocation4 + $0xf0] sm:$0xff] %vm1490, %v1847
      %1880 = vst.msk [vmem:[#allocation4 + $0xf8] sm:$0xff] %vm1490, %v1848
      %v1881 = vld [vmem:[#allocation2 + $0x2] sm:$0xff]
      %v1882 = vld [vmem:[#allocation2 + $0xa] sm:$0xff]
      %v1883 = vld [vmem:[#allocation2 + $0x1a] sm:$0xff]
      %v1884 = vld [vmem:[#allocation2 + $0x22] sm:$0xff]
      %v1885 = vld [vmem:[#allocation2 + $0x32] sm:$0xff]
      %v1886 = vld [vmem:[#allocation2 + $0x3a] sm:$0xff]
      %v1887 = vld [vmem:[#allocation2 + $0x4a] sm:$0xff]
      %v1888 = vld [vmem:[#allocation2 + $0x52] sm:$0xff]
      %v1889 = vld [vmem:[#allocation2 + $0x62] sm:$0xff]
      %v1890 = vld [vmem:[#allocation2 + $0x6a] sm:$0xff]
      %v1891 = vld [vmem:[#allocation2 + $0x7a] sm:$0xff]
      %v1892 = vld [vmem:[#allocation2 + $0x82] sm:$0xff]
      %v1893 = vld [vmem:[#allocation2 + $0x92] sm:$0xff]
      %v1894 = vld [vmem:[#allocation2 + $0x9a] sm:$0xff]
      %v1895 = vld [vmem:[#allocation2 + $0xaa] sm:$0xff]
      %v1896 = vld [vmem:[#allocation2 + $0xb2] sm:$0xff]
      %v1897 = vld [vmem:[#allocation2 + $0xc2] sm:$0xff]
      %v1898 = vld [vmem:[#allocation2 + $0xca] sm:$0xff]
      %v1899 = vld [vmem:[#allocation2 + $0xda] sm:$0xff]
      %v1900 = vld [vmem:[#allocation2 + $0xe2] sm:$0xff]
      %v1901 = vld [vmem:[#allocation2 + $0xf2] sm:$0xff]
      %v1902 = vld [vmem:[#allocation2 + $0xfa] sm:$0xff]
      %v1903 = vld [vmem:[#allocation2 + $0x10a] sm:$0xff]
      %v1904 = vld [vmem:[#allocation2 + $0x112] sm:$0xff]
      %v1905 = vld [vmem:[#allocation2 + $0x122] sm:$0xff]
      %v1906 = vld [vmem:[#allocation2 + $0x12a] sm:$0xff]
      %v1907 = vld [vmem:[#allocation2 + $0x13a] sm:$0xff]
      %v1908 = vld [vmem:[#allocation2 + $0x142] sm:$0xff]
      %v1909 = vld [vmem:[#allocation2 + $0x152] sm:$0xff]
      %v1910 = vld [vmem:[#allocation2 + $0x15a] sm:$0xff]
      %v1911 = vld [vmem:[#allocation2 + $0x16a] sm:$0xff]
      %v1912 = vld [vmem:[#allocation2 + $0x172] sm:$0xff]
      %v1913 = vpack.c.bf16 %v1882, %v1881
      %v1914 = vpack.c.bf16 %v1884, %v1883
      %v1915 = vpack.c.bf16 %v1886, %v1885
      %v1916 = vpack.c.bf16 %v1888, %v1887
      %v1917 = vpack.c.bf16 %v1890, %v1889
      %v1918 = vpack.c.bf16 %v1892, %v1891
      %v1919 = vpack.c.bf16 %v1894, %v1893
      %v1920 = vpack.c.bf16 %v1896, %v1895
      %v1921 = vpack.c.bf16 %v1898, %v1897
      %v1922 = vpack.c.bf16 %v1900, %v1899
      %v1923 = vpack.c.bf16 %v1902, %v1901
      %v1924 = vpack.c.bf16 %v1904, %v1903
      %v1925 = vpack.c.bf16 %v1906, %v1905
      %v1926 = vpack.c.bf16 %v1908, %v1907
      %v1927 = vpack.c.bf16 %v1910, %v1909
      %v1928 = vpack.c.bf16 %v1912, %v1911
      %s1929 = scalar_lea.vmem %s6, 8
      %v1930 = vld [vmem:[%s1929] sm:$0xf]
      %v1932 = vsel %vm556, %v1913, 0
      %v1935 = vsel %vm556, %v1914, 0
      %v1938 = vsel %vm556, %v1915, 0
      %v1941 = vsel %vm556, %v1916, 0
      %v1944 = vsel %vm556, %v1917, 0
      %v1947 = vsel %vm556, %v1918, 0
      %v1950 = vsel %vm556, %v1919, 0
      %v1953 = vsel %vm556, %v1920, 0
      %v1956 = vsel %vm556, %v1921, 0
      %v1959 = vsel %vm556, %v1922, 0
      %v1962 = vsel %vm556, %v1923, 0
      %v1965 = vsel %vm556, %v1924, 0
      %v1968 = vsel %vm556, %v1925, 0
      %v1971 = vsel %vm556, %v1926, 0
      %v1974 = vsel %vm556, %v1927, 0
      %v1977 = vsel %vm556, %v1928, 0
      %v1980 = vsel %vm1325, %v1930, 0
      %1982 = vmatprep.subr.bf16.mxu0 0
      %1983 = vmatpush1.bf16.msra.mxu0 %v1980
      %1984 = vmatprep.subr.bf16.mxu0 0
      %1985 = vmatpush1.bf16.msra.mxu0 0
      %1986 = vmatprep.subr.bf16.mxu0 0
      %1987 = vmatpush1.bf16.msra.mxu0 0
      %1988 = vmatprep.subr.bf16.mxu0 0
      %1989 = vmatpush1.bf16.msra.mxu0 0
      %1990 = vmatprep.subr.bf16.mxu0 0
      %1991 = vmatpush1.bf16.msra.mxu0 0
      %1992 = vmatprep.subr.bf16.mxu0 0
      %1993 = vmatpush1.bf16.msra.mxu0 0
      %1994 = vmatprep.subr.bf16.mxu0 0
      %1995 = vmatpush1.bf16.msra.mxu0 0
      %1996 = vmatprep.subr.bf16.mxu0 0
      %1997 = vmatpush1.bf16.msra.mxu0 0
      %1998 = vmatprep.subr.bf16.mxu0 0
      %1999 = vmatpush1.bf16.msra.mxu0 0
      %2000 = vmatprep.subr.bf16.mxu0 0
      %2001 = vmatpush1.bf16.msra.mxu0 0
      %2002 = vmatprep.subr.bf16.mxu0 0
      %2003 = vmatpush1.bf16.msra.mxu0 0
      %2004 = vmatprep.subr.bf16.mxu0 0
      %2005 = vmatpush1.bf16.msra.mxu0 0
      %2006 = vmatprep.subr.bf16.mxu0 0
      %2007 = vmatpush1.bf16.msra.mxu0 0
      %2008 = vmatprep.subr.bf16.mxu0 0
      %2009 = vmatpush1.bf16.msra.mxu0 0
      %2010 = vmatprep.subr.bf16.mxu0 0
      %2011 = vmatpush1.bf16.msra.mxu0 0
      %2012 = vmatprep.subr.bf16.mxu0 0
      %2013 = vmatpush1.bf16.msra.mxu0 0
      %2014 = vmatprep.mubr.bf16.mxu0 0
      %2015 = vmatmul.mubr.bf16.gmra.mrb[0].mxu0 %v1932
      %v2016 = vpop.f32.mrb[0].mxu0
      %v2017 = vadd.f32 0.0, %v2016
      %v2018 = vpop.f32.mrb[0].mxu0
      %v2019 = vpop.f32.mrb[0].mxu0
      %v2020 = vadd.f32 0.0, %v2019
      %v2021 = vpop.f32.mrb[0].mxu0
      %2022 = vmatprep.mubr.bf16.mxu0 0
      %2023 = vmatmul.mubr.bf16.gmra.mrb[0].mxu0 %v1935
      %v2024 = vpop.f32.mrb[0].mxu0
      %v2025 = vadd.f32 0.0, %v2024
      %v2026 = vpop.f32.mrb[0].mxu0
      %v2027 = vpop.f32.mrb[0].mxu0
      %v2028 = vadd.f32 0.0, %v2027
      %v2029 = vpop.f32.mrb[0].mxu0
      %2030 = vmatprep.mubr.bf16.mxu0 0
      %2031 = vmatmul.mubr.bf16.gmra.mrb[0].mxu0 %v1938
      %v2032 = vpop.f32.mrb[0].mxu0
      %v2033 = vadd.f32 0.0, %v2032
      %v2034 = vpop.f32.mrb[0].mxu0
      %v2035 = vpop.f32.mrb[0].mxu0
      %v2036 = vadd.f32 0.0, %v2035
      %v2037 = vpop.f32.mrb[0].mxu0
      %2038 = vmatprep.mubr.bf16.mxu0 0
      %2039 = vmatmul.mubr.bf16.gmra.mrb[0].mxu0 %v1941
      %v2040 = vpop.f32.mrb[0].mxu0
      %v2041 = vadd.f32 0.0, %v2040
      %v2042 = vpop.f32.mrb[0].mxu0
      %v2043 = vpop.f32.mrb[0].mxu0
      %v2044 = vadd.f32 0.0, %v2043
      %v2045 = vpop.f32.mrb[0].mxu0
      %2046 = vmatprep.mubr.bf16.mxu0 0
      %2047 = vmatmul.mubr.bf16.gmra.mrb[0].mxu0 %v1944
      %v2048 = vpop.f32.mrb[0].mxu0
      %v2049 = vadd.f32 0.0, %v2048
      %v2050 = vpop.f32.mrb[0].mxu0
      %v2051 = vpop.f32.mrb[0].mxu0
      %v2052 = vadd.f32 0.0, %v2051
      %v2053 = vpop.f32.mrb[0].mxu0
      %2054 = vmatprep.mubr.bf16.mxu0 0
      %2055 = vmatmul.mubr.bf16.gmra.mrb[0].mxu0 %v1947
      %v2056 = vpop.f32.mrb[0].mxu0
      %v2057 = vadd.f32 0.0, %v2056
      %v2058 = vpop.f32.mrb[0].mxu0
      %v2059 = vpop.f32.mrb[0].mxu0
      %v2060 = vadd.f32 0.0, %v2059
      %v2061 = vpop.f32.mrb[0].mxu0
      %2062 = vmatprep.mubr.bf16.mxu0 0
      %2063 = vmatmul.mubr.bf16.gmra.mrb[0].mxu0 %v1950
      %v2064 = vpop.f32.mrb[0].mxu0
      %v2065 = vadd.f32 0.0, %v2064
      %v2066 = vpop.f32.mrb[0].mxu0
      %v2067 = vpop.f32.mrb[0].mxu0
      %v2068 = vadd.f32 0.0, %v2067
      %v2069 = vpop.f32.mrb[0].mxu0
      %2070 = vmatprep.mubr.bf16.mxu0 0
      %2071 = vmatmul.mubr.bf16.gmra.mrb[0].mxu0 %v1953
      %v2072 = vpop.f32.mrb[0].mxu0
      %v2073 = vadd.f32 0.0, %v2072
      %v2074 = vpop.f32.mrb[0].mxu0
      %v2075 = vpop.f32.mrb[0].mxu0
      %v2076 = vadd.f32 0.0, %v2075
      %v2077 = vpop.f32.mrb[0].mxu0
      %2078 = vmatprep.mubr.bf16.mxu0 0
      %2079 = vmatmul.mubr.bf16.gmra.mrb[0].mxu0 %v1956
      %v2080 = vpop.f32.mrb[0].mxu0
      %v2081 = vadd.f32 0.0, %v2080
      %v2082 = vpop.f32.mrb[0].mxu0
      %v2083 = vpop.f32.mrb[0].mxu0
      %v2084 = vadd.f32 0.0, %v2083
      %v2085 = vpop.f32.mrb[0].mxu0
      %2086 = vmatprep.mubr.bf16.mxu0 0
      %2087 = vmatmul.mubr.bf16.gmra.mrb[0].mxu0 %v1959
      %v2088 = vpop.f32.mrb[0].mxu0
      %v2089 = vadd.f32 0.0, %v2088
      %v2090 = vpop.f32.mrb[0].mxu0
      %v2091 = vpop.f32.mrb[0].mxu0
      %v2092 = vadd.f32 0.0, %v2091
      %v2093 = vpop.f32.mrb[0].mxu0
      %2094 = vmatprep.mubr.bf16.mxu0 0
      %2095 = vmatmul.mubr.bf16.gmra.mrb[0].mxu0 %v1962
      %v2096 = vpop.f32.mrb[0].mxu0
      %v2097 = vadd.f32 0.0, %v2096
      %v2098 = vpop.f32.mrb[0].mxu0
      %v2099 = vpop.f32.mrb[0].mxu0
      %v2100 = vadd.f32 0.0, %v2099
      %v2101 = vpop.f32.mrb[0].mxu0
      %2102 = vmatprep.mubr.bf16.mxu0 0
      %2103 = vmatmul.mubr.bf16.gmra.mrb[0].mxu0 %v1965
      %v2104 = vpop.f32.mrb[0].mxu0
      %v2105 = vadd.f32 0.0, %v2104
      %v2106 = vpop.f32.mrb[0].mxu0
      %v2107 = vpop.f32.mrb[0].mxu0
      %v2108 = vadd.f32 0.0, %v2107
      %v2109 = vpop.f32.mrb[0].mxu0
      %2110 = vmatprep.mubr.bf16.mxu0 0
      %2111 = vmatmul.mubr.bf16.gmra.mrb[0].mxu0 %v1968
      %v2112 = vpop.f32.mrb[0].mxu0
      %v2113 = vadd.f32 0.0, %v2112
      %v2114 = vpop.f32.mrb[0].mxu0
      %v2115 = vpop.f32.mrb[0].mxu0
      %v2116 = vadd.f32 0.0, %v2115
      %v2117 = vpop.f32.mrb[0].mxu0
      %2118 = vmatprep.mubr.bf16.mxu0 0
      %2119 = vmatmul.mubr.bf16.gmra.mrb[0].mxu0 %v1971
      %v2120 = vpop.f32.mrb[0].mxu0
      %v2121 = vadd.f32 0.0, %v2120
      %v2122 = vpop.f32.mrb[0].mxu0
      %v2123 = vpop.f32.mrb[0].mxu0
      %v2124 = vadd.f32 0.0, %v2123
      %v2125 = vpop.f32.mrb[0].mxu0
      %2126 = vmatprep.mubr.bf16.mxu0 0
      %2127 = vmatmul.mubr.bf16.gmra.mrb[0].mxu0 %v1974
      %v2128 = vpop.f32.mrb[0].mxu0
      %v2129 = vadd.f32 0.0, %v2128
      %v2130 = vpop.f32.mrb[0].mxu0
      %v2131 = vpop.f32.mrb[0].mxu0
      %v2132 = vadd.f32 0.0, %v2131
      %v2133 = vpop.f32.mrb[0].mxu0
      %2134 = vmatprep.mubr.bf16.mxu0 0
      %2135 = vmatmul.mubr.bf16.gmra.mrb[0].mxu0 %v1977
      %v2136 = vpop.f32.mrb[0].mxu0
      %v2137 = vadd.f32 0.0, %v2136
      %v2138 = vpop.f32.mrb[0].mxu0
      %v2139 = vpop.f32.mrb[0].mxu0
      %v2140 = vadd.f32 0.0, %v2139
      %v2141 = vpop.f32.mrb[0].mxu0
      %2142 = vdwg.mxu0
      %v2143 = vld [vmem:[#allocation4] sm:$0xff]
      %v2144 = vld [vmem:[#allocation4 + $0x8] sm:$0xff]
      %v2145 = vld [vmem:[#allocation4 + $0x10] sm:$0xff]
      %v2146 = vld [vmem:[#allocation4 + $0x18] sm:$0xff]
      %v2147 = vld [vmem:[#allocation4 + $0x20] sm:$0xff]
      %v2148 = vld [vmem:[#allocation4 + $0x28] sm:$0xff]
      %v2149 = vld [vmem:[#allocation4 + $0x30] sm:$0xff]
      %v2150 = vld [vmem:[#allocation4 + $0x38] sm:$0xff]
      %v2151 = vld [vmem:[#allocation4 + $0x40] sm:$0xff]
      %v2152 = vld [vmem:[#allocation4 + $0x48] sm:$0xff]
      %v2153 = vld [vmem:[#allocation4 + $0x50] sm:$0xff]
      %v2154 = vld [vmem:[#allocation4 + $0x58] sm:$0xff]
      %v2155 = vld [vmem:[#allocation4 + $0x60] sm:$0xff]
      %v2156 = vld [vmem:[#allocation4 + $0x68] sm:$0xff]
      %v2157 = vld [vmem:[#allocation4 + $0x70] sm:$0xff]
      %v2158 = vld [vmem:[#allocation4 + $0x78] sm:$0xff]
      %v2159 = vld [vmem:[#allocation4 + $0x80] sm:$0xff]
      %v2160 = vld [vmem:[#allocation4 + $0x88] sm:$0xff]
      %v2161 = vld [vmem:[#allocation4 + $0x90] sm:$0xff]
      %v2162 = vld [vmem:[#allocation4 + $0x98] sm:$0xff]
      %v2163 = vld [vmem:[#allocation4 + $0xa0] sm:$0xff]
      %v2164 = vld [vmem:[#allocation4 + $0xa8] sm:$0xff]
      %v2165 = vld [vmem:[#allocation4 + $0xb0] sm:$0xff]
      %v2166 = vld [vmem:[#allocation4 + $0xb8] sm:$0xff]
      %v2167 = vld [vmem:[#allocation4 + $0xc0] sm:$0xff]
      %v2168 = vld [vmem:[#allocation4 + $0xc8] sm:$0xff]
      %v2169 = vld [vmem:[#allocation4 + $0xd0] sm:$0xff]
      %v2170 = vld [vmem:[#allocation4 + $0xd8] sm:$0xff]
      %v2171 = vld [vmem:[#allocation4 + $0xe0] sm:$0xff]
      %v2172 = vld [vmem:[#allocation4 + $0xe8] sm:$0xff]
      %v2173 = vld [vmem:[#allocation4 + $0xf0] sm:$0xff]
      %v2174 = vld [vmem:[#allocation4 + $0xf8] sm:$0xff]
      %v2175 = vadd.f32 %v2143, %v2017
      %v2176 = vadd.f32 %v2144, %v2020
      %v2177 = vadd.f32 %v2145, %v2025
      %v2178 = vadd.f32 %v2146, %v2028
      %v2179 = vadd.f32 %v2147, %v2033
      %v2180 = vadd.f32 %v2148, %v2036
      %v2181 = vadd.f32 %v2149, %v2041
      %v2182 = vadd.f32 %v2150, %v2044
      %v2183 = vadd.f32 %v2151, %v2049
      %v2184 = vadd.f32 %v2152, %v2052
      %v2185 = vadd.f32 %v2153, %v2057
      %v2186 = vadd.f32 %v2154, %v2060
      %v2187 = vadd.f32 %v2155, %v2065
      %v2188 = vadd.f32 %v2156, %v2068
      %v2189 = vadd.f32 %v2157, %v2073
      %v2190 = vadd.f32 %v2158, %v2076
      %v2191 = vadd.f32 %v2159, %v2081
      %v2192 = vadd.f32 %v2160, %v2084
      %v2193 = vadd.f32 %v2161, %v2089
      %v2194 = vadd.f32 %v2162, %v2092
      %v2195 = vadd.f32 %v2163, %v2097
      %v2196 = vadd.f32 %v2164, %v2100
      %v2197 = vadd.f32 %v2165, %v2105
      %v2198 = vadd.f32 %v2166, %v2108
      %v2199 = vadd.f32 %v2167, %v2113
      %v2200 = vadd.f32 %v2168, %v2116
      %v2201 = vadd.f32 %v2169, %v2121
      %v2202 = vadd.f32 %v2170, %v2124
      %v2203 = vadd.f32 %v2171, %v2129
      %v2204 = vadd.f32 %v2172, %v2132
      %v2205 = vadd.f32 %v2173, %v2137
      %v2206 = vadd.f32 %v2174, %v2140
      %2207 = vst.msk [vmem:[#allocation4] sm:$0xff] %vm1490, %v2175
      %2208 = vst.msk [vmem:[#allocation4 + $0x8] sm:$0xff] %vm1490, %v2176
      %2209 = vst.msk [vmem:[#allocation4 + $0x10] sm:$0xff] %vm1490, %v2177
      %2210 = vst.msk [vmem:[#allocation4 + $0x18] sm:$0xff] %vm1490, %v2178
      %2211 = vst.msk [vmem:[#allocation4 + $0x20] sm:$0xff] %vm1490, %v2179
      %2212 = vst.msk [vmem:[#allocation4 + $0x28] sm:$0xff] %vm1490, %v2180
      %2213 = vst.msk [vmem:[#allocation4 + $0x30] sm:$0xff] %vm1490, %v2181
      %2214 = vst.msk [vmem:[#allocation4 + $0x38] sm:$0xff] %vm1490, %v2182
      %2215 = vst.msk [vmem:[#allocation4 + $0x40] sm:$0xff] %vm1490, %v2183
      %2216 = vst.msk [vmem:[#allocation4 + $0x48] sm:$0xff] %vm1490, %v2184
      %2217 = vst.msk [vmem:[#allocation4 + $0x50] sm:$0xff] %vm1490, %v2185
      %2218 = vst.msk [vmem:[#allocation4 + $0x58] sm:$0xff] %vm1490, %v2186
      %2219 = vst.msk [vmem:[#allocation4 + $0x60] sm:$0xff] %vm1490, %v2187
      %2220 = vst.msk [vmem:[#allocation4 + $0x68] sm:$0xff] %vm1490, %v2188
      %2221 = vst.msk [vmem:[#allocation4 + $0x70] sm:$0xff] %vm1490, %v2189
      %2222 = vst.msk [vmem:[#allocation4 + $0x78] sm:$0xff] %vm1490, %v2190
      %2223 = vst.msk [vmem:[#allocation4 + $0x80] sm:$0xff] %vm1490, %v2191
      %2224 = vst.msk [vmem:[#allocation4 + $0x88] sm:$0xff] %vm1490, %v2192
      %2225 = vst.msk [vmem:[#allocation4 + $0x90] sm:$0xff] %vm1490, %v2193
      %2226 = vst.msk [vmem:[#allocation4 + $0x98] sm:$0xff] %vm1490, %v2194
      %2227 = vst.msk [vmem:[#allocation4 + $0xa0] sm:$0xff] %vm1490, %v2195
      %2228 = vst.msk [vmem:[#allocation4 + $0xa8] sm:$0xff] %vm1490, %v2196
      %2229 = vst.msk [vmem:[#allocation4 + $0xb0] sm:$0xff] %vm1490, %v2197
      %2230 = vst.msk [vmem:[#allocation4 + $0xb8] sm:$0xff] %vm1490, %v2198
      %2231 = vst.msk [vmem:[#allocation4 + $0xc0] sm:$0xff] %vm1490, %v2199
      %2232 = vst.msk [vmem:[#allocation4 + $0xc8] sm:$0xff] %vm1490, %v2200
      %2233 = vst.msk [vmem:[#allocation4 + $0xd0] sm:$0xff] %vm1490, %v2201
      %2234 = vst.msk [vmem:[#allocation4 + $0xd8] sm:$0xff] %vm1490, %v2202
      %2235 = vst.msk [vmem:[#allocation4 + $0xe0] sm:$0xff] %vm1490, %v2203
      %2236 = vst.msk [vmem:[#allocation4 + $0xe8] sm:$0xff] %vm1490, %v2204
      %2237 = vst.msk [vmem:[#allocation4 + $0xf0] sm:$0xff] %vm1490, %v2205
      %2238 = vst.msk [vmem:[#allocation4 + $0xf8] sm:$0xff] %vm1490, %v2206
      %v2239 = vld [vmem:[%s1195] sm:$0xff]
      %v2240 = vld [vmem:[%s1195 + $0x8] sm:$0xff]
      %v2241 = vld [vmem:[%s1195 + $0x18] sm:$0xff]
      %v2242 = vld [vmem:[%s1195 + $0x20] sm:$0xff]
      %v2243 = vld [vmem:[%s1195 + $0x30] sm:$0xff]
      %v2244 = vld [vmem:[%s1195 + $0x38] sm:$0xff]
      %v2245 = vld [vmem:[%s1195 + $0x48] sm:$0xff]
      %v2246 = vld [vmem:[%s1195 + $0x50] sm:$0xff]
      %v2247 = vld [vmem:[%s1195 + $0x60] sm:$0xff]
      %v2248 = vld [vmem:[%s1195 + $0x68] sm:$0xff]
      %v2249 = vld [vmem:[%s1195 + $0x78] sm:$0xff]
      %v2250 = vld [vmem:[%s1195 + $0x80] sm:$0xff]
      %v2251 = vld [vmem:[%s1195 + $0x90] sm:$0xff]
      %v2252 = vld [vmem:[%s1195 + $0x98] sm:$0xff]
      %v2253 = vld [vmem:[%s1195 + $0xa8] sm:$0xff]
      %v2254 = vld [vmem:[%s1195 + $0xb0] sm:$0xff]
      %v2255 = vld [vmem:[%s1195 + $0xc0] sm:$0xff]
      %v2256 = vld [vmem:[%s1195 + $0xc8] sm:$0xff]
      %v2257 = vld [vmem:[%s1195 + $0xd8] sm:$0xff]
      %v2258 = vld [vmem:[%s1195 + $0xe0] sm:$0xff]
      %v2259 = vld [vmem:[%s1195 + $0xf0] sm:$0xff]
      %v2260 = vld [vmem:[%s1195 + $0xf8] sm:$0xff]
      %v2261 = vld [vmem:[%s1195 + $0x108] sm:$0xff]
      %v2262 = vld [vmem:[%s1195 + $0x110] sm:$0xff]
      %v2263 = vld [vmem:[%s1195 + $0x120] sm:$0xff]
      %v2264 = vld [vmem:[%s1195 + $0x128] sm:$0xff]
      %v2265 = vld [vmem:[%s1195 + $0x138] sm:$0xff]
      %v2266 = vld [vmem:[%s1195 + $0x140] sm:$0xff]
      %v2267 = vld [vmem:[%s1195 + $0x150] sm:$0xff]
      %v2268 = vld [vmem:[%s1195 + $0x158] sm:$0xff]
      %v2269 = vld [vmem:[%s1195 + $0x168] sm:$0xff]
      %v2270 = vld [vmem:[%s1195 + $0x170] sm:$0xff]
      %v2271 = vpack.c.bf16 %v2240, %v2239
      %v2272 = vpack.c.bf16 %v2242, %v2241
      %v2273 = vpack.c.bf16 %v2244, %v2243
      %v2274 = vpack.c.bf16 %v2246, %v2245
      %v2275 = vpack.c.bf16 %v2248, %v2247
      %v2276 = vpack.c.bf16 %v2250, %v2249
      %v2277 = vpack.c.bf16 %v2252, %v2251
      %v2278 = vpack.c.bf16 %v2254, %v2253
      %v2279 = vpack.c.bf16 %v2256, %v2255
      %v2280 = vpack.c.bf16 %v2258, %v2257
      %v2281 = vpack.c.bf16 %v2260, %v2259
      %v2282 = vpack.c.bf16 %v2262, %v2261
      %v2283 = vpack.c.bf16 %v2264, %v2263
      %v2284 = vpack.c.bf16 %v2266, %v2265
      %v2285 = vpack.c.bf16 %v2268, %v2267
      %v2286 = vpack.c.bf16 %v2270, %v2269
      %s2287 = scalar_lea.vmem %s6, 12
      %v2288 = vld [vmem:[%s2287] sm:$0xf]
      %v2290 = vsel %vm556, %v2271, 0
      %v2293 = vsel %vm556, %v2272, 0
      %v2296 = vsel %vm556, %v2273, 0
      %v2299 = vsel %vm556, %v2274, 0
      %v2302 = vsel %vm556, %v2275, 0
      %v2305 = vsel %vm556, %v2276, 0
      %v2308 = vsel %vm556, %v2277, 0
      %v2311 = vsel %vm556, %v2278, 0
      %v2314 = vsel %vm556, %v2279, 0
      %v2317 = vsel %vm556, %v2280, 0
      %v2320 = vsel %vm556, %v2281, 0
      %v2323 = vsel %vm556, %v2282, 0
      %v2326 = vsel %vm556, %v2283, 0
      %v2329 = vsel %vm556, %v2284, 0
      %v2332 = vsel %vm556, %v2285, 0
      %v2335 = vsel %vm556, %v2286, 0
      %v2338 = vsel %vm1325, %v2288, 0
      %2340 = vmatprep.subr.bf16.mxu0 0
      %2341 = vmatpush1.bf16.msra.mxu0 %v2338
      %2342 = vmatprep.subr.bf16.mxu0 0
      %2343 = vmatpush1.bf16.msra.mxu0 0
      %2344 = vmatprep.subr.bf16.mxu0 0
      %2345 = vmatpush1.bf16.msra.mxu0 0
      %2346 = vmatprep.subr.bf16.mxu0 0
      %2347 = vmatpush1.bf16.msra.mxu0 0
      %2348 = vmatprep.subr.bf16.mxu0 0
      %2349 = vmatpush1.bf16.msra.mxu0 0
      %2350 = vmatprep.subr.bf16.mxu0 0
      %2351 = vmatpush1.bf16.msra.mxu0 0
      %2352 = vmatprep.subr.bf16.mxu0 0
      %2353 = vmatpush1.bf16.msra.mxu0 0
      %2354 = vmatprep.subr.bf16.mxu0 0
      %2355 = vmatpush1.bf16.msra.mxu0 0
      %2356 = vmatprep.subr.bf16.mxu0 0
      %2357 = vmatpush1.bf16.msra.mxu0 0
      %2358 = vmatprep.subr.bf16.mxu0 0
      %2359 = vmatpush1.bf16.msra.mxu0 0
      %2360 = vmatprep.subr.bf16.mxu0 0
      %2361 = vmatpush1.bf16.msra.mxu0 0
      %2362 = vmatprep.subr.bf16.mxu0 0
      %2363 = vmatpush1.bf16.msra.mxu0 0
      %2364 = vmatprep.subr.bf16.mxu0 0
      %2365 = vmatpush1.bf16.msra.mxu0 0
      %2366 = vmatprep.subr.bf16.mxu0 0
      %2367 = vmatpush1.bf16.msra.mxu0 0
      %2368 = vmatprep.subr.bf16.mxu0 0
      %2369 = vmatpush1.bf16.msra.mxu0 0
      %2370 = vmatprep.subr.bf16.mxu0 0
      %2371 = vmatpush1.bf16.msra.mxu0 0
      %2372 = vmatprep.mubr.bf16.mxu0 0
      %2373 = vmatmul.mubr.bf16.gmra.mrb[0].mxu0 %v2290
      %v2374 = vpop.f32.mrb[0].mxu0
      %v2375 = vadd.f32 0.0, %v2374
      %v2376 = vpop.f32.mrb[0].mxu0
      %v2377 = vpop.f32.mrb[0].mxu0
      %v2378 = vadd.f32 0.0, %v2377
      %v2379 = vpop.f32.mrb[0].mxu0
      %2380 = vmatprep.mubr.bf16.mxu0 0
      %2381 = vmatmul.mubr.bf16.gmra.mrb[0].mxu0 %v2293
      %v2382 = vpop.f32.mrb[0].mxu0
      %v2383 = vadd.f32 0.0, %v2382
      %v2384 = vpop.f32.mrb[0].mxu0
      %v2385 = vpop.f32.mrb[0].mxu0
      %v2386 = vadd.f32 0.0, %v2385
      %v2387 = vpop.f32.mrb[0].mxu0
      %2388 = vmatprep.mubr.bf16.mxu0 0
      %2389 = vmatmul.mubr.bf16.gmra.mrb[0].mxu0 %v2296
      %v2390 = vpop.f32.mrb[0].mxu0
      %v2391 = vadd.f32 0.0, %v2390
      %v2392 = vpop.f32.mrb[0].mxu0
      %v2393 = vpop.f32.mrb[0].mxu0
      %v2394 = vadd.f32 0.0, %v2393
      %v2395 = vpop.f32.mrb[0].mxu0
      %2396 = vmatprep.mubr.bf16.mxu0 0
      %2397 = vmatmul.mubr.bf16.gmra.mrb[0].mxu0 %v2299
      %v2398 = vpop.f32.mrb[0].mxu0
      %v2399 = vadd.f32 0.0, %v2398
      %v2400 = vpop.f32.mrb[0].mxu0
      %v2401 = vpop.f32.mrb[0].mxu0
      %v2402 = vadd.f32 0.0, %v2401
      %v2403 = vpop.f32.mrb[0].mxu0
      %2404 = vmatprep.mubr.bf16.mxu0 0
      %2405 = vmatmul.mubr.bf16.gmra.mrb[0].mxu0 %v2302
      %v2406 = vpop.f32.mrb[0].mxu0
      %v2407 = vadd.f32 0.0, %v2406
      %v2408 = vpop.f32.mrb[0].mxu0
      %v2409 = vpop.f32.mrb[0].mxu0
      %v2410 = vadd.f32 0.0, %v2409
      %v2411 = vpop.f32.mrb[0].mxu0
      %2412 = vmatprep.mubr.bf16.mxu0 0
      %2413 = vmatmul.mubr.bf16.gmra.mrb[0].mxu0 %v2305
      %v2414 = vpop.f32.mrb[0].mxu0
      %v2415 = vadd.f32 0.0, %v2414
      %v2416 = vpop.f32.mrb[0].mxu0
      %v2417 = vpop.f32.mrb[0].mxu0
      %v2418 = vadd.f32 0.0, %v2417
      %v2419 = vpop.f32.mrb[0].mxu0
      %2420 = vmatprep.mubr.bf16.mxu0 0
      %2421 = vmatmul.mubr.bf16.gmra.mrb[0].mxu0 %v2308
      %v2422 = vpop.f32.mrb[0].mxu0
      %v2423 = vadd.f32 0.0, %v2422
      %v2424 = vpop.f32.mrb[0].mxu0
      %v2425 = vpop.f32.mrb[0].mxu0
      %v2426 = vadd.f32 0.0, %v2425
      %v2427 = vpop.f32.mrb[0].mxu0
      %2428 = vmatprep.mubr.bf16.mxu0 0
      %2429 = vmatmul.mubr.bf16.gmra.mrb[0].mxu0 %v2311
      %v2430 = vpop.f32.mrb[0].mxu0
      %v2431 = vadd.f32 0.0, %v2430
      %v2432 = vpop.f32.mrb[0].mxu0
      %v2433 = vpop.f32.mrb[0].mxu0
      %v2434 = vadd.f32 0.0, %v2433
      %v2435 = vpop.f32.mrb[0].mxu0
      %2436 = vmatprep.mubr.bf16.mxu0 0
      %2437 = vmatmul.mubr.bf16.gmra.mrb[0].mxu0 %v2314
      %v2438 = vpop.f32.mrb[0].mxu0
      %v2439 = vadd.f32 0.0, %v2438
      %v2440 = vpop.f32.mrb[0].mxu0
      %v2441 = vpop.f32.mrb[0].mxu0
      %v2442 = vadd.f32 0.0, %v2441
      %v2443 = vpop.f32.mrb[0].mxu0
      %2444 = vmatprep.mubr.bf16.mxu0 0
      %2445 = vmatmul.mubr.bf16.gmra.mrb[0].mxu0 %v2317
      %v2446 = vpop.f32.mrb[0].mxu0
      %v2447 = vadd.f32 0.0, %v2446
      %v2448 = vpop.f32.mrb[0].mxu0
      %v2449 = vpop.f32.mrb[0].mxu0
      %v2450 = vadd.f32 0.0, %v2449
      %v2451 = vpop.f32.mrb[0].mxu0
      %2452 = vmatprep.mubr.bf16.mxu0 0
      %2453 = vmatmul.mubr.bf16.gmra.mrb[0].mxu0 %v2320
      %v2454 = vpop.f32.mrb[0].mxu0
      %v2455 = vadd.f32 0.0, %v2454
      %v2456 = vpop.f32.mrb[0].mxu0
      %v2457 = vpop.f32.mrb[0].mxu0
      %v2458 = vadd.f32 0.0, %v2457
      %v2459 = vpop.f32.mrb[0].mxu0
      %2460 = vmatprep.mubr.bf16.mxu0 0
      %2461 = vmatmul.mubr.bf16.gmra.mrb[0].mxu0 %v2323
      %v2462 = vpop.f32.mrb[0].mxu0
      %v2463 = vadd.f32 0.0, %v2462
      %v2464 = vpop.f32.mrb[0].mxu0
      %v2465 = vpop.f32.mrb[0].mxu0
      %v2466 = vadd.f32 0.0, %v2465
      %v2467 = vpop.f32.mrb[0].mxu0
      %2468 = vmatprep.mubr.bf16.mxu0 0
      %2469 = vmatmul.mubr.bf16.gmra.mrb[0].mxu0 %v2326
      %v2470 = vpop.f32.mrb[0].mxu0
      %v2471 = vadd.f32 0.0, %v2470
      %v2472 = vpop.f32.mrb[0].mxu0
      %v2473 = vpop.f32.mrb[0].mxu0
      %v2474 = vadd.f32 0.0, %v2473
      %v2475 = vpop.f32.mrb[0].mxu0
      %2476 = vmatprep.mubr.bf16.mxu0 0
      %2477 = vmatmul.mubr.bf16.gmra.mrb[0].mxu0 %v2329
      %v2478 = vpop.f32.mrb[0].mxu0
      %v2479 = vadd.f32 0.0, %v2478
      %v2480 = vpop.f32.mrb[0].mxu0
      %v2481 = vpop.f32.mrb[0].mxu0
      %v2482 = vadd.f32 0.0, %v2481
      %v2483 = vpop.f32.mrb[0].mxu0
      %2484 = vmatprep.mubr.bf16.mxu0 0
      %2485 = vmatmul.mubr.bf16.gmra.mrb[0].mxu0 %v2332
      %v2486 = vpop.f32.mrb[0].mxu0
      %v2487 = vadd.f32 0.0, %v2486
      %v2488 = vpop.f32.mrb[0].mxu0
      %v2489 = vpop.f32.mrb[0].mxu0
      %v2490 = vadd.f32 0.0, %v2489
      %v2491 = vpop.f32.mrb[0].mxu0
      %2492 = vmatprep.mubr.bf16.mxu0 0
      %2493 = vmatmul.mubr.bf16.gmra.mrb[0].mxu0 %v2335
      %v2494 = vpop.f32.mrb[0].mxu0
      %v2495 = vadd.f32 0.0, %v2494
      %v2496 = vpop.f32.mrb[0].mxu0
      %v2497 = vpop.f32.mrb[0].mxu0
      %v2498 = vadd.f32 0.0, %v2497
      %v2499 = vpop.f32.mrb[0].mxu0
      %2500 = vdwg.mxu0
      %v2501 = vld [vmem:[#allocation4] sm:$0xff]
      %v2502 = vld [vmem:[#allocation4 + $0x8] sm:$0xff]
      %v2503 = vld [vmem:[#allocation4 + $0x10] sm:$0xff]
      %v2504 = vld [vmem:[#allocation4 + $0x18] sm:$0xff]
      %v2505 = vld [vmem:[#allocation4 + $0x20] sm:$0xff]
      %v2506 = vld [vmem:[#allocation4 + $0x28] sm:$0xff]
      %v2507 = vld [vmem:[#allocation4 + $0x30] sm:$0xff]
      %v2508 = vld [vmem:[#allocation4 + $0x38] sm:$0xff]
      %v2509 = vld [vmem:[#allocation4 + $0x40] sm:$0xff]
      %v2510 = vld [vmem:[#allocation4 + $0x48] sm:$0xff]
      %v2511 = vld [vmem:[#allocation4 + $0x50] sm:$0xff]
      %v2512 = vld [vmem:[#allocation4 + $0x58] sm:$0xff]
      %v2513 = vld [vmem:[#allocation4 + $0x60] sm:$0xff]
      %v2514 = vld [vmem:[#allocation4 + $0x68] sm:$0xff]
      %v2515 = vld [vmem:[#allocation4 + $0x70] sm:$0xff]
      %v2516 = vld [vmem:[#allocation4 + $0x78] sm:$0xff]
      %v2517 = vld [vmem:[#allocation4 + $0x80] sm:$0xff]
      %v2518 = vld [vmem:[#allocation4 + $0x88] sm:$0xff]
      %v2519 = vld [vmem:[#allocation4 + $0x90] sm:$0xff]
      %v2520 = vld [vmem:[#allocation4 + $0x98] sm:$0xff]
      %v2521 = vld [vmem:[#allocation4 + $0xa0] sm:$0xff]
      %v2522 = vld [vmem:[#allocation4 + $0xa8] sm:$0xff]
      %v2523 = vld [vmem:[#allocation4 + $0xb0] sm:$0xff]
      %v2524 = vld [vmem:[#allocation4 + $0xb8] sm:$0xff]
      %v2525 = vld [vmem:[#allocation4 + $0xc0] sm:$0xff]
      %v2526 = vld [vmem:[#allocation4 + $0xc8] sm:$0xff]
      %v2527 = vld [vmem:[#allocation4 + $0xd0] sm:$0xff]
      %v2528 = vld [vmem:[#allocation4 + $0xd8] sm:$0xff]
      %v2529 = vld [vmem:[#allocation4 + $0xe0] sm:$0xff]
      %v2530 = vld [vmem:[#allocation4 + $0xe8] sm:$0xff]
      %v2531 = vld [vmem:[#allocation4 + $0xf0] sm:$0xff]
      %v2532 = vld [vmem:[#allocation4 + $0xf8] sm:$0xff]
      %v2533 = vadd.f32 %v2501, %v2375
      %v2534 = vadd.f32 %v2502, %v2378
      %v2535 = vadd.f32 %v2503, %v2383
      %v2536 = vadd.f32 %v2504, %v2386
      %v2537 = vadd.f32 %v2505, %v2391
      %v2538 = vadd.f32 %v2506, %v2394
      %v2539 = vadd.f32 %v2507, %v2399
      %v2540 = vadd.f32 %v2508, %v2402
      %v2541 = vadd.f32 %v2509, %v2407
      %v2542 = vadd.f32 %v2510, %v2410
      %v2543 = vadd.f32 %v2511, %v2415
      %v2544 = vadd.f32 %v2512, %v2418
      %v2545 = vadd.f32 %v2513, %v2423
      %v2546 = vadd.f32 %v2514, %v2426
      %v2547 = vadd.f32 %v2515, %v2431
      %v2548 = vadd.f32 %v2516, %v2434
      %v2549 = vadd.f32 %v2517, %v2439
      %v2550 = vadd.f32 %v2518, %v2442
      %v2551 = vadd.f32 %v2519, %v2447
      %v2552 = vadd.f32 %v2520, %v2450
      %v2553 = vadd.f32 %v2521, %v2455
      %v2554 = vadd.f32 %v2522, %v2458
      %v2555 = vadd.f32 %v2523, %v2463
      %v2556 = vadd.f32 %v2524, %v2466
      %v2557 = vadd.f32 %v2525, %v2471
      %v2558 = vadd.f32 %v2526, %v2474
      %v2559 = vadd.f32 %v2527, %v2479
      %v2560 = vadd.f32 %v2528, %v2482
      %v2561 = vadd.f32 %v2529, %v2487
      %v2562 = vadd.f32 %v2530, %v2490
      %v2563 = vadd.f32 %v2531, %v2495
      %v2564 = vadd.f32 %v2532, %v2498
      %2565 = vst.msk [vmem:[#allocation4] sm:$0xff] %vm1490, %v2533
      %2566 = vst.msk [vmem:[#allocation4 + $0x8] sm:$0xff] %vm1490, %v2534
      %2567 = vst.msk [vmem:[#allocation4 + $0x10] sm:$0xff] %vm1490, %v2535
      %2568 = vst.msk [vmem:[#allocation4 + $0x18] sm:$0xff] %vm1490, %v2536
      %2569 = vst.msk [vmem:[#allocation4 + $0x20] sm:$0xff] %vm1490, %v2537
      %2570 = vst.msk [vmem:[#allocation4 + $0x28] sm:$0xff] %vm1490, %v2538
      %2571 = vst.msk [vmem:[#allocation4 + $0x30] sm:$0xff] %vm1490, %v2539
      %2572 = vst.msk [vmem:[#allocation4 + $0x38] sm:$0xff] %vm1490, %v2540
      %2573 = vst.msk [vmem:[#allocation4 + $0x40] sm:$0xff] %vm1490, %v2541
      %2574 = vst.msk [vmem:[#allocation4 + $0x48] sm:$0xff] %vm1490, %v2542
      %2575 = vst.msk [vmem:[#allocation4 + $0x50] sm:$0xff] %vm1490, %v2543
      %2576 = vst.msk [vmem:[#allocation4 + $0x58] sm:$0xff] %vm1490, %v2544
      %2577 = vst.msk [vmem:[#allocation4 + $0x60] sm:$0xff] %vm1490, %v2545
      %2578 = vst.msk [vmem:[#allocation4 + $0x68] sm:$0xff] %vm1490, %v2546
      %2579 = vst.msk [vmem:[#allocation4 + $0x70] sm:$0xff] %vm1490, %v2547
      %2580 = vst.msk [vmem:[#allocation4 + $0x78] sm:$0xff] %vm1490, %v2548
      %2581 = vst.msk [vmem:[#allocation4 + $0x80] sm:$0xff] %vm1490, %v2549
      %2582 = vst.msk [vmem:[#allocation4 + $0x88] sm:$0xff] %vm1490, %v2550
      %2583 = vst.msk [vmem:[#allocation4 + $0x90] sm:$0xff] %vm1490, %v2551
      %2584 = vst.msk [vmem:[#allocation4 + $0x98] sm:$0xff] %vm1490, %v2552
      %2585 = vst.msk [vmem:[#allocation4 + $0xa0] sm:$0xff] %vm1490, %v2553
      %2586 = vst.msk [vmem:[#allocation4 + $0xa8] sm:$0xff] %vm1490, %v2554
      %2587 = vst.msk [vmem:[#allocation4 + $0xb0] sm:$0xff] %vm1490, %v2555
      %2588 = vst.msk [vmem:[#allocation4 + $0xb8] sm:$0xff] %vm1490, %v2556
      %2589 = vst.msk [vmem:[#allocation4 + $0xc0] sm:$0xff] %vm1490, %v2557
      %2590 = vst.msk [vmem:[#allocation4 + $0xc8] sm:$0xff] %vm1490, %v2558
      %2591 = vst.msk [vmem:[#allocation4 + $0xd0] sm:$0xff] %vm1490, %v2559
      %2592 = vst.msk [vmem:[#allocation4 + $0xd8] sm:$0xff] %vm1490, %v2560
      %2593 = vst.msk [vmem:[#allocation4 + $0xe0] sm:$0xff] %vm1490, %v2561
      %2594 = vst.msk [vmem:[#allocation4 + $0xe8] sm:$0xff] %vm1490, %v2562
      %2595 = vst.msk [vmem:[#allocation4 + $0xf0] sm:$0xff] %vm1490, %v2563
      %2596 = vst.msk [vmem:[#allocation4 + $0xf8] sm:$0xff] %vm1490, %v2564
      %v2597 = vld [vmem:[%s1195 + $0x1] sm:$0xff]
      %v2598 = vld [vmem:[%s1195 + $0x9] sm:$0xff]
      %v2599 = vld [vmem:[%s1195 + $0x19] sm:$0xff]
      %v2600 = vld [vmem:[%s1195 + $0x21] sm:$0xff]
      %v2601 = vld [vmem:[%s1195 + $0x31] sm:$0xff]
      %v2602 = vld [vmem:[%s1195 + $0x39] sm:$0xff]
      %v2603 = vld [vmem:[%s1195 + $0x49] sm:$0xff]
      %v2604 = vld [vmem:[%s1195 + $0x51] sm:$0xff]
      %v2605 = vld [vmem:[%s1195 + $0x61] sm:$0xff]
      %v2606 = vld [vmem:[%s1195 + $0x69] sm:$0xff]
      %v2607 = vld [vmem:[%s1195 + $0x79] sm:$0xff]
      %v2608 = vld [vmem:[%s1195 + $0x81] sm:$0xff]
      %v2609 = vld [vmem:[%s1195 + $0x91] sm:$0xff]
      %v2610 = vld [vmem:[%s1195 + $0x99] sm:$0xff]
      %v2611 = vld [vmem:[%s1195 + $0xa9] sm:$0xff]
      %v2612 = vld [vmem:[%s1195 + $0xb1] sm:$0xff]
      %v2613 = vld [vmem:[%s1195 + $0xc1] sm:$0xff]
      %v2614 = vld [vmem:[%s1195 + $0xc9] sm:$0xff]
      %v2615 = vld [vmem:[%s1195 + $0xd9] sm:$0xff]
      %v2616 = vld [vmem:[%s1195 + $0xe1] sm:$0xff]
      %v2617 = vld [vmem:[%s1195 + $0xf1] sm:$0xff]
      %v2618 = vld [vmem:[%s1195 + $0xf9] sm:$0xff]
      %v2619 = vld [vmem:[%s1195 + $0x109] sm:$0xff]
      %v2620 = vld [vmem:[%s1195 + $0x111] sm:$0xff]
      %v2621 = vld [vmem:[%s1195 + $0x121] sm:$0xff]
      %v2622 = vld [vmem:[%s1195 + $0x129] sm:$0xff]
      %v2623 = vld [vmem:[%s1195 + $0x139] sm:$0xff]
      %v2624 = vld [vmem:[%s1195 + $0x141] sm:$0xff]
      %v2625 = vld [vmem:[%s1195 + $0x151] sm:$0xff]
      %v2626 = vld [vmem:[%s1195 + $0x159] sm:$0xff]
      %v2627 = vld [vmem:[%s1195 + $0x169] sm:$0xff]
      %v2628 = vld [vmem:[%s1195 + $0x171] sm:$0xff]
      %v2629 = vpack.c.bf16 %v2598, %v2597
      %v2630 = vpack.c.bf16 %v2600, %v2599
      %v2631 = vpack.c.bf16 %v2602, %v2601
      %v2632 = vpack.c.bf16 %v2604, %v2603
      %v2633 = vpack.c.bf16 %v2606, %v2605
      %v2634 = vpack.c.bf16 %v2608, %v2607
      %v2635 = vpack.c.bf16 %v2610, %v2609
      %v2636 = vpack.c.bf16 %v2612, %v2611
      %v2637 = vpack.c.bf16 %v2614, %v2613
      %v2638 = vpack.c.bf16 %v2616, %v2615
      %v2639 = vpack.c.bf16 %v2618, %v2617
      %v2640 = vpack.c.bf16 %v2620, %v2619
      %v2641 = vpack.c.bf16 %v2622, %v2621
      %v2642 = vpack.c.bf16 %v2624, %v2623
      %v2643 = vpack.c.bf16 %v2626, %v2625
      %v2644 = vpack.c.bf16 %v2628, %v2627
      %s2645 = scalar_lea.vmem %s6, 16
      %v2646 = vld [vmem:[%s2645] sm:$0xf]
      %v2648 = vsel %vm556, %v2629, 0
      %v2651 = vsel %vm556, %v2630, 0
      %v2654 = vsel %vm556, %v2631, 0
      %v2657 = vsel %vm556, %v2632, 0
      %v2660 = vsel %vm556, %v2633, 0
      %v2663 = vsel %vm556, %v2634, 0
      %v2666 = vsel %vm556, %v2635, 0
      %v2669 = vsel %vm556, %v2636, 0
      %v2672 = vsel %vm556, %v2637, 0
      %v2675 = vsel %vm556, %v2638, 0
      %v2678 = vsel %vm556, %v2639, 0
      %v2681 = vsel %vm556, %v2640, 0
      %v2684 = vsel %vm556, %v2641, 0
      %v2687 = vsel %vm556, %v2642, 0
      %v2690 = vsel %vm556, %v2643, 0
      %v2693 = vsel %vm556, %v2644, 0
      %v2696 = vsel %vm1325, %v2646, 0
      %2698 = vmatprep.subr.bf16.mxu0 0
      %2699 = vmatpush1.bf16.msra.mxu0 %v2696
      %2700 = vmatprep.subr.bf16.mxu0 0
      %2701 = vmatpush1.bf16.msra.mxu0 0
      %2702 = vmatprep.subr.bf16.mxu0 0
      %2703 = vmatpush1.bf16.msra.mxu0 0
      %2704 = vmatprep.subr.bf16.mxu0 0
      %2705 = vmatpush1.bf16.msra.mxu0 0
      %2706 = vmatprep.subr.bf16.mxu0 0
      %2707 = vmatpush1.bf16.msra.mxu0 0
      %2708 = vmatprep.subr.bf16.mxu0 0
      %2709 = vmatpush1.bf16.msra.mxu0 0
      %2710 = vmatprep.subr.bf16.mxu0 0
      %2711 = vmatpush1.bf16.msra.mxu0 0
      %2712 = vmatprep.subr.bf16.mxu0 0
      %2713 = vmatpush1.bf16.msra.mxu0 0
      %2714 = vmatprep.subr.bf16.mxu0 0
      %2715 = vmatpush1.bf16.msra.mxu0 0
      %2716 = vmatprep.subr.bf16.mxu0 0
      %2717 = vmatpush1.bf16.msra.mxu0 0
      %2718 = vmatprep.subr.bf16.mxu0 0
      %2719 = vmatpush1.bf16.msra.mxu0 0
      %2720 = vmatprep.subr.bf16.mxu0 0
      %2721 = vmatpush1.bf16.msra.mxu0 0
      %2722 = vmatprep.subr.bf16.mxu0 0
      %2723 = vmatpush1.bf16.msra.mxu0 0
      %2724 = vmatprep.subr.bf16.mxu0 0
      %2725 = vmatpush1.bf16.msra.mxu0 0
      %2726 = vmatprep.subr.bf16.mxu0 0
      %2727 = vmatpush1.bf16.msra.mxu0 0
      %2728 = vmatprep.subr.bf16.mxu0 0
      %2729 = vmatpush1.bf16.msra.mxu0 0
      %2730 = vmatprep.mubr.bf16.mxu0 0
      %2731 = vmatmul.mubr.bf16.gmra.mrb[0].mxu0 %v2648
      %v2732 = vpop.f32.mrb[0].mxu0
      %v2733 = vadd.f32 0.0, %v2732
      %v2734 = vpop.f32.mrb[0].mxu0
      %v2735 = vpop.f32.mrb[0].mxu0
      %v2736 = vadd.f32 0.0, %v2735
      %v2737 = vpop.f32.mrb[0].mxu0
      %2738 = vmatprep.mubr.bf16.mxu0 0
      %2739 = vmatmul.mubr.bf16.gmra.mrb[0].mxu0 %v2651
      %v2740 = vpop.f32.mrb[0].mxu0
      %v2741 = vadd.f32 0.0, %v2740
      %v2742 = vpop.f32.mrb[0].mxu0
      %v2743 = vpop.f32.mrb[0].mxu0
      %v2744 = vadd.f32 0.0, %v2743
      %v2745 = vpop.f32.mrb[0].mxu0
      %2746 = vmatprep.mubr.bf16.mxu0 0
      %2747 = vmatmul.mubr.bf16.gmra.mrb[0].mxu0 %v2654
      %v2748 = vpop.f32.mrb[0].mxu0
      %v2749 = vadd.f32 0.0, %v2748
      %v2750 = vpop.f32.mrb[0].mxu0
      %v2751 = vpop.f32.mrb[0].mxu0
      %v2752 = vadd.f32 0.0, %v2751
      %v2753 = vpop.f32.mrb[0].mxu0
      %2754 = vmatprep.mubr.bf16.mxu0 0
      %2755 = vmatmul.mubr.bf16.gmra.mrb[0].mxu0 %v2657
      %v2756 = vpop.f32.mrb[0].mxu0
      %v2757 = vadd.f32 0.0, %v2756
      %v2758 = vpop.f32.mrb[0].mxu0
      %v2759 = vpop.f32.mrb[0].mxu0
      %v2760 = vadd.f32 0.0, %v2759
      %v2761 = vpop.f32.mrb[0].mxu0
      %2762 = vmatprep.mubr.bf16.mxu0 0
      %2763 = vmatmul.mubr.bf16.gmra.mrb[0].mxu0 %v2660
      %v2764 = vpop.f32.mrb[0].mxu0
      %v2765 = vadd.f32 0.0, %v2764
      %v2766 = vpop.f32.mrb[0].mxu0
      %v2767 = vpop.f32.mrb[0].mxu0
      %v2768 = vadd.f32 0.0, %v2767
      %v2769 = vpop.f32.mrb[0].mxu0
      %2770 = vmatprep.mubr.bf16.mxu0 0
      %2771 = vmatmul.mubr.bf16.gmra.mrb[0].mxu0 %v2663
      %v2772 = vpop.f32.mrb[0].mxu0
      %v2773 = vadd.f32 0.0, %v2772
      %v2774 = vpop.f32.mrb[0].mxu0
      %v2775 = vpop.f32.mrb[0].mxu0
      %v2776 = vadd.f32 0.0, %v2775
      %v2777 = vpop.f32.mrb[0].mxu0
      %2778 = vmatprep.mubr.bf16.mxu0 0
      %2779 = vmatmul.mubr.bf16.gmra.mrb[0].mxu0 %v2666
      %v2780 = vpop.f32.mrb[0].mxu0
      %v2781 = vadd.f32 0.0, %v2780
      %v2782 = vpop.f32.mrb[0].mxu0
      %v2783 = vpop.f32.mrb[0].mxu0
      %v2784 = vadd.f32 0.0, %v2783
      %v2785 = vpop.f32.mrb[0].mxu0
      %2786 = vmatprep.mubr.bf16.mxu0 0
      %2787 = vmatmul.mubr.bf16.gmra.mrb[0].mxu0 %v2669
      %v2788 = vpop.f32.mrb[0].mxu0
      %v2789 = vadd.f32 0.0, %v2788
      %v2790 = vpop.f32.mrb[0].mxu0
      %v2791 = vpop.f32.mrb[0].mxu0
      %v2792 = vadd.f32 0.0, %v2791
      %v2793 = vpop.f32.mrb[0].mxu0
      %2794 = vmatprep.mubr.bf16.mxu0 0
      %2795 = vmatmul.mubr.bf16.gmra.mrb[0].mxu0 %v2672
      %v2796 = vpop.f32.mrb[0].mxu0
      %v2797 = vadd.f32 0.0, %v2796
      %v2798 = vpop.f32.mrb[0].mxu0
      %v2799 = vpop.f32.mrb[0].mxu0
      %v2800 = vadd.f32 0.0, %v2799
      %v2801 = vpop.f32.mrb[0].mxu0
      %2802 = vmatprep.mubr.bf16.mxu0 0
      %2803 = vmatmul.mubr.bf16.gmra.mrb[0].mxu0 %v2675
      %v2804 = vpop.f32.mrb[0].mxu0
      %v2805 = vadd.f32 0.0, %v2804
      %v2806 = vpop.f32.mrb[0].mxu0
      %v2807 = vpop.f32.mrb[0].mxu0
      %v2808 = vadd.f32 0.0, %v2807
      %v2809 = vpop.f32.mrb[0].mxu0
      %2810 = vmatprep.mubr.bf16.mxu0 0
      %2811 = vmatmul.mubr.bf16.gmra.mrb[0].mxu0 %v2678
      %v2812 = vpop.f32.mrb[0].mxu0
      %v2813 = vadd.f32 0.0, %v2812
      %v2814 = vpop.f32.mrb[0].mxu0
      %v2815 = vpop.f32.mrb[0].mxu0
      %v2816 = vadd.f32 0.0, %v2815
      %v2817 = vpop.f32.mrb[0].mxu0
      %2818 = vmatprep.mubr.bf16.mxu0 0
      %2819 = vmatmul.mubr.bf16.gmra.mrb[0].mxu0 %v2681
      %v2820 = vpop.f32.mrb[0].mxu0
      %v2821 = vadd.f32 0.0, %v2820
      %v2822 = vpop.f32.mrb[0].mxu0
      %v2823 = vpop.f32.mrb[0].mxu0
      %v2824 = vadd.f32 0.0, %v2823
      %v2825 = vpop.f32.mrb[0].mxu0
      %2826 = vmatprep.mubr.bf16.mxu0 0
      %2827 = vmatmul.mubr.bf16.gmra.mrb[0].mxu0 %v2684
      %v2828 = vpop.f32.mrb[0].mxu0
      %v2829 = vadd.f32 0.0, %v2828
      %v2830 = vpop.f32.mrb[0].mxu0
      %v2831 = vpop.f32.mrb[0].mxu0
      %v2832 = vadd.f32 0.0, %v2831
      %v2833 = vpop.f32.mrb[0].mxu0
      %2834 = vmatprep.mubr.bf16.mxu0 0
      %2835 = vmatmul.mubr.bf16.gmra.mrb[0].mxu0 %v2687
      %v2836 = vpop.f32.mrb[0].mxu0
      %v2837 = vadd.f32 0.0, %v2836
      %v2838 = vpop.f32.mrb[0].mxu0
      %v2839 = vpop.f32.mrb[0].mxu0
      %v2840 = vadd.f32 0.0, %v2839
      %v2841 = vpop.f32.mrb[0].mxu0
      %2842 = vmatprep.mubr.bf16.mxu0 0
      %2843 = vmatmul.mubr.bf16.gmra.mrb[0].mxu0 %v2690
      %v2844 = vpop.f32.mrb[0].mxu0
      %v2845 = vadd.f32 0.0, %v2844
      %v2846 = vpop.f32.mrb[0].mxu0
      %v2847 = vpop.f32.mrb[0].mxu0
      %v2848 = vadd.f32 0.0, %v2847
      %v2849 = vpop.f32.mrb[0].mxu0
      %2850 = vmatprep.mubr.bf16.mxu0 0
      %2851 = vmatmul.mubr.bf16.gmra.mrb[0].mxu0 %v2693
      %v2852 = vpop.f32.mrb[0].mxu0
      %v2853 = vadd.f32 0.0, %v2852
      %v2854 = vpop.f32.mrb[0].mxu0
      %v2855 = vpop.f32.mrb[0].mxu0
      %v2856 = vadd.f32 0.0, %v2855
      %v2857 = vpop.f32.mrb[0].mxu0
      %2858 = vdwg.mxu0
      %v2859 = vld [vmem:[#allocation4] sm:$0xff]
      %v2860 = vld [vmem:[#allocation4 + $0x8] sm:$0xff]
      %v2861 = vld [vmem:[#allocation4 + $0x10] sm:$0xff]
      %v2862 = vld [vmem:[#allocation4 + $0x18] sm:$0xff]
      %v2863 = vld [vmem:[#allocation4 + $0x20] sm:$0xff]
      %v2864 = vld [vmem:[#allocation4 + $0x28] sm:$0xff]
      %v2865 = vld [vmem:[#allocation4 + $0x30] sm:$0xff]
      %v2866 = vld [vmem:[#allocation4 + $0x38] sm:$0xff]
      %v2867 = vld [vmem:[#allocation4 + $0x40] sm:$0xff]
      %v2868 = vld [vmem:[#allocation4 + $0x48] sm:$0xff]
      %v2869 = vld [vmem:[#allocation4 + $0x50] sm:$0xff]
      %v2870 = vld [vmem:[#allocation4 + $0x58] sm:$0xff]
      %v2871 = vld [vmem:[#allocation4 + $0x60] sm:$0xff]
      %v2872 = vld [vmem:[#allocation4 + $0x68] sm:$0xff]
      %v2873 = vld [vmem:[#allocation4 + $0x70] sm:$0xff]
      %v2874 = vld [vmem:[#allocation4 + $0x78] sm:$0xff]
      %v2875 = vld [vmem:[#allocation4 + $0x80] sm:$0xff]
      %v2876 = vld [vmem:[#allocation4 + $0x88] sm:$0xff]
      %v2877 = vld [vmem:[#allocation4 + $0x90] sm:$0xff]
      %v2878 = vld [vmem:[#allocation4 + $0x98] sm:$0xff]
      %v2879 = vld [vmem:[#allocation4 + $0xa0] sm:$0xff]
      %v2880 = vld [vmem:[#allocation4 + $0xa8] sm:$0xff]
      %v2881 = vld [vmem:[#allocation4 + $0xb0] sm:$0xff]
      %v2882 = vld [vmem:[#allocation4 + $0xb8] sm:$0xff]
      %v2883 = vld [vmem:[#allocation4 + $0xc0] sm:$0xff]
      %v2884 = vld [vmem:[#allocation4 + $0xc8] sm:$0xff]
      %v2885 = vld [vmem:[#allocation4 + $0xd0] sm:$0xff]
      %v2886 = vld [vmem:[#allocation4 + $0xd8] sm:$0xff]
      %v2887 = vld [vmem:[#allocation4 + $0xe0] sm:$0xff]
      %v2888 = vld [vmem:[#allocation4 + $0xe8] sm:$0xff]
      %v2889 = vld [vmem:[#allocation4 + $0xf0] sm:$0xff]
      %v2890 = vld [vmem:[#allocation4 + $0xf8] sm:$0xff]
      %v2891 = vadd.f32 %v2859, %v2733
      %v2892 = vadd.f32 %v2860, %v2736
      %v2893 = vadd.f32 %v2861, %v2741
      %v2894 = vadd.f32 %v2862, %v2744
      %v2895 = vadd.f32 %v2863, %v2749
      %v2896 = vadd.f32 %v2864, %v2752
      %v2897 = vadd.f32 %v2865, %v2757
      %v2898 = vadd.f32 %v2866, %v2760
      %v2899 = vadd.f32 %v2867, %v2765
      %v2900 = vadd.f32 %v2868, %v2768
      %v2901 = vadd.f32 %v2869, %v2773
      %v2902 = vadd.f32 %v2870, %v2776
      %v2903 = vadd.f32 %v2871, %v2781
      %v2904 = vadd.f32 %v2872, %v2784
      %v2905 = vadd.f32 %v2873, %v2789
      %v2906 = vadd.f32 %v2874, %v2792
      %v2907 = vadd.f32 %v2875, %v2797
      %v2908 = vadd.f32 %v2876, %v2800
      %v2909 = vadd.f32 %v2877, %v2805
      %v2910 = vadd.f32 %v2878, %v2808
      %v2911 = vadd.f32 %v2879, %v2813
      %v2912 = vadd.f32 %v2880, %v2816
      %v2913 = vadd.f32 %v2881, %v2821
      %v2914 = vadd.f32 %v2882, %v2824
      %v2915 = vadd.f32 %v2883, %v2829
      %v2916 = vadd.f32 %v2884, %v2832
      %v2917 = vadd.f32 %v2885, %v2837
      %v2918 = vadd.f32 %v2886, %v2840
      %v2919 = vadd.f32 %v2887, %v2845
      %v2920 = vadd.f32 %v2888, %v2848
      %v2921 = vadd.f32 %v2889, %v2853
      %v2922 = vadd.f32 %v2890, %v2856
      %2923 = vst.msk [vmem:[#allocation4] sm:$0xff] %vm1490, %v2891
      %2924 = vst.msk [vmem:[#allocation4 + $0x8] sm:$0xff] %vm1490, %v2892
      %2925 = vst.msk [vmem:[#allocation4 + $0x10] sm:$0xff] %vm1490, %v2893
      %2926 = vst.msk [vmem:[#allocation4 + $0x18] sm:$0xff] %vm1490, %v2894
      %2927 = vst.msk [vmem:[#allocation4 + $0x20] sm:$0xff] %vm1490, %v2895
      %2928 = vst.msk [vmem:[#allocation4 + $0x28] sm:$0xff] %vm1490, %v2896
      %2929 = vst.msk [vmem:[#allocation4 + $0x30] sm:$0xff] %vm1490, %v2897
      %2930 = vst.msk [vmem:[#allocation4 + $0x38] sm:$0xff] %vm1490, %v2898
      %2931 = vst.msk [vmem:[#allocation4 + $0x40] sm:$0xff] %vm1490, %v2899
      %2932 = vst.msk [vmem:[#allocation4 + $0x48] sm:$0xff] %vm1490, %v2900
      %2933 = vst.msk [vmem:[#allocation4 + $0x50] sm:$0xff] %vm1490, %v2901
      %2934 = vst.msk [vmem:[#allocation4 + $0x58] sm:$0xff] %vm1490, %v2902
      %2935 = vst.msk [vmem:[#allocation4 + $0x60] sm:$0xff] %vm1490, %v2903
      %2936 = vst.msk [vmem:[#allocation4 + $0x68] sm:$0xff] %vm1490, %v2904
      %2937 = vst.msk [vmem:[#allocation4 + $0x70] sm:$0xff] %vm1490, %v2905
      %2938 = vst.msk [vmem:[#allocation4 + $0x78] sm:$0xff] %vm1490, %v2906
      %2939 = vst.msk [vmem:[#allocation4 + $0x80] sm:$0xff] %vm1490, %v2907
      %2940 = vst.msk [vmem:[#allocation4 + $0x88] sm:$0xff] %vm1490, %v2908
      %2941 = vst.msk [vmem:[#allocation4 + $0x90] sm:$0xff] %vm1490, %v2909
      %2942 = vst.msk [vmem:[#allocation4 + $0x98] sm:$0xff] %vm1490, %v2910
      %2943 = vst.msk [vmem:[#allocation4 + $0xa0] sm:$0xff] %vm1490, %v2911
      %2944 = vst.msk [vmem:[#allocation4 + $0xa8] sm:$0xff] %vm1490, %v2912
      %2945 = vst.msk [vmem:[#allocation4 + $0xb0] sm:$0xff] %vm1490, %v2913
      %2946 = vst.msk [vmem:[#allocation4 + $0xb8] sm:$0xff] %vm1490, %v2914
      %2947 = vst.msk [vmem:[#allocation4 + $0xc0] sm:$0xff] %vm1490, %v2915
      %2948 = vst.msk [vmem:[#allocation4 + $0xc8] sm:$0xff] %vm1490, %v2916
      %2949 = vst.msk [vmem:[#allocation4 + $0xd0] sm:$0xff] %vm1490, %v2917
      %2950 = vst.msk [vmem:[#allocation4 + $0xd8] sm:$0xff] %vm1490, %v2918
      %2951 = vst.msk [vmem:[#allocation4 + $0xe0] sm:$0xff] %vm1490, %v2919
      %2952 = vst.msk [vmem:[#allocation4 + $0xe8] sm:$0xff] %vm1490, %v2920
      %2953 = vst.msk [vmem:[#allocation4 + $0xf0] sm:$0xff] %vm1490, %v2921
      %2954 = vst.msk [vmem:[#allocation4 + $0xf8] sm:$0xff] %vm1490, %v2922
      %v2955 = vld [vmem:[%s1195 + $0x2] sm:$0xff]
      %v2956 = vld [vmem:[%s1195 + $0xa] sm:$0xff]
      %v2957 = vld [vmem:[%s1195 + $0x1a] sm:$0xff]
      %v2958 = vld [vmem:[%s1195 + $0x22] sm:$0xff]
      %v2959 = vld [vmem:[%s1195 + $0x32] sm:$0xff]
      %v2960 = vld [vmem:[%s1195 + $0x3a] sm:$0xff]
      %v2961 = vld [vmem:[%s1195 + $0x4a] sm:$0xff]
      %v2962 = vld [vmem:[%s1195 + $0x52] sm:$0xff]
      %v2963 = vld [vmem:[%s1195 + $0x62] sm:$0xff]
      %v2964 = vld [vmem:[%s1195 + $0x6a] sm:$0xff]
      %v2965 = vld [vmem:[%s1195 + $0x7a] sm:$0xff]
      %v2966 = vld [vmem:[%s1195 + $0x82] sm:$0xff]
      %v2967 = vld [vmem:[%s1195 + $0x92] sm:$0xff]
      %v2968 = vld [vmem:[%s1195 + $0x9a] sm:$0xff]
      %v2969 = vld [vmem:[%s1195 + $0xaa] sm:$0xff]
      %v2970 = vld [vmem:[%s1195 + $0xb2] sm:$0xff]
      %v2971 = vld [vmem:[%s1195 + $0xc2] sm:$0xff]
      %v2972 = vld [vmem:[%s1195 + $0xca] sm:$0xff]
      %v2973 = vld [vmem:[%s1195 + $0xda] sm:$0xff]
      %v2974 = vld [vmem:[%s1195 + $0xe2] sm:$0xff]
      %v2975 = vld [vmem:[%s1195 + $0xf2] sm:$0xff]
      %v2976 = vld [vmem:[%s1195 + $0xfa] sm:$0xff]
      %v2977 = vld [vmem:[%s1195 + $0x10a] sm:$0xff]
      %v2978 = vld [vmem:[%s1195 + $0x112] sm:$0xff]
      %v2979 = vld [vmem:[%s1195 + $0x122] sm:$0xff]
      %v2980 = vld [vmem:[%s1195 + $0x12a] sm:$0xff]
      %v2981 = vld [vmem:[%s1195 + $0x13a] sm:$0xff]
      %v2982 = vld [vmem:[%s1195 + $0x142] sm:$0xff]
      %v2983 = vld [vmem:[%s1195 + $0x152] sm:$0xff]
      %v2984 = vld [vmem:[%s1195 + $0x15a] sm:$0xff]
      %v2985 = vld [vmem:[%s1195 + $0x16a] sm:$0xff]
      %v2986 = vld [vmem:[%s1195 + $0x172] sm:$0xff]
      %v2987 = vpack.c.bf16 %v2956, %v2955
      %v2988 = vpack.c.bf16 %v2958, %v2957
      %v2989 = vpack.c.bf16 %v2960, %v2959
      %v2990 = vpack.c.bf16 %v2962, %v2961
      %v2991 = vpack.c.bf16 %v2964, %v2963
      %v2992 = vpack.c.bf16 %v2966, %v2965
      %v2993 = vpack.c.bf16 %v2968, %v2967
      %v2994 = vpack.c.bf16 %v2970, %v2969
      %v2995 = vpack.c.bf16 %v2972, %v2971
      %v2996 = vpack.c.bf16 %v2974, %v2973
      %v2997 = vpack.c.bf16 %v2976, %v2975
      %v2998 = vpack.c.bf16 %v2978, %v2977
      %v2999 = vpack.c.bf16 %v2980, %v2979
      %v3000 = vpack.c.bf16 %v2982, %v2981
      %v3001 = vpack.c.bf16 %v2984, %v2983
      %v3002 = vpack.c.bf16 %v2986, %v2985
      %s3003 = scalar_lea.vmem %s6, 20
      %v3004 = vld [vmem:[%s3003] sm:$0xf]
      %v3006 = vsel %vm556, %v2987, 0
      %v3009 = vsel %vm556, %v2988, 0
      %v3012 = vsel %vm556, %v2989, 0
      %v3015 = vsel %vm556, %v2990, 0
      %v3018 = vsel %vm556, %v2991, 0
      %v3021 = vsel %vm556, %v2992, 0
      %v3024 = vsel %vm556, %v2993, 0
      %v3027 = vsel %vm556, %v2994, 0
      %v3030 = vsel %vm556, %v2995, 0
      %v3033 = vsel %vm556, %v2996, 0
      %v3036 = vsel %vm556, %v2997, 0
      %v3039 = vsel %vm556, %v2998, 0
      %v3042 = vsel %vm556, %v2999, 0
      %v3045 = vsel %vm556, %v3000, 0
      %v3048 = vsel %vm556, %v3001, 0
      %v3051 = vsel %vm556, %v3002, 0
      %v3054 = vsel %vm1325, %v3004, 0
      %3056 = vmatprep.subr.bf16.mxu0 0
      %3057 = vmatpush1.bf16.msra.mxu0 %v3054
      %3058 = vmatprep.subr.bf16.mxu0 0
      %3059 = vmatpush1.bf16.msra.mxu0 0
      %3060 = vmatprep.subr.bf16.mxu0 0
      %3061 = vmatpush1.bf16.msra.mxu0 0
      %3062 = vmatprep.subr.bf16.mxu0 0
      %3063 = vmatpush1.bf16.msra.mxu0 0
      %3064 = vmatprep.subr.bf16.mxu0 0
      %3065 = vmatpush1.bf16.msra.mxu0 0
      %3066 = vmatprep.subr.bf16.mxu0 0
      %3067 = vmatpush1.bf16.msra.mxu0 0
      %3068 = vmatprep.subr.bf16.mxu0 0
      %3069 = vmatpush1.bf16.msra.mxu0 0
      %3070 = vmatprep.subr.bf16.mxu0 0
      %3071 = vmatpush1.bf16.msra.mxu0 0
      %3072 = vmatprep.subr.bf16.mxu0 0
      %3073 = vmatpush1.bf16.msra.mxu0 0
      %3074 = vmatprep.subr.bf16.mxu0 0
      %3075 = vmatpush1.bf16.msra.mxu0 0
      %3076 = vmatprep.subr.bf16.mxu0 0
      %3077 = vmatpush1.bf16.msra.mxu0 0
      %3078 = vmatprep.subr.bf16.mxu0 0
      %3079 = vmatpush1.bf16.msra.mxu0 0
      %3080 = vmatprep.subr.bf16.mxu0 0
      %3081 = vmatpush1.bf16.msra.mxu0 0
      %3082 = vmatprep.subr.bf16.mxu0 0
      %3083 = vmatpush1.bf16.msra.mxu0 0
      %3084 = vmatprep.subr.bf16.mxu0 0
      %3085 = vmatpush1.bf16.msra.mxu0 0
      %3086 = vmatprep.subr.bf16.mxu0 0
      %3087 = vmatpush1.bf16.msra.mxu0 0
      %3088 = vmatprep.mubr.bf16.mxu0 0
      %3089 = vmatmul.mubr.bf16.gmra.mrb[0].mxu0 %v3006
      %v3090 = vpop.f32.mrb[0].mxu0
      %v3091 = vadd.f32 0.0, %v3090
      %v3092 = vpop.f32.mrb[0].mxu0
      %v3093 = vpop.f32.mrb[0].mxu0
      %v3094 = vadd.f32 0.0, %v3093
      %v3095 = vpop.f32.mrb[0].mxu0
      %3096 = vmatprep.mubr.bf16.mxu0 0
      %3097 = vmatmul.mubr.bf16.gmra.mrb[0].mxu0 %v3009
      %v3098 = vpop.f32.mrb[0].mxu0
      %v3099 = vadd.f32 0.0, %v3098
      %v3100 = vpop.f32.mrb[0].mxu0
      %v3101 = vpop.f32.mrb[0].mxu0
      %v3102 = vadd.f32 0.0, %v3101
      %v3103 = vpop.f32.mrb[0].mxu0
      %3104 = vmatprep.mubr.bf16.mxu0 0
      %3105 = vmatmul.mubr.bf16.gmra.mrb[0].mxu0 %v3012
      %v3106 = vpop.f32.mrb[0].mxu0
      %v3107 = vadd.f32 0.0, %v3106
      %v3108 = vpop.f32.mrb[0].mxu0
      %v3109 = vpop.f32.mrb[0].mxu0
      %v3110 = vadd.f32 0.0, %v3109
      %v3111 = vpop.f32.mrb[0].mxu0
      %3112 = vmatprep.mubr.bf16.mxu0 0
      %3113 = vmatmul.mubr.bf16.gmra.mrb[0].mxu0 %v3015
      %v3114 = vpop.f32.mrb[0].mxu0
      %v3115 = vadd.f32 0.0, %v3114
      %v3116 = vpop.f32.mrb[0].mxu0
      %v3117 = vpop.f32.mrb[0].mxu0
      %v3118 = vadd.f32 0.0, %v3117
      %v3119 = vpop.f32.mrb[0].mxu0
      %3120 = vmatprep.mubr.bf16.mxu0 0
      %3121 = vmatmul.mubr.bf16.gmra.mrb[0].mxu0 %v3018
      %v3122 = vpop.f32.mrb[0].mxu0
      %v3123 = vadd.f32 0.0, %v3122
      %v3124 = vpop.f32.mrb[0].mxu0
      %v3125 = vpop.f32.mrb[0].mxu0
      %v3126 = vadd.f32 0.0, %v3125
      %v3127 = vpop.f32.mrb[0].mxu0
      %3128 = vmatprep.mubr.bf16.mxu0 0
      %3129 = vmatmul.mubr.bf16.gmra.mrb[0].mxu0 %v3021
      %v3130 = vpop.f32.mrb[0].mxu0
      %v3131 = vadd.f32 0.0, %v3130
      %v3132 = vpop.f32.mrb[0].mxu0
      %v3133 = vpop.f32.mrb[0].mxu0
      %v3134 = vadd.f32 0.0, %v3133
      %v3135 = vpop.f32.mrb[0].mxu0
      %3136 = vmatprep.mubr.bf16.mxu0 0
      %3137 = vmatmul.mubr.bf16.gmra.mrb[0].mxu0 %v3024
      %v3138 = vpop.f32.mrb[0].mxu0
      %v3139 = vadd.f32 0.0, %v3138
      %v3140 = vpop.f32.mrb[0].mxu0
      %v3141 = vpop.f32.mrb[0].mxu0
      %v3142 = vadd.f32 0.0, %v3141
      %v3143 = vpop.f32.mrb[0].mxu0
      %3144 = vmatprep.mubr.bf16.mxu0 0
      %3145 = vmatmul.mubr.bf16.gmra.mrb[0].mxu0 %v3027
      %v3146 = vpop.f32.mrb[0].mxu0
      %v3147 = vadd.f32 0.0, %v3146
      %v3148 = vpop.f32.mrb[0].mxu0
      %v3149 = vpop.f32.mrb[0].mxu0
      %v3150 = vadd.f32 0.0, %v3149
      %v3151 = vpop.f32.mrb[0].mxu0
      %3152 = vmatprep.mubr.bf16.mxu0 0
      %3153 = vmatmul.mubr.bf16.gmra.mrb[0].mxu0 %v3030
      %v3154 = vpop.f32.mrb[0].mxu0
      %v3155 = vadd.f32 0.0, %v3154
      %v3156 = vpop.f32.mrb[0].mxu0
      %v3157 = vpop.f32.mrb[0].mxu0
      %v3158 = vadd.f32 0.0, %v3157
      %v3159 = vpop.f32.mrb[0].mxu0
      %3160 = vmatprep.mubr.bf16.mxu0 0
      %3161 = vmatmul.mubr.bf16.gmra.mrb[0].mxu0 %v3033
      %v3162 = vpop.f32.mrb[0].mxu0
      %v3163 = vadd.f32 0.0, %v3162
      %v3164 = vpop.f32.mrb[0].mxu0
      %v3165 = vpop.f32.mrb[0].mxu0
      %v3166 = vadd.f32 0.0, %v3165
      %v3167 = vpop.f32.mrb[0].mxu0
      %3168 = vmatprep.mubr.bf16.mxu0 0
      %3169 = vmatmul.mubr.bf16.gmra.mrb[0].mxu0 %v3036
      %v3170 = vpop.f32.mrb[0].mxu0
      %v3171 = vadd.f32 0.0, %v3170
      %v3172 = vpop.f32.mrb[0].mxu0
      %v3173 = vpop.f32.mrb[0].mxu0
      %v3174 = vadd.f32 0.0, %v3173
      %v3175 = vpop.f32.mrb[0].mxu0
      %3176 = vmatprep.mubr.bf16.mxu0 0
      %3177 = vmatmul.mubr.bf16.gmra.mrb[0].mxu0 %v3039
      %v3178 = vpop.f32.mrb[0].mxu0
      %v3179 = vadd.f32 0.0, %v3178
      %v3180 = vpop.f32.mrb[0].mxu0
      %v3181 = vpop.f32.mrb[0].mxu0
      %v3182 = vadd.f32 0.0, %v3181
      %v3183 = vpop.f32.mrb[0].mxu0
      %3184 = vmatprep.mubr.bf16.mxu0 0
      %3185 = vmatmul.mubr.bf16.gmra.mrb[0].mxu0 %v3042
      %v3186 = vpop.f32.mrb[0].mxu0
      %v3187 = vadd.f32 0.0, %v3186
      %v3188 = vpop.f32.mrb[0].mxu0
      %v3189 = vpop.f32.mrb[0].mxu0
      %v3190 = vadd.f32 0.0, %v3189
      %v3191 = vpop.f32.mrb[0].mxu0
      %3192 = vmatprep.mubr.bf16.mxu0 0
      %3193 = vmatmul.mubr.bf16.gmra.mrb[0].mxu0 %v3045
      %v3194 = vpop.f32.mrb[0].mxu0
      %v3195 = vadd.f32 0.0, %v3194
      %v3196 = vpop.f32.mrb[0].mxu0
      %v3197 = vpop.f32.mrb[0].mxu0
      %v3198 = vadd.f32 0.0, %v3197
      %v3199 = vpop.f32.mrb[0].mxu0
      %3200 = vmatprep.mubr.bf16.mxu0 0
      %3201 = vmatmul.mubr.bf16.gmra.mrb[0].mxu0 %v3048
      %v3202 = vpop.f32.mrb[0].mxu0
      %v3203 = vadd.f32 0.0, %v3202
      %v3204 = vpop.f32.mrb[0].mxu0
      %v3205 = vpop.f32.mrb[0].mxu0
      %v3206 = vadd.f32 0.0, %v3205
      %v3207 = vpop.f32.mrb[0].mxu0
      %3208 = vmatprep.mubr.bf16.mxu0 0
      %3209 = vmatmul.mubr.bf16.gmra.mrb[0].mxu0 %v3051
      %v3210 = vpop.f32.mrb[0].mxu0
      %v3211 = vadd.f32 0.0, %v3210
      %v3212 = vpop.f32.mrb[0].mxu0
      %v3213 = vpop.f32.mrb[0].mxu0
      %v3214 = vadd.f32 0.0, %v3213
      %v3215 = vpop.f32.mrb[0].mxu0
      %3216 = vdwg.mxu0
      %v3217 = vld [vmem:[#allocation4] sm:$0xff]
      %v3218 = vld [vmem:[#allocation4 + $0x8] sm:$0xff]
      %v3219 = vld [vmem:[#allocation4 + $0x10] sm:$0xff]
      %v3220 = vld [vmem:[#allocation4 + $0x18] sm:$0xff]
      %v3221 = vld [vmem:[#allocation4 + $0x20] sm:$0xff]
      %v3222 = vld [vmem:[#allocation4 + $0x28] sm:$0xff]
      %v3223 = vld [vmem:[#allocation4 + $0x30] sm:$0xff]
      %v3224 = vld [vmem:[#allocation4 + $0x38] sm:$0xff]
      %v3225 = vld [vmem:[#allocation4 + $0x40] sm:$0xff]
      %v3226 = vld [vmem:[#allocation4 + $0x48] sm:$0xff]
      %v3227 = vld [vmem:[#allocation4 + $0x50] sm:$0xff]
      %v3228 = vld [vmem:[#allocation4 + $0x58] sm:$0xff]
      %v3229 = vld [vmem:[#allocation4 + $0x60] sm:$0xff]
      %v3230 = vld [vmem:[#allocation4 + $0x68] sm:$0xff]
      %v3231 = vld [vmem:[#allocation4 + $0x70] sm:$0xff]
      %v3232 = vld [vmem:[#allocation4 + $0x78] sm:$0xff]
      %v3233 = vld [vmem:[#allocation4 + $0x80] sm:$0xff]
      %v3234 = vld [vmem:[#allocation4 + $0x88] sm:$0xff]
      %v3235 = vld [vmem:[#allocation4 + $0x90] sm:$0xff]
      %v3236 = vld [vmem:[#allocation4 + $0x98] sm:$0xff]
      %v3237 = vld [vmem:[#allocation4 + $0xa0] sm:$0xff]
      %v3238 = vld [vmem:[#allocation4 + $0xa8] sm:$0xff]
      %v3239 = vld [vmem:[#allocation4 + $0xb0] sm:$0xff]
      %v3240 = vld [vmem:[#allocation4 + $0xb8] sm:$0xff]
      %v3241 = vld [vmem:[#allocation4 + $0xc0] sm:$0xff]
      %v3242 = vld [vmem:[#allocation4 + $0xc8] sm:$0xff]
      %v3243 = vld [vmem:[#allocation4 + $0xd0] sm:$0xff]
      %v3244 = vld [vmem:[#allocation4 + $0xd8] sm:$0xff]
      %v3245 = vld [vmem:[#allocation4 + $0xe0] sm:$0xff]
      %v3246 = vld [vmem:[#allocation4 + $0xe8] sm:$0xff]
      %v3247 = vld [vmem:[#allocation4 + $0xf0] sm:$0xff]
      %v3248 = vld [vmem:[#allocation4 + $0xf8] sm:$0xff]
      %v3249 = vadd.f32 %v3217, %v3091
      %v3250 = vadd.f32 %v3218, %v3094
      %v3251 = vadd.f32 %v3219, %v3099
      %v3252 = vadd.f32 %v3220, %v3102
      %v3253 = vadd.f32 %v3221, %v3107
      %v3254 = vadd.f32 %v3222, %v3110
      %v3255 = vadd.f32 %v3223, %v3115
      %v3256 = vadd.f32 %v3224, %v3118
      %v3257 = vadd.f32 %v3225, %v3123
      %v3258 = vadd.f32 %v3226, %v3126
      %v3259 = vadd.f32 %v3227, %v3131
      %v3260 = vadd.f32 %v3228, %v3134
      %v3261 = vadd.f32 %v3229, %v3139
      %v3262 = vadd.f32 %v3230, %v3142
      %v3263 = vadd.f32 %v3231, %v3147
      %v3264 = vadd.f32 %v3232, %v3150
      %v3265 = vadd.f32 %v3233, %v3155
      %v3266 = vadd.f32 %v3234, %v3158
      %v3267 = vadd.f32 %v3235, %v3163
      %v3268 = vadd.f32 %v3236, %v3166
      %v3269 = vadd.f32 %v3237, %v3171
      %v3270 = vadd.f32 %v3238, %v3174
      %v3271 = vadd.f32 %v3239, %v3179
      %v3272 = vadd.f32 %v3240, %v3182
      %v3273 = vadd.f32 %v3241, %v3187
      %v3274 = vadd.f32 %v3242, %v3190
      %v3275 = vadd.f32 %v3243, %v3195
      %v3276 = vadd.f32 %v3244, %v3198
      %v3277 = vadd.f32 %v3245, %v3203
      %v3278 = vadd.f32 %v3246, %v3206
      %v3279 = vadd.f32 %v3247, %v3211
      %v3280 = vadd.f32 %v3248, %v3214
      %3281 = vst.msk [vmem:[#allocation4] sm:$0xff] %vm1490, %v3249
      %3282 = vst.msk [vmem:[#allocation4 + $0x8] sm:$0xff] %vm1490, %v3250
      %3283 = vst.msk [vmem:[#allocation4 + $0x10] sm:$0xff] %vm1490, %v3251
      %3284 = vst.msk [vmem:[#allocation4 + $0x18] sm:$0xff] %vm1490, %v3252
      %3285 = vst.msk [vmem:[#allocation4 + $0x20] sm:$0xff] %vm1490, %v3253
      %3286 = vst.msk [vmem:[#allocation4 + $0x28] sm:$0xff] %vm1490, %v3254
      %3287 = vst.msk [vmem:[#allocation4 + $0x30] sm:$0xff] %vm1490, %v3255
      %3288 = vst.msk [vmem:[#allocation4 + $0x38] sm:$0xff] %vm1490, %v3256
      %3289 = vst.msk [vmem:[#allocation4 + $0x40] sm:$0xff] %vm1490, %v3257
      %3290 = vst.msk [vmem:[#allocation4 + $0x48] sm:$0xff] %vm1490, %v3258
      %3291 = vst.msk [vmem:[#allocation4 + $0x50] sm:$0xff] %vm1490, %v3259
      %3292 = vst.msk [vmem:[#allocation4 + $0x58] sm:$0xff] %vm1490, %v3260
      %3293 = vst.msk [vmem:[#allocation4 + $0x60] sm:$0xff] %vm1490, %v3261
      %3294 = vst.msk [vmem:[#allocation4 + $0x68] sm:$0xff] %vm1490, %v3262
      %3295 = vst.msk [vmem:[#allocation4 + $0x70] sm:$0xff] %vm1490, %v3263
      %3296 = vst.msk [vmem:[#allocation4 + $0x78] sm:$0xff] %vm1490, %v3264
      %3297 = vst.msk [vmem:[#allocation4 + $0x80] sm:$0xff] %vm1490, %v3265
      %3298 = vst.msk [vmem:[#allocation4 + $0x88] sm:$0xff] %vm1490, %v3266
      %3299 = vst.msk [vmem:[#allocation4 + $0x90] sm:$0xff] %vm1490, %v3267
      %3300 = vst.msk [vmem:[#allocation4 + $0x98] sm:$0xff] %vm1490, %v3268
      %3301 = vst.msk [vmem:[#allocation4 + $0xa0] sm:$0xff] %vm1490, %v3269
      %3302 = vst.msk [vmem:[#allocation4 + $0xa8] sm:$0xff] %vm1490, %v3270
      %3303 = vst.msk [vmem:[#allocation4 + $0xb0] sm:$0xff] %vm1490, %v3271
      %3304 = vst.msk [vmem:[#allocation4 + $0xb8] sm:$0xff] %vm1490, %v3272
      %3305 = vst.msk [vmem:[#allocation4 + $0xc0] sm:$0xff] %vm1490, %v3273
      %3306 = vst.msk [vmem:[#allocation4 + $0xc8] sm:$0xff] %vm1490, %v3274
      %3307 = vst.msk [vmem:[#allocation4 + $0xd0] sm:$0xff] %vm1490, %v3275
      %3308 = vst.msk [vmem:[#allocation4 + $0xd8] sm:$0xff] %vm1490, %v3276
      %3309 = vst.msk [vmem:[#allocation4 + $0xe0] sm:$0xff] %vm1490, %v3277
      %3310 = vst.msk [vmem:[#allocation4 + $0xe8] sm:$0xff] %vm1490, %v3278
      %3311 = vst.msk [vmem:[#allocation4 + $0xf0] sm:$0xff] %vm1490, %v3279
      %3312 = vst.msk [vmem:[#allocation4 + $0xf8] sm:$0xff] %vm1490, %v3280
      %s3313 = scalar_lea.vmem [#allocation2], 48
      %v3314 = vld [vmem:[%s3313] sm:$0xff]
      %v3315 = vld [vmem:[%s3313 + $0x8] sm:$0xff]
      %v3316 = vld [vmem:[%s3313 + $0x18] sm:$0xff]
      %v3317 = vld [vmem:[%s3313 + $0x20] sm:$0xff]
      %v3318 = vld [vmem:[%s3313 + $0x30] sm:$0xff]
      %v3319 = vld [vmem:[%s3313 + $0x38] sm:$0xff]
      %v3320 = vld [vmem:[%s3313 + $0x48] sm:$0xff]
      %v3321 = vld [vmem:[%s3313 + $0x50] sm:$0xff]
      %v3322 = vld [vmem:[%s3313 + $0x60] sm:$0xff]
      %v3323 = vld [vmem:[%s3313 + $0x68] sm:$0xff]
      %v3324 = vld [vmem:[%s3313 + $0x78] sm:$0xff]
      %v3325 = vld [vmem:[%s3313 + $0x80] sm:$0xff]
      %v3326 = vld [vmem:[%s3313 + $0x90] sm:$0xff]
      %v3327 = vld [vmem:[%s3313 + $0x98] sm:$0xff]
      %v3328 = vld [vmem:[%s3313 + $0xa8] sm:$0xff]
      %v3329 = vld [vmem:[%s3313 + $0xb0] sm:$0xff]
      %v3330 = vld [vmem:[%s3313 + $0xc0] sm:$0xff]
      %v3331 = vld [vmem:[%s3313 + $0xc8] sm:$0xff]
      %v3332 = vld [vmem:[%s3313 + $0xd8] sm:$0xff]
      %v3333 = vld [vmem:[%s3313 + $0xe0] sm:$0xff]
      %v3334 = vld [vmem:[%s3313 + $0xf0] sm:$0xff]
      %v3335 = vld [vmem:[%s3313 + $0xf8] sm:$0xff]
      %v3336 = vld [vmem:[%s3313 + $0x108] sm:$0xff]
      %v3337 = vld [vmem:[%s3313 + $0x110] sm:$0xff]
      %v3338 = vld [vmem:[%s3313 + $0x120] sm:$0xff]
      %v3339 = vld [vmem:[%s3313 + $0x128] sm:$0xff]
      %v3340 = vld [vmem:[%s3313 + $0x138] sm:$0xff]
      %v3341 = vld [vmem:[%s3313 + $0x140] sm:$0xff]
      %v3342 = vld [vmem:[%s3313 + $0x150] sm:$0xff]
      %v3343 = vld [vmem:[%s3313 + $0x158] sm:$0xff]
      %v3344 = vld [vmem:[%s3313 + $0x168] sm:$0xff]
      %v3345 = vld [vmem:[%s3313 + $0x170] sm:$0xff]
      %v3346 = vpack.c.bf16 %v3315, %v3314
      %v3347 = vpack.c.bf16 %v3317, %v3316
      %v3348 = vpack.c.bf16 %v3319, %v3318
      %v3349 = vpack.c.bf16 %v3321, %v3320
      %v3350 = vpack.c.bf16 %v3323, %v3322
      %v3351 = vpack.c.bf16 %v3325, %v3324
      %v3352 = vpack.c.bf16 %v3327, %v3326
      %v3353 = vpack.c.bf16 %v3329, %v3328
      %v3354 = vpack.c.bf16 %v3331, %v3330
      %v3355 = vpack.c.bf16 %v3333, %v3332
      %v3356 = vpack.c.bf16 %v3335, %v3334
      %v3357 = vpack.c.bf16 %v3337, %v3336
      %v3358 = vpack.c.bf16 %v3339, %v3338
      %v3359 = vpack.c.bf16 %v3341, %v3340
      %v3360 = vpack.c.bf16 %v3343, %v3342
      %v3361 = vpack.c.bf16 %v3345, %v3344
      %s3362 = scalar_lea.vmem %s6, 24
      %v3363 = vld [vmem:[%s3362] sm:$0xf]
      %v3365 = vsel %vm556, %v3346, 0
      %v3368 = vsel %vm556, %v3347, 0
      %v3371 = vsel %vm556, %v3348, 0
      %v3374 = vsel %vm556, %v3349, 0
      %v3377 = vsel %vm556, %v3350, 0
      %v3380 = vsel %vm556, %v3351, 0
      %v3383 = vsel %vm556, %v3352, 0
      %v3386 = vsel %vm556, %v3353, 0
      %v3389 = vsel %vm556, %v3354, 0
      %v3392 = vsel %vm556, %v3355, 0
      %v3395 = vsel %vm556, %v3356, 0
      %v3398 = vsel %vm556, %v3357, 0
      %v3401 = vsel %vm556, %v3358, 0
      %v3404 = vsel %vm556, %v3359, 0
      %v3407 = vsel %vm556, %v3360, 0
      %v3410 = vsel %vm556, %v3361, 0
      %v3413 = vsel %vm1325, %v3363, 0
      %3415 = vmatprep.subr.bf16.mxu0 0
      %3416 = vmatpush1.bf16.msra.mxu0 %v3413
      %3417 = vmatprep.subr.bf16.mxu0 0
      %3418 = vmatpush1.bf16.msra.mxu0 0
      %3419 = vmatprep.subr.bf16.mxu0 0
      %3420 = vmatpush1.bf16.msra.mxu0 0
      %3421 = vmatprep.subr.bf16.mxu0 0
      %3422 = vmatpush1.bf16.msra.mxu0 0
      %3423 = vmatprep.subr.bf16.mxu0 0
      %3424 = vmatpush1.bf16.msra.mxu0 0
      %3425 = vmatprep.subr.bf16.mxu0 0
      %3426 = vmatpush1.bf16.msra.mxu0 0
      %3427 = vmatprep.subr.bf16.mxu0 0
      %3428 = vmatpush1.bf16.msra.mxu0 0
      %3429 = vmatprep.subr.bf16.mxu0 0
      %3430 = vmatpush1.bf16.msra.mxu0 0
      %3431 = vmatprep.subr.bf16.mxu0 0
      %3432 = vmatpush1.bf16.msra.mxu0 0
      %3433 = vmatprep.subr.bf16.mxu0 0
      %3434 = vmatpush1.bf16.msra.mxu0 0
      %3435 = vmatprep.subr.bf16.mxu0 0
      %3436 = vmatpush1.bf16.msra.mxu0 0
      %3437 = vmatprep.subr.bf16.mxu0 0
      %3438 = vmatpush1.bf16.msra.mxu0 0
      %3439 = vmatprep.subr.bf16.mxu0 0
      %3440 = vmatpush1.bf16.msra.mxu0 0
      %3441 = vmatprep.subr.bf16.mxu0 0
      %3442 = vmatpush1.bf16.msra.mxu0 0
      %3443 = vmatprep.subr.bf16.mxu0 0
      %3444 = vmatpush1.bf16.msra.mxu0 0
      %3445 = vmatprep.subr.bf16.mxu0 0
      %3446 = vmatpush1.bf16.msra.mxu0 0
      %3447 = vmatprep.mubr.bf16.mxu0 0
      %3448 = vmatmul.mubr.bf16.gmra.mrb[0].mxu0 %v3365
      %v3449 = vpop.f32.mrb[0].mxu0
      %v3450 = vadd.f32 0.0, %v3449
      %v3451 = vpop.f32.mrb[0].mxu0
      %v3452 = vpop.f32.mrb[0].mxu0
      %v3453 = vadd.f32 0.0, %v3452
      %v3454 = vpop.f32.mrb[0].mxu0
      %3455 = vmatprep.mubr.bf16.mxu0 0
      %3456 = vmatmul.mubr.bf16.gmra.mrb[0].mxu0 %v3368
      %v3457 = vpop.f32.mrb[0].mxu0
      %v3458 = vadd.f32 0.0, %v3457
      %v3459 = vpop.f32.mrb[0].mxu0
      %v3460 = vpop.f32.mrb[0].mxu0
      %v3461 = vadd.f32 0.0, %v3460
      %v3462 = vpop.f32.mrb[0].mxu0
      %3463 = vmatprep.mubr.bf16.mxu0 0
      %3464 = vmatmul.mubr.bf16.gmra.mrb[0].mxu0 %v3371
      %v3465 = vpop.f32.mrb[0].mxu0
      %v3466 = vadd.f32 0.0, %v3465
      %v3467 = vpop.f32.mrb[0].mxu0
      %v3468 = vpop.f32.mrb[0].mxu0
      %v3469 = vadd.f32 0.0, %v3468
      %v3470 = vpop.f32.mrb[0].mxu0
      %3471 = vmatprep.mubr.bf16.mxu0 0
      %3472 = vmatmul.mubr.bf16.gmra.mrb[0].mxu0 %v3374
      %v3473 = vpop.f32.mrb[0].mxu0
      %v3474 = vadd.f32 0.0, %v3473
      %v3475 = vpop.f32.mrb[0].mxu0
      %v3476 = vpop.f32.mrb[0].mxu0
      %v3477 = vadd.f32 0.0, %v3476
      %v3478 = vpop.f32.mrb[0].mxu0
      %3479 = vmatprep.mubr.bf16.mxu0 0
      %3480 = vmatmul.mubr.bf16.gmra.mrb[0].mxu0 %v3377
      %v3481 = vpop.f32.mrb[0].mxu0
      %v3482 = vadd.f32 0.0, %v3481
      %v3483 = vpop.f32.mrb[0].mxu0
      %v3484 = vpop.f32.mrb[0].mxu0
      %v3485 = vadd.f32 0.0, %v3484
      %v3486 = vpop.f32.mrb[0].mxu0
      %3487 = vmatprep.mubr.bf16.mxu0 0
      %3488 = vmatmul.mubr.bf16.gmra.mrb[0].mxu0 %v3380
      %v3489 = vpop.f32.mrb[0].mxu0
      %v3490 = vadd.f32 0.0, %v3489
      %v3491 = vpop.f32.mrb[0].mxu0
      %v3492 = vpop.f32.mrb[0].mxu0
      %v3493 = vadd.f32 0.0, %v3492
      %v3494 = vpop.f32.mrb[0].mxu0
      %3495 = vmatprep.mubr.bf16.mxu0 0
      %3496 = vmatmul.mubr.bf16.gmra.mrb[0].mxu0 %v3383
      %v3497 = vpop.f32.mrb[0].mxu0
      %v3498 = vadd.f32 0.0, %v3497
      %v3499 = vpop.f32.mrb[0].mxu0
      %v3500 = vpop.f32.mrb[0].mxu0
      %v3501 = vadd.f32 0.0, %v3500
      %v3502 = vpop.f32.mrb[0].mxu0
      %3503 = vmatprep.mubr.bf16.mxu0 0
      %3504 = vmatmul.mubr.bf16.gmra.mrb[0].mxu0 %v3386
      %v3505 = vpop.f32.mrb[0].mxu0
      %v3506 = vadd.f32 0.0, %v3505
      %v3507 = vpop.f32.mrb[0].mxu0
      %v3508 = vpop.f32.mrb[0].mxu0
      %v3509 = vadd.f32 0.0, %v3508
      %v3510 = vpop.f32.mrb[0].mxu0
      %3511 = vmatprep.mubr.bf16.mxu0 0
      %3512 = vmatmul.mubr.bf16.gmra.mrb[0].mxu0 %v3389
      %v3513 = vpop.f32.mrb[0].mxu0
      %v3514 = vadd.f32 0.0, %v3513
      %v3515 = vpop.f32.mrb[0].mxu0
      %v3516 = vpop.f32.mrb[0].mxu0
      %v3517 = vadd.f32 0.0, %v3516
      %v3518 = vpop.f32.mrb[0].mxu0
      %3519 = vmatprep.mubr.bf16.mxu0 0
      %3520 = vmatmul.mubr.bf16.gmra.mrb[0].mxu0 %v3392
      %v3521 = vpop.f32.mrb[0].mxu0
      %v3522 = vadd.f32 0.0, %v3521
      %v3523 = vpop.f32.mrb[0].mxu0
      %v3524 = vpop.f32.mrb[0].mxu0
      %v3525 = vadd.f32 0.0, %v3524
      %v3526 = vpop.f32.mrb[0].mxu0
      %3527 = vmatprep.mubr.bf16.mxu0 0
      %3528 = vmatmul.mubr.bf16.gmra.mrb[0].mxu0 %v3395
      %v3529 = vpop.f32.mrb[0].mxu0
      %v3530 = vadd.f32 0.0, %v3529
      %v3531 = vpop.f32.mrb[0].mxu0
      %v3532 = vpop.f32.mrb[0].mxu0
      %v3533 = vadd.f32 0.0, %v3532
      %v3534 = vpop.f32.mrb[0].mxu0
      %3535 = vmatprep.mubr.bf16.mxu0 0
      %3536 = vmatmul.mubr.bf16.gmra.mrb[0].mxu0 %v3398
      %v3537 = vpop.f32.mrb[0].mxu0
      %v3538 = vadd.f32 0.0, %v3537
      %v3539 = vpop.f32.mrb[0].mxu0
      %v3540 = vpop.f32.mrb[0].mxu0
      %v3541 = vadd.f32 0.0, %v3540
      %v3542 = vpop.f32.mrb[0].mxu0
      %3543 = vmatprep.mubr.bf16.mxu0 0
      %3544 = vmatmul.mubr.bf16.gmra.mrb[0].mxu0 %v3401
      %v3545 = vpop.f32.mrb[0].mxu0
      %v3546 = vadd.f32 0.0, %v3545
      %v3547 = vpop.f32.mrb[0].mxu0
      %v3548 = vpop.f32.mrb[0].mxu0
      %v3549 = vadd.f32 0.0, %v3548
      %v3550 = vpop.f32.mrb[0].mxu0
      %3551 = vmatprep.mubr.bf16.mxu0 0
      %3552 = vmatmul.mubr.bf16.gmra.mrb[0].mxu0 %v3404
      %v3553 = vpop.f32.mrb[0].mxu0
      %v3554 = vadd.f32 0.0, %v3553
      %v3555 = vpop.f32.mrb[0].mxu0
      %v3556 = vpop.f32.mrb[0].mxu0
      %v3557 = vadd.f32 0.0, %v3556
      %v3558 = vpop.f32.mrb[0].mxu0
      %3559 = vmatprep.mubr.bf16.mxu0 0
      %3560 = vmatmul.mubr.bf16.gmra.mrb[0].mxu0 %v3407
      %v3561 = vpop.f32.mrb[0].mxu0
      %v3562 = vadd.f32 0.0, %v3561
      %v3563 = vpop.f32.mrb[0].mxu0
      %v3564 = vpop.f32.mrb[0].mxu0
      %v3565 = vadd.f32 0.0, %v3564
      %v3566 = vpop.f32.mrb[0].mxu0
      %3567 = vmatprep.mubr.bf16.mxu0 0
      %3568 = vmatmul.mubr.bf16.gmra.mrb[0].mxu0 %v3410
      %v3569 = vpop.f32.mrb[0].mxu0
      %v3570 = vadd.f32 0.0, %v3569
      %v3571 = vpop.f32.mrb[0].mxu0
      %v3572 = vpop.f32.mrb[0].mxu0
      %v3573 = vadd.f32 0.0, %v3572
      %v3574 = vpop.f32.mrb[0].mxu0
      %3575 = vdwg.mxu0
      %v3576 = vld [vmem:[#allocation4] sm:$0xff]
      %v3577 = vld [vmem:[#allocation4 + $0x8] sm:$0xff]
      %v3578 = vld [vmem:[#allocation4 + $0x10] sm:$0xff]
      %v3579 = vld [vmem:[#allocation4 + $0x18] sm:$0xff]
      %v3580 = vld [vmem:[#allocation4 + $0x20] sm:$0xff]
      %v3581 = vld [vmem:[#allocation4 + $0x28] sm:$0xff]
      %v3582 = vld [vmem:[#allocation4 + $0x30] sm:$0xff]
      %v3583 = vld [vmem:[#allocation4 + $0x38] sm:$0xff]
      %v3584 = vld [vmem:[#allocation4 + $0x40] sm:$0xff]
      %v3585 = vld [vmem:[#allocation4 + $0x48] sm:$0xff]
      %v3586 = vld [vmem:[#allocation4 + $0x50] sm:$0xff]
      %v3587 = vld [vmem:[#allocation4 + $0x58] sm:$0xff]
      %v3588 = vld [vmem:[#allocation4 + $0x60] sm:$0xff]
      %v3589 = vld [vmem:[#allocation4 + $0x68] sm:$0xff]
      %v3590 = vld [vmem:[#allocation4 + $0x70] sm:$0xff]
      %v3591 = vld [vmem:[#allocation4 + $0x78] sm:$0xff]
      %v3592 = vld [vmem:[#allocation4 + $0x80] sm:$0xff]
      %v3593 = vld [vmem:[#allocation4 + $0x88] sm:$0xff]
      %v3594 = vld [vmem:[#allocation4 + $0x90] sm:$0xff]
      %v3595 = vld [vmem:[#allocation4 + $0x98] sm:$0xff]
      %v3596 = vld [vmem:[#allocation4 + $0xa0] sm:$0xff]
      %v3597 = vld [vmem:[#allocation4 + $0xa8] sm:$0xff]
      %v3598 = vld [vmem:[#allocation4 + $0xb0] sm:$0xff]
      %v3599 = vld [vmem:[#allocation4 + $0xb8] sm:$0xff]
      %v3600 = vld [vmem:[#allocation4 + $0xc0] sm:$0xff]
      %v3601 = vld [vmem:[#allocation4 + $0xc8] sm:$0xff]
      %v3602 = vld [vmem:[#allocation4 + $0xd0] sm:$0xff]
      %v3603 = vld [vmem:[#allocation4 + $0xd8] sm:$0xff]
      %v3604 = vld [vmem:[#allocation4 + $0xe0] sm:$0xff]
      %v3605 = vld [vmem:[#allocation4 + $0xe8] sm:$0xff]
      %v3606 = vld [vmem:[#allocation4 + $0xf0] sm:$0xff]
      %v3607 = vld [vmem:[#allocation4 + $0xf8] sm:$0xff]
      %v3608 = vadd.f32 %v3576, %v3450
      %v3609 = vadd.f32 %v3577, %v3453
      %v3610 = vadd.f32 %v3578, %v3458
      %v3611 = vadd.f32 %v3579, %v3461
      %v3612 = vadd.f32 %v3580, %v3466
      %v3613 = vadd.f32 %v3581, %v3469
      %v3614 = vadd.f32 %v3582, %v3474
      %v3615 = vadd.f32 %v3583, %v3477
      %v3616 = vadd.f32 %v3584, %v3482
      %v3617 = vadd.f32 %v3585, %v3485
      %v3618 = vadd.f32 %v3586, %v3490
      %v3619 = vadd.f32 %v3587, %v3493
      %v3620 = vadd.f32 %v3588, %v3498
      %v3621 = vadd.f32 %v3589, %v3501
      %v3622 = vadd.f32 %v3590, %v3506
      %v3623 = vadd.f32 %v3591, %v3509
      %v3624 = vadd.f32 %v3592, %v3514
      %v3625 = vadd.f32 %v3593, %v3517
      %v3626 = vadd.f32 %v3594, %v3522
      %v3627 = vadd.f32 %v3595, %v3525
      %v3628 = vadd.f32 %v3596, %v3530
      %v3629 = vadd.f32 %v3597, %v3533
      %v3630 = vadd.f32 %v3598, %v3538
      %v3631 = vadd.f32 %v3599, %v3541
      %v3632 = vadd.f32 %v3600, %v3546
      %v3633 = vadd.f32 %v3601, %v3549
      %v3634 = vadd.f32 %v3602, %v3554
      %v3635 = vadd.f32 %v3603, %v3557
      %v3636 = vadd.f32 %v3604, %v3562
      %v3637 = vadd.f32 %v3605, %v3565
      %v3638 = vadd.f32 %v3606, %v3570
      %v3639 = vadd.f32 %v3607, %v3573
      %3640 = vst.msk [vmem:[#allocation4] sm:$0xff] %vm1490, %v3608
      %3641 = vst.msk [vmem:[#allocation4 + $0x8] sm:$0xff] %vm1490, %v3609
      %3642 = vst.msk [vmem:[#allocation4 + $0x10] sm:$0xff] %vm1490, %v3610
      %3643 = vst.msk [vmem:[#allocation4 + $0x18] sm:$0xff] %vm1490, %v3611
      %3644 = vst.msk [vmem:[#allocation4 + $0x20] sm:$0xff] %vm1490, %v3612
      %3645 = vst.msk [vmem:[#allocation4 + $0x28] sm:$0xff] %vm1490, %v3613
      %3646 = vst.msk [vmem:[#allocation4 + $0x30] sm:$0xff] %vm1490, %v3614
      %3647 = vst.msk [vmem:[#allocation4 + $0x38] sm:$0xff] %vm1490, %v3615
      %3648 = vst.msk [vmem:[#allocation4 + $0x40] sm:$0xff] %vm1490, %v3616
      %3649 = vst.msk [vmem:[#allocation4 + $0x48] sm:$0xff] %vm1490, %v3617
      %3650 = vst.msk [vmem:[#allocation4 + $0x50] sm:$0xff] %vm1490, %v3618
      %3651 = vst.msk [vmem:[#allocation4 + $0x58] sm:$0xff] %vm1490, %v3619
      %3652 = vst.msk [vmem:[#allocation4 + $0x60] sm:$0xff] %vm1490, %v3620
      %3653 = vst.msk [vmem:[#allocation4 + $0x68] sm:$0xff] %vm1490, %v3621
      %3654 = vst.msk [vmem:[#allocation4 + $0x70] sm:$0xff] %vm1490, %v3622
      %3655 = vst.msk [vmem:[#allocation4 + $0x78] sm:$0xff] %vm1490, %v3623
      %3656 = vst.msk [vmem:[#allocation4 + $0x80] sm:$0xff] %vm1490, %v3624
      %3657 = vst.msk [vmem:[#allocation4 + $0x88] sm:$0xff] %vm1490, %v3625
      %3658 = vst.msk [vmem:[#allocation4 + $0x90] sm:$0xff] %vm1490, %v3626
      %3659 = vst.msk [vmem:[#allocation4 + $0x98] sm:$0xff] %vm1490, %v3627
      %3660 = vst.msk [vmem:[#allocation4 + $0xa0] sm:$0xff] %vm1490, %v3628
      %3661 = vst.msk [vmem:[#allocation4 + $0xa8] sm:$0xff] %vm1490, %v3629
      %3662 = vst.msk [vmem:[#allocation4 + $0xb0] sm:$0xff] %vm1490, %v3630
      %3663 = vst.msk [vmem:[#allocation4 + $0xb8] sm:$0xff] %vm1490, %v3631
      %3664 = vst.msk [vmem:[#allocation4 + $0xc0] sm:$0xff] %vm1490, %v3632
      %3665 = vst.msk [vmem:[#allocation4 + $0xc8] sm:$0xff] %vm1490, %v3633
      %3666 = vst.msk [vmem:[#allocation4 + $0xd0] sm:$0xff] %vm1490, %v3634
      %3667 = vst.msk [vmem:[#allocation4 + $0xd8] sm:$0xff] %vm1490, %v3635
      %3668 = vst.msk [vmem:[#allocation4 + $0xe0] sm:$0xff] %vm1490, %v3636
      %3669 = vst.msk [vmem:[#allocation4 + $0xe8] sm:$0xff] %vm1490, %v3637
      %3670 = vst.msk [vmem:[#allocation4 + $0xf0] sm:$0xff] %vm1490, %v3638
      %3671 = vst.msk [vmem:[#allocation4 + $0xf8] sm:$0xff] %vm1490, %v3639
      %v3672 = vld [vmem:[%s3313 + $0x1] sm:$0xff]
      %v3673 = vld [vmem:[%s3313 + $0x9] sm:$0xff]
      %v3674 = vld [vmem:[%s3313 + $0x19] sm:$0xff]
      %v3675 = vld [vmem:[%s3313 + $0x21] sm:$0xff]
      %v3676 = vld [vmem:[%s3313 + $0x31] sm:$0xff]
      %v3677 = vld [vmem:[%s3313 + $0x39] sm:$0xff]
      %v3678 = vld [vmem:[%s3313 + $0x49] sm:$0xff]
      %v3679 = vld [vmem:[%s3313 + $0x51] sm:$0xff]
      %v3680 = vld [vmem:[%s3313 + $0x61] sm:$0xff]
      %v3681 = vld [vmem:[%s3313 + $0x69] sm:$0xff]
      %v3682 = vld [vmem:[%s3313 + $0x79] sm:$0xff]
      %v3683 = vld [vmem:[%s3313 + $0x81] sm:$0xff]
      %v3684 = vld [vmem:[%s3313 + $0x91] sm:$0xff]
      %v3685 = vld [vmem:[%s3313 + $0x99] sm:$0xff]
      %v3686 = vld [vmem:[%s3313 + $0xa9] sm:$0xff]
      %v3687 = vld [vmem:[%s3313 + $0xb1] sm:$0xff]
      %v3688 = vld [vmem:[%s3313 + $0xc1] sm:$0xff]
      %v3689 = vld [vmem:[%s3313 + $0xc9] sm:$0xff]
      %v3690 = vld [vmem:[%s3313 + $0xd9] sm:$0xff]
      %v3691 = vld [vmem:[%s3313 + $0xe1] sm:$0xff]
      %v3692 = vld [vmem:[%s3313 + $0xf1] sm:$0xff]
      %v3693 = vld [vmem:[%s3313 + $0xf9] sm:$0xff]
      %v3694 = vld [vmem:[%s3313 + $0x109] sm:$0xff]
      %v3695 = vld [vmem:[%s3313 + $0x111] sm:$0xff]
      %v3696 = vld [vmem:[%s3313 + $0x121] sm:$0xff]
      %v3697 = vld [vmem:[%s3313 + $0x129] sm:$0xff]
      %v3698 = vld [vmem:[%s3313 + $0x139] sm:$0xff]
      %v3699 = vld [vmem:[%s3313 + $0x141] sm:$0xff]
      %v3700 = vld [vmem:[%s3313 + $0x151] sm:$0xff]
      %v3701 = vld [vmem:[%s3313 + $0x159] sm:$0xff]
      %v3702 = vld [vmem:[%s3313 + $0x169] sm:$0xff]
      %v3703 = vld [vmem:[%s3313 + $0x171] sm:$0xff]
      %v3704 = vpack.c.bf16 %v3673, %v3672
      %v3705 = vpack.c.bf16 %v3675, %v3674
      %v3706 = vpack.c.bf16 %v3677, %v3676
      %v3707 = vpack.c.bf16 %v3679, %v3678
      %v3708 = vpack.c.bf16 %v3681, %v3680
      %v3709 = vpack.c.bf16 %v3683, %v3682
      %v3710 = vpack.c.bf16 %v3685, %v3684
      %v3711 = vpack.c.bf16 %v3687, %v3686
      %v3712 = vpack.c.bf16 %v3689, %v3688
      %v3713 = vpack.c.bf16 %v3691, %v3690
      %v3714 = vpack.c.bf16 %v3693, %v3692
      %v3715 = vpack.c.bf16 %v3695, %v3694
      %v3716 = vpack.c.bf16 %v3697, %v3696
      %v3717 = vpack.c.bf16 %v3699, %v3698
      %v3718 = vpack.c.bf16 %v3701, %v3700
      %v3719 = vpack.c.bf16 %v3703, %v3702
      %s3720 = scalar_lea.vmem %s6, 28
      %v3721 = vld [vmem:[%s3720] sm:$0xf]
      %v3723 = vsel %vm556, %v3704, 0
      %v3726 = vsel %vm556, %v3705, 0
      %v3729 = vsel %vm556, %v3706, 0
      %v3732 = vsel %vm556, %v3707, 0
      %v3735 = vsel %vm556, %v3708, 0
      %v3738 = vsel %vm556, %v3709, 0
      %v3741 = vsel %vm556, %v3710, 0
      %v3744 = vsel %vm556, %v3711, 0
      %v3747 = vsel %vm556, %v3712, 0
      %v3750 = vsel %vm556, %v3713, 0
      %v3753 = vsel %vm556, %v3714, 0
      %v3756 = vsel %vm556, %v3715, 0
      %v3759 = vsel %vm556, %v3716, 0
      %v3762 = vsel %vm556, %v3717, 0
      %v3765 = vsel %vm556, %v3718, 0
      %v3768 = vsel %vm556, %v3719, 0
      %v3771 = vsel %vm1325, %v3721, 0
      %3773 = vmatprep.subr.bf16.mxu0 0
      %3774 = vmatpush1.bf16.msra.mxu0 %v3771
      %3775 = vmatprep.subr.bf16.mxu0 0
      %3776 = vmatpush1.bf16.msra.mxu0 0
      %3777 = vmatprep.subr.bf16.mxu0 0
      %3778 = vmatpush1.bf16.msra.mxu0 0
      %3779 = vmatprep.subr.bf16.mxu0 0
      %3780 = vmatpush1.bf16.msra.mxu0 0
      %3781 = vmatprep.subr.bf16.mxu0 0
      %3782 = vmatpush1.bf16.msra.mxu0 0
      %3783 = vmatprep.subr.bf16.mxu0 0
      %3784 = vmatpush1.bf16.msra.mxu0 0
      %3785 = vmatprep.subr.bf16.mxu0 0
      %3786 = vmatpush1.bf16.msra.mxu0 0
      %3787 = vmatprep.subr.bf16.mxu0 0
      %3788 = vmatpush1.bf16.msra.mxu0 0
      %3789 = vmatprep.subr.bf16.mxu0 0
      %3790 = vmatpush1.bf16.msra.mxu0 0
      %3791 = vmatprep.subr.bf16.mxu0 0
      %3792 = vmatpush1.bf16.msra.mxu0 0
      %3793 = vmatprep.subr.bf16.mxu0 0
      %3794 = vmatpush1.bf16.msra.mxu0 0
      %3795 = vmatprep.subr.bf16.mxu0 0
      %3796 = vmatpush1.bf16.msra.mxu0 0
      %3797 = vmatprep.subr.bf16.mxu0 0
      %3798 = vmatpush1.bf16.msra.mxu0 0
      %3799 = vmatprep.subr.bf16.mxu0 0
      %3800 = vmatpush1.bf16.msra.mxu0 0
      %3801 = vmatprep.subr.bf16.mxu0 0
      %3802 = vmatpush1.bf16.msra.mxu0 0
      %3803 = vmatprep.subr.bf16.mxu0 0
      %3804 = vmatpush1.bf16.msra.mxu0 0
      %3805 = vmatprep.mubr.bf16.mxu0 0
      %3806 = vmatmul.mubr.bf16.gmra.mrb[0].mxu0 %v3723
      %v3807 = vpop.f32.mrb[0].mxu0
      %v3808 = vadd.f32 0.0, %v3807
      %v3809 = vpop.f32.mrb[0].mxu0
      %v3810 = vpop.f32.mrb[0].mxu0
      %v3811 = vadd.f32 0.0, %v3810
      %v3812 = vpop.f32.mrb[0].mxu0
      %3813 = vmatprep.mubr.bf16.mxu0 0
      %3814 = vmatmul.mubr.bf16.gmra.mrb[0].mxu0 %v3726
      %v3815 = vpop.f32.mrb[0].mxu0
      %v3816 = vadd.f32 0.0, %v3815
      %v3817 = vpop.f32.mrb[0].mxu0
      %v3818 = vpop.f32.mrb[0].mxu0
      %v3819 = vadd.f32 0.0, %v3818
      %v3820 = vpop.f32.mrb[0].mxu0
      %3821 = vmatprep.mubr.bf16.mxu0 0
      %3822 = vmatmul.mubr.bf16.gmra.mrb[0].mxu0 %v3729
      %v3823 = vpop.f32.mrb[0].mxu0
      %v3824 = vadd.f32 0.0, %v3823
      %v3825 = vpop.f32.mrb[0].mxu0
      %v3826 = vpop.f32.mrb[0].mxu0
      %v3827 = vadd.f32 0.0, %v3826
      %v3828 = vpop.f32.mrb[0].mxu0
      %3829 = vmatprep.mubr.bf16.mxu0 0
      %3830 = vmatmul.mubr.bf16.gmra.mrb[0].mxu0 %v3732
      %v3831 = vpop.f32.mrb[0].mxu0
      %v3832 = vadd.f32 0.0, %v3831
      %v3833 = vpop.f32.mrb[0].mxu0
      %v3834 = vpop.f32.mrb[0].mxu0
      %v3835 = vadd.f32 0.0, %v3834
      %v3836 = vpop.f32.mrb[0].mxu0
      %3837 = vmatprep.mubr.bf16.mxu0 0
      %3838 = vmatmul.mubr.bf16.gmra.mrb[0].mxu0 %v3735
      %v3839 = vpop.f32.mrb[0].mxu0
      %v3840 = vadd.f32 0.0, %v3839
      %v3841 = vpop.f32.mrb[0].mxu0
      %v3842 = vpop.f32.mrb[0].mxu0
      %v3843 = vadd.f32 0.0, %v3842
      %v3844 = vpop.f32.mrb[0].mxu0
      %3845 = vmatprep.mubr.bf16.mxu0 0
      %3846 = vmatmul.mubr.bf16.gmra.mrb[0].mxu0 %v3738
      %v3847 = vpop.f32.mrb[0].mxu0
      %v3848 = vadd.f32 0.0, %v3847
      %v3849 = vpop.f32.mrb[0].mxu0
      %v3850 = vpop.f32.mrb[0].mxu0
      %v3851 = vadd.f32 0.0, %v3850
      %v3852 = vpop.f32.mrb[0].mxu0
      %3853 = vmatprep.mubr.bf16.mxu0 0
      %3854 = vmatmul.mubr.bf16.gmra.mrb[0].mxu0 %v3741
      %v3855 = vpop.f32.mrb[0].mxu0
      %v3856 = vadd.f32 0.0, %v3855
      %v3857 = vpop.f32.mrb[0].mxu0
      %v3858 = vpop.f32.mrb[0].mxu0
      %v3859 = vadd.f32 0.0, %v3858
      %v3860 = vpop.f32.mrb[0].mxu0
      %3861 = vmatprep.mubr.bf16.mxu0 0
      %3862 = vmatmul.mubr.bf16.gmra.mrb[0].mxu0 %v3744
      %v3863 = vpop.f32.mrb[0].mxu0
      %v3864 = vadd.f32 0.0, %v3863
      %v3865 = vpop.f32.mrb[0].mxu0
      %v3866 = vpop.f32.mrb[0].mxu0
      %v3867 = vadd.f32 0.0, %v3866
      %v3868 = vpop.f32.mrb[0].mxu0
      %3869 = vmatprep.mubr.bf16.mxu0 0
      %3870 = vmatmul.mubr.bf16.gmra.mrb[0].mxu0 %v3747
      %v3871 = vpop.f32.mrb[0].mxu0
      %v3872 = vadd.f32 0.0, %v3871
      %v3873 = vpop.f32.mrb[0].mxu0
      %v3874 = vpop.f32.mrb[0].mxu0
      %v3875 = vadd.f32 0.0, %v3874
      %v3876 = vpop.f32.mrb[0].mxu0
      %3877 = vmatprep.mubr.bf16.mxu0 0
      %3878 = vmatmul.mubr.bf16.gmra.mrb[0].mxu0 %v3750
      %v3879 = vpop.f32.mrb[0].mxu0
      %v3880 = vadd.f32 0.0, %v3879
      %v3881 = vpop.f32.mrb[0].mxu0
      %v3882 = vpop.f32.mrb[0].mxu0
      %v3883 = vadd.f32 0.0, %v3882
      %v3884 = vpop.f32.mrb[0].mxu0
      %3885 = vmatprep.mubr.bf16.mxu0 0
      %3886 = vmatmul.mubr.bf16.gmra.mrb[0].mxu0 %v3753
      %v3887 = vpop.f32.mrb[0].mxu0
      %v3888 = vadd.f32 0.0, %v3887
      %v3889 = vpop.f32.mrb[0].mxu0
      %v3890 = vpop.f32.mrb[0].mxu0
      %v3891 = vadd.f32 0.0, %v3890
      %v3892 = vpop.f32.mrb[0].mxu0
      %3893 = vmatprep.mubr.bf16.mxu0 0
      %3894 = vmatmul.mubr.bf16.gmra.mrb[0].mxu0 %v3756
      %v3895 = vpop.f32.mrb[0].mxu0
      %v3896 = vadd.f32 0.0, %v3895
      %v3897 = vpop.f32.mrb[0].mxu0
      %v3898 = vpop.f32.mrb[0].mxu0
      %v3899 = vadd.f32 0.0, %v3898
      %v3900 = vpop.f32.mrb[0].mxu0
      %3901 = vmatprep.mubr.bf16.mxu0 0
      %3902 = vmatmul.mubr.bf16.gmra.mrb[0].mxu0 %v3759
      %v3903 = vpop.f32.mrb[0].mxu0
      %v3904 = vadd.f32 0.0, %v3903
      %v3905 = vpop.f32.mrb[0].mxu0
      %v3906 = vpop.f32.mrb[0].mxu0
      %v3907 = vadd.f32 0.0, %v3906
      %v3908 = vpop.f32.mrb[0].mxu0
      %3909 = vmatprep.mubr.bf16.mxu0 0
      %3910 = vmatmul.mubr.bf16.gmra.mrb[0].mxu0 %v3762
      %v3911 = vpop.f32.mrb[0].mxu0
      %v3912 = vadd.f32 0.0, %v3911
      %v3913 = vpop.f32.mrb[0].mxu0
      %v3914 = vpop.f32.mrb[0].mxu0
      %v3915 = vadd.f32 0.0, %v3914
      %v3916 = vpop.f32.mrb[0].mxu0
      %3917 = vmatprep.mubr.bf16.mxu0 0
      %3918 = vmatmul.mubr.bf16.gmra.mrb[0].mxu0 %v3765
      %v3919 = vpop.f32.mrb[0].mxu0
      %v3920 = vadd.f32 0.0, %v3919
      %v3921 = vpop.f32.mrb[0].mxu0
      %v3922 = vpop.f32.mrb[0].mxu0
      %v3923 = vadd.f32 0.0, %v3922
      %v3924 = vpop.f32.mrb[0].mxu0
      %3925 = vmatprep.mubr.bf16.mxu0 0
      %3926 = vmatmul.mubr.bf16.gmra.mrb[0].mxu0 %v3768
      %v3927 = vpop.f32.mrb[0].mxu0
      %v3928 = vadd.f32 0.0, %v3927
      %v3929 = vpop.f32.mrb[0].mxu0
      %v3930 = vpop.f32.mrb[0].mxu0
      %v3931 = vadd.f32 0.0, %v3930
      %v3932 = vpop.f32.mrb[0].mxu0
      %3933 = vdwg.mxu0
      %v3934 = vld [vmem:[#allocation4] sm:$0xff]
      %v3935 = vld [vmem:[#allocation4 + $0x8] sm:$0xff]
      %v3936 = vld [vmem:[#allocation4 + $0x10] sm:$0xff]
      %v3937 = vld [vmem:[#allocation4 + $0x18] sm:$0xff]
      %v3938 = vld [vmem:[#allocation4 + $0x20] sm:$0xff]
      %v3939 = vld [vmem:[#allocation4 + $0x28] sm:$0xff]
      %v3940 = vld [vmem:[#allocation4 + $0x30] sm:$0xff]
      %v3941 = vld [vmem:[#allocation4 + $0x38] sm:$0xff]
      %v3942 = vld [vmem:[#allocation4 + $0x40] sm:$0xff]
      %v3943 = vld [vmem:[#allocation4 + $0x48] sm:$0xff]
      %v3944 = vld [vmem:[#allocation4 + $0x50] sm:$0xff]
      %v3945 = vld [vmem:[#allocation4 + $0x58] sm:$0xff]
      %v3946 = vld [vmem:[#allocation4 + $0x60] sm:$0xff]
      %v3947 = vld [vmem:[#allocation4 + $0x68] sm:$0xff]
      %v3948 = vld [vmem:[#allocation4 + $0x70] sm:$0xff]
      %v3949 = vld [vmem:[#allocation4 + $0x78] sm:$0xff]
      %v3950 = vld [vmem:[#allocation4 + $0x80] sm:$0xff]
      %v3951 = vld [vmem:[#allocation4 + $0x88] sm:$0xff]
      %v3952 = vld [vmem:[#allocation4 + $0x90] sm:$0xff]
      %v3953 = vld [vmem:[#allocation4 + $0x98] sm:$0xff]
      %v3954 = vld [vmem:[#allocation4 + $0xa0] sm:$0xff]
      %v3955 = vld [vmem:[#allocation4 + $0xa8] sm:$0xff]
      %v3956 = vld [vmem:[#allocation4 + $0xb0] sm:$0xff]
      %v3957 = vld [vmem:[#allocation4 + $0xb8] sm:$0xff]
      %v3958 = vld [vmem:[#allocation4 + $0xc0] sm:$0xff]
      %v3959 = vld [vmem:[#allocation4 + $0xc8] sm:$0xff]
      %v3960 = vld [vmem:[#allocation4 + $0xd0] sm:$0xff]
      %v3961 = vld [vmem:[#allocation4 + $0xd8] sm:$0xff]
      %v3962 = vld [vmem:[#allocation4 + $0xe0] sm:$0xff]
      %v3963 = vld [vmem:[#allocation4 + $0xe8] sm:$0xff]
      %v3964 = vld [vmem:[#allocation4 + $0xf0] sm:$0xff]
      %v3965 = vld [vmem:[#allocation4 + $0xf8] sm:$0xff]
      %v3966 = vadd.f32 %v3934, %v3808
      %v3967 = vadd.f32 %v3935, %v3811
      %v3968 = vadd.f32 %v3936, %v3816
      %v3969 = vadd.f32 %v3937, %v3819
      %v3970 = vadd.f32 %v3938, %v3824
      %v3971 = vadd.f32 %v3939, %v3827
      %v3972 = vadd.f32 %v3940, %v3832
      %v3973 = vadd.f32 %v3941, %v3835
      %v3974 = vadd.f32 %v3942, %v3840
      %v3975 = vadd.f32 %v3943, %v3843
      %v3976 = vadd.f32 %v3944, %v3848
      %v3977 = vadd.f32 %v3945, %v3851
      %v3978 = vadd.f32 %v3946, %v3856
      %v3979 = vadd.f32 %v3947, %v3859
      %v3980 = vadd.f32 %v3948, %v3864
      %v3981 = vadd.f32 %v3949, %v3867
      %v3982 = vadd.f32 %v3950, %v3872
      %v3983 = vadd.f32 %v3951, %v3875
      %v3984 = vadd.f32 %v3952, %v3880
      %v3985 = vadd.f32 %v3953, %v3883
      %v3986 = vadd.f32 %v3954, %v3888
      %v3987 = vadd.f32 %v3955, %v3891
      %v3988 = vadd.f32 %v3956, %v3896
      %v3989 = vadd.f32 %v3957, %v3899
      %v3990 = vadd.f32 %v3958, %v3904
      %v3991 = vadd.f32 %v3959, %v3907
      %v3992 = vadd.f32 %v3960, %v3912
      %v3993 = vadd.f32 %v3961, %v3915
      %v3994 = vadd.f32 %v3962, %v3920
      %v3995 = vadd.f32 %v3963, %v3923
      %v3996 = vadd.f32 %v3964, %v3928
      %v3997 = vadd.f32 %v3965, %v3931
      %3998 = vst.msk [vmem:[#allocation4] sm:$0xff] %vm1490, %v3966
      %3999 = vst.msk [vmem:[#allocation4 + $0x8] sm:$0xff] %vm1490, %v3967
      %4000 = vst.msk [vmem:[#allocation4 + $0x10] sm:$0xff] %vm1490, %v3968
      %4001 = vst.msk [vmem:[#allocation4 + $0x18] sm:$0xff] %vm1490, %v3969
      %4002 = vst.msk [vmem:[#allocation4 + $0x20] sm:$0xff] %vm1490, %v3970
      %4003 = vst.msk [vmem:[#allocation4 + $0x28] sm:$0xff] %vm1490, %v3971
      %4004 = vst.msk [vmem:[#allocation4 + $0x30] sm:$0xff] %vm1490, %v3972
      %4005 = vst.msk [vmem:[#allocation4 + $0x38] sm:$0xff] %vm1490, %v3973
      %4006 = vst.msk [vmem:[#allocation4 + $0x40] sm:$0xff] %vm1490, %v3974
      %4007 = vst.msk [vmem:[#allocation4 + $0x48] sm:$0xff] %vm1490, %v3975
      %4008 = vst.msk [vmem:[#allocation4 + $0x50] sm:$0xff] %vm1490, %v3976
      %4009 = vst.msk [vmem:[#allocation4 + $0x58] sm:$0xff] %vm1490, %v3977
      %4010 = vst.msk [vmem:[#allocation4 + $0x60] sm:$0xff] %vm1490, %v3978
      %4011 = vst.msk [vmem:[#allocation4 + $0x68] sm:$0xff] %vm1490, %v3979
      %4012 = vst.msk [vmem:[#allocation4 + $0x70] sm:$0xff] %vm1490, %v3980
      %4013 = vst.msk [vmem:[#allocation4 + $0x78] sm:$0xff] %vm1490, %v3981
      %4014 = vst.msk [vmem:[#allocation4 + $0x80] sm:$0xff] %vm1490, %v3982
      %4015 = vst.msk [vmem:[#allocation4 + $0x88] sm:$0xff] %vm1490, %v3983
      %4016 = vst.msk [vmem:[#allocation4 + $0x90] sm:$0xff] %vm1490, %v3984
      %4017 = vst.msk [vmem:[#allocation4 + $0x98] sm:$0xff] %vm1490, %v3985
      %4018 = vst.msk [vmem:[#allocation4 + $0xa0] sm:$0xff] %vm1490, %v3986
      %4019 = vst.msk [vmem:[#allocation4 + $0xa8] sm:$0xff] %vm1490, %v3987
      %4020 = vst.msk [vmem:[#allocation4 + $0xb0] sm:$0xff] %vm1490, %v3988
      %4021 = vst.msk [vmem:[#allocation4 + $0xb8] sm:$0xff] %vm1490, %v3989
      %4022 = vst.msk [vmem:[#allocation4 + $0xc0] sm:$0xff] %vm1490, %v3990
      %4023 = vst.msk [vmem:[#allocation4 + $0xc8] sm:$0xff] %vm1490, %v3991
      %4024 = vst.msk [vmem:[#allocation4 + $0xd0] sm:$0xff] %vm1490, %v3992
      %4025 = vst.msk [vmem:[#allocation4 + $0xd8] sm:$0xff] %vm1490, %v3993
      %4026 = vst.msk [vmem:[#allocation4 + $0xe0] sm:$0xff] %vm1490, %v3994
      %4027 = vst.msk [vmem:[#allocation4 + $0xe8] sm:$0xff] %vm1490, %v3995
      %4028 = vst.msk [vmem:[#allocation4 + $0xf0] sm:$0xff] %vm1490, %v3996
      %4029 = vst.msk [vmem:[#allocation4 + $0xf8] sm:$0xff] %vm1490, %v3997
      %v4030 = vld [vmem:[%s3313 + $0x2] sm:$0xff]
      %v4031 = vld [vmem:[%s3313 + $0xa] sm:$0xff]
      %v4032 = vld [vmem:[%s3313 + $0x1a] sm:$0xff]
      %v4033 = vld [vmem:[%s3313 + $0x22] sm:$0xff]
      %v4034 = vld [vmem:[%s3313 + $0x32] sm:$0xff]
      %v4035 = vld [vmem:[%s3313 + $0x3a] sm:$0xff]
      %v4036 = vld [vmem:[%s3313 + $0x4a] sm:$0xff]
      %v4037 = vld [vmem:[%s3313 + $0x52] sm:$0xff]
      %v4038 = vld [vmem:[%s3313 + $0x62] sm:$0xff]
      %v4039 = vld [vmem:[%s3313 + $0x6a] sm:$0xff]
      %v4040 = vld [vmem:[%s3313 + $0x7a] sm:$0xff]
      %v4041 = vld [vmem:[%s3313 + $0x82] sm:$0xff]
      %v4042 = vld [vmem:[%s3313 + $0x92] sm:$0xff]
      %v4043 = vld [vmem:[%s3313 + $0x9a] sm:$0xff]
      %v4044 = vld [vmem:[%s3313 + $0xaa] sm:$0xff]
      %v4045 = vld [vmem:[%s3313 + $0xb2] sm:$0xff]
      %v4046 = vld [vmem:[%s3313 + $0xc2] sm:$0xff]
      %v4047 = vld [vmem:[%s3313 + $0xca] sm:$0xff]
      %v4048 = vld [vmem:[%s3313 + $0xda] sm:$0xff]
      %v4049 = vld [vmem:[%s3313 + $0xe2] sm:$0xff]
      %v4050 = vld [vmem:[%s3313 + $0xf2] sm:$0xff]
      %v4051 = vld [vmem:[%s3313 + $0xfa] sm:$0xff]
      %v4052 = vld [vmem:[%s3313 + $0x10a] sm:$0xff]
      %v4053 = vld [vmem:[%s3313 + $0x112] sm:$0xff]
      %v4054 = vld [vmem:[%s3313 + $0x122] sm:$0xff]
      %v4055 = vld [vmem:[%s3313 + $0x12a] sm:$0xff]
      %v4056 = vld [vmem:[%s3313 + $0x13a] sm:$0xff]
      %v4057 = vld [vmem:[%s3313 + $0x142] sm:$0xff]
      %v4058 = vld [vmem:[%s3313 + $0x152] sm:$0xff]
      %v4059 = vld [vmem:[%s3313 + $0x15a] sm:$0xff]
      %v4060 = vld [vmem:[%s3313 + $0x16a] sm:$0xff]
      %v4061 = vld [vmem:[%s3313 + $0x172] sm:$0xff]
      %v4062 = vpack.c.bf16 %v4031, %v4030
      %v4063 = vpack.c.bf16 %v4033, %v4032
      %v4064 = vpack.c.bf16 %v4035, %v4034
      %v4065 = vpack.c.bf16 %v4037, %v4036
      %v4066 = vpack.c.bf16 %v4039, %v4038
      %v4067 = vpack.c.bf16 %v4041, %v4040
      %v4068 = vpack.c.bf16 %v4043, %v4042
      %v4069 = vpack.c.bf16 %v4045, %v4044
      %v4070 = vpack.c.bf16 %v4047, %v4046
      %v4071 = vpack.c.bf16 %v4049, %v4048
      %v4072 = vpack.c.bf16 %v4051, %v4050
      %v4073 = vpack.c.bf16 %v4053, %v4052
      %v4074 = vpack.c.bf16 %v4055, %v4054
      %v4075 = vpack.c.bf16 %v4057, %v4056
      %v4076 = vpack.c.bf16 %v4059, %v4058
      %v4077 = vpack.c.bf16 %v4061, %v4060
      %s4078 = scalar_lea.vmem %s6, 32
      %v4079 = vld [vmem:[%s4078] sm:$0xf]
      %v4081 = vsel %vm556, %v4062, 0
      %v4084 = vsel %vm556, %v4063, 0
      %v4087 = vsel %vm556, %v4064, 0
      %v4090 = vsel %vm556, %v4065, 0
      %v4093 = vsel %vm556, %v4066, 0
      %v4096 = vsel %vm556, %v4067, 0
      %v4099 = vsel %vm556, %v4068, 0
      %v4102 = vsel %vm556, %v4069, 0
      %v4105 = vsel %vm556, %v4070, 0
      %v4108 = vsel %vm556, %v4071, 0
      %v4111 = vsel %vm556, %v4072, 0
      %v4114 = vsel %vm556, %v4073, 0
      %v4117 = vsel %vm556, %v4074, 0
      %v4120 = vsel %vm556, %v4075, 0
      %v4123 = vsel %vm556, %v4076, 0
      %v4126 = vsel %vm556, %v4077, 0
      %v4129 = vsel %vm1325, %v4079, 0
      %4131 = vmatprep.subr.bf16.mxu0 0
      %4132 = vmatpush1.bf16.msra.mxu0 %v4129
      %4133 = vmatprep.subr.bf16.mxu0 0
      %4134 = vmatpush1.bf16.msra.mxu0 0
      %4135 = vmatprep.subr.bf16.mxu0 0
      %4136 = vmatpush1.bf16.msra.mxu0 0
      %4137 = vmatprep.subr.bf16.mxu0 0
      %4138 = vmatpush1.bf16.msra.mxu0 0
      %4139 = vmatprep.subr.bf16.mxu0 0
      %4140 = vmatpush1.bf16.msra.mxu0 0
      %4141 = vmatprep.subr.bf16.mxu0 0
      %4142 = vmatpush1.bf16.msra.mxu0 0
      %4143 = vmatprep.subr.bf16.mxu0 0
      %4144 = vmatpush1.bf16.msra.mxu0 0
      %4145 = vmatprep.subr.bf16.mxu0 0
      %4146 = vmatpush1.bf16.msra.mxu0 0
      %4147 = vmatprep.subr.bf16.mxu0 0
      %4148 = vmatpush1.bf16.msra.mxu0 0
      %4149 = vmatprep.subr.bf16.mxu0 0
      %4150 = vmatpush1.bf16.msra.mxu0 0
      %4151 = vmatprep.subr.bf16.mxu0 0
      %4152 = vmatpush1.bf16.msra.mxu0 0
      %4153 = vmatprep.subr.bf16.mxu0 0
      %4154 = vmatpush1.bf16.msra.mxu0 0
      %4155 = vmatprep.subr.bf16.mxu0 0
      %4156 = vmatpush1.bf16.msra.mxu0 0
      %4157 = vmatprep.subr.bf16.mxu0 0
      %4158 = vmatpush1.bf16.msra.mxu0 0
      %4159 = vmatprep.subr.bf16.mxu0 0
      %4160 = vmatpush1.bf16.msra.mxu0 0
      %4161 = vmatprep.subr.bf16.mxu0 0
      %4162 = vmatpush1.bf16.msra.mxu0 0
      %4163 = vmatprep.mubr.bf16.mxu0 0
      %4164 = vmatmul.mubr.bf16.gmra.mrb[0].mxu0 %v4081
      %v4165 = vpop.f32.mrb[0].mxu0
      %v4166 = vadd.f32 0.0, %v4165
      %v4167 = vpop.f32.mrb[0].mxu0
      %v4168 = vpop.f32.mrb[0].mxu0
      %v4169 = vadd.f32 0.0, %v4168
      %v4170 = vpop.f32.mrb[0].mxu0
      %4171 = vmatprep.mubr.bf16.mxu0 0
      %4172 = vmatmul.mubr.bf16.gmra.mrb[0].mxu0 %v4084
      %v4173 = vpop.f32.mrb[0].mxu0
      %v4174 = vadd.f32 0.0, %v4173
      %v4175 = vpop.f32.mrb[0].mxu0
      %v4176 = vpop.f32.mrb[0].mxu0
      %v4177 = vadd.f32 0.0, %v4176
      %v4178 = vpop.f32.mrb[0].mxu0
      %4179 = vmatprep.mubr.bf16.mxu0 0
      %4180 = vmatmul.mubr.bf16.gmra.mrb[0].mxu0 %v4087
      %v4181 = vpop.f32.mrb[0].mxu0
      %v4182 = vadd.f32 0.0, %v4181
      %v4183 = vpop.f32.mrb[0].mxu0
      %v4184 = vpop.f32.mrb[0].mxu0
      %v4185 = vadd.f32 0.0, %v4184
      %v4186 = vpop.f32.mrb[0].mxu0
      %4187 = vmatprep.mubr.bf16.mxu0 0
      %4188 = vmatmul.mubr.bf16.gmra.mrb[0].mxu0 %v4090
      %v4189 = vpop.f32.mrb[0].mxu0
      %v4190 = vadd.f32 0.0, %v4189
      %v4191 = vpop.f32.mrb[0].mxu0
      %v4192 = vpop.f32.mrb[0].mxu0
      %v4193 = vadd.f32 0.0, %v4192
      %v4194 = vpop.f32.mrb[0].mxu0
      %4195 = vmatprep.mubr.bf16.mxu0 0
      %4196 = vmatmul.mubr.bf16.gmra.mrb[0].mxu0 %v4093
      %v4197 = vpop.f32.mrb[0].mxu0
      %v4198 = vadd.f32 0.0, %v4197
      %v4199 = vpop.f32.mrb[0].mxu0
      %v4200 = vpop.f32.mrb[0].mxu0
      %v4201 = vadd.f32 0.0, %v4200
      %v4202 = vpop.f32.mrb[0].mxu0
      %4203 = vmatprep.mubr.bf16.mxu0 0
      %4204 = vmatmul.mubr.bf16.gmra.mrb[0].mxu0 %v4096
      %v4205 = vpop.f32.mrb[0].mxu0
      %v4206 = vadd.f32 0.0, %v4205
      %v4207 = vpop.f32.mrb[0].mxu0
      %v4208 = vpop.f32.mrb[0].mxu0
      %v4209 = vadd.f32 0.0, %v4208
      %v4210 = vpop.f32.mrb[0].mxu0
      %4211 = vmatprep.mubr.bf16.mxu0 0
      %4212 = vmatmul.mubr.bf16.gmra.mrb[0].mxu0 %v4099
      %v4213 = vpop.f32.mrb[0].mxu0
      %v4214 = vadd.f32 0.0, %v4213
      %v4215 = vpop.f32.mrb[0].mxu0
      %v4216 = vpop.f32.mrb[0].mxu0
      %v4217 = vadd.f32 0.0, %v4216
      %v4218 = vpop.f32.mrb[0].mxu0
      %4219 = vmatprep.mubr.bf16.mxu0 0
      %4220 = vmatmul.mubr.bf16.gmra.mrb[0].mxu0 %v4102
      %v4221 = vpop.f32.mrb[0].mxu0
      %v4222 = vadd.f32 0.0, %v4221
      %v4223 = vpop.f32.mrb[0].mxu0
      %v4224 = vpop.f32.mrb[0].mxu0
      %v4225 = vadd.f32 0.0, %v4224
      %v4226 = vpop.f32.mrb[0].mxu0
      %4227 = vmatprep.mubr.bf16.mxu0 0
      %4228 = vmatmul.mubr.bf16.gmra.mrb[0].mxu0 %v4105
      %v4229 = vpop.f32.mrb[0].mxu0
      %v4230 = vadd.f32 0.0, %v4229
      %v4231 = vpop.f32.mrb[0].mxu0
      %v4232 = vpop.f32.mrb[0].mxu0
      %v4233 = vadd.f32 0.0, %v4232
      %v4234 = vpop.f32.mrb[0].mxu0
      %4235 = vmatprep.mubr.bf16.mxu0 0
      %4236 = vmatmul.mubr.bf16.gmra.mrb[0].mxu0 %v4108
      %v4237 = vpop.f32.mrb[0].mxu0
      %v4238 = vadd.f32 0.0, %v4237
      %v4239 = vpop.f32.mrb[0].mxu0
      %v4240 = vpop.f32.mrb[0].mxu0
      %v4241 = vadd.f32 0.0, %v4240
      %v4242 = vpop.f32.mrb[0].mxu0
      %4243 = vmatprep.mubr.bf16.mxu0 0
      %4244 = vmatmul.mubr.bf16.gmra.mrb[0].mxu0 %v4111
      %v4245 = vpop.f32.mrb[0].mxu0
      %v4246 = vadd.f32 0.0, %v4245
      %v4247 = vpop.f32.mrb[0].mxu0
      %v4248 = vpop.f32.mrb[0].mxu0
      %v4249 = vadd.f32 0.0, %v4248
      %v4250 = vpop.f32.mrb[0].mxu0
      %4251 = vmatprep.mubr.bf16.mxu0 0
      %4252 = vmatmul.mubr.bf16.gmra.mrb[0].mxu0 %v4114
      %v4253 = vpop.f32.mrb[0].mxu0
      %v4254 = vadd.f32 0.0, %v4253
      %v4255 = vpop.f32.mrb[0].mxu0
      %v4256 = vpop.f32.mrb[0].mxu0
      %v4257 = vadd.f32 0.0, %v4256
      %v4258 = vpop.f32.mrb[0].mxu0
      %4259 = vmatprep.mubr.bf16.mxu0 0
      %4260 = vmatmul.mubr.bf16.gmra.mrb[0].mxu0 %v4117
      %v4261 = vpop.f32.mrb[0].mxu0
      %v4262 = vadd.f32 0.0, %v4261
      %v4263 = vpop.f32.mrb[0].mxu0
      %v4264 = vpop.f32.mrb[0].mxu0
      %v4265 = vadd.f32 0.0, %v4264
      %v4266 = vpop.f32.mrb[0].mxu0
      %4267 = vmatprep.mubr.bf16.mxu0 0
      %4268 = vmatmul.mubr.bf16.gmra.mrb[0].mxu0 %v4120
      %v4269 = vpop.f32.mrb[0].mxu0
      %v4270 = vadd.f32 0.0, %v4269
      %v4271 = vpop.f32.mrb[0].mxu0
      %v4272 = vpop.f32.mrb[0].mxu0
      %v4273 = vadd.f32 0.0, %v4272
      %v4274 = vpop.f32.mrb[0].mxu0
      %4275 = vmatprep.mubr.bf16.mxu0 0
      %4276 = vmatmul.mubr.bf16.gmra.mrb[0].mxu0 %v4123
      %v4277 = vpop.f32.mrb[0].mxu0
      %v4278 = vadd.f32 0.0, %v4277
      %v4279 = vpop.f32.mrb[0].mxu0
      %v4280 = vpop.f32.mrb[0].mxu0
      %v4281 = vadd.f32 0.0, %v4280
      %v4282 = vpop.f32.mrb[0].mxu0
      %4283 = vmatprep.mubr.bf16.mxu0 0
      %4284 = vmatmul.mubr.bf16.gmra.mrb[0].mxu0 %v4126
      %v4285 = vpop.f32.mrb[0].mxu0
      %v4286 = vadd.f32 0.0, %v4285
      %v4287 = vpop.f32.mrb[0].mxu0
      %v4288 = vpop.f32.mrb[0].mxu0
      %v4289 = vadd.f32 0.0, %v4288
      %v4290 = vpop.f32.mrb[0].mxu0
      %4291 = vdwg.mxu0
      %v4292 = vld [vmem:[#allocation4] sm:$0xff]
      %v4293 = vld [vmem:[#allocation4 + $0x8] sm:$0xff]
      %v4294 = vld [vmem:[#allocation4 + $0x10] sm:$0xff]
      %v4295 = vld [vmem:[#allocation4 + $0x18] sm:$0xff]
      %v4296 = vld [vmem:[#allocation4 + $0x20] sm:$0xff]
      %v4297 = vld [vmem:[#allocation4 + $0x28] sm:$0xff]
      %v4298 = vld [vmem:[#allocation4 + $0x30] sm:$0xff]
      %v4299 = vld [vmem:[#allocation4 + $0x38] sm:$0xff]
      %v4300 = vld [vmem:[#allocation4 + $0x40] sm:$0xff]
      %v4301 = vld [vmem:[#allocation4 + $0x48] sm:$0xff]
      %v4302 = vld [vmem:[#allocation4 + $0x50] sm:$0xff]
      %v4303 = vld [vmem:[#allocation4 + $0x58] sm:$0xff]
      %v4304 = vld [vmem:[#allocation4 + $0x60] sm:$0xff]
      %v4305 = vld [vmem:[#allocation4 + $0x68] sm:$0xff]
      %v4306 = vld [vmem:[#allocation4 + $0x70] sm:$0xff]
      %v4307 = vld [vmem:[#allocation4 + $0x78] sm:$0xff]
      %v4308 = vld [vmem:[#allocation4 + $0x80] sm:$0xff]
      %v4309 = vld [vmem:[#allocation4 + $0x88] sm:$0xff]
      %v4310 = vld [vmem:[#allocation4 + $0x90] sm:$0xff]
      %v4311 = vld [vmem:[#allocation4 + $0x98] sm:$0xff]
      %v4312 = vld [vmem:[#allocation4 + $0xa0] sm:$0xff]
      %v4313 = vld [vmem:[#allocation4 + $0xa8] sm:$0xff]
      %v4314 = vld [vmem:[#allocation4 + $0xb0] sm:$0xff]
      %v4315 = vld [vmem:[#allocation4 + $0xb8] sm:$0xff]
      %v4316 = vld [vmem:[#allocation4 + $0xc0] sm:$0xff]
      %v4317 = vld [vmem:[#allocation4 + $0xc8] sm:$0xff]
      %v4318 = vld [vmem:[#allocation4 + $0xd0] sm:$0xff]
      %v4319 = vld [vmem:[#allocation4 + $0xd8] sm:$0xff]
      %v4320 = vld [vmem:[#allocation4 + $0xe0] sm:$0xff]
      %v4321 = vld [vmem:[#allocation4 + $0xe8] sm:$0xff]
      %v4322 = vld [vmem:[#allocation4 + $0xf0] sm:$0xff]
      %v4323 = vld [vmem:[#allocation4 + $0xf8] sm:$0xff]
      %v4324 = vadd.f32 %v4292, %v4166
      %v4325 = vadd.f32 %v4293, %v4169
      %v4326 = vadd.f32 %v4294, %v4174
      %v4327 = vadd.f32 %v4295, %v4177
      %v4328 = vadd.f32 %v4296, %v4182
      %v4329 = vadd.f32 %v4297, %v4185
      %v4330 = vadd.f32 %v4298, %v4190
      %v4331 = vadd.f32 %v4299, %v4193
      %v4332 = vadd.f32 %v4300, %v4198
      %v4333 = vadd.f32 %v4301, %v4201
      %v4334 = vadd.f32 %v4302, %v4206
      %v4335 = vadd.f32 %v4303, %v4209
      %v4336 = vadd.f32 %v4304, %v4214
      %v4337 = vadd.f32 %v4305, %v4217
      %v4338 = vadd.f32 %v4306, %v4222
      %v4339 = vadd.f32 %v4307, %v4225
      %v4340 = vadd.f32 %v4308, %v4230
      %v4341 = vadd.f32 %v4309, %v4233
      %v4342 = vadd.f32 %v4310, %v4238
      %v4343 = vadd.f32 %v4311, %v4241
      %v4344 = vadd.f32 %v4312, %v4246
      %v4345 = vadd.f32 %v4313, %v4249
      %v4346 = vadd.f32 %v4314, %v4254
      %v4347 = vadd.f32 %v4315, %v4257
      %v4348 = vadd.f32 %v4316, %v4262
      %v4349 = vadd.f32 %v4317, %v4265
      %v4350 = vadd.f32 %v4318, %v4270
      %v4351 = vadd.f32 %v4319, %v4273
      %v4352 = vadd.f32 %v4320, %v4278
      %v4353 = vadd.f32 %v4321, %v4281
      %v4354 = vadd.f32 %v4322, %v4286
      %v4355 = vadd.f32 %v4323, %v4289
      %4356 = vst.msk [vmem:[#allocation4] sm:$0xff] %vm1490, %v4324
      %4357 = vst.msk [vmem:[#allocation4 + $0x8] sm:$0xff] %vm1490, %v4325
      %4358 = vst.msk [vmem:[#allocation4 + $0x10] sm:$0xff] %vm1490, %v4326
      %4359 = vst.msk [vmem:[#allocation4 + $0x18] sm:$0xff] %vm1490, %v4327
      %4360 = vst.msk [vmem:[#allocation4 + $0x20] sm:$0xff] %vm1490, %v4328
      %4361 = vst.msk [vmem:[#allocation4 + $0x28] sm:$0xff] %vm1490, %v4329
      %4362 = vst.msk [vmem:[#allocation4 + $0x30] sm:$0xff] %vm1490, %v4330
      %4363 = vst.msk [vmem:[#allocation4 + $0x38] sm:$0xff] %vm1490, %v4331
      %4364 = vst.msk [vmem:[#allocation4 + $0x40] sm:$0xff] %vm1490, %v4332
      %4365 = vst.msk [vmem:[#allocation4 + $0x48] sm:$0xff] %vm1490, %v4333
      %4366 = vst.msk [vmem:[#allocation4 + $0x50] sm:$0xff] %vm1490, %v4334
      %4367 = vst.msk [vmem:[#allocation4 + $0x58] sm:$0xff] %vm1490, %v4335
      %4368 = vst.msk [vmem:[#allocation4 + $0x60] sm:$0xff] %vm1490, %v4336
      %4369 = vst.msk [vmem:[#allocation4 + $0x68] sm:$0xff] %vm1490, %v4337
      %4370 = vst.msk [vmem:[#allocation4 + $0x70] sm:$0xff] %vm1490, %v4338
      %4371 = vst.msk [vmem:[#allocation4 + $0x78] sm:$0xff] %vm1490, %v4339
      %4372 = vst.msk [vmem:[#allocation4 + $0x80] sm:$0xff] %vm1490, %v4340
      %4373 = vst.msk [vmem:[#allocation4 + $0x88] sm:$0xff] %vm1490, %v4341
      %4374 = vst.msk [vmem:[#allocation4 + $0x90] sm:$0xff] %vm1490, %v4342
      %4375 = vst.msk [vmem:[#allocation4 + $0x98] sm:$0xff] %vm1490, %v4343
      %4376 = vst.msk [vmem:[#allocation4 + $0xa0] sm:$0xff] %vm1490, %v4344
      %4377 = vst.msk [vmem:[#allocation4 + $0xa8] sm:$0xff] %vm1490, %v4345
      %4378 = vst.msk [vmem:[#allocation4 + $0xb0] sm:$0xff] %vm1490, %v4346
      %4379 = vst.msk [vmem:[#allocation4 + $0xb8] sm:$0xff] %vm1490, %v4347
      %4380 = vst.msk [vmem:[#allocation4 + $0xc0] sm:$0xff] %vm1490, %v4348
      %4381 = vst.msk [vmem:[#allocation4 + $0xc8] sm:$0xff] %vm1490, %v4349
      %4382 = vst.msk [vmem:[#allocation4 + $0xd0] sm:$0xff] %vm1490, %v4350
      %4383 = vst.msk [vmem:[#allocation4 + $0xd8] sm:$0xff] %vm1490, %v4351
      %4384 = vst.msk [vmem:[#allocation4 + $0xe0] sm:$0xff] %vm1490, %v4352
      %4385 = vst.msk [vmem:[#allocation4 + $0xe8] sm:$0xff] %vm1490, %v4353
      %4386 = vst.msk [vmem:[#allocation4 + $0xf0] sm:$0xff] %vm1490, %v4354
      %4387 = vst.msk [vmem:[#allocation4 + $0xf8] sm:$0xff] %vm1490, %v4355
      %v4388 = vld [vmem:[#allocation4] sm:$0xff]
      %v4389 = vld [vmem:[#allocation4 + $0x8] sm:$0xff]
      %v4390 = vld [vmem:[#allocation4 + $0x10] sm:$0xff]
      %v4391 = vld [vmem:[#allocation4 + $0x18] sm:$0xff]
      %v4392 = vld [vmem:[#allocation4 + $0x20] sm:$0xff]
      %v4393 = vld [vmem:[#allocation4 + $0x28] sm:$0xff]
      %v4394 = vld [vmem:[#allocation4 + $0x30] sm:$0xff]
      %v4395 = vld [vmem:[#allocation4 + $0x38] sm:$0xff]
      %v4396 = vld [vmem:[#allocation4 + $0x40] sm:$0xff]
      %v4397 = vld [vmem:[#allocation4 + $0x48] sm:$0xff]
      %v4398 = vld [vmem:[#allocation4 + $0x50] sm:$0xff]
      %v4399 = vld [vmem:[#allocation4 + $0x58] sm:$0xff]
      %v4400 = vld [vmem:[#allocation4 + $0x60] sm:$0xff]
      %v4401 = vld [vmem:[#allocation4 + $0x68] sm:$0xff]
      %v4402 = vld [vmem:[#allocation4 + $0x70] sm:$0xff]
      %v4403 = vld [vmem:[#allocation4 + $0x78] sm:$0xff]
      %v4404 = vld [vmem:[#allocation4 + $0x80] sm:$0xff]
      %v4405 = vld [vmem:[#allocation4 + $0x88] sm:$0xff]
      %v4406 = vld [vmem:[#allocation4 + $0x90] sm:$0xff]
      %v4407 = vld [vmem:[#allocation4 + $0x98] sm:$0xff]
      %v4408 = vld [vmem:[#allocation4 + $0xa0] sm:$0xff]
      %v4409 = vld [vmem:[#allocation4 + $0xa8] sm:$0xff]
      %v4410 = vld [vmem:[#allocation4 + $0xb0] sm:$0xff]
      %v4411 = vld [vmem:[#allocation4 + $0xb8] sm:$0xff]
      %v4412 = vld [vmem:[#allocation4 + $0xc0] sm:$0xff]
      %v4413 = vld [vmem:[#allocation4 + $0xc8] sm:$0xff]
      %v4414 = vld [vmem:[#allocation4 + $0xd0] sm:$0xff]
      %v4415 = vld [vmem:[#allocation4 + $0xd8] sm:$0xff]
      %v4416 = vld [vmem:[#allocation4 + $0xe0] sm:$0xff]
      %v4417 = vld [vmem:[#allocation4 + $0xe8] sm:$0xff]
      %v4418 = vld [vmem:[#allocation4 + $0xf0] sm:$0xff]
      %v4419 = vld [vmem:[#allocation4 + $0xf8] sm:$0xff]
      %v4420 = vld [vmem:[%s7] sm:$0x1]
      %v4422 = vlaneseq
      %v4423 = vshrl.u32 %v4422, 7
      %v4424 = vsub.s32 0, %v4423
      %v4425 = vrot.slane %v4420, %v4424
      %v4427 = vadd.f32 %v4388, %v4425
      %v4428 = vadd.f32 %v4389, %v4425
      %v4429 = vadd.f32 %v4390, %v4425
      %v4430 = vadd.f32 %v4391, %v4425
      %v4431 = vadd.f32 %v4392, %v4425
      %v4432 = vadd.f32 %v4393, %v4425
      %v4433 = vadd.f32 %v4394, %v4425
      %v4434 = vadd.f32 %v4395, %v4425
      %v4435 = vadd.f32 %v4396, %v4425
      %v4436 = vadd.f32 %v4397, %v4425
      %v4437 = vadd.f32 %v4398, %v4425
      %v4438 = vadd.f32 %v4399, %v4425
      %v4439 = vadd.f32 %v4400, %v4425
      %v4440 = vadd.f32 %v4401, %v4425
      %v4441 = vadd.f32 %v4402, %v4425
      %v4442 = vadd.f32 %v4403, %v4425
      %v4443 = vadd.f32 %v4404, %v4425
      %v4444 = vadd.f32 %v4405, %v4425
      %v4445 = vadd.f32 %v4406, %v4425
      %v4446 = vadd.f32 %v4407, %v4425
      %v4447 = vadd.f32 %v4408, %v4425
      %v4448 = vadd.f32 %v4409, %v4425
      %v4449 = vadd.f32 %v4410, %v4425
      %v4450 = vadd.f32 %v4411, %v4425
      %v4451 = vadd.f32 %v4412, %v4425
      %v4452 = vadd.f32 %v4413, %v4425
      %v4453 = vadd.f32 %v4414, %v4425
      %v4454 = vadd.f32 %v4415, %v4425
      %v4455 = vadd.f32 %v4416, %v4425
      %v4456 = vadd.f32 %v4417, %v4425
      %v4457 = vadd.f32 %v4418, %v4425
      %v4458 = vadd.f32 %v4419, %v4425
      %v4459 = vpack.c.bf16 %v525, %v524
      %v4460 = vpack.c.bf16 %v527, %v526
      %v4461 = vpack.c.bf16 %v529, %v528
      %v4462 = vpack.c.bf16 %v531, %v530
      %v4463 = vpack.c.bf16 %v533, %v532
      %v4464 = vpack.c.bf16 %v535, %v534
      %v4465 = vpack.c.bf16 %v537, %v536
      %v4466 = vpack.c.bf16 %v539, %v538
      %v4467 = vpack.c.bf16 %v541, %v540
      %v4468 = vpack.c.bf16 %v543, %v542
      %v4469 = vpack.c.bf16 %v545, %v544
      %v4470 = vpack.c.bf16 %v547, %v546
      %v4471 = vpack.c.bf16 %v549, %v548
      %v4472 = vpack.c.bf16 %v551, %v550
      %v4473 = vpack.c.bf16 %v553, %v552
      %v4474 = vpack.c.bf16 %v555, %v554
      %v4475 = vld [vmem:[%s13] sm:$0xf]
      %v4476 = vld [vmem:[%s14] sm:$0x1]
      %v4478 = vlaneseq
      %v4479 = vshrl.u32 %v4478, 7
      %v4480 = vsub.s32 0, %v4479
      %v4481 = vrot.slane %v4476, %v4480
      %v4484 = vsel %vm556, %v4459, 0
      %v4487 = vsel %vm556, %v4460, 0
      %v4490 = vsel %vm556, %v4461, 0
      %v4493 = vsel %vm556, %v4462, 0
      %v4496 = vsel %vm556, %v4463, 0
      %v4499 = vsel %vm556, %v4464, 0
      %v4502 = vsel %vm556, %v4465, 0
      %v4505 = vsel %vm556, %v4466, 0
      %v4508 = vsel %vm556, %v4467, 0
      %v4511 = vsel %vm556, %v4468, 0
      %v4514 = vsel %vm556, %v4469, 0
      %v4517 = vsel %vm556, %v4470, 0
      %v4520 = vsel %vm556, %v4471, 0
      %v4523 = vsel %vm556, %v4472, 0
      %v4526 = vsel %vm556, %v4473, 0
      %v4529 = vsel %vm556, %v4474, 0
      %v4532 = vsel %vm1325, %v4475, 0
      %4534 = vmatprep.subr.bf16.mxu0 0
      %4535 = vmatpush1.bf16.msra.mxu0 %v4532
      %4536 = vmatprep.subr.bf16.mxu0 0
      %4537 = vmatpush1.bf16.msra.mxu0 0
      %4538 = vmatprep.subr.bf16.mxu0 0
      %4539 = vmatpush1.bf16.msra.mxu0 0
      %4540 = vmatprep.subr.bf16.mxu0 0
      %4541 = vmatpush1.bf16.msra.mxu0 0
      %4542 = vmatprep.subr.bf16.mxu0 0
      %4543 = vmatpush1.bf16.msra.mxu0 0
      %4544 = vmatprep.subr.bf16.mxu0 0
      %4545 = vmatpush1.bf16.msra.mxu0 0
      %4546 = vmatprep.subr.bf16.mxu0 0
      %4547 = vmatpush1.bf16.msra.mxu0 0
      %4548 = vmatprep.subr.bf16.mxu0 0
      %4549 = vmatpush1.bf16.msra.mxu0 0
      %4550 = vmatprep.subr.bf16.mxu0 0
      %4551 = vmatpush1.bf16.msra.mxu0 0
      %4552 = vmatprep.subr.bf16.mxu0 0
      %4553 = vmatpush1.bf16.msra.mxu0 0
      %4554 = vmatprep.subr.bf16.mxu0 0
      %4555 = vmatpush1.bf16.msra.mxu0 0
      %4556 = vmatprep.subr.bf16.mxu0 0
      %4557 = vmatpush1.bf16.msra.mxu0 0
      %4558 = vmatprep.subr.bf16.mxu0 0
      %4559 = vmatpush1.bf16.msra.mxu0 0
      %4560 = vmatprep.subr.bf16.mxu0 0
      %4561 = vmatpush1.bf16.msra.mxu0 0
      %4562 = vmatprep.subr.bf16.mxu0 0
      %4563 = vmatpush1.bf16.msra.mxu0 0
      %4564 = vmatprep.subr.bf16.mxu0 0
      %4565 = vmatpush1.bf16.msra.mxu0 0
      %4566 = vmatprep.mubr.bf16.mxu0 0
      %4567 = vmatmul.mubr.bf16.gmra.mrb[0].mxu0 %v4484
      %v4568 = vpop.f32.mrb[0].mxu0
      %v4569 = vadd.f32 %v4481, %v4568
      %v4570 = vpop.f32.mrb[0].mxu0
      %v4571 = vpop.f32.mrb[0].mxu0
      %v4572 = vadd.f32 %v4481, %v4571
      %v4573 = vpop.f32.mrb[0].mxu0
      %4574 = vmatprep.mubr.bf16.mxu0 0
      %4575 = vmatmul.mubr.bf16.gmra.mrb[0].mxu0 %v4487
      %v4576 = vpop.f32.mrb[0].mxu0
      %v4577 = vadd.f32 %v4481, %v4576
      %v4578 = vpop.f32.mrb[0].mxu0
      %v4579 = vpop.f32.mrb[0].mxu0
      %v4580 = vadd.f32 %v4481, %v4579
      %v4581 = vpop.f32.mrb[0].mxu0
      %4582 = vmatprep.mubr.bf16.mxu0 0
      %4583 = vmatmul.mubr.bf16.gmra.mrb[0].mxu0 %v4490
      %v4584 = vpop.f32.mrb[0].mxu0
      %v4585 = vadd.f32 %v4481, %v4584
      %v4586 = vpop.f32.mrb[0].mxu0
      %v4587 = vpop.f32.mrb[0].mxu0
      %v4588 = vadd.f32 %v4481, %v4587
      %v4589 = vpop.f32.mrb[0].mxu0
      %4590 = vmatprep.mubr.bf16.mxu0 0
      %4591 = vmatmul.mubr.bf16.gmra.mrb[0].mxu0 %v4493
      %v4592 = vpop.f32.mrb[0].mxu0
      %v4593 = vadd.f32 %v4481, %v4592
      %v4594 = vpop.f32.mrb[0].mxu0
      %v4595 = vpop.f32.mrb[0].mxu0
      %v4596 = vadd.f32 %v4481, %v4595
      %v4597 = vpop.f32.mrb[0].mxu0
      %4598 = vmatprep.mubr.bf16.mxu0 0
      %4599 = vmatmul.mubr.bf16.gmra.mrb[0].mxu0 %v4496
      %v4600 = vpop.f32.mrb[0].mxu0
      %v4601 = vadd.f32 %v4481, %v4600
      %v4602 = vpop.f32.mrb[0].mxu0
      %v4603 = vpop.f32.mrb[0].mxu0
      %v4604 = vadd.f32 %v4481, %v4603
      %v4605 = vpop.f32.mrb[0].mxu0
      %4606 = vmatprep.mubr.bf16.mxu0 0
      %4607 = vmatmul.mubr.bf16.gmra.mrb[0].mxu0 %v4499
      %v4608 = vpop.f32.mrb[0].mxu0
      %v4609 = vadd.f32 %v4481, %v4608
      %v4610 = vpop.f32.mrb[0].mxu0
      %v4611 = vpop.f32.mrb[0].mxu0
      %v4612 = vadd.f32 %v4481, %v4611
      %v4613 = vpop.f32.mrb[0].mxu0
      %4614 = vmatprep.mubr.bf16.mxu0 0
      %4615 = vmatmul.mubr.bf16.gmra.mrb[0].mxu0 %v4502
      %v4616 = vpop.f32.mrb[0].mxu0
      %v4617 = vadd.f32 %v4481, %v4616
      %v4618 = vpop.f32.mrb[0].mxu0
      %v4619 = vpop.f32.mrb[0].mxu0
      %v4620 = vadd.f32 %v4481, %v4619
      %v4621 = vpop.f32.mrb[0].mxu0
      %4622 = vmatprep.mubr.bf16.mxu0 0
      %4623 = vmatmul.mubr.bf16.gmra.mrb[0].mxu0 %v4505
      %v4624 = vpop.f32.mrb[0].mxu0
      %v4625 = vadd.f32 %v4481, %v4624
      %v4626 = vpop.f32.mrb[0].mxu0
      %v4627 = vpop.f32.mrb[0].mxu0
      %v4628 = vadd.f32 %v4481, %v4627
      %v4629 = vpop.f32.mrb[0].mxu0
      %4630 = vmatprep.mubr.bf16.mxu0 0
      %4631 = vmatmul.mubr.bf16.gmra.mrb[0].mxu0 %v4508
      %v4632 = vpop.f32.mrb[0].mxu0
      %v4633 = vadd.f32 %v4481, %v4632
      %v4634 = vpop.f32.mrb[0].mxu0
      %v4635 = vpop.f32.mrb[0].mxu0
      %v4636 = vadd.f32 %v4481, %v4635
      %v4637 = vpop.f32.mrb[0].mxu0
      %4638 = vmatprep.mubr.bf16.mxu0 0
      %4639 = vmatmul.mubr.bf16.gmra.mrb[0].mxu0 %v4511
      %v4640 = vpop.f32.mrb[0].mxu0
      %v4641 = vadd.f32 %v4481, %v4640
      %v4642 = vpop.f32.mrb[0].mxu0
      %v4643 = vpop.f32.mrb[0].mxu0
      %v4644 = vadd.f32 %v4481, %v4643
      %v4645 = vpop.f32.mrb[0].mxu0
      %4646 = vmatprep.mubr.bf16.mxu0 0
      %4647 = vmatmul.mubr.bf16.gmra.mrb[0].mxu0 %v4514
      %v4648 = vpop.f32.mrb[0].mxu0
      %v4649 = vadd.f32 %v4481, %v4648
      %v4650 = vpop.f32.mrb[0].mxu0
      %v4651 = vpop.f32.mrb[0].mxu0
      %v4652 = vadd.f32 %v4481, %v4651
      %v4653 = vpop.f32.mrb[0].mxu0
      %4654 = vmatprep.mubr.bf16.mxu0 0
      %4655 = vmatmul.mubr.bf16.gmra.mrb[0].mxu0 %v4517
      %v4656 = vpop.f32.mrb[0].mxu0
      %v4657 = vadd.f32 %v4481, %v4656
      %v4658 = vpop.f32.mrb[0].mxu0
      %v4659 = vpop.f32.mrb[0].mxu0
      %v4660 = vadd.f32 %v4481, %v4659
      %v4661 = vpop.f32.mrb[0].mxu0
      %4662 = vmatprep.mubr.bf16.mxu0 0
      %4663 = vmatmul.mubr.bf16.gmra.mrb[0].mxu0 %v4520
      %v4664 = vpop.f32.mrb[0].mxu0
      %v4665 = vadd.f32 %v4481, %v4664
      %v4666 = vpop.f32.mrb[0].mxu0
      %v4667 = vpop.f32.mrb[0].mxu0
      %v4668 = vadd.f32 %v4481, %v4667
      %v4669 = vpop.f32.mrb[0].mxu0
      %4670 = vmatprep.mubr.bf16.mxu0 0
      %4671 = vmatmul.mubr.bf16.gmra.mrb[0].mxu0 %v4523
      %v4672 = vpop.f32.mrb[0].mxu0
      %v4673 = vadd.f32 %v4481, %v4672
      %v4674 = vpop.f32.mrb[0].mxu0
      %v4675 = vpop.f32.mrb[0].mxu0
      %v4676 = vadd.f32 %v4481, %v4675
      %v4677 = vpop.f32.mrb[0].mxu0
      %4678 = vmatprep.mubr.bf16.mxu0 0
      %4679 = vmatmul.mubr.bf16.gmra.mrb[0].mxu0 %v4526
      %v4680 = vpop.f32.mrb[0].mxu0
      %v4681 = vadd.f32 %v4481, %v4680
      %v4682 = vpop.f32.mrb[0].mxu0
      %v4683 = vpop.f32.mrb[0].mxu0
      %v4684 = vadd.f32 %v4481, %v4683
      %v4685 = vpop.f32.mrb[0].mxu0
      %4686 = vmatprep.mubr.bf16.mxu0 0
      %4687 = vmatmul.mubr.bf16.gmra.mrb[0].mxu0 %v4529
      %v4688 = vpop.f32.mrb[0].mxu0
      %v4689 = vadd.f32 %v4481, %v4688
      %v4690 = vpop.f32.mrb[0].mxu0
      %v4691 = vpop.f32.mrb[0].mxu0
      %v4692 = vadd.f32 %v4481, %v4691
      %v4693 = vpop.f32.mrb[0].mxu0
      %4694 = vdwg.mxu0
      %v4695 = vld [vmem:[%s514] sm:$0x1]
      %v4696 = vld [vmem:[%s517] sm:$0x1]
      %v4697 = vsel %vm1490, %v4427, 0.0
      %v4698 = vsel %vm1490, %v4428, 0.0
      %v4699 = vadd.f32 %v4697, %v4698
      %v4700 = vsel %vm1490, %v4429, 0.0
      %v4701 = vadd.f32 %v4699, %v4700
      %v4702 = vsel %vm1490, %v4430, 0.0
      %v4703 = vadd.f32 %v4701, %v4702
      %v4704 = vsel %vm1490, %v4431, 0.0
      %v4705 = vadd.f32 %v4703, %v4704
      %v4706 = vsel %vm1490, %v4432, 0.0
      %v4707 = vadd.f32 %v4705, %v4706
      %v4708 = vsel %vm1490, %v4433, 0.0
      %v4709 = vadd.f32 %v4707, %v4708
      %v4710 = vsel %vm1490, %v4434, 0.0
      %v4711 = vadd.f32 %v4709, %v4710
      %v4712 = vsel %vm1490, %v4435, 0.0
      %v4713 = vadd.f32 %v4711, %v4712
      %v4714 = vsel %vm1490, %v4436, 0.0
      %v4715 = vadd.f32 %v4713, %v4714
      %v4716 = vsel %vm1490, %v4437, 0.0
      %v4717 = vadd.f32 %v4715, %v4716
      %v4718 = vsel %vm1490, %v4438, 0.0
      %v4719 = vadd.f32 %v4717, %v4718
      %v4720 = vsel %vm1490, %v4439, 0.0
      %v4721 = vadd.f32 %v4719, %v4720
      %v4722 = vsel %vm1490, %v4440, 0.0
      %v4723 = vadd.f32 %v4721, %v4722
      %v4724 = vsel %vm1490, %v4441, 0.0
      %v4725 = vadd.f32 %v4723, %v4724
      %v4726 = vsel %vm1490, %v4442, 0.0
      %v4727 = vadd.f32 %v4725, %v4726
      %v4728 = vsel %vm1490, %v4443, 0.0
      %v4729 = vadd.f32 %v4727, %v4728
      %v4730 = vsel %vm1490, %v4444, 0.0
      %v4731 = vadd.f32 %v4729, %v4730
      %v4732 = vsel %vm1490, %v4445, 0.0
      %v4733 = vadd.f32 %v4731, %v4732
      %v4734 = vsel %vm1490, %v4446, 0.0
      %v4735 = vadd.f32 %v4733, %v4734
      %v4736 = vsel %vm1490, %v4447, 0.0
      %v4737 = vadd.f32 %v4735, %v4736
      %v4738 = vsel %vm1490, %v4448, 0.0
      %v4739 = vadd.f32 %v4737, %v4738
      %v4740 = vsel %vm1490, %v4449, 0.0
      %v4741 = vadd.f32 %v4739, %v4740
      %v4742 = vsel %vm1490, %v4450, 0.0
      %v4743 = vadd.f32 %v4741, %v4742
      %v4744 = vsel %vm1490, %v4451, 0.0
      %v4745 = vadd.f32 %v4743, %v4744
      %v4746 = vsel %vm1490, %v4452, 0.0
      %v4747 = vadd.f32 %v4745, %v4746
      %v4748 = vsel %vm1490, %v4453, 0.0
      %v4749 = vadd.f32 %v4747, %v4748
      %v4750 = vsel %vm1490, %v4454, 0.0
      %v4751 = vadd.f32 %v4749, %v4750
      %v4752 = vsel %vm1490, %v4455, 0.0
      %v4753 = vadd.f32 %v4751, %v4752
      %v4754 = vsel %vm1490, %v4456, 0.0
      %v4755 = vadd.f32 %v4753, %v4754
      %v4756 = vsel %vm1490, %v4457, 0.0
      %v4757 = vadd.f32 %v4755, %v4756
      %v4758 = vsel %vm1490, %v4458, 0.0
      %v4759 = vadd.f32 %v4757, %v4758
      %v4760 = vrot.slane %v4759, 4
      %v4761 = vadd.f32 %v4759, %v4760
      %v4762 = vrot.slane %v4761, 2
      %v4763 = vadd.f32 %v4761, %v4762
      %v4764 = vrot.slane %v4763, 1
      %v4765 = vadd.f32 %v4763, %v4764
      %v4766 = vmul.f32 %v4765, 0.00390625
      %v4767 = vmul.f32 %v4427, %v4427
      %v4768 = vmul.f32 %v4428, %v4428
      %v4769 = vmul.f32 %v4429, %v4429
      %v4770 = vmul.f32 %v4430, %v4430
      %v4771 = vmul.f32 %v4431, %v4431
      %v4772 = vmul.f32 %v4432, %v4432
      %v4773 = vmul.f32 %v4433, %v4433
      %v4774 = vmul.f32 %v4434, %v4434
      %v4775 = vmul.f32 %v4435, %v4435
      %v4776 = vmul.f32 %v4436, %v4436
      %v4777 = vmul.f32 %v4437, %v4437
      %v4778 = vmul.f32 %v4438, %v4438
      %v4779 = vmul.f32 %v4439, %v4439
      %v4780 = vmul.f32 %v4440, %v4440
      %v4781 = vmul.f32 %v4441, %v4441
      %v4782 = vmul.f32 %v4442, %v4442
      %v4783 = vmul.f32 %v4443, %v4443
      %v4784 = vmul.f32 %v4444, %v4444
      %v4785 = vmul.f32 %v4445, %v4445
      %v4786 = vmul.f32 %v4446, %v4446
      %v4787 = vmul.f32 %v4447, %v4447
      %v4788 = vmul.f32 %v4448, %v4448
      %v4789 = vmul.f32 %v4449, %v4449
      %v4790 = vmul.f32 %v4450, %v4450
      %v4791 = vmul.f32 %v4451, %v4451
      %v4792 = vmul.f32 %v4452, %v4452
      %v4793 = vmul.f32 %v4453, %v4453
      %v4794 = vmul.f32 %v4454, %v4454
      %v4795 = vmul.f32 %v4455, %v4455
      %v4796 = vmul.f32 %v4456, %v4456
      %v4797 = vmul.f32 %v4457, %v4457
      %v4798 = vmul.f32 %v4458, %v4458
      %v4799 = vsel %vm1490, %v4767, 0.0
      %v4800 = vsel %vm1490, %v4768, 0.0
      %v4801 = vadd.f32 %v4799, %v4800
      %v4802 = vsel %vm1490, %v4769, 0.0
      %v4803 = vadd.f32 %v4801, %v4802
      %v4804 = vsel %vm1490, %v4770, 0.0
      %v4805 = vadd.f32 %v4803, %v4804
      %v4806 = vsel %vm1490, %v4771, 0.0
      %v4807 = vadd.f32 %v4805, %v4806
      %v4808 = vsel %vm1490, %v4772, 0.0
      %v4809 = vadd.f32 %v4807, %v4808
      %v4810 = vsel %vm1490, %v4773, 0.0
      %v4811 = vadd.f32 %v4809, %v4810
      %v4812 = vsel %vm1490, %v4774, 0.0
      %v4813 = vadd.f32 %v4811, %v4812
      %v4814 = vsel %vm1490, %v4775, 0.0
      %v4815 = vadd.f32 %v4813, %v4814
      %v4816 = vsel %vm1490, %v4776, 0.0
      %v4817 = vadd.f32 %v4815, %v4816
      %v4818 = vsel %vm1490, %v4777, 0.0
      %v4819 = vadd.f32 %v4817, %v4818
      %v4820 = vsel %vm1490, %v4778, 0.0
      %v4821 = vadd.f32 %v4819, %v4820
      %v4822 = vsel %vm1490, %v4779, 0.0
      %v4823 = vadd.f32 %v4821, %v4822
      %v4824 = vsel %vm1490, %v4780, 0.0
      %v4825 = vadd.f32 %v4823, %v4824
      %v4826 = vsel %vm1490, %v4781, 0.0
      %v4827 = vadd.f32 %v4825, %v4826
      %v4828 = vsel %vm1490, %v4782, 0.0
      %v4829 = vadd.f32 %v4827, %v4828
      %v4830 = vsel %vm1490, %v4783, 0.0
      %v4831 = vadd.f32 %v4829, %v4830
      %v4832 = vsel %vm1490, %v4784, 0.0
      %v4833 = vadd.f32 %v4831, %v4832
      %v4834 = vsel %vm1490, %v4785, 0.0
      %v4835 = vadd.f32 %v4833, %v4834
      %v4836 = vsel %vm1490, %v4786, 0.0
      %v4837 = vadd.f32 %v4835, %v4836
      %v4838 = vsel %vm1490, %v4787, 0.0
      %v4839 = vadd.f32 %v4837, %v4838
      %v4840 = vsel %vm1490, %v4788, 0.0
      %v4841 = vadd.f32 %v4839, %v4840
      %v4842 = vsel %vm1490, %v4789, 0.0
      %v4843 = vadd.f32 %v4841, %v4842
      %v4844 = vsel %vm1490, %v4790, 0.0
      %v4845 = vadd.f32 %v4843, %v4844
      %v4846 = vsel %vm1490, %v4791, 0.0
      %v4847 = vadd.f32 %v4845, %v4846
      %v4848 = vsel %vm1490, %v4792, 0.0
      %v4849 = vadd.f32 %v4847, %v4848
      %v4850 = vsel %vm1490, %v4793, 0.0
      %v4851 = vadd.f32 %v4849, %v4850
      %v4852 = vsel %vm1490, %v4794, 0.0
      %v4853 = vadd.f32 %v4851, %v4852
      %v4854 = vsel %vm1490, %v4795, 0.0
      %v4855 = vadd.f32 %v4853, %v4854
      %v4856 = vsel %vm1490, %v4796, 0.0
      %v4857 = vadd.f32 %v4855, %v4856
      %v4858 = vsel %vm1490, %v4797, 0.0
      %v4859 = vadd.f32 %v4857, %v4858
      %v4860 = vsel %vm1490, %v4798, 0.0
      %v4861 = vadd.f32 %v4859, %v4860
      %v4862 = vrot.slane %v4861, 4
      %v4863 = vadd.f32 %v4861, %v4862
      %v4864 = vrot.slane %v4863, 2
      %v4865 = vadd.f32 %v4863, %v4864
      %v4866 = vrot.slane %v4865, 1
      %v4867 = vadd.f32 %v4865, %v4866
      %v4868 = vmul.f32 %v4867, 0.00390625
      %v4869 = vld [vmem:[%s10] sm:$0xff]
      %v4870 = vld [vmem:[%s10 + $0x8] sm:$0xff]
      %v4871 = vld [vmem:[%s10 + $0x10] sm:$0xff]
      %v4872 = vld [vmem:[%s10 + $0x18] sm:$0xff]
      %v4874 = vsel %vm1490, %v4766, 0
      %4876 = vmatprep.subr.mxu0 0.0
      %4877 = vmatpush1.msra.mxu0 %v4869
      %4878 = vmatprep.subr.mxu0 0.0
      %4879 = vmatpush1.msra.mxu0 %v4870
      %4880 = vmatprep.subr.mxu0 0.0
      %4881 = vmatpush1.msra.mxu0 %v4871
      %4882 = vmatprep.subr.mxu0 0.0
      %4883 = vmatpush1.msra.mxu0 %v4872
      %4884 = vmatprep.subr.mxu0 0.0
      %4885 = vmatpush1.msra.mxu0 0.0
      %4886 = vmatprep.subr.mxu0 0.0
      %4887 = vmatpush1.msra.mxu0 0.0
      %4888 = vmatprep.subr.mxu0 0.0
      %4889 = vmatpush1.msra.mxu0 0.0
      %4890 = vmatprep.subr.mxu0 0.0
      %4891 = vmatpush1.msra.mxu0 0.0
      %4892 = vmatprep.subr.mxu0 0.0
      %4893 = vmatpush1.msra.mxu0 0.0
      %4894 = vmatprep.subr.mxu0 0.0
      %4895 = vmatpush1.msra.mxu0 0.0
      %4896 = vmatprep.subr.mxu0 0.0
      %4897 = vmatpush1.msra.mxu0 0.0
      %4898 = vmatprep.subr.mxu0 0.0
      %4899 = vmatpush1.msra.mxu0 0.0
      %4900 = vmatprep.subr.mxu0 0.0
      %4901 = vmatpush1.msra.mxu0 0.0
      %4902 = vmatprep.subr.mxu0 0.0
      %4903 = vmatpush1.msra.mxu0 0.0
      %4904 = vmatprep.subr.mxu0 0.0
      %4905 = vmatpush1.msra.mxu0 0.0
      %4906 = vmatprep.subr.mxu0 0.0
      %4907 = vmatpush1.msra.mxu0 0.0
      %4908 = vmatprep.subr.mxu0 0.0
      %4909 = vmatpush1.msra.mxu0 0.0
      %4910 = vmatprep.subr.mxu0 0.0
      %4911 = vmatpush1.msra.mxu0 0.0
      %4912 = vmatprep.subr.mxu0 0.0
      %4913 = vmatpush1.msra.mxu0 0.0
      %4914 = vmatprep.subr.mxu0 0.0
      %4915 = vmatpush1.msra.mxu0 0.0
      %4916 = vmatprep.subr.mxu0 0.0
      %4917 = vmatpush1.msra.mxu0 0.0
      %4918 = vmatprep.subr.mxu0 0.0
      %4919 = vmatpush1.msra.mxu0 0.0
      %4920 = vmatprep.subr.mxu0 0.0
      %4921 = vmatpush1.msra.mxu0 0.0
      %4922 = vmatprep.subr.mxu0 0.0
      %4923 = vmatpush1.msra.mxu0 0.0
      %4924 = vmatprep.subr.mxu0 0.0
      %4925 = vmatpush1.msra.mxu0 0.0
      %4926 = vmatprep.subr.mxu0 0.0
      %4927 = vmatpush1.msra.mxu0 0.0
      %4928 = vmatprep.subr.mxu0 0.0
      %4929 = vmatpush1.msra.mxu0 0.0
      %4930 = vmatprep.subr.mxu0 0.0
      %4931 = vmatpush1.msra.mxu0 0.0
      %4932 = vmatprep.subr.mxu0 0.0
      %4933 = vmatpush1.msra.mxu0 0.0
      %4934 = vmatprep.subr.mxu0 0.0
      %4935 = vmatpush1.msra.mxu0 0.0
      %4936 = vmatprep.subr.mxu0 0.0
      %4937 = vmatpush1.msra.mxu0 0.0
      %4938 = vmatprep.subr.mxu0 0.0
      %4939 = vmatpush1.msra.mxu0 0.0
      %4940 = vmatprep.mubr.f32.mxu0 0.0
      %4941 = vmatmul.mubr.f32.gmra.mrb[0].mxu0 %v4874
      %v4942 = vpop.f32.mrb[0].mxu0
      %v4943 = vadd.f32 0.0, %v4942
      %v4944 = vpop.f32.mrb[0].mxu0
      %4945 = vdwg.mxu0
      %v4947 = vsel %vm1490, %v4868, 0
      %4949 = vmatprep.subr.mxu0 0.0
      %4950 = vmatpush1.msra.mxu0 %v4869
      %4951 = vmatprep.subr.mxu0 0.0
      %4952 = vmatpush1.msra.mxu0 %v4870
      %4953 = vmatprep.subr.mxu0 0.0
      %4954 = vmatpush1.msra.mxu0 %v4871
      %4955 = vmatprep.subr.mxu0 0.0
      %4956 = vmatpush1.msra.mxu0 %v4872
      %4957 = vmatprep.subr.mxu0 0.0
      %4958 = vmatpush1.msra.mxu0 0.0
      %4959 = vmatprep.subr.mxu0 0.0
      %4960 = vmatpush1.msra.mxu0 0.0
      %4961 = vmatprep.subr.mxu0 0.0
      %4962 = vmatpush1.msra.mxu0 0.0
      %4963 = vmatprep.subr.mxu0 0.0
      %4964 = vmatpush1.msra.mxu0 0.0
      %4965 = vmatprep.subr.mxu0 0.0
      %4966 = vmatpush1.msra.mxu0 0.0
      %4967 = vmatprep.subr.mxu0 0.0
      %4968 = vmatpush1.msra.mxu0 0.0
      %4969 = vmatprep.subr.mxu0 0.0
      %4970 = vmatpush1.msra.mxu0 0.0
      %4971 = vmatprep.subr.mxu0 0.0
      %4972 = vmatpush1.msra.mxu0 0.0
      %4973 = vmatprep.subr.mxu0 0.0
      %4974 = vmatpush1.msra.mxu0 0.0
      %4975 = vmatprep.subr.mxu0 0.0
      %4976 = vmatpush1.msra.mxu0 0.0
      %4977 = vmatprep.subr.mxu0 0.0
      %4978 = vmatpush1.msra.mxu0 0.0
      %4979 = vmatprep.subr.mxu0 0.0
      %4980 = vmatpush1.msra.mxu0 0.0
      %4981 = vmatprep.subr.mxu0 0.0
      %4982 = vmatpush1.msra.mxu0 0.0
      %4983 = vmatprep.subr.mxu0 0.0
      %4984 = vmatpush1.msra.mxu0 0.0
      %4985 = vmatprep.subr.mxu0 0.0
      %4986 = vmatpush1.msra.mxu0 0.0
      %4987 = vmatprep.subr.mxu0 0.0
      %4988 = vmatpush1.msra.mxu0 0.0
      %4989 = vmatprep.subr.mxu0 0.0
      %4990 = vmatpush1.msra.mxu0 0.0
      %4991 = vmatprep.subr.mxu0 0.0
      %4992 = vmatpush1.msra.mxu0 0.0
      %4993 = vmatprep.subr.mxu0 0.0
      %4994 = vmatpush1.msra.mxu0 0.0
      %4995 = vmatprep.subr.mxu0 0.0
      %4996 = vmatpush1.msra.mxu0 0.0
      %4997 = vmatprep.subr.mxu0 0.0
      %4998 = vmatpush1.msra.mxu0 0.0
      %4999 = vmatprep.subr.mxu0 0.0
      %5000 = vmatpush1.msra.mxu0 0.0
      %5001 = vmatprep.subr.mxu0 0.0
      %5002 = vmatpush1.msra.mxu0 0.0
      %5003 = vmatprep.subr.mxu0 0.0
      %5004 = vmatpush1.msra.mxu0 0.0
      %5005 = vmatprep.subr.mxu0 0.0
      %5006 = vmatpush1.msra.mxu0 0.0
      %5007 = vmatprep.subr.mxu0 0.0
      %5008 = vmatpush1.msra.mxu0 0.0
      %5009 = vmatprep.subr.mxu0 0.0
      %5010 = vmatpush1.msra.mxu0 0.0
      %5011 = vmatprep.subr.mxu0 0.0
      %5012 = vmatpush1.msra.mxu0 0.0
      %5013 = vmatprep.mubr.f32.mxu0 0.0
      %5014 = vmatmul.mubr.f32.gmra.mrb[0].mxu0 %v4947
      %v5015 = vpop.f32.mrb[0].mxu0
      %v5016 = vadd.f32 0.0, %v5015
      %v5017 = vpop.f32.mrb[0].mxu0
      %5018 = vdwg.mxu0
      %v5019 = vmul.f32 %v4943, %v4943
      %v5020 = vsub.f32 %v5016, %v5019
      %v5021 = vadd.f32 %v5020, 1e-05
      %v5022 = vrsqrt.pop %v5021
      %v5023 = vld [vmem:[%s8] sm:$0x1]
      %v5024 = vmul.f32 %v5022, %v5023
      %v5025 = vld [vmem:[%s9] sm:$0x1]
      %v5026 = vmul.f32 %v4943, %v5024
      %v5027 = vsub.f32 %v5025, %v5026
      %v5028 = vmul.f32 %v5024, %v4695
      %v5029 = vmul.f32 %v5027, %v4695
      %v5030 = vadd.f32 %v5029, %v4696
      %v5031 = vlaneseq
      %v5032 = vshrl.u32 %v5031, 7
      %v5033 = vsub.s32 0, %v5032
      %v5034 = vrot.slane %v5028, %v5033
      %v5035 = vmul.f32 %v4427, %v5034
      %v5036 = vmul.f32 %v4428, %v5034
      %v5037 = vmul.f32 %v4429, %v5034
      %v5038 = vmul.f32 %v4430, %v5034
      %v5039 = vmul.f32 %v4431, %v5034
      %v5040 = vmul.f32 %v4432, %v5034
      %v5041 = vmul.f32 %v4433, %v5034
      %v5042 = vmul.f32 %v4434, %v5034
      %v5043 = vmul.f32 %v4435, %v5034
      %v5044 = vmul.f32 %v4436, %v5034
      %v5045 = vmul.f32 %v4437, %v5034
      %v5046 = vmul.f32 %v4438, %v5034
      %v5047 = vmul.f32 %v4439, %v5034
      %v5048 = vmul.f32 %v4440, %v5034
      %v5049 = vmul.f32 %v4441, %v5034
      %v5050 = vmul.f32 %v4442, %v5034
      %v5051 = vmul.f32 %v4443, %v5034
      %v5052 = vmul.f32 %v4444, %v5034
      %v5053 = vmul.f32 %v4445, %v5034
      %v5054 = vmul.f32 %v4446, %v5034
      %v5055 = vmul.f32 %v4447, %v5034
      %v5056 = vmul.f32 %v4448, %v5034
      %v5057 = vmul.f32 %v4449, %v5034
      %v5058 = vmul.f32 %v4450, %v5034
      %v5059 = vmul.f32 %v4451, %v5034
      %v5060 = vmul.f32 %v4452, %v5034
      %v5061 = vmul.f32 %v4453, %v5034
      %v5062 = vmul.f32 %v4454, %v5034
      %v5063 = vmul.f32 %v4455, %v5034
      %v5064 = vmul.f32 %v4456, %v5034
      %v5065 = vmul.f32 %v4457, %v5034
      %v5066 = vmul.f32 %v4458, %v5034
      %v5068 = vlaneseq
      %v5069 = vshrl.u32 %v5068, 7
      %v5070 = vsub.s32 0, %v5069
      %v5071 = vrot.slane %v5030, %v5070
      %v5073 = vadd.f32 %v5035, %v5071
      %v5074 = vadd.f32 %v5036, %v5071
      %v5075 = vadd.f32 %v5037, %v5071
      %v5076 = vadd.f32 %v5038, %v5071
      %v5077 = vadd.f32 %v5039, %v5071
      %v5078 = vadd.f32 %v5040, %v5071
      %v5079 = vadd.f32 %v5041, %v5071
      %v5080 = vadd.f32 %v5042, %v5071
      %v5081 = vadd.f32 %v5043, %v5071
      %v5082 = vadd.f32 %v5044, %v5071
      %v5083 = vadd.f32 %v5045, %v5071
      %v5084 = vadd.f32 %v5046, %v5071
      %v5085 = vadd.f32 %v5047, %v5071
      %v5086 = vadd.f32 %v5048, %v5071
      %v5087 = vadd.f32 %v5049, %v5071
      %v5088 = vadd.f32 %v5050, %v5071
      %v5089 = vadd.f32 %v5051, %v5071
      %v5090 = vadd.f32 %v5052, %v5071
      %v5091 = vadd.f32 %v5053, %v5071
      %v5092 = vadd.f32 %v5054, %v5071
      %v5093 = vadd.f32 %v5055, %v5071
      %v5094 = vadd.f32 %v5056, %v5071
      %v5095 = vadd.f32 %v5057, %v5071
      %v5096 = vadd.f32 %v5058, %v5071
      %v5097 = vadd.f32 %v5059, %v5071
      %v5098 = vadd.f32 %v5060, %v5071
      %v5099 = vadd.f32 %v5061, %v5071
      %v5100 = vadd.f32 %v5062, %v5071
      %v5101 = vadd.f32 %v5063, %v5071
      %v5102 = vadd.f32 %v5064, %v5071
      %v5103 = vadd.f32 %v5065, %v5071
      %v5104 = vadd.f32 %v5066, %v5071
      %v5105 = vsub.f32 0.0, %v5073
      %v5106 = vsub.f32 0.0, %v5074
      %v5107 = vsub.f32 0.0, %v5075
      %v5108 = vsub.f32 0.0, %v5076
      %v5109 = vsub.f32 0.0, %v5077
      %v5110 = vsub.f32 0.0, %v5078
      %v5111 = vsub.f32 0.0, %v5079
      %v5112 = vsub.f32 0.0, %v5080
      %v5113 = vsub.f32 0.0, %v5081
      %v5114 = vsub.f32 0.0, %v5082
      %v5115 = vsub.f32 0.0, %v5083
      %v5116 = vsub.f32 0.0, %v5084
      %v5117 = vsub.f32 0.0, %v5085
      %v5118 = vsub.f32 0.0, %v5086
      %v5119 = vsub.f32 0.0, %v5087
      %v5120 = vsub.f32 0.0, %v5088
      %v5121 = vsub.f32 0.0, %v5089
      %v5122 = vsub.f32 0.0, %v5090
      %v5123 = vsub.f32 0.0, %v5091
      %v5124 = vsub.f32 0.0, %v5092
      %v5125 = vsub.f32 0.0, %v5093
      %v5126 = vsub.f32 0.0, %v5094
      %v5127 = vsub.f32 0.0, %v5095
      %v5128 = vsub.f32 0.0, %v5096
      %v5129 = vsub.f32 0.0, %v5097
      %v5130 = vsub.f32 0.0, %v5098
      %v5131 = vsub.f32 0.0, %v5099
      %v5132 = vsub.f32 0.0, %v5100
      %v5133 = vsub.f32 0.0, %v5101
      %v5134 = vsub.f32 0.0, %v5102
      %v5135 = vsub.f32 0.0, %v5103
      %v5136 = vsub.f32 0.0, %v5104
      %v5137 = vmul.f32 %v5105, 1.442695
      %v5138 = vpow.pop %v5137
      %v5139 = vmul.f32 %v5106, 1.442695
      %v5140 = vpow.pop %v5139
      %v5141 = vmul.f32 %v5107, 1.442695
      %v5142 = vpow.pop %v5141
      %v5143 = vmul.f32 %v5108, 1.442695
      %v5144 = vpow.pop %v5143
      %v5145 = vmul.f32 %v5109, 1.442695
      %v5146 = vpow.pop %v5145
      %v5147 = vmul.f32 %v5110, 1.442695
      %v5148 = vpow.pop %v5147
      %v5149 = vmul.f32 %v5111, 1.442695
      %v5150 = vpow.pop %v5149
      %v5151 = vmul.f32 %v5112, 1.442695
      %v5152 = vpow.pop %v5151
      %v5153 = vmul.f32 %v5113, 1.442695
      %v5154 = vpow.pop %v5153
      %v5155 = vmul.f32 %v5114, 1.442695
      %v5156 = vpow.pop %v5155
      %v5157 = vmul.f32 %v5115, 1.442695
      %v5158 = vpow.pop %v5157
      %v5159 = vmul.f32 %v5116, 1.442695
      %v5160 = vpow.pop %v5159
      %v5161 = vmul.f32 %v5117, 1.442695
      %v5162 = vpow.pop %v5161
      %v5163 = vmul.f32 %v5118, 1.442695
      %v5164 = vpow.pop %v5163
      %v5165 = vmul.f32 %v5119, 1.442695
      %v5166 = vpow.pop %v5165
      %v5167 = vmul.f32 %v5120, 1.442695
      %v5168 = vpow.pop %v5167
      %v5169 = vmul.f32 %v5121, 1.442695
      %v5170 = vpow.pop %v5169
      %v5171 = vmul.f32 %v5122, 1.442695
      %v5172 = vpow.pop %v5171
      %v5173 = vmul.f32 %v5123, 1.442695
      %v5174 = vpow.pop %v5173
      %v5175 = vmul.f32 %v5124, 1.442695
      %v5176 = vpow.pop %v5175
      %v5177 = vmul.f32 %v5125, 1.442695
      %v5178 = vpow.pop %v5177
      %v5179 = vmul.f32 %v5126, 1.442695
      %v5180 = vpow.pop %v5179
      %v5181 = vmul.f32 %v5127, 1.442695
      %v5182 = vpow.pop %v5181
      %v5183 = vmul.f32 %v5128, 1.442695
      %v5184 = vpow.pop %v5183
      %v5185 = vmul.f32 %v5129, 1.442695
      %v5186 = vpow.pop %v5185
      %v5187 = vmul.f32 %v5130, 1.442695
      %v5188 = vpow.pop %v5187
      %v5189 = vmul.f32 %v5131, 1.442695
      %v5190 = vpow.pop %v5189
      %v5191 = vmul.f32 %v5132, 1.442695
      %v5192 = vpow.pop %v5191
      %v5193 = vmul.f32 %v5133, 1.442695
      %v5194 = vpow.pop %v5193
      %v5195 = vmul.f32 %v5134, 1.442695
      %v5196 = vpow.pop %v5195
      %v5197 = vmul.f32 %v5135, 1.442695
      %v5198 = vpow.pop %v5197
      %v5199 = vmul.f32 %v5136, 1.442695
      %v5200 = vpow.pop %v5199
      %v5201 = vadd.f32 %v5138, 1.0
      %v5202 = vadd.f32 %v5140, 1.0
      %v5203 = vadd.f32 %v5142, 1.0
      %v5204 = vadd.f32 %v5144, 1.0
      %v5205 = vadd.f32 %v5146, 1.0
      %v5206 = vadd.f32 %v5148, 1.0
      %v5207 = vadd.f32 %v5150, 1.0
      %v5208 = vadd.f32 %v5152, 1.0
      %v5209 = vadd.f32 %v5154, 1.0
      %v5210 = vadd.f32 %v5156, 1.0
      %v5211 = vadd.f32 %v5158, 1.0
      %v5212 = vadd.f32 %v5160, 1.0
      %v5213 = vadd.f32 %v5162, 1.0
      %v5214 = vadd.f32 %v5164, 1.0
      %v5215 = vadd.f32 %v5166, 1.0
      %v5216 = vadd.f32 %v5168, 1.0
      %v5217 = vadd.f32 %v5170, 1.0
      %v5218 = vadd.f32 %v5172, 1.0
      %v5219 = vadd.f32 %v5174, 1.0
      %v5220 = vadd.f32 %v5176, 1.0
      %v5221 = vadd.f32 %v5178, 1.0
      %v5222 = vadd.f32 %v5180, 1.0
      %v5223 = vadd.f32 %v5182, 1.0
      %v5224 = vadd.f32 %v5184, 1.0
      %v5225 = vadd.f32 %v5186, 1.0
      %v5226 = vadd.f32 %v5188, 1.0
      %v5227 = vadd.f32 %v5190, 1.0
      %v5228 = vadd.f32 %v5192, 1.0
      %v5229 = vadd.f32 %v5194, 1.0
      %v5230 = vadd.f32 %v5196, 1.0
      %v5231 = vadd.f32 %v5198, 1.0
      %v5232 = vadd.f32 %v5200, 1.0
      %v5233 = vrcp.pop %v5201
      %v5234 = vrcp.pop %v5202
      %v5235 = vrcp.pop %v5203
      %v5236 = vrcp.pop %v5204
      %v5237 = vrcp.pop %v5205
      %v5238 = vrcp.pop %v5206
      %v5239 = vrcp.pop %v5207
      %v5240 = vrcp.pop %v5208
      %v5241 = vrcp.pop %v5209
      %v5242 = vrcp.pop %v5210
      %v5243 = vrcp.pop %v5211
      %v5244 = vrcp.pop %v5212
      %v5245 = vrcp.pop %v5213
      %v5246 = vrcp.pop %v5214
      %v5247 = vrcp.pop %v5215
      %v5248 = vrcp.pop %v5216
      %v5249 = vrcp.pop %v5217
      %v5250 = vrcp.pop %v5218
      %v5251 = vrcp.pop %v5219
      %v5252 = vrcp.pop %v5220
      %v5253 = vrcp.pop %v5221
      %v5254 = vrcp.pop %v5222
      %v5255 = vrcp.pop %v5223
      %v5256 = vrcp.pop %v5224
      %v5257 = vrcp.pop %v5225
      %v5258 = vrcp.pop %v5226
      %v5259 = vrcp.pop %v5227
      %v5260 = vrcp.pop %v5228
      %v5261 = vrcp.pop %v5229
      %v5262 = vrcp.pop %v5230
      %v5263 = vrcp.pop %v5231
      %v5264 = vrcp.pop %v5232
      %v5265 = vmul.f32 %v5073, %v5233
      %v5266 = vmul.f32 %v5074, %v5234
      %v5267 = vmul.f32 %v5075, %v5235
      %v5268 = vmul.f32 %v5076, %v5236
      %v5269 = vmul.f32 %v5077, %v5237
      %v5270 = vmul.f32 %v5078, %v5238
      %v5271 = vmul.f32 %v5079, %v5239
      %v5272 = vmul.f32 %v5080, %v5240
      %v5273 = vmul.f32 %v5081, %v5241
      %v5274 = vmul.f32 %v5082, %v5242
      %v5275 = vmul.f32 %v5083, %v5243
      %v5276 = vmul.f32 %v5084, %v5244
      %v5277 = vmul.f32 %v5085, %v5245
      %v5278 = vmul.f32 %v5086, %v5246
      %v5279 = vmul.f32 %v5087, %v5247
      %v5280 = vmul.f32 %v5088, %v5248
      %v5281 = vmul.f32 %v5089, %v5249
      %v5282 = vmul.f32 %v5090, %v5250
      %v5283 = vmul.f32 %v5091, %v5251
      %v5284 = vmul.f32 %v5092, %v5252
      %v5285 = vmul.f32 %v5093, %v5253
      %v5286 = vmul.f32 %v5094, %v5254
      %v5287 = vmul.f32 %v5095, %v5255
      %v5288 = vmul.f32 %v5096, %v5256
      %v5289 = vmul.f32 %v5097, %v5257
      %v5290 = vmul.f32 %v5098, %v5258
      %v5291 = vmul.f32 %v5099, %v5259
      %v5292 = vmul.f32 %v5100, %v5260
      %v5293 = vmul.f32 %v5101, %v5261
      %v5294 = vmul.f32 %v5102, %v5262
      %v5295 = vmul.f32 %v5103, %v5263
      %v5296 = vmul.f32 %v5104, %v5264
      %v5297 = vld [vmem:[%s12] sm:$0x1]
      %v5299 = vlaneseq
      %v5300 = vshrl.u32 %v5299, 7
      %v5301 = vsub.s32 0, %v5300
      %v5302 = vrot.slane %v5297, %v5301
      %v5304 = vadd.f32 %v4569, %v5302
      %v5305 = vadd.f32 %v4572, %v5302
      %v5306 = vadd.f32 %v4577, %v5302
      %v5307 = vadd.f32 %v4580, %v5302
      %v5308 = vadd.f32 %v4585, %v5302
      %v5309 = vadd.f32 %v4588, %v5302
      %v5310 = vadd.f32 %v4593, %v5302
      %v5311 = vadd.f32 %v4596, %v5302
      %v5312 = vadd.f32 %v4601, %v5302
      %v5313 = vadd.f32 %v4604, %v5302
      %v5314 = vadd.f32 %v4609, %v5302
      %v5315 = vadd.f32 %v4612, %v5302
      %v5316 = vadd.f32 %v4617, %v5302
      %v5317 = vadd.f32 %v4620, %v5302
      %v5318 = vadd.f32 %v4625, %v5302
      %v5319 = vadd.f32 %v4628, %v5302
      %v5320 = vadd.f32 %v4633, %v5302
      %v5321 = vadd.f32 %v4636, %v5302
      %v5322 = vadd.f32 %v4641, %v5302
      %v5323 = vadd.f32 %v4644, %v5302
      %v5324 = vadd.f32 %v4649, %v5302
      %v5325 = vadd.f32 %v4652, %v5302
      %v5326 = vadd.f32 %v4657, %v5302
      %v5327 = vadd.f32 %v4660, %v5302
      %v5328 = vadd.f32 %v4665, %v5302
      %v5329 = vadd.f32 %v4668, %v5302
      %v5330 = vadd.f32 %v4673, %v5302
      %v5331 = vadd.f32 %v4676, %v5302
      %v5332 = vadd.f32 %v4681, %v5302
      %v5333 = vadd.f32 %v4684, %v5302
      %v5334 = vadd.f32 %v4689, %v5302
      %v5335 = vadd.f32 %v4692, %v5302
      %5336 = vst.msk [vmem:[#allocation3] sm:$0xff] %vm1490, 0.0
      %5337 = vst.msk [vmem:[#allocation3 + $0x8] sm:$0xff] %vm1490, 0.0
      %5338 = vst.msk [vmem:[#allocation3 + $0x10] sm:$0xff] %vm1490, 0.0
      %s5339 = scalar_lea.vmem [#allocation3], 408
      %5340 = vst.msk [vmem:[%s5339] sm:$0xff] %vm1490, 0.0
      %5341 = vst.msk [vmem:[%s5339 + $0x8] sm:$0xff] %vm1490, 0.0
      %5342 = vst.msk [vmem:[%s5339 + $0x10] sm:$0xff] %vm1490, 0.0
      %vm5343 = vcmask 253952
      %5344 = vst.msk [vmem:[#allocation3] sm:$0x1] %vm5343, 0.0
      %5345 = vst.msk [vmem:[#allocation3 + $0x18] sm:$0x1] %vm5343, 0.0
      %5346 = vst.msk [vmem:[#allocation3 + $0x30] sm:$0x1] %vm5343, 0.0
      %5347 = vst.msk [vmem:[#allocation3 + $0x48] sm:$0x1] %vm5343, 0.0
      %5348 = vst.msk [vmem:[#allocation3 + $0x60] sm:$0x1] %vm5343, 0.0
      %5349 = vst.msk [vmem:[#allocation3 + $0x78] sm:$0x1] %vm5343, 0.0
      %5350 = vst.msk [vmem:[#allocation3 + $0x90] sm:$0x1] %vm5343, 0.0
      %5351 = vst.msk [vmem:[#allocation3 + $0xa8] sm:$0x1] %vm5343, 0.0
      %5352 = vst.msk [vmem:[#allocation3 + $0xc0] sm:$0x1] %vm5343, 0.0
      %5353 = vst.msk [vmem:[#allocation3 + $0xd8] sm:$0x1] %vm5343, 0.0
      %5354 = vst.msk [vmem:[#allocation3 + $0xf0] sm:$0x1] %vm5343, 0.0
      %5355 = vst.msk [vmem:[#allocation3 + $0x108] sm:$0x1] %vm5343, 0.0
      %5356 = vst.msk [vmem:[#allocation3 + $0x120] sm:$0x1] %vm5343, 0.0
      %5357 = vst.msk [vmem:[#allocation3 + $0x138] sm:$0x1] %vm5343, 0.0
      %5358 = vst.msk [vmem:[#allocation3 + $0x150] sm:$0x1] %vm5343, 0.0
      %5359 = vst.msk [vmem:[#allocation3 + $0x168] sm:$0x1] %vm5343, 0.0
      %5360 = vst.msk [vmem:[#allocation3 + $0x180] sm:$0x1] %vm5343, 0.0
      %5361 = vst.msk [vmem:[#allocation3 + $0x198] sm:$0x1] %vm5343, 0.0
      %5362 = vst.msk [vmem:[#allocation3 + $0x11] sm:$0x1] %vm5343, 0.0
      %5363 = vst.msk [vmem:[#allocation3 + $0x29] sm:$0x1] %vm5343, 0.0
      %5364 = vst.msk [vmem:[#allocation3 + $0x41] sm:$0x1] %vm5343, 0.0
      %5365 = vst.msk [vmem:[#allocation3 + $0x59] sm:$0x1] %vm5343, 0.0
      %5366 = vst.msk [vmem:[#allocation3 + $0x71] sm:$0x1] %vm5343, 0.0
      %5367 = vst.msk [vmem:[#allocation3 + $0x89] sm:$0x1] %vm5343, 0.0
      %5368 = vst.msk [vmem:[#allocation3 + $0xa1] sm:$0x1] %vm5343, 0.0
      %5369 = vst.msk [vmem:[#allocation3 + $0xb9] sm:$0x1] %vm5343, 0.0
      %5370 = vst.msk [vmem:[#allocation3 + $0xd1] sm:$0x1] %vm5343, 0.0
      %5371 = vst.msk [vmem:[#allocation3 + $0xe9] sm:$0x1] %vm5343, 0.0
      %5372 = vst.msk [vmem:[#allocation3 + $0x101] sm:$0x1] %vm5343, 0.0
      %5373 = vst.msk [vmem:[#allocation3 + $0x119] sm:$0x1] %vm5343, 0.0
      %5374 = vst.msk [vmem:[#allocation3 + $0x131] sm:$0x1] %vm5343, 0.0
      %5375 = vst.msk [vmem:[#allocation3 + $0x149] sm:$0x1] %vm5343, 0.0
      %5376 = vst.msk [vmem:[#allocation3 + $0x161] sm:$0x1] %vm5343, 0.0
      %5377 = vst.msk [vmem:[#allocation3 + $0x179] sm:$0x1] %vm5343, 0.0
      %5378 = vst.msk [vmem:[#allocation3 + $0x191] sm:$0x1] %vm5343, 0.0
      %5379 = vst.msk [vmem:[#allocation3 + $0x1a9] sm:$0x1] %vm5343, 0.0
      %s5380 = scalar_lea.vmem [#allocation3], 24
      %5381 = vst.msk [vmem:[%s5380 + $0x1] sm:$0xff] %vm1490, %v5265
      %5382 = vst.msk [vmem:[%s5380 + $0x9] sm:$0xff] %vm1490, %v5266
      %5383 = vst.msk [vmem:[%s5380 + $0x19] sm:$0xff] %vm1490, %v5267
      %5384 = vst.msk [vmem:[%s5380 + $0x21] sm:$0xff] %vm1490, %v5268
      %5385 = vst.msk [vmem:[%s5380 + $0x31] sm:$0xff] %vm1490, %v5269
      %5386 = vst.msk [vmem:[%s5380 + $0x39] sm:$0xff] %vm1490, %v5270
      %5387 = vst.msk [vmem:[%s5380 + $0x49] sm:$0xff] %vm1490, %v5271
      %5388 = vst.msk [vmem:[%s5380 + $0x51] sm:$0xff] %vm1490, %v5272
      %5389 = vst.msk [vmem:[%s5380 + $0x61] sm:$0xff] %vm1490, %v5273
      %5390 = vst.msk [vmem:[%s5380 + $0x69] sm:$0xff] %vm1490, %v5274
      %5391 = vst.msk [vmem:[%s5380 + $0x79] sm:$0xff] %vm1490, %v5275
      %5392 = vst.msk [vmem:[%s5380 + $0x81] sm:$0xff] %vm1490, %v5276
      %5393 = vst.msk [vmem:[%s5380 + $0x91] sm:$0xff] %vm1490, %v5277
      %5394 = vst.msk [vmem:[%s5380 + $0x99] sm:$0xff] %vm1490, %v5278
      %5395 = vst.msk [vmem:[%s5380 + $0xa9] sm:$0xff] %vm1490, %v5279
      %5396 = vst.msk [vmem:[%s5380 + $0xb1] sm:$0xff] %vm1490, %v5280
      %5397 = vst.msk [vmem:[%s5380 + $0xc1] sm:$0xff] %vm1490, %v5281
      %5398 = vst.msk [vmem:[%s5380 + $0xc9] sm:$0xff] %vm1490, %v5282
      %5399 = vst.msk [vmem:[%s5380 + $0xd9] sm:$0xff] %vm1490, %v5283
      %5400 = vst.msk [vmem:[%s5380 + $0xe1] sm:$0xff] %vm1490, %v5284
      %5401 = vst.msk [vmem:[%s5380 + $0xf1] sm:$0xff] %vm1490, %v5285
      %5402 = vst.msk [vmem:[%s5380 + $0xf9] sm:$0xff] %vm1490, %v5286
      %5403 = vst.msk [vmem:[%s5380 + $0x109] sm:$0xff] %vm1490, %v5287
      %5404 = vst.msk [vmem:[%s5380 + $0x111] sm:$0xff] %vm1490, %v5288
      %5405 = vst.msk [vmem:[%s5380 + $0x121] sm:$0xff] %vm1490, %v5289
      %5406 = vst.msk [vmem:[%s5380 + $0x129] sm:$0xff] %vm1490, %v5290
      %5407 = vst.msk [vmem:[%s5380 + $0x139] sm:$0xff] %vm1490, %v5291
      %5408 = vst.msk [vmem:[%s5380 + $0x141] sm:$0xff] %vm1490, %v5292
      %5409 = vst.msk [vmem:[%s5380 + $0x151] sm:$0xff] %vm1490, %v5293
      %5410 = vst.msk [vmem:[%s5380 + $0x159] sm:$0xff] %vm1490, %v5294
      %5411 = vst.msk [vmem:[%s5380 + $0x169] sm:$0xff] %vm1490, %v5295
      %5412 = vst.msk [vmem:[%s5380 + $0x171] sm:$0xff] %vm1490, %v5296
      %5413 = vst.msk [vmem:[#allocation4] sm:$0xff] %vm1490, %v5304
      %5414 = vst.msk [vmem:[#allocation4 + $0x8] sm:$0xff] %vm1490, %v5305
      %5415 = vst.msk [vmem:[#allocation4 + $0x10] sm:$0xff] %vm1490, %v5306
      %5416 = vst.msk [vmem:[#allocation4 + $0x18] sm:$0xff] %vm1490, %v5307
      %5417 = vst.msk [vmem:[#allocation4 + $0x20] sm:$0xff] %vm1490, %v5308
      %5418 = vst.msk [vmem:[#allocation4 + $0x28] sm:$0xff] %vm1490, %v5309
      %5419 = vst.msk [vmem:[#allocation4 + $0x30] sm:$0xff] %vm1490, %v5310
      %5420 = vst.msk [vmem:[#allocation4 + $0x38] sm:$0xff] %vm1490, %v5311
      %5421 = vst.msk [vmem:[#allocation4 + $0x40] sm:$0xff] %vm1490, %v5312
      %5422 = vst.msk [vmem:[#allocation4 + $0x48] sm:$0xff] %vm1490, %v5313
      %5423 = vst.msk [vmem:[#allocation4 + $0x50] sm:$0xff] %vm1490, %v5314
      %5424 = vst.msk [vmem:[#allocation4 + $0x58] sm:$0xff] %vm1490, %v5315
      %5425 = vst.msk [vmem:[#allocation4 + $0x60] sm:$0xff] %vm1490, %v5316
      %5426 = vst.msk [vmem:[#allocation4 + $0x68] sm:$0xff] %vm1490, %v5317
      %5427 = vst.msk [vmem:[#allocation4 + $0x70] sm:$0xff] %vm1490, %v5318
      %5428 = vst.msk [vmem:[#allocation4 + $0x78] sm:$0xff] %vm1490, %v5319
      %5429 = vst.msk [vmem:[#allocation4 + $0x80] sm:$0xff] %vm1490, %v5320
      %5430 = vst.msk [vmem:[#allocation4 + $0x88] sm:$0xff] %vm1490, %v5321
      %5431 = vst.msk [vmem:[#allocation4 + $0x90] sm:$0xff] %vm1490, %v5322
      %5432 = vst.msk [vmem:[#allocation4 + $0x98] sm:$0xff] %vm1490, %v5323
      %5433 = vst.msk [vmem:[#allocation4 + $0xa0] sm:$0xff] %vm1490, %v5324
      %5434 = vst.msk [vmem:[#allocation4 + $0xa8] sm:$0xff] %vm1490, %v5325
      %5435 = vst.msk [vmem:[#allocation4 + $0xb0] sm:$0xff] %vm1490, %v5326
      %5436 = vst.msk [vmem:[#allocation4 + $0xb8] sm:$0xff] %vm1490, %v5327
      %5437 = vst.msk [vmem:[#allocation4 + $0xc0] sm:$0xff] %vm1490, %v5328
      %5438 = vst.msk [vmem:[#allocation4 + $0xc8] sm:$0xff] %vm1490, %v5329
      %5439 = vst.msk [vmem:[#allocation4 + $0xd0] sm:$0xff] %vm1490, %v5330
      %5440 = vst.msk [vmem:[#allocation4 + $0xd8] sm:$0xff] %vm1490, %v5331
      %5441 = vst.msk [vmem:[#allocation4 + $0xe0] sm:$0xff] %vm1490, %v5332
      %5442 = vst.msk [vmem:[#allocation4 + $0xe8] sm:$0xff] %vm1490, %v5333
      %5443 = vst.msk [vmem:[#allocation4 + $0xf0] sm:$0xff] %vm1490, %v5334
      %5444 = vst.msk [vmem:[#allocation4 + $0xf8] sm:$0xff] %vm1490, %v5335
      %v5445 = vld [vmem:[#allocation3] sm:$0xff]
      %v5446 = vld [vmem:[#allocation3 + $0x8] sm:$0xff]
      %v5447 = vld [vmem:[#allocation3 + $0x18] sm:$0xff]
      %v5448 = vld [vmem:[#allocation3 + $0x20] sm:$0xff]
      %v5449 = vld [vmem:[#allocation3 + $0x30] sm:$0xff]
      %v5450 = vld [vmem:[#allocation3 + $0x38] sm:$0xff]
      %v5451 = vld [vmem:[#allocation3 + $0x48] sm:$0xff]
      %v5452 = vld [vmem:[#allocation3 + $0x50] sm:$0xff]
      %v5453 = vld [vmem:[#allocation3 + $0x60] sm:$0xff]
      %v5454 = vld [vmem:[#allocation3 + $0x68] sm:$0xff]
      %v5455 = vld [vmem:[#allocation3 + $0x78] sm:$0xff]
      %v5456 = vld [vmem:[#allocation3 + $0x80] sm:$0xff]
      %v5457 = vld [vmem:[#allocation3 + $0x90] sm:$0xff]
      %v5458 = vld [vmem:[#allocation3 + $0x98] sm:$0xff]
      %v5459 = vld [vmem:[#allocation3 + $0xa8] sm:$0xff]
      %v5460 = vld [vmem:[#allocation3 + $0xb0] sm:$0xff]
      %v5461 = vld [vmem:[#allocation3 + $0xc0] sm:$0xff]
      %v5462 = vld [vmem:[#allocation3 + $0xc8] sm:$0xff]
      %v5463 = vld [vmem:[#allocation3 + $0xd8] sm:$0xff]
      %v5464 = vld [vmem:[#allocation3 + $0xe0] sm:$0xff]
      %v5465 = vld [vmem:[#allocation3 + $0xf0] sm:$0xff]
      %v5466 = vld [vmem:[#allocation3 + $0xf8] sm:$0xff]
      %v5467 = vld [vmem:[#allocation3 + $0x108] sm:$0xff]
      %v5468 = vld [vmem:[#allocation3 + $0x110] sm:$0xff]
      %v5469 = vld [vmem:[#allocation3 + $0x120] sm:$0xff]
      %v5470 = vld [vmem:[#allocation3 + $0x128] sm:$0xff]
      %v5471 = vld [vmem:[#allocation3 + $0x138] sm:$0xff]
      %v5472 = vld [vmem:[#allocation3 + $0x140] sm:$0xff]
      %v5473 = vld [vmem:[#allocation3 + $0x150] sm:$0xff]
      %v5474 = vld [vmem:[#allocation3 + $0x158] sm:$0xff]
      %v5475 = vld [vmem:[#allocation3 + $0x168] sm:$0xff]
      %v5476 = vld [vmem:[#allocation3 + $0x170] sm:$0xff]
      %v5477 = vpack.c.bf16 %v5446, %v5445
      %v5478 = vpack.c.bf16 %v5448, %v5447
      %v5479 = vpack.c.bf16 %v5450, %v5449
      %v5480 = vpack.c.bf16 %v5452, %v5451
      %v5481 = vpack.c.bf16 %v5454, %v5453
      %v5482 = vpack.c.bf16 %v5456, %v5455
      %v5483 = vpack.c.bf16 %v5458, %v5457
      %v5484 = vpack.c.bf16 %v5460, %v5459
      %v5485 = vpack.c.bf16 %v5462, %v5461
      %v5486 = vpack.c.bf16 %v5464, %v5463
      %v5487 = vpack.c.bf16 %v5466, %v5465
      %v5488 = vpack.c.bf16 %v5468, %v5467
      %v5489 = vpack.c.bf16 %v5470, %v5469
      %v5490 = vpack.c.bf16 %v5472, %v5471
      %v5491 = vpack.c.bf16 %v5474, %v5473
      %v5492 = vpack.c.bf16 %v5476, %v5475
      %v5493 = vld [vmem:[%s11] sm:$0xf]
      %v5494 = vld [vmem:[%s11 + $0x4] sm:$0xf]
      %v5495 = vld [vmem:[%s11 + $0x8] sm:$0xf]
      %v5496 = vld [vmem:[%s11 + $0xc] sm:$0xf]
      %v5501 = vunpack.c.l.b16 %v5493
      %v5502 = vunpack.c.l.b16 %v5494
      %v5503 = vunpack.c.l.b16 %v5495
      %v5504 = vunpack.c.l.b16 %v5496
      %v5505 = vpack.c.b16 %v5502, %v5501
      %v5506 = vpack.c.b16 %v5504, %v5503
      %v5510 = vsel %vm1490, %v5477, 0
      %v5513 = vsel %vm1490, %v5478, 0
      %v5516 = vsel %vm1490, %v5479, 0
      %v5519 = vsel %vm1490, %v5480, 0
      %v5522 = vsel %vm1490, %v5481, 0
      %v5525 = vsel %vm1490, %v5482, 0
      %v5528 = vsel %vm1490, %v5483, 0
      %v5531 = vsel %vm1490, %v5484, 0
      %v5534 = vsel %vm1490, %v5485, 0
      %v5537 = vsel %vm1490, %v5486, 0
      %v5540 = vsel %vm1490, %v5487, 0
      %v5543 = vsel %vm1490, %v5488, 0
      %v5546 = vsel %vm1490, %v5489, 0
      %v5549 = vsel %vm1490, %v5490, 0
      %v5552 = vsel %vm1490, %v5491, 0
      %v5555 = vsel %vm1490, %v5492, 0
      %5557 = vmatprep.subr.bf16.mxu0 0
      %5558 = vmatpush1.bf16.msra.mxu0 %v5505
      %5559 = vmatprep.subr.bf16.mxu0 0
      %5560 = vmatpush1.bf16.msra.mxu0 %v5506
      %5561 = vmatprep.subr.bf16.mxu0 0
      %5562 = vmatpush1.bf16.msra.mxu0 0
      %5563 = vmatprep.subr.bf16.mxu0 0
      %5564 = vmatpush1.bf16.msra.mxu0 0
      %5565 = vmatprep.subr.bf16.mxu0 0
      %5566 = vmatpush1.bf16.msra.mxu0 0
      %5567 = vmatprep.subr.bf16.mxu0 0
      %5568 = vmatpush1.bf16.msra.mxu0 0
      %5569 = vmatprep.subr.bf16.mxu0 0
      %5570 = vmatpush1.bf16.msra.mxu0 0
      %5571 = vmatprep.subr.bf16.mxu0 0
      %5572 = vmatpush1.bf16.msra.mxu0 0
      %5573 = vmatprep.subr.bf16.mxu0 0
      %5574 = vmatpush1.bf16.msra.mxu0 0
      %5575 = vmatprep.subr.bf16.mxu0 0
      %5576 = vmatpush1.bf16.msra.mxu0 0
      %5577 = vmatprep.subr.bf16.mxu0 0
      %5578 = vmatpush1.bf16.msra.mxu0 0
      %5579 = vmatprep.subr.bf16.mxu0 0
      %5580 = vmatpush1.bf16.msra.mxu0 0
      %5581 = vmatprep.subr.bf16.mxu0 0
      %5582 = vmatpush1.bf16.msra.mxu0 0
      %5583 = vmatprep.subr.bf16.mxu0 0
      %5584 = vmatpush1.bf16.msra.mxu0 0
      %5585 = vmatprep.subr.bf16.mxu0 0
      %5586 = vmatpush1.bf16.msra.mxu0 0
      %5587 = vmatprep.subr.bf16.mxu0 0
      %5588 = vmatpush1.bf16.msra.mxu0 0
      %5589 = vmatprep.mubr.bf16.mxu0 0
      %5590 = vmatmul.mubr.bf16.gmra.mrb[0].mxu0 %v5510
      %v5591 = vpop.f32.mrb[0].mxu0
      %v5592 = vadd.f32 0.0, %v5591
      %v5593 = vpop.f32.mrb[0].mxu0
      %v5594 = vpop.f32.mrb[0].mxu0
      %v5595 = vadd.f32 0.0, %v5594
      %v5596 = vpop.f32.mrb[0].mxu0
      %5597 = vmatprep.mubr.bf16.mxu0 0
      %5598 = vmatmul.mubr.bf16.gmra.mrb[0].mxu0 %v5513
      %v5599 = vpop.f32.mrb[0].mxu0
      %v5600 = vadd.f32 0.0, %v5599
      %v5601 = vpop.f32.mrb[0].mxu0
      %v5602 = vpop.f32.mrb[0].mxu0
      %v5603 = vadd.f32 0.0, %v5602
      %v5604 = vpop.f32.mrb[0].mxu0
      %5605 = vmatprep.mubr.bf16.mxu0 0
      %5606 = vmatmul.mubr.bf16.gmra.mrb[0].mxu0 %v5516
      %v5607 = vpop.f32.mrb[0].mxu0
      %v5608 = vadd.f32 0.0, %v5607
      %v5609 = vpop.f32.mrb[0].mxu0
      %v5610 = vpop.f32.mrb[0].mxu0
      %v5611 = vadd.f32 0.0, %v5610
      %v5612 = vpop.f32.mrb[0].mxu0
      %5613 = vmatprep.mubr.bf16.mxu0 0
      %5614 = vmatmul.mubr.bf16.gmra.mrb[0].mxu0 %v5519
      %v5615 = vpop.f32.mrb[0].mxu0
      %v5616 = vadd.f32 0.0, %v5615
      %v5617 = vpop.f32.mrb[0].mxu0
      %v5618 = vpop.f32.mrb[0].mxu0
      %v5619 = vadd.f32 0.0, %v5618
      %v5620 = vpop.f32.mrb[0].mxu0
      %5621 = vmatprep.mubr.bf16.mxu0 0
      %5622 = vmatmul.mubr.bf16.gmra.mrb[0].mxu0 %v5522
      %v5623 = vpop.f32.mrb[0].mxu0
      %v5624 = vadd.f32 0.0, %v5623
      %v5625 = vpop.f32.mrb[0].mxu0
      %v5626 = vpop.f32.mrb[0].mxu0
      %v5627 = vadd.f32 0.0, %v5626
      %v5628 = vpop.f32.mrb[0].mxu0
      %5629 = vmatprep.mubr.bf16.mxu0 0
      %5630 = vmatmul.mubr.bf16.gmra.mrb[0].mxu0 %v5525
      %v5631 = vpop.f32.mrb[0].mxu0
      %v5632 = vadd.f32 0.0, %v5631
      %v5633 = vpop.f32.mrb[0].mxu0
      %v5634 = vpop.f32.mrb[0].mxu0
      %v5635 = vadd.f32 0.0, %v5634
      %v5636 = vpop.f32.mrb[0].mxu0
      %5637 = vmatprep.mubr.bf16.mxu0 0
      %5638 = vmatmul.mubr.bf16.gmra.mrb[0].mxu0 %v5528
      %v5639 = vpop.f32.mrb[0].mxu0
      %v5640 = vadd.f32 0.0, %v5639
      %v5641 = vpop.f32.mrb[0].mxu0
      %v5642 = vpop.f32.mrb[0].mxu0
      %v5643 = vadd.f32 0.0, %v5642
      %v5644 = vpop.f32.mrb[0].mxu0
      %5645 = vmatprep.mubr.bf16.mxu0 0
      %5646 = vmatmul.mubr.bf16.gmra.mrb[0].mxu0 %v5531
      %v5647 = vpop.f32.mrb[0].mxu0
      %v5648 = vadd.f32 0.0, %v5647
      %v5649 = vpop.f32.mrb[0].mxu0
      %v5650 = vpop.f32.mrb[0].mxu0
      %v5651 = vadd.f32 0.0, %v5650
      %v5652 = vpop.f32.mrb[0].mxu0
      %5653 = vmatprep.mubr.bf16.mxu0 0
      %5654 = vmatmul.mubr.bf16.gmra.mrb[0].mxu0 %v5534
      %v5655 = vpop.f32.mrb[0].mxu0
      %v5656 = vadd.f32 0.0, %v5655
      %v5657 = vpop.f32.mrb[0].mxu0
      %v5658 = vpop.f32.mrb[0].mxu0
      %v5659 = vadd.f32 0.0, %v5658
      %v5660 = vpop.f32.mrb[0].mxu0
      %5661 = vmatprep.mubr.bf16.mxu0 0
      %5662 = vmatmul.mubr.bf16.gmra.mrb[0].mxu0 %v5537
      %v5663 = vpop.f32.mrb[0].mxu0
      %v5664 = vadd.f32 0.0, %v5663
      %v5665 = vpop.f32.mrb[0].mxu0
      %v5666 = vpop.f32.mrb[0].mxu0
      %v5667 = vadd.f32 0.0, %v5666
      %v5668 = vpop.f32.mrb[0].mxu0
      %5669 = vmatprep.mubr.bf16.mxu0 0
      %5670 = vmatmul.mubr.bf16.gmra.mrb[0].mxu0 %v5540
      %v5671 = vpop.f32.mrb[0].mxu0
      %v5672 = vadd.f32 0.0, %v5671
      %v5673 = vpop.f32.mrb[0].mxu0
      %v5674 = vpop.f32.mrb[0].mxu0
      %v5675 = vadd.f32 0.0, %v5674
      %v5676 = vpop.f32.mrb[0].mxu0
      %5677 = vmatprep.mubr.bf16.mxu0 0
      %5678 = vmatmul.mubr.bf16.gmra.mrb[0].mxu0 %v5543
      %v5679 = vpop.f32.mrb[0].mxu0
      %v5680 = vadd.f32 0.0, %v5679
      %v5681 = vpop.f32.mrb[0].mxu0
      %v5682 = vpop.f32.mrb[0].mxu0
      %v5683 = vadd.f32 0.0, %v5682
      %v5684 = vpop.f32.mrb[0].mxu0
      %5685 = vmatprep.mubr.bf16.mxu0 0
      %5686 = vmatmul.mubr.bf16.gmra.mrb[0].mxu0 %v5546
      %v5687 = vpop.f32.mrb[0].mxu0
      %v5688 = vadd.f32 0.0, %v5687
      %v5689 = vpop.f32.mrb[0].mxu0
      %v5690 = vpop.f32.mrb[0].mxu0
      %v5691 = vadd.f32 0.0, %v5690
      %v5692 = vpop.f32.mrb[0].mxu0
      %5693 = vmatprep.mubr.bf16.mxu0 0
      %5694 = vmatmul.mubr.bf16.gmra.mrb[0].mxu0 %v5549
      %v5695 = vpop.f32.mrb[0].mxu0
      %v5696 = vadd.f32 0.0, %v5695
      %v5697 = vpop.f32.mrb[0].mxu0
      %v5698 = vpop.f32.mrb[0].mxu0
      %v5699 = vadd.f32 0.0, %v5698
      %v5700 = vpop.f32.mrb[0].mxu0
      %5701 = vmatprep.mubr.bf16.mxu0 0
      %5702 = vmatmul.mubr.bf16.gmra.mrb[0].mxu0 %v5552
      %v5703 = vpop.f32.mrb[0].mxu0
      %v5704 = vadd.f32 0.0, %v5703
      %v5705 = vpop.f32.mrb[0].mxu0
      %v5706 = vpop.f32.mrb[0].mxu0
      %v5707 = vadd.f32 0.0, %v5706
      %v5708 = vpop.f32.mrb[0].mxu0
      %5709 = vmatprep.mubr.bf16.mxu0 0
      %5710 = vmatmul.mubr.bf16.gmra.mrb[0].mxu0 %v5555
      %v5711 = vpop.f32.mrb[0].mxu0
      %v5712 = vadd.f32 0.0, %v5711
      %v5713 = vpop.f32.mrb[0].mxu0
      %v5714 = vpop.f32.mrb[0].mxu0
      %v5715 = vadd.f32 0.0, %v5714
      %v5716 = vpop.f32.mrb[0].mxu0
      %5717 = vdwg.mxu0
      %v5718 = vld [vmem:[#allocation4] sm:$0xff]
      %v5719 = vld [vmem:[#allocation4 + $0x8] sm:$0xff]
      %v5720 = vld [vmem:[#allocation4 + $0x10] sm:$0xff]
      %v5721 = vld [vmem:[#allocation4 + $0x18] sm:$0xff]
      %v5722 = vld [vmem:[#allocation4 + $0x20] sm:$0xff]
      %v5723 = vld [vmem:[#allocation4 + $0x28] sm:$0xff]
      %v5724 = vld [vmem:[#allocation4 + $0x30] sm:$0xff]
      %v5725 = vld [vmem:[#allocation4 + $0x38] sm:$0xff]
      %v5726 = vld [vmem:[#allocation4 + $0x40] sm:$0xff]
      %v5727 = vld [vmem:[#allocation4 + $0x48] sm:$0xff]
      %v5728 = vld [vmem:[#allocation4 + $0x50] sm:$0xff]
      %v5729 = vld [vmem:[#allocation4 + $0x58] sm:$0xff]
      %v5730 = vld [vmem:[#allocation4 + $0x60] sm:$0xff]
      %v5731 = vld [vmem:[#allocation4 + $0x68] sm:$0xff]
      %v5732 = vld [vmem:[#allocation4 + $0x70] sm:$0xff]
      %v5733 = vld [vmem:[#allocation4 + $0x78] sm:$0xff]
      %v5734 = vld [vmem:[#allocation4 + $0x80] sm:$0xff]
      %v5735 = vld [vmem:[#allocation4 + $0x88] sm:$0xff]
      %v5736 = vld [vmem:[#allocation4 + $0x90] sm:$0xff]
      %v5737 = vld [vmem:[#allocation4 + $0x98] sm:$0xff]
      %v5738 = vld [vmem:[#allocation4 + $0xa0] sm:$0xff]
      %v5739 = vld [vmem:[#allocation4 + $0xa8] sm:$0xff]
      %v5740 = vld [vmem:[#allocation4 + $0xb0] sm:$0xff]
      %v5741 = vld [vmem:[#allocation4 + $0xb8] sm:$0xff]
      %v5742 = vld [vmem:[#allocation4 + $0xc0] sm:$0xff]
      %v5743 = vld [vmem:[#allocation4 + $0xc8] sm:$0xff]
      %v5744 = vld [vmem:[#allocation4 + $0xd0] sm:$0xff]
      %v5745 = vld [vmem:[#allocation4 + $0xd8] sm:$0xff]
      %v5746 = vld [vmem:[#allocation4 + $0xe0] sm:$0xff]
      %v5747 = vld [vmem:[#allocation4 + $0xe8] sm:$0xff]
      %v5748 = vld [vmem:[#allocation4 + $0xf0] sm:$0xff]
      %v5749 = vld [vmem:[#allocation4 + $0xf8] sm:$0xff]
      %v5750 = vadd.f32 %v5718, %v5592
      %v5751 = vadd.f32 %v5719, %v5595
      %v5752 = vadd.f32 %v5720, %v5600
      %v5753 = vadd.f32 %v5721, %v5603
      %v5754 = vadd.f32 %v5722, %v5608
      %v5755 = vadd.f32 %v5723, %v5611
      %v5756 = vadd.f32 %v5724, %v5616
      %v5757 = vadd.f32 %v5725, %v5619
      %v5758 = vadd.f32 %v5726, %v5624
      %v5759 = vadd.f32 %v5727, %v5627
      %v5760 = vadd.f32 %v5728, %v5632
      %v5761 = vadd.f32 %v5729, %v5635
      %v5762 = vadd.f32 %v5730, %v5640
      %v5763 = vadd.f32 %v5731, %v5643
      %v5764 = vadd.f32 %v5732, %v5648
      %v5765 = vadd.f32 %v5733, %v5651
      %v5766 = vadd.f32 %v5734, %v5656
      %v5767 = vadd.f32 %v5735, %v5659
      %v5768 = vadd.f32 %v5736, %v5664
      %v5769 = vadd.f32 %v5737, %v5667
      %v5770 = vadd.f32 %v5738, %v5672
      %v5771 = vadd.f32 %v5739, %v5675
      %v5772 = vadd.f32 %v5740, %v5680
      %v5773 = vadd.f32 %v5741, %v5683
      %v5774 = vadd.f32 %v5742, %v5688
      %v5775 = vadd.f32 %v5743, %v5691
      %v5776 = vadd.f32 %v5744, %v5696
      %v5777 = vadd.f32 %v5745, %v5699
      %v5778 = vadd.f32 %v5746, %v5704
      %v5779 = vadd.f32 %v5747, %v5707
      %v5780 = vadd.f32 %v5748, %v5712
      %v5781 = vadd.f32 %v5749, %v5715
      %5782 = vst.msk [vmem:[#allocation4] sm:$0xff] %vm1490, %v5750
      %5783 = vst.msk [vmem:[#allocation4 + $0x8] sm:$0xff] %vm1490, %v5751
      %5784 = vst.msk [vmem:[#allocation4 + $0x10] sm:$0xff] %vm1490, %v5752
      %5785 = vst.msk [vmem:[#allocation4 + $0x18] sm:$0xff] %vm1490, %v5753
      %5786 = vst.msk [vmem:[#allocation4 + $0x20] sm:$0xff] %vm1490, %v5754
      %5787 = vst.msk [vmem:[#allocation4 + $0x28] sm:$0xff] %vm1490, %v5755
      %5788 = vst.msk [vmem:[#allocation4 + $0x30] sm:$0xff] %vm1490, %v5756
      %5789 = vst.msk [vmem:[#allocation4 + $0x38] sm:$0xff] %vm1490, %v5757
      %5790 = vst.msk [vmem:[#allocation4 + $0x40] sm:$0xff] %vm1490, %v5758
      %5791 = vst.msk [vmem:[#allocation4 + $0x48] sm:$0xff] %vm1490, %v5759
      %5792 = vst.msk [vmem:[#allocation4 + $0x50] sm:$0xff] %vm1490, %v5760
      %5793 = vst.msk [vmem:[#allocation4 + $0x58] sm:$0xff] %vm1490, %v5761
      %5794 = vst.msk [vmem:[#allocation4 + $0x60] sm:$0xff] %vm1490, %v5762
      %5795 = vst.msk [vmem:[#allocation4 + $0x68] sm:$0xff] %vm1490, %v5763
      %5796 = vst.msk [vmem:[#allocation4 + $0x70] sm:$0xff] %vm1490, %v5764
      %5797 = vst.msk [vmem:[#allocation4 + $0x78] sm:$0xff] %vm1490, %v5765
      %5798 = vst.msk [vmem:[#allocation4 + $0x80] sm:$0xff] %vm1490, %v5766
      %5799 = vst.msk [vmem:[#allocation4 + $0x88] sm:$0xff] %vm1490, %v5767
      %5800 = vst.msk [vmem:[#allocation4 + $0x90] sm:$0xff] %vm1490, %v5768
      %5801 = vst.msk [vmem:[#allocation4 + $0x98] sm:$0xff] %vm1490, %v5769
      %5802 = vst.msk [vmem:[#allocation4 + $0xa0] sm:$0xff] %vm1490, %v5770
      %5803 = vst.msk [vmem:[#allocation4 + $0xa8] sm:$0xff] %vm1490, %v5771
      %5804 = vst.msk [vmem:[#allocation4 + $0xb0] sm:$0xff] %vm1490, %v5772
      %5805 = vst.msk [vmem:[#allocation4 + $0xb8] sm:$0xff] %vm1490, %v5773
      %5806 = vst.msk [vmem:[#allocation4 + $0xc0] sm:$0xff] %vm1490, %v5774
      %5807 = vst.msk [vmem:[#allocation4 + $0xc8] sm:$0xff] %vm1490, %v5775
      %5808 = vst.msk [vmem:[#allocation4 + $0xd0] sm:$0xff] %vm1490, %v5776
      %5809 = vst.msk [vmem:[#allocation4 + $0xd8] sm:$0xff] %vm1490, %v5777
      %5810 = vst.msk [vmem:[#allocation4 + $0xe0] sm:$0xff] %vm1490, %v5778
      %5811 = vst.msk [vmem:[#allocation4 + $0xe8] sm:$0xff] %vm1490, %v5779
      %5812 = vst.msk [vmem:[#allocation4 + $0xf0] sm:$0xff] %vm1490, %v5780
      %5813 = vst.msk [vmem:[#allocation4 + $0xf8] sm:$0xff] %vm1490, %v5781
      %v5814 = vld [vmem:[#allocation3 + $0x1] sm:$0xff]
      %v5815 = vld [vmem:[#allocation3 + $0x9] sm:$0xff]
      %v5816 = vld [vmem:[#allocation3 + $0x19] sm:$0xff]
      %v5817 = vld [vmem:[#allocation3 + $0x21] sm:$0xff]
      %v5818 = vld [vmem:[#allocation3 + $0x31] sm:$0xff]
      %v5819 = vld [vmem:[#allocation3 + $0x39] sm:$0xff]
      %v5820 = vld [vmem:[#allocation3 + $0x49] sm:$0xff]
      %v5821 = vld [vmem:[#allocation3 + $0x51] sm:$0xff]
      %v5822 = vld [vmem:[#allocation3 + $0x61] sm:$0xff]
      %v5823 = vld [vmem:[#allocation3 + $0x69] sm:$0xff]
      %v5824 = vld [vmem:[#allocation3 + $0x79] sm:$0xff]
      %v5825 = vld [vmem:[#allocation3 + $0x81] sm:$0xff]
      %v5826 = vld [vmem:[#allocation3 + $0x91] sm:$0xff]
      %v5827 = vld [vmem:[#allocation3 + $0x99] sm:$0xff]
      %v5828 = vld [vmem:[#allocation3 + $0xa9] sm:$0xff]
      %v5829 = vld [vmem:[#allocation3 + $0xb1] sm:$0xff]
      %v5830 = vld [vmem:[#allocation3 + $0xc1] sm:$0xff]
      %v5831 = vld [vmem:[#allocation3 + $0xc9] sm:$0xff]
      %v5832 = vld [vmem:[#allocation3 + $0xd9] sm:$0xff]
      %v5833 = vld [vmem:[#allocation3 + $0xe1] sm:$0xff]
      %v5834 = vld [vmem:[#allocation3 + $0xf1] sm:$0xff]
      %v5835 = vld [vmem:[#allocation3 + $0xf9] sm:$0xff]
      %v5836 = vld [vmem:[#allocation3 + $0x109] sm:$0xff]
      %v5837 = vld [vmem:[#allocation3 + $0x111] sm:$0xff]
      %v5838 = vld [vmem:[#allocation3 + $0x121] sm:$0xff]
      %v5839 = vld [vmem:[#allocation3 + $0x129] sm:$0xff]
      %v5840 = vld [vmem:[#allocation3 + $0x139] sm:$0xff]
      %v5841 = vld [vmem:[#allocation3 + $0x141] sm:$0xff]
      %v5842 = vld [vmem:[#allocation3 + $0x151] sm:$0xff]
      %v5843 = vld [vmem:[#allocation3 + $0x159] sm:$0xff]
      %v5844 = vld [vmem:[#allocation3 + $0x169] sm:$0xff]
      %v5845 = vld [vmem:[#allocation3 + $0x171] sm:$0xff]
      %v5846 = vpack.c.bf16 %v5815, %v5814
      %v5847 = vpack.c.bf16 %v5817, %v5816
      %v5848 = vpack.c.bf16 %v5819, %v5818
      %v5849 = vpack.c.bf16 %v5821, %v5820
      %v5850 = vpack.c.bf16 %v5823, %v5822
      %v5851 = vpack.c.bf16 %v5825, %v5824
      %v5852 = vpack.c.bf16 %v5827, %v5826
      %v5853 = vpack.c.bf16 %v5829, %v5828
      %v5854 = vpack.c.bf16 %v5831, %v5830
      %v5855 = vpack.c.bf16 %v5833, %v5832
      %v5856 = vpack.c.bf16 %v5835, %v5834
      %v5857 = vpack.c.bf16 %v5837, %v5836
      %v5858 = vpack.c.bf16 %v5839, %v5838
      %v5859 = vpack.c.bf16 %v5841, %v5840
      %v5860 = vpack.c.bf16 %v5843, %v5842
      %v5861 = vpack.c.bf16 %v5845, %v5844
      %s5862 = scalar_lea.vmem %s11, 16
      %v5863 = vld [vmem:[%s5862] sm:$0xf]
      %v5864 = vld [vmem:[%s5862 + $0x4] sm:$0xf]
      %v5865 = vld [vmem:[%s5862 + $0x8] sm:$0xf]
      %v5866 = vld [vmem:[%s5862 + $0xc] sm:$0xf]
      %v5871 = vunpack.c.l.b16 %v5863
      %v5872 = vunpack.c.l.b16 %v5864
      %v5873 = vunpack.c.l.b16 %v5865
      %v5874 = vunpack.c.l.b16 %v5866
      %v5875 = vpack.c.b16 %v5872, %v5871
      %v5876 = vpack.c.b16 %v5874, %v5873
      %v5880 = vsel %vm1490, %v5846, 0
      %v5883 = vsel %vm1490, %v5847, 0
      %v5886 = vsel %vm1490, %v5848, 0
      %v5889 = vsel %vm1490, %v5849, 0
      %v5892 = vsel %vm1490, %v5850, 0
      %v5895 = vsel %vm1490, %v5851, 0
      %v5898 = vsel %vm1490, %v5852, 0
      %v5901 = vsel %vm1490, %v5853, 0
      %v5904 = vsel %vm1490, %v5854, 0
      %v5907 = vsel %vm1490, %v5855, 0
      %v5910 = vsel %vm1490, %v5856, 0
      %v5913 = vsel %vm1490, %v5857, 0
      %v5916 = vsel %vm1490, %v5858, 0
      %v5919 = vsel %vm1490, %v5859, 0
      %v5922 = vsel %vm1490, %v5860, 0
      %v5925 = vsel %vm1490, %v5861, 0
      %5927 = vmatprep.subr.bf16.mxu0 0
      %5928 = vmatpush1.bf16.msra.mxu0 %v5875
      %5929 = vmatprep.subr.bf16.mxu0 0
      %5930 = vmatpush1.bf16.msra.mxu0 %v5876
      %5931 = vmatprep.subr.bf16.mxu0 0
      %5932 = vmatpush1.bf16.msra.mxu0 0
      %5933 = vmatprep.subr.bf16.mxu0 0
      %5934 = vmatpush1.bf16.msra.mxu0 0
      %5935 = vmatprep.subr.bf16.mxu0 0
      %5936 = vmatpush1.bf16.msra.mxu0 0
      %5937 = vmatprep.subr.bf16.mxu0 0
      %5938 = vmatpush1.bf16.msra.mxu0 0
      %5939 = vmatprep.subr.bf16.mxu0 0
      %5940 = vmatpush1.bf16.msra.mxu0 0
      %5941 = vmatprep.subr.bf16.mxu0 0
      %5942 = vmatpush1.bf16.msra.mxu0 0
      %5943 = vmatprep.subr.bf16.mxu0 0
      %5944 = vmatpush1.bf16.msra.mxu0 0
      %5945 = vmatprep.subr.bf16.mxu0 0
      %5946 = vmatpush1.bf16.msra.mxu0 0
      %5947 = vmatprep.subr.bf16.mxu0 0
      %5948 = vmatpush1.bf16.msra.mxu0 0
      %5949 = vmatprep.subr.bf16.mxu0 0
      %5950 = vmatpush1.bf16.msra.mxu0 0
      %5951 = vmatprep.subr.bf16.mxu0 0
      %5952 = vmatpush1.bf16.msra.mxu0 0
      %5953 = vmatprep.subr.bf16.mxu0 0
      %5954 = vmatpush1.bf16.msra.mxu0 0
      %5955 = vmatprep.subr.bf16.mxu0 0
      %5956 = vmatpush1.bf16.msra.mxu0 0
      %5957 = vmatprep.subr.bf16.mxu0 0
      %5958 = vmatpush1.bf16.msra.mxu0 0
      %5959 = vmatprep.mubr.bf16.mxu0 0
      %5960 = vmatmul.mubr.bf16.gmra.mrb[0].mxu0 %v5880
      %v5961 = vpop.f32.mrb[0].mxu0
      %v5962 = vadd.f32 0.0, %v5961
      %v5963 = vpop.f32.mrb[0].mxu0
      %v5964 = vpop.f32.mrb[0].mxu0
      %v5965 = vadd.f32 0.0, %v5964
      %v5966 = vpop.f32.mrb[0].mxu0
      %5967 = vmatprep.mubr.bf16.mxu0 0
      %5968 = vmatmul.mubr.bf16.gmra.mrb[0].mxu0 %v5883
      %v5969 = vpop.f32.mrb[0].mxu0
      %v5970 = vadd.f32 0.0, %v5969
      %v5971 = vpop.f32.mrb[0].mxu0
      %v5972 = vpop.f32.mrb[0].mxu0
      %v5973 = vadd.f32 0.0, %v5972
      %v5974 = vpop.f32.mrb[0].mxu0
      %5975 = vmatprep.mubr.bf16.mxu0 0
      %5976 = vmatmul.mubr.bf16.gmra.mrb[0].mxu0 %v5886
      %v5977 = vpop.f32.mrb[0].mxu0
      %v5978 = vadd.f32 0.0, %v5977
      %v5979 = vpop.f32.mrb[0].mxu0
      %v5980 = vpop.f32.mrb[0].mxu0
      %v5981 = vadd.f32 0.0, %v5980
      %v5982 = vpop.f32.mrb[0].mxu0
      %5983 = vmatprep.mubr.bf16.mxu0 0
      %5984 = vmatmul.mubr.bf16.gmra.mrb[0].mxu0 %v5889
      %v5985 = vpop.f32.mrb[0].mxu0
      %v5986 = vadd.f32 0.0, %v5985
      %v5987 = vpop.f32.mrb[0].mxu0
      %v5988 = vpop.f32.mrb[0].mxu0
      %v5989 = vadd.f32 0.0, %v5988
      %v5990 = vpop.f32.mrb[0].mxu0
      %5991 = vmatprep.mubr.bf16.mxu0 0
      %5992 = vmatmul.mubr.bf16.gmra.mrb[0].mxu0 %v5892
      %v5993 = vpop.f32.mrb[0].mxu0
      %v5994 = vadd.f32 0.0, %v5993
      %v5995 = vpop.f32.mrb[0].mxu0
      %v5996 = vpop.f32.mrb[0].mxu0
      %v5997 = vadd.f32 0.0, %v5996
      %v5998 = vpop.f32.mrb[0].mxu0
      %5999 = vmatprep.mubr.bf16.mxu0 0
      %6000 = vmatmul.mubr.bf16.gmra.mrb[0].mxu0 %v5895
      %v6001 = vpop.f32.mrb[0].mxu0
      %v6002 = vadd.f32 0.0, %v6001
      %v6003 = vpop.f32.mrb[0].mxu0
      %v6004 = vpop.f32.mrb[0].mxu0
      %v6005 = vadd.f32 0.0, %v6004
      %v6006 = vpop.f32.mrb[0].mxu0
      %6007 = vmatprep.mubr.bf16.mxu0 0
      %6008 = vmatmul.mubr.bf16.gmra.mrb[0].mxu0 %v5898
      %v6009 = vpop.f32.mrb[0].mxu0
      %v6010 = vadd.f32 0.0, %v6009
      %v6011 = vpop.f32.mrb[0].mxu0
      %v6012 = vpop.f32.mrb[0].mxu0
      %v6013 = vadd.f32 0.0, %v6012
      %v6014 = vpop.f32.mrb[0].mxu0
      %6015 = vmatprep.mubr.bf16.mxu0 0
      %6016 = vmatmul.mubr.bf16.gmra.mrb[0].mxu0 %v5901
      %v6017 = vpop.f32.mrb[0].mxu0
      %v6018 = vadd.f32 0.0, %v6017
      %v6019 = vpop.f32.mrb[0].mxu0
      %v6020 = vpop.f32.mrb[0].mxu0
      %v6021 = vadd.f32 0.0, %v6020
      %v6022 = vpop.f32.mrb[0].mxu0
      %6023 = vmatprep.mubr.bf16.mxu0 0
      %6024 = vmatmul.mubr.bf16.gmra.mrb[0].mxu0 %v5904
      %v6025 = vpop.f32.mrb[0].mxu0
      %v6026 = vadd.f32 0.0, %v6025
      %v6027 = vpop.f32.mrb[0].mxu0
      %v6028 = vpop.f32.mrb[0].mxu0
      %v6029 = vadd.f32 0.0, %v6028
      %v6030 = vpop.f32.mrb[0].mxu0
      %6031 = vmatprep.mubr.bf16.mxu0 0
      %6032 = vmatmul.mubr.bf16.gmra.mrb[0].mxu0 %v5907
      %v6033 = vpop.f32.mrb[0].mxu0
      %v6034 = vadd.f32 0.0, %v6033
      %v6035 = vpop.f32.mrb[0].mxu0
      %v6036 = vpop.f32.mrb[0].mxu0
      %v6037 = vadd.f32 0.0, %v6036
      %v6038 = vpop.f32.mrb[0].mxu0
      %6039 = vmatprep.mubr.bf16.mxu0 0
      %6040 = vmatmul.mubr.bf16.gmra.mrb[0].mxu0 %v5910
      %v6041 = vpop.f32.mrb[0].mxu0
      %v6042 = vadd.f32 0.0, %v6041
      %v6043 = vpop.f32.mrb[0].mxu0
      %v6044 = vpop.f32.mrb[0].mxu0
      %v6045 = vadd.f32 0.0, %v6044
      %v6046 = vpop.f32.mrb[0].mxu0
      %6047 = vmatprep.mubr.bf16.mxu0 0
      %6048 = vmatmul.mubr.bf16.gmra.mrb[0].mxu0 %v5913
      %v6049 = vpop.f32.mrb[0].mxu0
      %v6050 = vadd.f32 0.0, %v6049
      %v6051 = vpop.f32.mrb[0].mxu0
      %v6052 = vpop.f32.mrb[0].mxu0
      %v6053 = vadd.f32 0.0, %v6052
      %v6054 = vpop.f32.mrb[0].mxu0
      %6055 = vmatprep.mubr.bf16.mxu0 0
      %6056 = vmatmul.mubr.bf16.gmra.mrb[0].mxu0 %v5916
      %v6057 = vpop.f32.mrb[0].mxu0
      %v6058 = vadd.f32 0.0, %v6057
      %v6059 = vpop.f32.mrb[0].mxu0
      %v6060 = vpop.f32.mrb[0].mxu0
      %v6061 = vadd.f32 0.0, %v6060
      %v6062 = vpop.f32.mrb[0].mxu0
      %6063 = vmatprep.mubr.bf16.mxu0 0
      %6064 = vmatmul.mubr.bf16.gmra.mrb[0].mxu0 %v5919
      %v6065 = vpop.f32.mrb[0].mxu0
      %v6066 = vadd.f32 0.0, %v6065
      %v6067 = vpop.f32.mrb[0].mxu0
      %v6068 = vpop.f32.mrb[0].mxu0
      %v6069 = vadd.f32 0.0, %v6068
      %v6070 = vpop.f32.mrb[0].mxu0
      %6071 = vmatprep.mubr.bf16.mxu0 0
      %6072 = vmatmul.mubr.bf16.gmra.mrb[0].mxu0 %v5922
      %v6073 = vpop.f32.mrb[0].mxu0
      %v6074 = vadd.f32 0.0, %v6073
      %v6075 = vpop.f32.mrb[0].mxu0
      %v6076 = vpop.f32.mrb[0].mxu0
      %v6077 = vadd.f32 0.0, %v6076
      %v6078 = vpop.f32.mrb[0].mxu0
      %6079 = vmatprep.mubr.bf16.mxu0 0
      %6080 = vmatmul.mubr.bf16.gmra.mrb[0].mxu0 %v5925
      %v6081 = vpop.f32.mrb[0].mxu0
      %v6082 = vadd.f32 0.0, %v6081
      %v6083 = vpop.f32.mrb[0].mxu0
      %v6084 = vpop.f32.mrb[0].mxu0
      %v6085 = vadd.f32 0.0, %v6084
      %v6086 = vpop.f32.mrb[0].mxu0
      %6087 = vdwg.mxu0
      %v6088 = vld [vmem:[#allocation4] sm:$0xff]
      %v6089 = vld [vmem:[#allocation4 + $0x8] sm:$0xff]
      %v6090 = vld [vmem:[#allocation4 + $0x10] sm:$0xff]
      %v6091 = vld [vmem:[#allocation4 + $0x18] sm:$0xff]
      %v6092 = vld [vmem:[#allocation4 + $0x20] sm:$0xff]
      %v6093 = vld [vmem:[#allocation4 + $0x28] sm:$0xff]
      %v6094 = vld [vmem:[#allocation4 + $0x30] sm:$0xff]
      %v6095 = vld [vmem:[#allocation4 + $0x38] sm:$0xff]
      %v6096 = vld [vmem:[#allocation4 + $0x40] sm:$0xff]
      %v6097 = vld [vmem:[#allocation4 + $0x48] sm:$0xff]
      %v6098 = vld [vmem:[#allocation4 + $0x50] sm:$0xff]
      %v6099 = vld [vmem:[#allocation4 + $0x58] sm:$0xff]
      %v6100 = vld [vmem:[#allocation4 + $0x60] sm:$0xff]
      %v6101 = vld [vmem:[#allocation4 + $0x68] sm:$0xff]
      %v6102 = vld [vmem:[#allocation4 + $0x70] sm:$0xff]
      %v6103 = vld [vmem:[#allocation4 + $0x78] sm:$0xff]
      %v6104 = vld [vmem:[#allocation4 + $0x80] sm:$0xff]
      %v6105 = vld [vmem:[#allocation4 + $0x88] sm:$0xff]
      %v6106 = vld [vmem:[#allocation4 + $0x90] sm:$0xff]
      %v6107 = vld [vmem:[#allocation4 + $0x98] sm:$0xff]
      %v6108 = vld [vmem:[#allocation4 + $0xa0] sm:$0xff]
      %v6109 = vld [vmem:[#allocation4 + $0xa8] sm:$0xff]
      %v6110 = vld [vmem:[#allocation4 + $0xb0] sm:$0xff]
      %v6111 = vld [vmem:[#allocation4 + $0xb8] sm:$0xff]
      %v6112 = vld [vmem:[#allocation4 + $0xc0] sm:$0xff]
      %v6113 = vld [vmem:[#allocation4 + $0xc8] sm:$0xff]
      %v6114 = vld [vmem:[#allocation4 + $0xd0] sm:$0xff]
      %v6115 = vld [vmem:[#allocation4 + $0xd8] sm:$0xff]
      %v6116 = vld [vmem:[#allocation4 + $0xe0] sm:$0xff]
      %v6117 = vld [vmem:[#allocation4 + $0xe8] sm:$0xff]
      %v6118 = vld [vmem:[#allocation4 + $0xf0] sm:$0xff]
      %v6119 = vld [vmem:[#allocation4 + $0xf8] sm:$0xff]
      %v6120 = vadd.f32 %v6088, %v5962
      %v6121 = vadd.f32 %v6089, %v5965
      %v6122 = vadd.f32 %v6090, %v5970
      %v6123 = vadd.f32 %v6091, %v5973
      %v6124 = vadd.f32 %v6092, %v5978
      %v6125 = vadd.f32 %v6093, %v5981
      %v6126 = vadd.f32 %v6094, %v5986
      %v6127 = vadd.f32 %v6095, %v5989
      %v6128 = vadd.f32 %v6096, %v5994
      %v6129 = vadd.f32 %v6097, %v5997
      %v6130 = vadd.f32 %v6098, %v6002
      %v6131 = vadd.f32 %v6099, %v6005
      %v6132 = vadd.f32 %v6100, %v6010
      %v6133 = vadd.f32 %v6101, %v6013
      %v6134 = vadd.f32 %v6102, %v6018
      %v6135 = vadd.f32 %v6103, %v6021
      %v6136 = vadd.f32 %v6104, %v6026
      %v6137 = vadd.f32 %v6105, %v6029
      %v6138 = vadd.f32 %v6106, %v6034
      %v6139 = vadd.f32 %v6107, %v6037
      %v6140 = vadd.f32 %v6108, %v6042
      %v6141 = vadd.f32 %v6109, %v6045
      %v6142 = vadd.f32 %v6110, %v6050
      %v6143 = vadd.f32 %v6111, %v6053
      %v6144 = vadd.f32 %v6112, %v6058
      %v6145 = vadd.f32 %v6113, %v6061
      %v6146 = vadd.f32 %v6114, %v6066
      %v6147 = vadd.f32 %v6115, %v6069
      %v6148 = vadd.f32 %v6116, %v6074
      %v6149 = vadd.f32 %v6117, %v6077
      %v6150 = vadd.f32 %v6118, %v6082
      %v6151 = vadd.f32 %v6119, %v6085
      %6152 = vst.msk [vmem:[#allocation4] sm:$0xff] %vm1490, %v6120
      %6153 = vst.msk [vmem:[#allocation4 + $0x8] sm:$0xff] %vm1490, %v6121
      %6154 = vst.msk [vmem:[#allocation4 + $0x10] sm:$0xff] %vm1490, %v6122
      %6155 = vst.msk [vmem:[#allocation4 + $0x18] sm:$0xff] %vm1490, %v6123
      %6156 = vst.msk [vmem:[#allocation4 + $0x20] sm:$0xff] %vm1490, %v6124
      %6157 = vst.msk [vmem:[#allocation4 + $0x28] sm:$0xff] %vm1490, %v6125
      %6158 = vst.msk [vmem:[#allocation4 + $0x30] sm:$0xff] %vm1490, %v6126
      %6159 = vst.msk [vmem:[#allocation4 + $0x38] sm:$0xff] %vm1490, %v6127
      %6160 = vst.msk [vmem:[#allocation4 + $0x40] sm:$0xff] %vm1490, %v6128
      %6161 = vst.msk [vmem:[#allocation4 + $0x48] sm:$0xff] %vm1490, %v6129
      %6162 = vst.msk [vmem:[#allocation4 + $0x50] sm:$0xff] %vm1490, %v6130
      %6163 = vst.msk [vmem:[#allocation4 + $0x58] sm:$0xff] %vm1490, %v6131
      %6164 = vst.msk [vmem:[#allocation4 + $0x60] sm:$0xff] %vm1490, %v6132
      %6165 = vst.msk [vmem:[#allocation4 + $0x68] sm:$0xff] %vm1490, %v6133
      %6166 = vst.msk [vmem:[#allocation4 + $0x70] sm:$0xff] %vm1490, %v6134
      %6167 = vst.msk [vmem:[#allocation4 + $0x78] sm:$0xff] %vm1490, %v6135
      %6168 = vst.msk [vmem:[#allocation4 + $0x80] sm:$0xff] %vm1490, %v6136
      %6169 = vst.msk [vmem:[#allocation4 + $0x88] sm:$0xff] %vm1490, %v6137
      %6170 = vst.msk [vmem:[#allocation4 + $0x90] sm:$0xff] %vm1490, %v6138
      %6171 = vst.msk [vmem:[#allocation4 + $0x98] sm:$0xff] %vm1490, %v6139
      %6172 = vst.msk [vmem:[#allocation4 + $0xa0] sm:$0xff] %vm1490, %v6140
      %6173 = vst.msk [vmem:[#allocation4 + $0xa8] sm:$0xff] %vm1490, %v6141
      %6174 = vst.msk [vmem:[#allocation4 + $0xb0] sm:$0xff] %vm1490, %v6142
      %6175 = vst.msk [vmem:[#allocation4 + $0xb8] sm:$0xff] %vm1490, %v6143
      %6176 = vst.msk [vmem:[#allocation4 + $0xc0] sm:$0xff] %vm1490, %v6144
      %6177 = vst.msk [vmem:[#allocation4 + $0xc8] sm:$0xff] %vm1490, %v6145
      %6178 = vst.msk [vmem:[#allocation4 + $0xd0] sm:$0xff] %vm1490, %v6146
      %6179 = vst.msk [vmem:[#allocation4 + $0xd8] sm:$0xff] %vm1490, %v6147
      %6180 = vst.msk [vmem:[#allocation4 + $0xe0] sm:$0xff] %vm1490, %v6148
      %6181 = vst.msk [vmem:[#allocation4 + $0xe8] sm:$0xff] %vm1490, %v6149
      %6182 = vst.msk [vmem:[#allocation4 + $0xf0] sm:$0xff] %vm1490, %v6150
      %6183 = vst.msk [vmem:[#allocation4 + $0xf8] sm:$0xff] %vm1490, %v6151
      %v6184 = vld [vmem:[#allocation3 + $0x2] sm:$0xff]
      %v6185 = vld [vmem:[#allocation3 + $0xa] sm:$0xff]
      %v6186 = vld [vmem:[#allocation3 + $0x1a] sm:$0xff]
      %v6187 = vld [vmem:[#allocation3 + $0x22] sm:$0xff]
      %v6188 = vld [vmem:[#allocation3 + $0x32] sm:$0xff]
      %v6189 = vld [vmem:[#allocation3 + $0x3a] sm:$0xff]
      %v6190 = vld [vmem:[#allocation3 + $0x4a] sm:$0xff]
      %v6191 = vld [vmem:[#allocation3 + $0x52] sm:$0xff]
      %v6192 = vld [vmem:[#allocation3 + $0x62] sm:$0xff]
      %v6193 = vld [vmem:[#allocation3 + $0x6a] sm:$0xff]
      %v6194 = vld [vmem:[#allocation3 + $0x7a] sm:$0xff]
      %v6195 = vld [vmem:[#allocation3 + $0x82] sm:$0xff]
      %v6196 = vld [vmem:[#allocation3 + $0x92] sm:$0xff]
      %v6197 = vld [vmem:[#allocation3 + $0x9a] sm:$0xff]
      %v6198 = vld [vmem:[#allocation3 + $0xaa] sm:$0xff]
      %v6199 = vld [vmem:[#allocation3 + $0xb2] sm:$0xff]
      %v6200 = vld [vmem:[#allocation3 + $0xc2] sm:$0xff]
      %v6201 = vld [vmem:[#allocation3 + $0xca] sm:$0xff]
      %v6202 = vld [vmem:[#allocation3 + $0xda] sm:$0xff]
      %v6203 = vld [vmem:[#allocation3 + $0xe2] sm:$0xff]
      %v6204 = vld [vmem:[#allocation3 + $0xf2] sm:$0xff]
      %v6205 = vld [vmem:[#allocation3 + $0xfa] sm:$0xff]
      %v6206 = vld [vmem:[#allocation3 + $0x10a] sm:$0xff]
      %v6207 = vld [vmem:[#allocation3 + $0x112] sm:$0xff]
      %v6208 = vld [vmem:[#allocation3 + $0x122] sm:$0xff]
      %v6209 = vld [vmem:[#allocation3 + $0x12a] sm:$0xff]
      %v6210 = vld [vmem:[#allocation3 + $0x13a] sm:$0xff]
      %v6211 = vld [vmem:[#allocation3 + $0x142] sm:$0xff]
      %v6212 = vld [vmem:[#allocation3 + $0x152] sm:$0xff]
      %v6213 = vld [vmem:[#allocation3 + $0x15a] sm:$0xff]
      %v6214 = vld [vmem:[#allocation3 + $0x16a] sm:$0xff]
      %v6215 = vld [vmem:[#allocation3 + $0x172] sm:$0xff]
      %v6216 = vpack.c.bf16 %v6185, %v6184
      %v6217 = vpack.c.bf16 %v6187, %v6186
      %v6218 = vpack.c.bf16 %v6189, %v6188
      %v6219 = vpack.c.bf16 %v6191, %v6190
      %v6220 = vpack.c.bf16 %v6193, %v6192
      %v6221 = vpack.c.bf16 %v6195, %v6194
      %v6222 = vpack.c.bf16 %v6197, %v6196
      %v6223 = vpack.c.bf16 %v6199, %v6198
      %v6224 = vpack.c.bf16 %v6201, %v6200
      %v6225 = vpack.c.bf16 %v6203, %v6202
      %v6226 = vpack.c.bf16 %v6205, %v6204
      %v6227 = vpack.c.bf16 %v6207, %v6206
      %v6228 = vpack.c.bf16 %v6209, %v6208
      %v6229 = vpack.c.bf16 %v6211, %v6210
      %v6230 = vpack.c.bf16 %v6213, %v6212
      %v6231 = vpack.c.bf16 %v6215, %v6214
      %s6232 = scalar_lea.vmem %s11, 32
      %v6233 = vld [vmem:[%s6232] sm:$0xf]
      %v6234 = vld [vmem:[%s6232 + $0x4] sm:$0xf]
      %v6235 = vld [vmem:[%s6232 + $0x8] sm:$0xf]
      %v6236 = vld [vmem:[%s6232 + $0xc] sm:$0xf]
      %v6241 = vunpack.c.l.b16 %v6233
      %v6242 = vunpack.c.l.b16 %v6234
      %v6243 = vunpack.c.l.b16 %v6235
      %v6244 = vunpack.c.l.b16 %v6236
      %v6245 = vpack.c.b16 %v6242, %v6241
      %v6246 = vpack.c.b16 %v6244, %v6243
      %v6250 = vsel %vm1490, %v6216, 0
      %v6253 = vsel %vm1490, %v6217, 0
      %v6256 = vsel %vm1490, %v6218, 0
      %v6259 = vsel %vm1490, %v6219, 0
      %v6262 = vsel %vm1490, %v6220, 0
      %v6265 = vsel %vm1490, %v6221, 0
      %v6268 = vsel %vm1490, %v6222, 0
      %v6271 = vsel %vm1490, %v6223, 0
      %v6274 = vsel %vm1490, %v6224, 0
      %v6277 = vsel %vm1490, %v6225, 0
      %v6280 = vsel %vm1490, %v6226, 0
      %v6283 = vsel %vm1490, %v6227, 0
      %v6286 = vsel %vm1490, %v6228, 0
      %v6289 = vsel %vm1490, %v6229, 0
      %v6292 = vsel %vm1490, %v6230, 0
      %v6295 = vsel %vm1490, %v6231, 0
      %6297 = vmatprep.subr.bf16.mxu0 0
      %6298 = vmatpush1.bf16.msra.mxu0 %v6245
      %6299 = vmatprep.subr.bf16.mxu0 0
      %6300 = vmatpush1.bf16.msra.mxu0 %v6246
      %6301 = vmatprep.subr.bf16.mxu0 0
      %6302 = vmatpush1.bf16.msra.mxu0 0
      %6303 = vmatprep.subr.bf16.mxu0 0
      %6304 = vmatpush1.bf16.msra.mxu0 0
      %6305 = vmatprep.subr.bf16.mxu0 0
      %6306 = vmatpush1.bf16.msra.mxu0 0
      %6307 = vmatprep.subr.bf16.mxu0 0
      %6308 = vmatpush1.bf16.msra.mxu0 0
      %6309 = vmatprep.subr.bf16.mxu0 0
      %6310 = vmatpush1.bf16.msra.mxu0 0
      %6311 = vmatprep.subr.bf16.mxu0 0
      %6312 = vmatpush1.bf16.msra.mxu0 0
      %6313 = vmatprep.subr.bf16.mxu0 0
      %6314 = vmatpush1.bf16.msra.mxu0 0
      %6315 = vmatprep.subr.bf16.mxu0 0
      %6316 = vmatpush1.bf16.msra.mxu0 0
      %6317 = vmatprep.subr.bf16.mxu0 0
      %6318 = vmatpush1.bf16.msra.mxu0 0
      %6319 = vmatprep.subr.bf16.mxu0 0
      %6320 = vmatpush1.bf16.msra.mxu0 0
      %6321 = vmatprep.subr.bf16.mxu0 0
      %6322 = vmatpush1.bf16.msra.mxu0 0
      %6323 = vmatprep.subr.bf16.mxu0 0
      %6324 = vmatpush1.bf16.msra.mxu0 0
      %6325 = vmatprep.subr.bf16.mxu0 0
      %6326 = vmatpush1.bf16.msra.mxu0 0
      %6327 = vmatprep.subr.bf16.mxu0 0
      %6328 = vmatpush1.bf16.msra.mxu0 0
      %6329 = vmatprep.mubr.bf16.mxu0 0
      %6330 = vmatmul.mubr.bf16.gmra.mrb[0].mxu0 %v6250
      %v6331 = vpop.f32.mrb[0].mxu0
      %v6332 = vadd.f32 0.0, %v6331
      %v6333 = vpop.f32.mrb[0].mxu0
      %v6334 = vpop.f32.mrb[0].mxu0
      %v6335 = vadd.f32 0.0, %v6334
      %v6336 = vpop.f32.mrb[0].mxu0
      %6337 = vmatprep.mubr.bf16.mxu0 0
      %6338 = vmatmul.mubr.bf16.gmra.mrb[0].mxu0 %v6253
      %v6339 = vpop.f32.mrb[0].mxu0
      %v6340 = vadd.f32 0.0, %v6339
      %v6341 = vpop.f32.mrb[0].mxu0
      %v6342 = vpop.f32.mrb[0].mxu0
      %v6343 = vadd.f32 0.0, %v6342
      %v6344 = vpop.f32.mrb[0].mxu0
      %6345 = vmatprep.mubr.bf16.mxu0 0
      %6346 = vmatmul.mubr.bf16.gmra.mrb[0].mxu0 %v6256
      %v6347 = vpop.f32.mrb[0].mxu0
      %v6348 = vadd.f32 0.0, %v6347
      %v6349 = vpop.f32.mrb[0].mxu0
      %v6350 = vpop.f32.mrb[0].mxu0
      %v6351 = vadd.f32 0.0, %v6350
      %v6352 = vpop.f32.mrb[0].mxu0
      %6353 = vmatprep.mubr.bf16.mxu0 0
      %6354 = vmatmul.mubr.bf16.gmra.mrb[0].mxu0 %v6259
      %v6355 = vpop.f32.mrb[0].mxu0
      %v6356 = vadd.f32 0.0, %v6355
      %v6357 = vpop.f32.mrb[0].mxu0
      %v6358 = vpop.f32.mrb[0].mxu0
      %v6359 = vadd.f32 0.0, %v6358
      %v6360 = vpop.f32.mrb[0].mxu0
      %6361 = vmatprep.mubr.bf16.mxu0 0
      %6362 = vmatmul.mubr.bf16.gmra.mrb[0].mxu0 %v6262
      %v6363 = vpop.f32.mrb[0].mxu0
      %v6364 = vadd.f32 0.0, %v6363
      %v6365 = vpop.f32.mrb[0].mxu0
      %v6366 = vpop.f32.mrb[0].mxu0
      %v6367 = vadd.f32 0.0, %v6366
      %v6368 = vpop.f32.mrb[0].mxu0
      %6369 = vmatprep.mubr.bf16.mxu0 0
      %6370 = vmatmul.mubr.bf16.gmra.mrb[0].mxu0 %v6265
      %v6371 = vpop.f32.mrb[0].mxu0
      %v6372 = vadd.f32 0.0, %v6371
      %v6373 = vpop.f32.mrb[0].mxu0
      %v6374 = vpop.f32.mrb[0].mxu0
      %v6375 = vadd.f32 0.0, %v6374
      %v6376 = vpop.f32.mrb[0].mxu0
      %6377 = vmatprep.mubr.bf16.mxu0 0
      %6378 = vmatmul.mubr.bf16.gmra.mrb[0].mxu0 %v6268
      %v6379 = vpop.f32.mrb[0].mxu0
      %v6380 = vadd.f32 0.0, %v6379
      %v6381 = vpop.f32.mrb[0].mxu0
      %v6382 = vpop.f32.mrb[0].mxu0
      %v6383 = vadd.f32 0.0, %v6382
      %v6384 = vpop.f32.mrb[0].mxu0
      %6385 = vmatprep.mubr.bf16.mxu0 0
      %6386 = vmatmul.mubr.bf16.gmra.mrb[0].mxu0 %v6271
      %v6387 = vpop.f32.mrb[0].mxu0
      %v6388 = vadd.f32 0.0, %v6387
      %v6389 = vpop.f32.mrb[0].mxu0
      %v6390 = vpop.f32.mrb[0].mxu0
      %v6391 = vadd.f32 0.0, %v6390
      %v6392 = vpop.f32.mrb[0].mxu0
      %6393 = vmatprep.mubr.bf16.mxu0 0
      %6394 = vmatmul.mubr.bf16.gmra.mrb[0].mxu0 %v6274
      %v6395 = vpop.f32.mrb[0].mxu0
      %v6396 = vadd.f32 0.0, %v6395
      %v6397 = vpop.f32.mrb[0].mxu0
      %v6398 = vpop.f32.mrb[0].mxu0
      %v6399 = vadd.f32 0.0, %v6398
      %v6400 = vpop.f32.mrb[0].mxu0
      %6401 = vmatprep.mubr.bf16.mxu0 0
      %6402 = vmatmul.mubr.bf16.gmra.mrb[0].mxu0 %v6277
      %v6403 = vpop.f32.mrb[0].mxu0
      %v6404 = vadd.f32 0.0, %v6403
      %v6405 = vpop.f32.mrb[0].mxu0
      %v6406 = vpop.f32.mrb[0].mxu0
      %v6407 = vadd.f32 0.0, %v6406
      %v6408 = vpop.f32.mrb[0].mxu0
      %6409 = vmatprep.mubr.bf16.mxu0 0
      %6410 = vmatmul.mubr.bf16.gmra.mrb[0].mxu0 %v6280
      %v6411 = vpop.f32.mrb[0].mxu0
      %v6412 = vadd.f32 0.0, %v6411
      %v6413 = vpop.f32.mrb[0].mxu0
      %v6414 = vpop.f32.mrb[0].mxu0
      %v6415 = vadd.f32 0.0, %v6414
      %v6416 = vpop.f32.mrb[0].mxu0
      %6417 = vmatprep.mubr.bf16.mxu0 0
      %6418 = vmatmul.mubr.bf16.gmra.mrb[0].mxu0 %v6283
      %v6419 = vpop.f32.mrb[0].mxu0
      %v6420 = vadd.f32 0.0, %v6419
      %v6421 = vpop.f32.mrb[0].mxu0
      %v6422 = vpop.f32.mrb[0].mxu0
      %v6423 = vadd.f32 0.0, %v6422
      %v6424 = vpop.f32.mrb[0].mxu0
      %6425 = vmatprep.mubr.bf16.mxu0 0
      %6426 = vmatmul.mubr.bf16.gmra.mrb[0].mxu0 %v6286
      %v6427 = vpop.f32.mrb[0].mxu0
      %v6428 = vadd.f32 0.0, %v6427
      %v6429 = vpop.f32.mrb[0].mxu0
      %v6430 = vpop.f32.mrb[0].mxu0
      %v6431 = vadd.f32 0.0, %v6430
      %v6432 = vpop.f32.mrb[0].mxu0
      %6433 = vmatprep.mubr.bf16.mxu0 0
      %6434 = vmatmul.mubr.bf16.gmra.mrb[0].mxu0 %v6289
      %v6435 = vpop.f32.mrb[0].mxu0
      %v6436 = vadd.f32 0.0, %v6435
      %v6437 = vpop.f32.mrb[0].mxu0
      %v6438 = vpop.f32.mrb[0].mxu0
      %v6439 = vadd.f32 0.0, %v6438
      %v6440 = vpop.f32.mrb[0].mxu0
      %6441 = vmatprep.mubr.bf16.mxu0 0
      %6442 = vmatmul.mubr.bf16.gmra.mrb[0].mxu0 %v6292
      %v6443 = vpop.f32.mrb[0].mxu0
      %v6444 = vadd.f32 0.0, %v6443
      %v6445 = vpop.f32.mrb[0].mxu0
      %v6446 = vpop.f32.mrb[0].mxu0
      %v6447 = vadd.f32 0.0, %v6446
      %v6448 = vpop.f32.mrb[0].mxu0
      %6449 = vmatprep.mubr.bf16.mxu0 0
      %6450 = vmatmul.mubr.bf16.gmra.mrb[0].mxu0 %v6295
      %v6451 = vpop.f32.mrb[0].mxu0
      %v6452 = vadd.f32 0.0, %v6451
      %v6453 = vpop.f32.mrb[0].mxu0
      %v6454 = vpop.f32.mrb[0].mxu0
      %v6455 = vadd.f32 0.0, %v6454
      %v6456 = vpop.f32.mrb[0].mxu0
      %6457 = vdwg.mxu0
      %v6458 = vld [vmem:[#allocation4] sm:$0xff]
      %v6459 = vld [vmem:[#allocation4 + $0x8] sm:$0xff]
      %v6460 = vld [vmem:[#allocation4 + $0x10] sm:$0xff]
      %v6461 = vld [vmem:[#allocation4 + $0x18] sm:$0xff]
      %v6462 = vld [vmem:[#allocation4 + $0x20] sm:$0xff]
      %v6463 = vld [vmem:[#allocation4 + $0x28] sm:$0xff]
      %v6464 = vld [vmem:[#allocation4 + $0x30] sm:$0xff]
      %v6465 = vld [vmem:[#allocation4 + $0x38] sm:$0xff]
      %v6466 = vld [vmem:[#allocation4 + $0x40] sm:$0xff]
      %v6467 = vld [vmem:[#allocation4 + $0x48] sm:$0xff]
      %v6468 = vld [vmem:[#allocation4 + $0x50] sm:$0xff]
      %v6469 = vld [vmem:[#allocation4 + $0x58] sm:$0xff]
      %v6470 = vld [vmem:[#allocation4 + $0x60] sm:$0xff]
      %v6471 = vld [vmem:[#allocation4 + $0x68] sm:$0xff]
      %v6472 = vld [vmem:[#allocation4 + $0x70] sm:$0xff]
      %v6473 = vld [vmem:[#allocation4 + $0x78] sm:$0xff]
      %v6474 = vld [vmem:[#allocation4 + $0x80] sm:$0xff]
      %v6475 = vld [vmem:[#allocation4 + $0x88] sm:$0xff]
      %v6476 = vld [vmem:[#allocation4 + $0x90] sm:$0xff]
      %v6477 = vld [vmem:[#allocation4 + $0x98] sm:$0xff]
      %v6478 = vld [vmem:[#allocation4 + $0xa0] sm:$0xff]
      %v6479 = vld [vmem:[#allocation4 + $0xa8] sm:$0xff]
      %v6480 = vld [vmem:[#allocation4 + $0xb0] sm:$0xff]
      %v6481 = vld [vmem:[#allocation4 + $0xb8] sm:$0xff]
      %v6482 = vld [vmem:[#allocation4 + $0xc0] sm:$0xff]
      %v6483 = vld [vmem:[#allocation4 + $0xc8] sm:$0xff]
      %v6484 = vld [vmem:[#allocation4 + $0xd0] sm:$0xff]
      %v6485 = vld [vmem:[#allocation4 + $0xd8] sm:$0xff]
      %v6486 = vld [vmem:[#allocation4 + $0xe0] sm:$0xff]
      %v6487 = vld [vmem:[#allocation4 + $0xe8] sm:$0xff]
      %v6488 = vld [vmem:[#allocation4 + $0xf0] sm:$0xff]
      %v6489 = vld [vmem:[#allocation4 + $0xf8] sm:$0xff]
      %v6490 = vadd.f32 %v6458, %v6332
      %v6491 = vadd.f32 %v6459, %v6335
      %v6492 = vadd.f32 %v6460, %v6340
      %v6493 = vadd.f32 %v6461, %v6343
      %v6494 = vadd.f32 %v6462, %v6348
      %v6495 = vadd.f32 %v6463, %v6351
      %v6496 = vadd.f32 %v6464, %v6356
      %v6497 = vadd.f32 %v6465, %v6359
      %v6498 = vadd.f32 %v6466, %v6364
      %v6499 = vadd.f32 %v6467, %v6367
      %v6500 = vadd.f32 %v6468, %v6372
      %v6501 = vadd.f32 %v6469, %v6375
      %v6502 = vadd.f32 %v6470, %v6380
      %v6503 = vadd.f32 %v6471, %v6383
      %v6504 = vadd.f32 %v6472, %v6388
      %v6505 = vadd.f32 %v6473, %v6391
      %v6506 = vadd.f32 %v6474, %v6396
      %v6507 = vadd.f32 %v6475, %v6399
      %v6508 = vadd.f32 %v6476, %v6404
      %v6509 = vadd.f32 %v6477, %v6407
      %v6510 = vadd.f32 %v6478, %v6412
      %v6511 = vadd.f32 %v6479, %v6415
      %v6512 = vadd.f32 %v6480, %v6420
      %v6513 = vadd.f32 %v6481, %v6423
      %v6514 = vadd.f32 %v6482, %v6428
      %v6515 = vadd.f32 %v6483, %v6431
      %v6516 = vadd.f32 %v6484, %v6436
      %v6517 = vadd.f32 %v6485, %v6439
      %v6518 = vadd.f32 %v6486, %v6444
      %v6519 = vadd.f32 %v6487, %v6447
      %v6520 = vadd.f32 %v6488, %v6452
      %v6521 = vadd.f32 %v6489, %v6455
      %6522 = vst.msk [vmem:[#allocation4] sm:$0xff] %vm1490, %v6490
      %6523 = vst.msk [vmem:[#allocation4 + $0x8] sm:$0xff] %vm1490, %v6491
      %6524 = vst.msk [vmem:[#allocation4 + $0x10] sm:$0xff] %vm1490, %v6492
      %6525 = vst.msk [vmem:[#allocation4 + $0x18] sm:$0xff] %vm1490, %v6493
      %6526 = vst.msk [vmem:[#allocation4 + $0x20] sm:$0xff] %vm1490, %v6494
      %6527 = vst.msk [vmem:[#allocation4 + $0x28] sm:$0xff] %vm1490, %v6495
      %6528 = vst.msk [vmem:[#allocation4 + $0x30] sm:$0xff] %vm1490, %v6496
      %6529 = vst.msk [vmem:[#allocation4 + $0x38] sm:$0xff] %vm1490, %v6497
      %6530 = vst.msk [vmem:[#allocation4 + $0x40] sm:$0xff] %vm1490, %v6498
      %6531 = vst.msk [vmem:[#allocation4 + $0x48] sm:$0xff] %vm1490, %v6499
      %6532 = vst.msk [vmem:[#allocation4 + $0x50] sm:$0xff] %vm1490, %v6500
      %6533 = vst.msk [vmem:[#allocation4 + $0x58] sm:$0xff] %vm1490, %v6501
      %6534 = vst.msk [vmem:[#allocation4 + $0x60] sm:$0xff] %vm1490, %v6502
      %6535 = vst.msk [vmem:[#allocation4 + $0x68] sm:$0xff] %vm1490, %v6503
      %6536 = vst.msk [vmem:[#allocation4 + $0x70] sm:$0xff] %vm1490, %v6504
      %6537 = vst.msk [vmem:[#allocation4 + $0x78] sm:$0xff] %vm1490, %v6505
      %6538 = vst.msk [vmem:[#allocation4 + $0x80] sm:$0xff] %vm1490, %v6506
      %6539 = vst.msk [vmem:[#allocation4 + $0x88] sm:$0xff] %vm1490, %v6507
      %6540 = vst.msk [vmem:[#allocation4 + $0x90] sm:$0xff] %vm1490, %v6508
      %6541 = vst.msk [vmem:[#allocation4 + $0x98] sm:$0xff] %vm1490, %v6509
      %6542 = vst.msk [vmem:[#allocation4 + $0xa0] sm:$0xff] %vm1490, %v6510
      %6543 = vst.msk [vmem:[#allocation4 + $0xa8] sm:$0xff] %vm1490, %v6511
      %6544 = vst.msk [vmem:[#allocation4 + $0xb0] sm:$0xff] %vm1490, %v6512
      %6545 = vst.msk [vmem:[#allocation4 + $0xb8] sm:$0xff] %vm1490, %v6513
      %6546 = vst.msk [vmem:[#allocation4 + $0xc0] sm:$0xff] %vm1490, %v6514
      %6547 = vst.msk [vmem:[#allocation4 + $0xc8] sm:$0xff] %vm1490, %v6515
      %6548 = vst.msk [vmem:[#allocation4 + $0xd0] sm:$0xff] %vm1490, %v6516
      %6549 = vst.msk [vmem:[#allocation4 + $0xd8] sm:$0xff] %vm1490, %v6517
      %6550 = vst.msk [vmem:[#allocation4 + $0xe0] sm:$0xff] %vm1490, %v6518
      %6551 = vst.msk [vmem:[#allocation4 + $0xe8] sm:$0xff] %vm1490, %v6519
      %6552 = vst.msk [vmem:[#allocation4 + $0xf0] sm:$0xff] %vm1490, %v6520
      %6553 = vst.msk [vmem:[#allocation4 + $0xf8] sm:$0xff] %vm1490, %v6521
      %v6554 = vld [vmem:[%s5380] sm:$0xff]
      %v6555 = vld [vmem:[%s5380 + $0x8] sm:$0xff]
      %v6556 = vld [vmem:[%s5380 + $0x18] sm:$0xff]
      %v6557 = vld [vmem:[%s5380 + $0x20] sm:$0xff]
      %v6558 = vld [vmem:[%s5380 + $0x30] sm:$0xff]
      %v6559 = vld [vmem:[%s5380 + $0x38] sm:$0xff]
      %v6560 = vld [vmem:[%s5380 + $0x48] sm:$0xff]
      %v6561 = vld [vmem:[%s5380 + $0x50] sm:$0xff]
      %v6562 = vld [vmem:[%s5380 + $0x60] sm:$0xff]
      %v6563 = vld [vmem:[%s5380 + $0x68] sm:$0xff]
      %v6564 = vld [vmem:[%s5380 + $0x78] sm:$0xff]
      %v6565 = vld [vmem:[%s5380 + $0x80] sm:$0xff]
      %v6566 = vld [vmem:[%s5380 + $0x90] sm:$0xff]
      %v6567 = vld [vmem:[%s5380 + $0x98] sm:$0xff]
      %v6568 = vld [vmem:[%s5380 + $0xa8] sm:$0xff]
      %v6569 = vld [vmem:[%s5380 + $0xb0] sm:$0xff]
      %v6570 = vld [vmem:[%s5380 + $0xc0] sm:$0xff]
      %v6571 = vld [vmem:[%s5380 + $0xc8] sm:$0xff]
      %v6572 = vld [vmem:[%s5380 + $0xd8] sm:$0xff]
      %v6573 = vld [vmem:[%s5380 + $0xe0] sm:$0xff]
      %v6574 = vld [vmem:[%s5380 + $0xf0] sm:$0xff]
      %v6575 = vld [vmem:[%s5380 + $0xf8] sm:$0xff]
      %v6576 = vld [vmem:[%s5380 + $0x108] sm:$0xff]
      %v6577 = vld [vmem:[%s5380 + $0x110] sm:$0xff]
      %v6578 = vld [vmem:[%s5380 + $0x120] sm:$0xff]
      %v6579 = vld [vmem:[%s5380 + $0x128] sm:$0xff]
      %v6580 = vld [vmem:[%s5380 + $0x138] sm:$0xff]
      %v6581 = vld [vmem:[%s5380 + $0x140] sm:$0xff]
      %v6582 = vld [vmem:[%s5380 + $0x150] sm:$0xff]
      %v6583 = vld [vmem:[%s5380 + $0x158] sm:$0xff]
      %v6584 = vld [vmem:[%s5380 + $0x168] sm:$0xff]
      %v6585 = vld [vmem:[%s5380 + $0x170] sm:$0xff]
      %v6586 = vpack.c.bf16 %v6555, %v6554
      %v6587 = vpack.c.bf16 %v6557, %v6556
      %v6588 = vpack.c.bf16 %v6559, %v6558
      %v6589 = vpack.c.bf16 %v6561, %v6560
      %v6590 = vpack.c.bf16 %v6563, %v6562
      %v6591 = vpack.c.bf16 %v6565, %v6564
      %v6592 = vpack.c.bf16 %v6567, %v6566
      %v6593 = vpack.c.bf16 %v6569, %v6568
      %v6594 = vpack.c.bf16 %v6571, %v6570
      %v6595 = vpack.c.bf16 %v6573, %v6572
      %v6596 = vpack.c.bf16 %v6575, %v6574
      %v6597 = vpack.c.bf16 %v6577, %v6576
      %v6598 = vpack.c.bf16 %v6579, %v6578
      %v6599 = vpack.c.bf16 %v6581, %v6580
      %v6600 = vpack.c.bf16 %v6583, %v6582
      %v6601 = vpack.c.bf16 %v6585, %v6584
      %s6602 = scalar_lea.vmem %s11, 48
      %v6603 = vld [vmem:[%s6602] sm:$0xf]
      %v6604 = vld [vmem:[%s6602 + $0x4] sm:$0xf]
      %v6605 = vld [vmem:[%s6602 + $0x8] sm:$0xf]
      %v6606 = vld [vmem:[%s6602 + $0xc] sm:$0xf]
      %v6611 = vunpack.c.l.b16 %v6603
      %v6612 = vunpack.c.l.b16 %v6604
      %v6613 = vunpack.c.l.b16 %v6605
      %v6614 = vunpack.c.l.b16 %v6606
      %v6615 = vpack.c.b16 %v6612, %v6611
      %v6616 = vpack.c.b16 %v6614, %v6613
      %v6620 = vsel %vm1490, %v6586, 0
      %v6623 = vsel %vm1490, %v6587, 0
      %v6626 = vsel %vm1490, %v6588, 0
      %v6629 = vsel %vm1490, %v6589, 0
      %v6632 = vsel %vm1490, %v6590, 0
      %v6635 = vsel %vm1490, %v6591, 0
      %v6638 = vsel %vm1490, %v6592, 0
      %v6641 = vsel %vm1490, %v6593, 0
      %v6644 = vsel %vm1490, %v6594, 0
      %v6647 = vsel %vm1490, %v6595, 0
      %v6650 = vsel %vm1490, %v6596, 0
      %v6653 = vsel %vm1490, %v6597, 0
      %v6656 = vsel %vm1490, %v6598, 0
      %v6659 = vsel %vm1490, %v6599, 0
      %v6662 = vsel %vm1490, %v6600, 0
      %v6665 = vsel %vm1490, %v6601, 0
      %6667 = vmatprep.subr.bf16.mxu0 0
      %6668 = vmatpush1.bf16.msra.mxu0 %v6615
      %6669 = vmatprep.subr.bf16.mxu0 0
      %6670 = vmatpush1.bf16.msra.mxu0 %v6616
      %6671 = vmatprep.subr.bf16.mxu0 0
      %6672 = vmatpush1.bf16.msra.mxu0 0
      %6673 = vmatprep.subr.bf16.mxu0 0
      %6674 = vmatpush1.bf16.msra.mxu0 0
      %6675 = vmatprep.subr.bf16.mxu0 0
      %6676 = vmatpush1.bf16.msra.mxu0 0
      %6677 = vmatprep.subr.bf16.mxu0 0
      %6678 = vmatpush1.bf16.msra.mxu0 0
      %6679 = vmatprep.subr.bf16.mxu0 0
      %6680 = vmatpush1.bf16.msra.mxu0 0
      %6681 = vmatprep.subr.bf16.mxu0 0
      %6682 = vmatpush1.bf16.msra.mxu0 0
      %6683 = vmatprep.subr.bf16.mxu0 0
      %6684 = vmatpush1.bf16.msra.mxu0 0
      %6685 = vmatprep.subr.bf16.mxu0 0
      %6686 = vmatpush1.bf16.msra.mxu0 0
      %6687 = vmatprep.subr.bf16.mxu0 0
      %6688 = vmatpush1.bf16.msra.mxu0 0
      %6689 = vmatprep.subr.bf16.mxu0 0
      %6690 = vmatpush1.bf16.msra.mxu0 0
      %6691 = vmatprep.subr.bf16.mxu0 0
      %6692 = vmatpush1.bf16.msra.mxu0 0
      %6693 = vmatprep.subr.bf16.mxu0 0
      %6694 = vmatpush1.bf16.msra.mxu0 0
      %6695 = vmatprep.subr.bf16.mxu0 0
      %6696 = vmatpush1.bf16.msra.mxu0 0
      %6697 = vmatprep.subr.bf16.mxu0 0
      %6698 = vmatpush1.bf16.msra.mxu0 0
      %6699 = vmatprep.mubr.bf16.mxu0 0
      %6700 = vmatmul.mubr.bf16.gmra.mrb[0].mxu0 %v6620
      %v6701 = vpop.f32.mrb[0].mxu0
      %v6702 = vadd.f32 0.0, %v6701
      %v6703 = vpop.f32.mrb[0].mxu0
      %v6704 = vpop.f32.mrb[0].mxu0
      %v6705 = vadd.f32 0.0, %v6704
      %v6706 = vpop.f32.mrb[0].mxu0
      %6707 = vmatprep.mubr.bf16.mxu0 0
      %6708 = vmatmul.mubr.bf16.gmra.mrb[0].mxu0 %v6623
      %v6709 = vpop.f32.mrb[0].mxu0
      %v6710 = vadd.f32 0.0, %v6709
      %v6711 = vpop.f32.mrb[0].mxu0
      %v6712 = vpop.f32.mrb[0].mxu0
      %v6713 = vadd.f32 0.0, %v6712
      %v6714 = vpop.f32.mrb[0].mxu0
      %6715 = vmatprep.mubr.bf16.mxu0 0
      %6716 = vmatmul.mubr.bf16.gmra.mrb[0].mxu0 %v6626
      %v6717 = vpop.f32.mrb[0].mxu0
      %v6718 = vadd.f32 0.0, %v6717
      %v6719 = vpop.f32.mrb[0].mxu0
      %v6720 = vpop.f32.mrb[0].mxu0
      %v6721 = vadd.f32 0.0, %v6720
      %v6722 = vpop.f32.mrb[0].mxu0
      %6723 = vmatprep.mubr.bf16.mxu0 0
      %6724 = vmatmul.mubr.bf16.gmra.mrb[0].mxu0 %v6629
      %v6725 = vpop.f32.mrb[0].mxu0
      %v6726 = vadd.f32 0.0, %v6725
      %v6727 = vpop.f32.mrb[0].mxu0
      %v6728 = vpop.f32.mrb[0].mxu0
      %v6729 = vadd.f32 0.0, %v6728
      %v6730 = vpop.f32.mrb[0].mxu0
      %6731 = vmatprep.mubr.bf16.mxu0 0
      %6732 = vmatmul.mubr.bf16.gmra.mrb[0].mxu0 %v6632
      %v6733 = vpop.f32.mrb[0].mxu0
      %v6734 = vadd.f32 0.0, %v6733
      %v6735 = vpop.f32.mrb[0].mxu0
      %v6736 = vpop.f32.mrb[0].mxu0
      %v6737 = vadd.f32 0.0, %v6736
      %v6738 = vpop.f32.mrb[0].mxu0
      %6739 = vmatprep.mubr.bf16.mxu0 0
      %6740 = vmatmul.mubr.bf16.gmra.mrb[0].mxu0 %v6635
      %v6741 = vpop.f32.mrb[0].mxu0
      %v6742 = vadd.f32 0.0, %v6741
      %v6743 = vpop.f32.mrb[0].mxu0
      %v6744 = vpop.f32.mrb[0].mxu0
      %v6745 = vadd.f32 0.0, %v6744
      %v6746 = vpop.f32.mrb[0].mxu0
      %6747 = vmatprep.mubr.bf16.mxu0 0
      %6748 = vmatmul.mubr.bf16.gmra.mrb[0].mxu0 %v6638
      %v6749 = vpop.f32.mrb[0].mxu0
      %v6750 = vadd.f32 0.0, %v6749
      %v6751 = vpop.f32.mrb[0].mxu0
      %v6752 = vpop.f32.mrb[0].mxu0
      %v6753 = vadd.f32 0.0, %v6752
      %v6754 = vpop.f32.mrb[0].mxu0
      %6755 = vmatprep.mubr.bf16.mxu0 0
      %6756 = vmatmul.mubr.bf16.gmra.mrb[0].mxu0 %v6641
      %v6757 = vpop.f32.mrb[0].mxu0
      %v6758 = vadd.f32 0.0, %v6757
      %v6759 = vpop.f32.mrb[0].mxu0
      %v6760 = vpop.f32.mrb[0].mxu0
      %v6761 = vadd.f32 0.0, %v6760
      %v6762 = vpop.f32.mrb[0].mxu0
      %6763 = vmatprep.mubr.bf16.mxu0 0
      %6764 = vmatmul.mubr.bf16.gmra.mrb[0].mxu0 %v6644
      %v6765 = vpop.f32.mrb[0].mxu0
      %v6766 = vadd.f32 0.0, %v6765
      %v6767 = vpop.f32.mrb[0].mxu0
      %v6768 = vpop.f32.mrb[0].mxu0
      %v6769 = vadd.f32 0.0, %v6768
      %v6770 = vpop.f32.mrb[0].mxu0
      %6771 = vmatprep.mubr.bf16.mxu0 0
      %6772 = vmatmul.mubr.bf16.gmra.mrb[0].mxu0 %v6647
      %v6773 = vpop.f32.mrb[0].mxu0
      %v6774 = vadd.f32 0.0, %v6773
      %v6775 = vpop.f32.mrb[0].mxu0
      %v6776 = vpop.f32.mrb[0].mxu0
      %v6777 = vadd.f32 0.0, %v6776
      %v6778 = vpop.f32.mrb[0].mxu0
      %6779 = vmatprep.mubr.bf16.mxu0 0
      %6780 = vmatmul.mubr.bf16.gmra.mrb[0].mxu0 %v6650
      %v6781 = vpop.f32.mrb[0].mxu0
      %v6782 = vadd.f32 0.0, %v6781
      %v6783 = vpop.f32.mrb[0].mxu0
      %v6784 = vpop.f32.mrb[0].mxu0
      %v6785 = vadd.f32 0.0, %v6784
      %v6786 = vpop.f32.mrb[0].mxu0
      %6787 = vmatprep.mubr.bf16.mxu0 0
      %6788 = vmatmul.mubr.bf16.gmra.mrb[0].mxu0 %v6653
      %v6789 = vpop.f32.mrb[0].mxu0
      %v6790 = vadd.f32 0.0, %v6789
      %v6791 = vpop.f32.mrb[0].mxu0
      %v6792 = vpop.f32.mrb[0].mxu0
      %v6793 = vadd.f32 0.0, %v6792
      %v6794 = vpop.f32.mrb[0].mxu0
      %6795 = vmatprep.mubr.bf16.mxu0 0
      %6796 = vmatmul.mubr.bf16.gmra.mrb[0].mxu0 %v6656
      %v6797 = vpop.f32.mrb[0].mxu0
      %v6798 = vadd.f32 0.0, %v6797
      %v6799 = vpop.f32.mrb[0].mxu0
      %v6800 = vpop.f32.mrb[0].mxu0
      %v6801 = vadd.f32 0.0, %v6800
      %v6802 = vpop.f32.mrb[0].mxu0
      %6803 = vmatprep.mubr.bf16.mxu0 0
      %6804 = vmatmul.mubr.bf16.gmra.mrb[0].mxu0 %v6659
      %v6805 = vpop.f32.mrb[0].mxu0
      %v6806 = vadd.f32 0.0, %v6805
      %v6807 = vpop.f32.mrb[0].mxu0
      %v6808 = vpop.f32.mrb[0].mxu0
      %v6809 = vadd.f32 0.0, %v6808
      %v6810 = vpop.f32.mrb[0].mxu0
      %6811 = vmatprep.mubr.bf16.mxu0 0
      %6812 = vmatmul.mubr.bf16.gmra.mrb[0].mxu0 %v6662
      %v6813 = vpop.f32.mrb[0].mxu0
      %v6814 = vadd.f32 0.0, %v6813
      %v6815 = vpop.f32.mrb[0].mxu0
      %v6816 = vpop.f32.mrb[0].mxu0
      %v6817 = vadd.f32 0.0, %v6816
      %v6818 = vpop.f32.mrb[0].mxu0
      %6819 = vmatprep.mubr.bf16.mxu0 0
      %6820 = vmatmul.mubr.bf16.gmra.mrb[0].mxu0 %v6665
      %v6821 = vpop.f32.mrb[0].mxu0
      %v6822 = vadd.f32 0.0, %v6821
      %v6823 = vpop.f32.mrb[0].mxu0
      %v6824 = vpop.f32.mrb[0].mxu0
      %v6825 = vadd.f32 0.0, %v6824
      %v6826 = vpop.f32.mrb[0].mxu0
      %6827 = vdwg.mxu0
      %v6828 = vld [vmem:[#allocation4] sm:$0xff]
      %v6829 = vld [vmem:[#allocation4 + $0x8] sm:$0xff]
      %v6830 = vld [vmem:[#allocation4 + $0x10] sm:$0xff]
      %v6831 = vld [vmem:[#allocation4 + $0x18] sm:$0xff]
      %v6832 = vld [vmem:[#allocation4 + $0x20] sm:$0xff]
      %v6833 = vld [vmem:[#allocation4 + $0x28] sm:$0xff]
      %v6834 = vld [vmem:[#allocation4 + $0x30] sm:$0xff]
      %v6835 = vld [vmem:[#allocation4 + $0x38] sm:$0xff]
      %v6836 = vld [vmem:[#allocation4 + $0x40] sm:$0xff]
      %v6837 = vld [vmem:[#allocation4 + $0x48] sm:$0xff]
      %v6838 = vld [vmem:[#allocation4 + $0x50] sm:$0xff]
      %v6839 = vld [vmem:[#allocation4 + $0x58] sm:$0xff]
      %v6840 = vld [vmem:[#allocation4 + $0x60] sm:$0xff]
      %v6841 = vld [vmem:[#allocation4 + $0x68] sm:$0xff]
      %v6842 = vld [vmem:[#allocation4 + $0x70] sm:$0xff]
      %v6843 = vld [vmem:[#allocation4 + $0x78] sm:$0xff]
      %v6844 = vld [vmem:[#allocation4 + $0x80] sm:$0xff]
      %v6845 = vld [vmem:[#allocation4 + $0x88] sm:$0xff]
      %v6846 = vld [vmem:[#allocation4 + $0x90] sm:$0xff]
      %v6847 = vld [vmem:[#allocation4 + $0x98] sm:$0xff]
      %v6848 = vld [vmem:[#allocation4 + $0xa0] sm:$0xff]
      %v6849 = vld [vmem:[#allocation4 + $0xa8] sm:$0xff]
      %v6850 = vld [vmem:[#allocation4 + $0xb0] sm:$0xff]
      %v6851 = vld [vmem:[#allocation4 + $0xb8] sm:$0xff]
      %v6852 = vld [vmem:[#allocation4 + $0xc0] sm:$0xff]
      %v6853 = vld [vmem:[#allocation4 + $0xc8] sm:$0xff]
      %v6854 = vld [vmem:[#allocation4 + $0xd0] sm:$0xff]
      %v6855 = vld [vmem:[#allocation4 + $0xd8] sm:$0xff]
      %v6856 = vld [vmem:[#allocation4 + $0xe0] sm:$0xff]
      %v6857 = vld [vmem:[#allocation4 + $0xe8] sm:$0xff]
      %v6858 = vld [vmem:[#allocation4 + $0xf0] sm:$0xff]
      %v6859 = vld [vmem:[#allocation4 + $0xf8] sm:$0xff]
      %v6860 = vadd.f32 %v6828, %v6702
      %v6861 = vadd.f32 %v6829, %v6705
      %v6862 = vadd.f32 %v6830, %v6710
      %v6863 = vadd.f32 %v6831, %v6713
      %v6864 = vadd.f32 %v6832, %v6718
      %v6865 = vadd.f32 %v6833, %v6721
      %v6866 = vadd.f32 %v6834, %v6726
      %v6867 = vadd.f32 %v6835, %v6729
      %v6868 = vadd.f32 %v6836, %v6734
      %v6869 = vadd.f32 %v6837, %v6737
      %v6870 = vadd.f32 %v6838, %v6742
      %v6871 = vadd.f32 %v6839, %v6745
      %v6872 = vadd.f32 %v6840, %v6750
      %v6873 = vadd.f32 %v6841, %v6753
      %v6874 = vadd.f32 %v6842, %v6758
      %v6875 = vadd.f32 %v6843, %v6761
      %v6876 = vadd.f32 %v6844, %v6766
      %v6877 = vadd.f32 %v6845, %v6769
      %v6878 = vadd.f32 %v6846, %v6774
      %v6879 = vadd.f32 %v6847, %v6777
      %v6880 = vadd.f32 %v6848, %v6782
      %v6881 = vadd.f32 %v6849, %v6785
      %v6882 = vadd.f32 %v6850, %v6790
      %v6883 = vadd.f32 %v6851, %v6793
      %v6884 = vadd.f32 %v6852, %v6798
      %v6885 = vadd.f32 %v6853, %v6801
      %v6886 = vadd.f32 %v6854, %v6806
      %v6887 = vadd.f32 %v6855, %v6809
      %v6888 = vadd.f32 %v6856, %v6814
      %v6889 = vadd.f32 %v6857, %v6817
      %v6890 = vadd.f32 %v6858, %v6822
      %v6891 = vadd.f32 %v6859, %v6825
      %6892 = vst.msk [vmem:[#allocation4] sm:$0xff] %vm1490, %v6860
      %6893 = vst.msk [vmem:[#allocation4 + $0x8] sm:$0xff] %vm1490, %v6861
      %6894 = vst.msk [vmem:[#allocation4 + $0x10] sm:$0xff] %vm1490, %v6862
      %6895 = vst.msk [vmem:[#allocation4 + $0x18] sm:$0xff] %vm1490, %v6863
      %6896 = vst.msk [vmem:[#allocation4 + $0x20] sm:$0xff] %vm1490, %v6864
      %6897 = vst.msk [vmem:[#allocation4 + $0x28] sm:$0xff] %vm1490, %v6865
      %6898 = vst.msk [vmem:[#allocation4 + $0x30] sm:$0xff] %vm1490, %v6866
      %6899 = vst.msk [vmem:[#allocation4 + $0x38] sm:$0xff] %vm1490, %v6867
      %6900 = vst.msk [vmem:[#allocation4 + $0x40] sm:$0xff] %vm1490, %v6868
      %6901 = vst.msk [vmem:[#allocation4 + $0x48] sm:$0xff] %vm1490, %v6869
      %6902 = vst.msk [vmem:[#allocation4 + $0x50] sm:$0xff] %vm1490, %v6870
      %6903 = vst.msk [vmem:[#allocation4 + $0x58] sm:$0xff] %vm1490, %v6871
      %6904 = vst.msk [vmem:[#allocation4 + $0x60] sm:$0xff] %vm1490, %v6872
      %6905 = vst.msk [vmem:[#allocation4 + $0x68] sm:$0xff] %vm1490, %v6873
      %6906 = vst.msk [vmem:[#allocation4 + $0x70] sm:$0xff] %vm1490, %v6874
      %6907 = vst.msk [vmem:[#allocation4 + $0x78] sm:$0xff] %vm1490, %v6875
      %6908 = vst.msk [vmem:[#allocation4 + $0x80] sm:$0xff] %vm1490, %v6876
      %6909 = vst.msk [vmem:[#allocation4 + $0x88] sm:$0xff] %vm1490, %v6877
      %6910 = vst.msk [vmem:[#allocation4 + $0x90] sm:$0xff] %vm1490, %v6878
      %6911 = vst.msk [vmem:[#allocation4 + $0x98] sm:$0xff] %vm1490, %v6879
      %6912 = vst.msk [vmem:[#allocation4 + $0xa0] sm:$0xff] %vm1490, %v6880
      %6913 = vst.msk [vmem:[#allocation4 + $0xa8] sm:$0xff] %vm1490, %v6881
      %6914 = vst.msk [vmem:[#allocation4 + $0xb0] sm:$0xff] %vm1490, %v6882
      %6915 = vst.msk [vmem:[#allocation4 + $0xb8] sm:$0xff] %vm1490, %v6883
      %6916 = vst.msk [vmem:[#allocation4 + $0xc0] sm:$0xff] %vm1490, %v6884
      %6917 = vst.msk [vmem:[#allocation4 + $0xc8] sm:$0xff] %vm1490, %v6885
      %6918 = vst.msk [vmem:[#allocation4 + $0xd0] sm:$0xff] %vm1490, %v6886
      %6919 = vst.msk [vmem:[#allocation4 + $0xd8] sm:$0xff] %vm1490, %v6887
      %6920 = vst.msk [vmem:[#allocation4 + $0xe0] sm:$0xff] %vm1490, %v6888
      %6921 = vst.msk [vmem:[#allocation4 + $0xe8] sm:$0xff] %vm1490, %v6889
      %6922 = vst.msk [vmem:[#allocation4 + $0xf0] sm:$0xff] %vm1490, %v6890
      %6923 = vst.msk [vmem:[#allocation4 + $0xf8] sm:$0xff] %vm1490, %v6891
      %v6924 = vld [vmem:[%s5380 + $0x1] sm:$0xff]
      %v6925 = vld [vmem:[%s5380 + $0x9] sm:$0xff]
      %v6926 = vld [vmem:[%s5380 + $0x19] sm:$0xff]
      %v6927 = vld [vmem:[%s5380 + $0x21] sm:$0xff]
      %v6928 = vld [vmem:[%s5380 + $0x31] sm:$0xff]
      %v6929 = vld [vmem:[%s5380 + $0x39] sm:$0xff]
      %v6930 = vld [vmem:[%s5380 + $0x49] sm:$0xff]
      %v6931 = vld [vmem:[%s5380 + $0x51] sm:$0xff]
      %v6932 = vld [vmem:[%s5380 + $0x61] sm:$0xff]
      %v6933 = vld [vmem:[%s5380 + $0x69] sm:$0xff]
      %v6934 = vld [vmem:[%s5380 + $0x79] sm:$0xff]
      %v6935 = vld [vmem:[%s5380 + $0x81] sm:$0xff]
      %v6936 = vld [vmem:[%s5380 + $0x91] sm:$0xff]
      %v6937 = vld [vmem:[%s5380 + $0x99] sm:$0xff]
      %v6938 = vld [vmem:[%s5380 + $0xa9] sm:$0xff]
      %v6939 = vld [vmem:[%s5380 + $0xb1] sm:$0xff]
      %v6940 = vld [vmem:[%s5380 + $0xc1] sm:$0xff]
      %v6941 = vld [vmem:[%s5380 + $0xc9] sm:$0xff]
      %v6942 = vld [vmem:[%s5380 + $0xd9] sm:$0xff]
      %v6943 = vld [vmem:[%s5380 + $0xe1] sm:$0xff]
      %v6944 = vld [vmem:[%s5380 + $0xf1] sm:$0xff]
      %v6945 = vld [vmem:[%s5380 + $0xf9] sm:$0xff]
      %v6946 = vld [vmem:[%s5380 + $0x109] sm:$0xff]
      %v6947 = vld [vmem:[%s5380 + $0x111] sm:$0xff]
      %v6948 = vld [vmem:[%s5380 + $0x121] sm:$0xff]
      %v6949 = vld [vmem:[%s5380 + $0x129] sm:$0xff]
      %v6950 = vld [vmem:[%s5380 + $0x139] sm:$0xff]
      %v6951 = vld [vmem:[%s5380 + $0x141] sm:$0xff]
      %v6952 = vld [vmem:[%s5380 + $0x151] sm:$0xff]
      %v6953 = vld [vmem:[%s5380 + $0x159] sm:$0xff]
      %v6954 = vld [vmem:[%s5380 + $0x169] sm:$0xff]
      %v6955 = vld [vmem:[%s5380 + $0x171] sm:$0xff]
      %v6956 = vpack.c.bf16 %v6925, %v6924
      %v6957 = vpack.c.bf16 %v6927, %v6926
      %v6958 = vpack.c.bf16 %v6929, %v6928
      %v6959 = vpack.c.bf16 %v6931, %v6930
      %v6960 = vpack.c.bf16 %v6933, %v6932
      %v6961 = vpack.c.bf16 %v6935, %v6934
      %v6962 = vpack.c.bf16 %v6937, %v6936
      %v6963 = vpack.c.bf16 %v6939, %v6938
      %v6964 = vpack.c.bf16 %v6941, %v6940
      %v6965 = vpack.c.bf16 %v6943, %v6942
      %v6966 = vpack.c.bf16 %v6945, %v6944
      %v6967 = vpack.c.bf16 %v6947, %v6946
      %v6968 = vpack.c.bf16 %v6949, %v6948
      %v6969 = vpack.c.bf16 %v6951, %v6950
      %v6970 = vpack.c.bf16 %v6953, %v6952
      %v6971 = vpack.c.bf16 %v6955, %v6954
      %s6972 = scalar_lea.vmem %s11, 64
      %v6973 = vld [vmem:[%s6972] sm:$0xf]
      %v6974 = vld [vmem:[%s6972 + $0x4] sm:$0xf]
      %v6975 = vld [vmem:[%s6972 + $0x8] sm:$0xf]
      %v6976 = vld [vmem:[%s6972 + $0xc] sm:$0xf]
      %v6981 = vunpack.c.l.b16 %v6973
      %v6982 = vunpack.c.l.b16 %v6974
      %v6983 = vunpack.c.l.b16 %v6975
      %v6984 = vunpack.c.l.b16 %v6976
      %v6985 = vpack.c.b16 %v6982, %v6981
      %v6986 = vpack.c.b16 %v6984, %v6983
      %v6990 = vsel %vm1490, %v6956, 0
      %v6993 = vsel %vm1490, %v6957, 0
      %v6996 = vsel %vm1490, %v6958, 0
      %v6999 = vsel %vm1490, %v6959, 0
      %v7002 = vsel %vm1490, %v6960, 0
      %v7005 = vsel %vm1490, %v6961, 0
      %v7008 = vsel %vm1490, %v6962, 0
      %v7011 = vsel %vm1490, %v6963, 0
      %v7014 = vsel %vm1490, %v6964, 0
      %v7017 = vsel %vm1490, %v6965, 0
      %v7020 = vsel %vm1490, %v6966, 0
      %v7023 = vsel %vm1490, %v6967, 0
      %v7026 = vsel %vm1490, %v6968, 0
      %v7029 = vsel %vm1490, %v6969, 0
      %v7032 = vsel %vm1490, %v6970, 0
      %v7035 = vsel %vm1490, %v6971, 0
      %7037 = vmatprep.subr.bf16.mxu0 0
      %7038 = vmatpush1.bf16.msra.mxu0 %v6985
      %7039 = vmatprep.subr.bf16.mxu0 0
      %7040 = vmatpush1.bf16.msra.mxu0 %v6986
      %7041 = vmatprep.subr.bf16.mxu0 0
      %7042 = vmatpush1.bf16.msra.mxu0 0
      %7043 = vmatprep.subr.bf16.mxu0 0
      %7044 = vmatpush1.bf16.msra.mxu0 0
      %7045 = vmatprep.subr.bf16.mxu0 0
      %7046 = vmatpush1.bf16.msra.mxu0 0
      %7047 = vmatprep.subr.bf16.mxu0 0
      %7048 = vmatpush1.bf16.msra.mxu0 0
      %7049 = vmatprep.subr.bf16.mxu0 0
      %7050 = vmatpush1.bf16.msra.mxu0 0
      %7051 = vmatprep.subr.bf16.mxu0 0
      %7052 = vmatpush1.bf16.msra.mxu0 0
      %7053 = vmatprep.subr.bf16.mxu0 0
      %7054 = vmatpush1.bf16.msra.mxu0 0
      %7055 = vmatprep.subr.bf16.mxu0 0
      %7056 = vmatpush1.bf16.msra.mxu0 0
      %7057 = vmatprep.subr.bf16.mxu0 0
      %7058 = vmatpush1.bf16.msra.mxu0 0
      %7059 = vmatprep.subr.bf16.mxu0 0
      %7060 = vmatpush1.bf16.msra.mxu0 0
      %7061 = vmatprep.subr.bf16.mxu0 0
      %7062 = vmatpush1.bf16.msra.mxu0 0
      %7063 = vmatprep.subr.bf16.mxu0 0
      %7064 = vmatpush1.bf16.msra.mxu0 0
      %7065 = vmatprep.subr.bf16.mxu0 0
      %7066 = vmatpush1.bf16.msra.mxu0 0
      %7067 = vmatprep.subr.bf16.mxu0 0
      %7068 = vmatpush1.bf16.msra.mxu0 0
      %7069 = vmatprep.mubr.bf16.mxu0 0
      %7070 = vmatmul.mubr.bf16.gmra.mrb[0].mxu0 %v6990
      %v7071 = vpop.f32.mrb[0].mxu0
      %v7072 = vadd.f32 0.0, %v7071
      %v7073 = vpop.f32.mrb[0].mxu0
      %v7074 = vpop.f32.mrb[0].mxu0
      %v7075 = vadd.f32 0.0, %v7074
      %v7076 = vpop.f32.mrb[0].mxu0
      %7077 = vmatprep.mubr.bf16.mxu0 0
      %7078 = vmatmul.mubr.bf16.gmra.mrb[0].mxu0 %v6993
      %v7079 = vpop.f32.mrb[0].mxu0
      %v7080 = vadd.f32 0.0, %v7079
      %v7081 = vpop.f32.mrb[0].mxu0
      %v7082 = vpop.f32.mrb[0].mxu0
      %v7083 = vadd.f32 0.0, %v7082
      %v7084 = vpop.f32.mrb[0].mxu0
      %7085 = vmatprep.mubr.bf16.mxu0 0
      %7086 = vmatmul.mubr.bf16.gmra.mrb[0].mxu0 %v6996
      %v7087 = vpop.f32.mrb[0].mxu0
      %v7088 = vadd.f32 0.0, %v7087
      %v7089 = vpop.f32.mrb[0].mxu0
      %v7090 = vpop.f32.mrb[0].mxu0
      %v7091 = vadd.f32 0.0, %v7090
      %v7092 = vpop.f32.mrb[0].mxu0
      %7093 = vmatprep.mubr.bf16.mxu0 0
      %7094 = vmatmul.mubr.bf16.gmra.mrb[0].mxu0 %v6999
      %v7095 = vpop.f32.mrb[0].mxu0
      %v7096 = vadd.f32 0.0, %v7095
      %v7097 = vpop.f32.mrb[0].mxu0
      %v7098 = vpop.f32.mrb[0].mxu0
      %v7099 = vadd.f32 0.0, %v7098
      %v7100 = vpop.f32.mrb[0].mxu0
      %7101 = vmatprep.mubr.bf16.mxu0 0
      %7102 = vmatmul.mubr.bf16.gmra.mrb[0].mxu0 %v7002
      %v7103 = vpop.f32.mrb[0].mxu0
      %v7104 = vadd.f32 0.0, %v7103
      %v7105 = vpop.f32.mrb[0].mxu0
      %v7106 = vpop.f32.mrb[0].mxu0
      %v7107 = vadd.f32 0.0, %v7106
      %v7108 = vpop.f32.mrb[0].mxu0
      %7109 = vmatprep.mubr.bf16.mxu0 0
      %7110 = vmatmul.mubr.bf16.gmra.mrb[0].mxu0 %v7005
      %v7111 = vpop.f32.mrb[0].mxu0
      %v7112 = vadd.f32 0.0, %v7111
      %v7113 = vpop.f32.mrb[0].mxu0
      %v7114 = vpop.f32.mrb[0].mxu0
      %v7115 = vadd.f32 0.0, %v7114
      %v7116 = vpop.f32.mrb[0].mxu0
      %7117 = vmatprep.mubr.bf16.mxu0 0
      %7118 = vmatmul.mubr.bf16.gmra.mrb[0].mxu0 %v7008
      %v7119 = vpop.f32.mrb[0].mxu0
      %v7120 = vadd.f32 0.0, %v7119
      %v7121 = vpop.f32.mrb[0].mxu0
      %v7122 = vpop.f32.mrb[0].mxu0
      %v7123 = vadd.f32 0.0, %v7122
      %v7124 = vpop.f32.mrb[0].mxu0
      %7125 = vmatprep.mubr.bf16.mxu0 0
      %7126 = vmatmul.mubr.bf16.gmra.mrb[0].mxu0 %v7011
      %v7127 = vpop.f32.mrb[0].mxu0
      %v7128 = vadd.f32 0.0, %v7127
      %v7129 = vpop.f32.mrb[0].mxu0
      %v7130 = vpop.f32.mrb[0].mxu0
      %v7131 = vadd.f32 0.0, %v7130
      %v7132 = vpop.f32.mrb[0].mxu0
      %7133 = vmatprep.mubr.bf16.mxu0 0
      %7134 = vmatmul.mubr.bf16.gmra.mrb[0].mxu0 %v7014
      %v7135 = vpop.f32.mrb[0].mxu0
      %v7136 = vadd.f32 0.0, %v7135
      %v7137 = vpop.f32.mrb[0].mxu0
      %v7138 = vpop.f32.mrb[0].mxu0
      %v7139 = vadd.f32 0.0, %v7138
      %v7140 = vpop.f32.mrb[0].mxu0
      %7141 = vmatprep.mubr.bf16.mxu0 0
      %7142 = vmatmul.mubr.bf16.gmra.mrb[0].mxu0 %v7017
      %v7143 = vpop.f32.mrb[0].mxu0
      %v7144 = vadd.f32 0.0, %v7143
      %v7145 = vpop.f32.mrb[0].mxu0
      %v7146 = vpop.f32.mrb[0].mxu0
      %v7147 = vadd.f32 0.0, %v7146
      %v7148 = vpop.f32.mrb[0].mxu0
      %7149 = vmatprep.mubr.bf16.mxu0 0
      %7150 = vmatmul.mubr.bf16.gmra.mrb[0].mxu0 %v7020
      %v7151 = vpop.f32.mrb[0].mxu0
      %v7152 = vadd.f32 0.0, %v7151
      %v7153 = vpop.f32.mrb[0].mxu0
      %v7154 = vpop.f32.mrb[0].mxu0
      %v7155 = vadd.f32 0.0, %v7154
      %v7156 = vpop.f32.mrb[0].mxu0
      %7157 = vmatprep.mubr.bf16.mxu0 0
      %7158 = vmatmul.mubr.bf16.gmra.mrb[0].mxu0 %v7023
      %v7159 = vpop.f32.mrb[0].mxu0
      %v7160 = vadd.f32 0.0, %v7159
      %v7161 = vpop.f32.mrb[0].mxu0
      %v7162 = vpop.f32.mrb[0].mxu0
      %v7163 = vadd.f32 0.0, %v7162
      %v7164 = vpop.f32.mrb[0].mxu0
      %7165 = vmatprep.mubr.bf16.mxu0 0
      %7166 = vmatmul.mubr.bf16.gmra.mrb[0].mxu0 %v7026
      %v7167 = vpop.f32.mrb[0].mxu0
      %v7168 = vadd.f32 0.0, %v7167
      %v7169 = vpop.f32.mrb[0].mxu0
      %v7170 = vpop.f32.mrb[0].mxu0
      %v7171 = vadd.f32 0.0, %v7170
      %v7172 = vpop.f32.mrb[0].mxu0
      %7173 = vmatprep.mubr.bf16.mxu0 0
      %7174 = vmatmul.mubr.bf16.gmra.mrb[0].mxu0 %v7029
      %v7175 = vpop.f32.mrb[0].mxu0
      %v7176 = vadd.f32 0.0, %v7175
      %v7177 = vpop.f32.mrb[0].mxu0
      %v7178 = vpop.f32.mrb[0].mxu0
      %v7179 = vadd.f32 0.0, %v7178
      %v7180 = vpop.f32.mrb[0].mxu0
      %7181 = vmatprep.mubr.bf16.mxu0 0
      %7182 = vmatmul.mubr.bf16.gmra.mrb[0].mxu0 %v7032
      %v7183 = vpop.f32.mrb[0].mxu0
      %v7184 = vadd.f32 0.0, %v7183
      %v7185 = vpop.f32.mrb[0].mxu0
      %v7186 = vpop.f32.mrb[0].mxu0
      %v7187 = vadd.f32 0.0, %v7186
      %v7188 = vpop.f32.mrb[0].mxu0
      %7189 = vmatprep.mubr.bf16.mxu0 0
      %7190 = vmatmul.mubr.bf16.gmra.mrb[0].mxu0 %v7035
      %v7191 = vpop.f32.mrb[0].mxu0
      %v7192 = vadd.f32 0.0, %v7191
      %v7193 = vpop.f32.mrb[0].mxu0
      %v7194 = vpop.f32.mrb[0].mxu0
      %v7195 = vadd.f32 0.0, %v7194
      %v7196 = vpop.f32.mrb[0].mxu0
      %7197 = vdwg.mxu0
      %v7198 = vld [vmem:[#allocation4] sm:$0xff]
      %v7199 = vld [vmem:[#allocation4 + $0x8] sm:$0xff]
      %v7200 = vld [vmem:[#allocation4 + $0x10] sm:$0xff]
      %v7201 = vld [vmem:[#allocation4 + $0x18] sm:$0xff]
      %v7202 = vld [vmem:[#allocation4 + $0x20] sm:$0xff]
      %v7203 = vld [vmem:[#allocation4 + $0x28] sm:$0xff]
      %v7204 = vld [vmem:[#allocation4 + $0x30] sm:$0xff]
      %v7205 = vld [vmem:[#allocation4 + $0x38] sm:$0xff]
      %v7206 = vld [vmem:[#allocation4 + $0x40] sm:$0xff]
      %v7207 = vld [vmem:[#allocation4 + $0x48] sm:$0xff]
      %v7208 = vld [vmem:[#allocation4 + $0x50] sm:$0xff]
      %v7209 = vld [vmem:[#allocation4 + $0x58] sm:$0xff]
      %v7210 = vld [vmem:[#allocation4 + $0x60] sm:$0xff]
      %v7211 = vld [vmem:[#allocation4 + $0x68] sm:$0xff]
      %v7212 = vld [vmem:[#allocation4 + $0x70] sm:$0xff]
      %v7213 = vld [vmem:[#allocation4 + $0x78] sm:$0xff]
      %v7214 = vld [vmem:[#allocation4 + $0x80] sm:$0xff]
      %v7215 = vld [vmem:[#allocation4 + $0x88] sm:$0xff]
      %v7216 = vld [vmem:[#allocation4 + $0x90] sm:$0xff]
      %v7217 = vld [vmem:[#allocation4 + $0x98] sm:$0xff]
      %v7218 = vld [vmem:[#allocation4 + $0xa0] sm:$0xff]
      %v7219 = vld [vmem:[#allocation4 + $0xa8] sm:$0xff]
      %v7220 = vld [vmem:[#allocation4 + $0xb0] sm:$0xff]
      %v7221 = vld [vmem:[#allocation4 + $0xb8] sm:$0xff]
      %v7222 = vld [vmem:[#allocation4 + $0xc0] sm:$0xff]
      %v7223 = vld [vmem:[#allocation4 + $0xc8] sm:$0xff]
      %v7224 = vld [vmem:[#allocation4 + $0xd0] sm:$0xff]
      %v7225 = vld [vmem:[#allocation4 + $0xd8] sm:$0xff]
      %v7226 = vld [vmem:[#allocation4 + $0xe0] sm:$0xff]
      %v7227 = vld [vmem:[#allocation4 + $0xe8] sm:$0xff]
      %v7228 = vld [vmem:[#allocation4 + $0xf0] sm:$0xff]
      %v7229 = vld [vmem:[#allocation4 + $0xf8] sm:$0xff]
      %v7230 = vadd.f32 %v7198, %v7072
      %v7231 = vadd.f32 %v7199, %v7075
      %v7232 = vadd.f32 %v7200, %v7080
      %v7233 = vadd.f32 %v7201, %v7083
      %v7234 = vadd.f32 %v7202, %v7088
      %v7235 = vadd.f32 %v7203, %v7091
      %v7236 = vadd.f32 %v7204, %v7096
      %v7237 = vadd.f32 %v7205, %v7099
      %v7238 = vadd.f32 %v7206, %v7104
      %v7239 = vadd.f32 %v7207, %v7107
      %v7240 = vadd.f32 %v7208, %v7112
      %v7241 = vadd.f32 %v7209, %v7115
      %v7242 = vadd.f32 %v7210, %v7120
      %v7243 = vadd.f32 %v7211, %v7123
      %v7244 = vadd.f32 %v7212, %v7128
      %v7245 = vadd.f32 %v7213, %v7131
      %v7246 = vadd.f32 %v7214, %v7136
      %v7247 = vadd.f32 %v7215, %v7139
      %v7248 = vadd.f32 %v7216, %v7144
      %v7249 = vadd.f32 %v7217, %v7147
      %v7250 = vadd.f32 %v7218, %v7152
      %v7251 = vadd.f32 %v7219, %v7155
      %v7252 = vadd.f32 %v7220, %v7160
      %v7253 = vadd.f32 %v7221, %v7163
      %v7254 = vadd.f32 %v7222, %v7168
      %v7255 = vadd.f32 %v7223, %v7171
      %v7256 = vadd.f32 %v7224, %v7176
      %v7257 = vadd.f32 %v7225, %v7179
      %v7258 = vadd.f32 %v7226, %v7184
      %v7259 = vadd.f32 %v7227, %v7187
      %v7260 = vadd.f32 %v7228, %v7192
      %v7261 = vadd.f32 %v7229, %v7195
      %7262 = vst.msk [vmem:[#allocation4] sm:$0xff] %vm1490, %v7230
      %7263 = vst.msk [vmem:[#allocation4 + $0x8] sm:$0xff] %vm1490, %v7231
      %7264 = vst.msk [vmem:[#allocation4 + $0x10] sm:$0xff] %vm1490, %v7232
      %7265 = vst.msk [vmem:[#allocation4 + $0x18] sm:$0xff] %vm1490, %v7233
      %7266 = vst.msk [vmem:[#allocation4 + $0x20] sm:$0xff] %vm1490, %v7234
      %7267 = vst.msk [vmem:[#allocation4 + $0x28] sm:$0xff] %vm1490, %v7235
      %7268 = vst.msk [vmem:[#allocation4 + $0x30] sm:$0xff] %vm1490, %v7236
      %7269 = vst.msk [vmem:[#allocation4 + $0x38] sm:$0xff] %vm1490, %v7237
      %7270 = vst.msk [vmem:[#allocation4 + $0x40] sm:$0xff] %vm1490, %v7238
      %7271 = vst.msk [vmem:[#allocation4 + $0x48] sm:$0xff] %vm1490, %v7239
      %7272 = vst.msk [vmem:[#allocation4 + $0x50] sm:$0xff] %vm1490, %v7240
      %7273 = vst.msk [vmem:[#allocation4 + $0x58] sm:$0xff] %vm1490, %v7241
      %7274 = vst.msk [vmem:[#allocation4 + $0x60] sm:$0xff] %vm1490, %v7242
      %7275 = vst.msk [vmem:[#allocation4 + $0x68] sm:$0xff] %vm1490, %v7243
      %7276 = vst.msk [vmem:[#allocation4 + $0x70] sm:$0xff] %vm1490, %v7244
      %7277 = vst.msk [vmem:[#allocation4 + $0x78] sm:$0xff] %vm1490, %v7245
      %7278 = vst.msk [vmem:[#allocation4 + $0x80] sm:$0xff] %vm1490, %v7246
      %7279 = vst.msk [vmem:[#allocation4 + $0x88] sm:$0xff] %vm1490, %v7247
      %7280 = vst.msk [vmem:[#allocation4 + $0x90] sm:$0xff] %vm1490, %v7248
      %7281 = vst.msk [vmem:[#allocation4 + $0x98] sm:$0xff] %vm1490, %v7249
      %7282 = vst.msk [vmem:[#allocation4 + $0xa0] sm:$0xff] %vm1490, %v7250
      %7283 = vst.msk [vmem:[#allocation4 + $0xa8] sm:$0xff] %vm1490, %v7251
      %7284 = vst.msk [vmem:[#allocation4 + $0xb0] sm:$0xff] %vm1490, %v7252
      %7285 = vst.msk [vmem:[#allocation4 + $0xb8] sm:$0xff] %vm1490, %v7253
      %7286 = vst.msk [vmem:[#allocation4 + $0xc0] sm:$0xff] %vm1490, %v7254
      %7287 = vst.msk [vmem:[#allocation4 + $0xc8] sm:$0xff] %vm1490, %v7255
      %7288 = vst.msk [vmem:[#allocation4 + $0xd0] sm:$0xff] %vm1490, %v7256
      %7289 = vst.msk [vmem:[#allocation4 + $0xd8] sm:$0xff] %vm1490, %v7257
      %7290 = vst.msk [vmem:[#allocation4 + $0xe0] sm:$0xff] %vm1490, %v7258
      %7291 = vst.msk [vmem:[#allocation4 + $0xe8] sm:$0xff] %vm1490, %v7259
      %7292 = vst.msk [vmem:[#allocation4 + $0xf0] sm:$0xff] %vm1490, %v7260
      %7293 = vst.msk [vmem:[#allocation4 + $0xf8] sm:$0xff] %vm1490, %v7261
      %v7294 = vld [vmem:[%s5380 + $0x2] sm:$0xff]
      %v7295 = vld [vmem:[%s5380 + $0xa] sm:$0xff]
      %v7296 = vld [vmem:[%s5380 + $0x1a] sm:$0xff]
      %v7297 = vld [vmem:[%s5380 + $0x22] sm:$0xff]
      %v7298 = vld [vmem:[%s5380 + $0x32] sm:$0xff]
      %v7299 = vld [vmem:[%s5380 + $0x3a] sm:$0xff]
      %v7300 = vld [vmem:[%s5380 + $0x4a] sm:$0xff]
      %v7301 = vld [vmem:[%s5380 + $0x52] sm:$0xff]
      %v7302 = vld [vmem:[%s5380 + $0x62] sm:$0xff]
      %v7303 = vld [vmem:[%s5380 + $0x6a] sm:$0xff]
      %v7304 = vld [vmem:[%s5380 + $0x7a] sm:$0xff]
      %v7305 = vld [vmem:[%s5380 + $0x82] sm:$0xff]
      %v7306 = vld [vmem:[%s5380 + $0x92] sm:$0xff]
      %v7307 = vld [vmem:[%s5380 + $0x9a] sm:$0xff]
      %v7308 = vld [vmem:[%s5380 + $0xaa] sm:$0xff]
      %v7309 = vld [vmem:[%s5380 + $0xb2] sm:$0xff]
      %v7310 = vld [vmem:[%s5380 + $0xc2] sm:$0xff]
      %v7311 = vld [vmem:[%s5380 + $0xca] sm:$0xff]
      %v7312 = vld [vmem:[%s5380 + $0xda] sm:$0xff]
      %v7313 = vld [vmem:[%s5380 + $0xe2] sm:$0xff]
      %v7314 = vld [vmem:[%s5380 + $0xf2] sm:$0xff]
      %v7315 = vld [vmem:[%s5380 + $0xfa] sm:$0xff]
      %v7316 = vld [vmem:[%s5380 + $0x10a] sm:$0xff]
      %v7317 = vld [vmem:[%s5380 + $0x112] sm:$0xff]
      %v7318 = vld [vmem:[%s5380 + $0x122] sm:$0xff]
      %v7319 = vld [vmem:[%s5380 + $0x12a] sm:$0xff]
      %v7320 = vld [vmem:[%s5380 + $0x13a] sm:$0xff]
      %v7321 = vld [vmem:[%s5380 + $0x142] sm:$0xff]
      %v7322 = vld [vmem:[%s5380 + $0x152] sm:$0xff]
      %v7323 = vld [vmem:[%s5380 + $0x15a] sm:$0xff]
      %v7324 = vld [vmem:[%s5380 + $0x16a] sm:$0xff]
      %v7325 = vld [vmem:[%s5380 + $0x172] sm:$0xff]
      %v7326 = vpack.c.bf16 %v7295, %v7294
      %v7327 = vpack.c.bf16 %v7297, %v7296
      %v7328 = vpack.c.bf16 %v7299, %v7298
      %v7329 = vpack.c.bf16 %v7301, %v7300
      %v7330 = vpack.c.bf16 %v7303, %v7302
      %v7331 = vpack.c.bf16 %v7305, %v7304
      %v7332 = vpack.c.bf16 %v7307, %v7306
      %v7333 = vpack.c.bf16 %v7309, %v7308
      %v7334 = vpack.c.bf16 %v7311, %v7310
      %v7335 = vpack.c.bf16 %v7313, %v7312
      %v7336 = vpack.c.bf16 %v7315, %v7314
      %v7337 = vpack.c.bf16 %v7317, %v7316
      %v7338 = vpack.c.bf16 %v7319, %v7318
      %v7339 = vpack.c.bf16 %v7321, %v7320
      %v7340 = vpack.c.bf16 %v7323, %v7322
      %v7341 = vpack.c.bf16 %v7325, %v7324
      %s7342 = scalar_lea.vmem %s11, 80
      %v7343 = vld [vmem:[%s7342] sm:$0xf]
      %v7344 = vld [vmem:[%s7342 + $0x4] sm:$0xf]
      %v7345 = vld [vmem:[%s7342 + $0x8] sm:$0xf]
      %v7346 = vld [vmem:[%s7342 + $0xc] sm:$0xf]
      %v7351 = vunpack.c.l.b16 %v7343
      %v7352 = vunpack.c.l.b16 %v7344
      %v7353 = vunpack.c.l.b16 %v7345
      %v7354 = vunpack.c.l.b16 %v7346
      %v7355 = vpack.c.b16 %v7352, %v7351
      %v7356 = vpack.c.b16 %v7354, %v7353
      %v7360 = vsel %vm1490, %v7326, 0
      %v7363 = vsel %vm1490, %v7327, 0
      %v7366 = vsel %vm1490, %v7328, 0
      %v7369 = vsel %vm1490, %v7329, 0
      %v7372 = vsel %vm1490, %v7330, 0
      %v7375 = vsel %vm1490, %v7331, 0
      %v7378 = vsel %vm1490, %v7332, 0
      %v7381 = vsel %vm1490, %v7333, 0
      %v7384 = vsel %vm1490, %v7334, 0
      %v7387 = vsel %vm1490, %v7335, 0
      %v7390 = vsel %vm1490, %v7336, 0
      %v7393 = vsel %vm1490, %v7337, 0
      %v7396 = vsel %vm1490, %v7338, 0
      %v7399 = vsel %vm1490, %v7339, 0
      %v7402 = vsel %vm1490, %v7340, 0
      %v7405 = vsel %vm1490, %v7341, 0
      %7407 = vmatprep.subr.bf16.mxu0 0
      %7408 = vmatpush1.bf16.msra.mxu0 %v7355
      %7409 = vmatprep.subr.bf16.mxu0 0
      %7410 = vmatpush1.bf16.msra.mxu0 %v7356
      %7411 = vmatprep.subr.bf16.mxu0 0
      %7412 = vmatpush1.bf16.msra.mxu0 0
      %7413 = vmatprep.subr.bf16.mxu0 0
      %7414 = vmatpush1.bf16.msra.mxu0 0
      %7415 = vmatprep.subr.bf16.mxu0 0
      %7416 = vmatpush1.bf16.msra.mxu0 0
      %7417 = vmatprep.subr.bf16.mxu0 0
      %7418 = vmatpush1.bf16.msra.mxu0 0
      %7419 = vmatprep.subr.bf16.mxu0 0
      %7420 = vmatpush1.bf16.msra.mxu0 0
      %7421 = vmatprep.subr.bf16.mxu0 0
      %7422 = vmatpush1.bf16.msra.mxu0 0
      %7423 = vmatprep.subr.bf16.mxu0 0
      %7424 = vmatpush1.bf16.msra.mxu0 0
      %7425 = vmatprep.subr.bf16.mxu0 0
      %7426 = vmatpush1.bf16.msra.mxu0 0
      %7427 = vmatprep.subr.bf16.mxu0 0
      %7428 = vmatpush1.bf16.msra.mxu0 0
      %7429 = vmatprep.subr.bf16.mxu0 0
      %7430 = vmatpush1.bf16.msra.mxu0 0
      %7431 = vmatprep.subr.bf16.mxu0 0
      %7432 = vmatpush1.bf16.msra.mxu0 0
      %7433 = vmatprep.subr.bf16.mxu0 0
      %7434 = vmatpush1.bf16.msra.mxu0 0
      %7435 = vmatprep.subr.bf16.mxu0 0
      %7436 = vmatpush1.bf16.msra.mxu0 0
      %7437 = vmatprep.subr.bf16.mxu0 0
      %7438 = vmatpush1.bf16.msra.mxu0 0
      %7439 = vmatprep.mubr.bf16.mxu0 0
      %7440 = vmatmul.mubr.bf16.gmra.mrb[0].mxu0 %v7360
      %v7441 = vpop.f32.mrb[0].mxu0
      %v7442 = vadd.f32 0.0, %v7441
      %v7443 = vpop.f32.mrb[0].mxu0
      %v7444 = vpop.f32.mrb[0].mxu0
      %v7445 = vadd.f32 0.0, %v7444
      %v7446 = vpop.f32.mrb[0].mxu0
      %7447 = vmatprep.mubr.bf16.mxu0 0
      %7448 = vmatmul.mubr.bf16.gmra.mrb[0].mxu0 %v7363
      %v7449 = vpop.f32.mrb[0].mxu0
      %v7450 = vadd.f32 0.0, %v7449
      %v7451 = vpop.f32.mrb[0].mxu0
      %v7452 = vpop.f32.mrb[0].mxu0
      %v7453 = vadd.f32 0.0, %v7452
      %v7454 = vpop.f32.mrb[0].mxu0
      %7455 = vmatprep.mubr.bf16.mxu0 0
      %7456 = vmatmul.mubr.bf16.gmra.mrb[0].mxu0 %v7366
      %v7457 = vpop.f32.mrb[0].mxu0
      %v7458 = vadd.f32 0.0, %v7457
      %v7459 = vpop.f32.mrb[0].mxu0
      %v7460 = vpop.f32.mrb[0].mxu0
      %v7461 = vadd.f32 0.0, %v7460
      %v7462 = vpop.f32.mrb[0].mxu0
      %7463 = vmatprep.mubr.bf16.mxu0 0
      %7464 = vmatmul.mubr.bf16.gmra.mrb[0].mxu0 %v7369
      %v7465 = vpop.f32.mrb[0].mxu0
      %v7466 = vadd.f32 0.0, %v7465
      %v7467 = vpop.f32.mrb[0].mxu0
      %v7468 = vpop.f32.mrb[0].mxu0
      %v7469 = vadd.f32 0.0, %v7468
      %v7470 = vpop.f32.mrb[0].mxu0
      %7471 = vmatprep.mubr.bf16.mxu0 0
      %7472 = vmatmul.mubr.bf16.gmra.mrb[0].mxu0 %v7372
      %v7473 = vpop.f32.mrb[0].mxu0
      %v7474 = vadd.f32 0.0, %v7473
      %v7475 = vpop.f32.mrb[0].mxu0
      %v7476 = vpop.f32.mrb[0].mxu0
      %v7477 = vadd.f32 0.0, %v7476
      %v7478 = vpop.f32.mrb[0].mxu0
      %7479 = vmatprep.mubr.bf16.mxu0 0
      %7480 = vmatmul.mubr.bf16.gmra.mrb[0].mxu0 %v7375
      %v7481 = vpop.f32.mrb[0].mxu0
      %v7482 = vadd.f32 0.0, %v7481
      %v7483 = vpop.f32.mrb[0].mxu0
      %v7484 = vpop.f32.mrb[0].mxu0
      %v7485 = vadd.f32 0.0, %v7484
      %v7486 = vpop.f32.mrb[0].mxu0
      %7487 = vmatprep.mubr.bf16.mxu0 0
      %7488 = vmatmul.mubr.bf16.gmra.mrb[0].mxu0 %v7378
      %v7489 = vpop.f32.mrb[0].mxu0
      %v7490 = vadd.f32 0.0, %v7489
      %v7491 = vpop.f32.mrb[0].mxu0
      %v7492 = vpop.f32.mrb[0].mxu0
      %v7493 = vadd.f32 0.0, %v7492
      %v7494 = vpop.f32.mrb[0].mxu0
      %7495 = vmatprep.mubr.bf16.mxu0 0
      %7496 = vmatmul.mubr.bf16.gmra.mrb[0].mxu0 %v7381
      %v7497 = vpop.f32.mrb[0].mxu0
      %v7498 = vadd.f32 0.0, %v7497
      %v7499 = vpop.f32.mrb[0].mxu0
      %v7500 = vpop.f32.mrb[0].mxu0
      %v7501 = vadd.f32 0.0, %v7500
      %v7502 = vpop.f32.mrb[0].mxu0
      %7503 = vmatprep.mubr.bf16.mxu0 0
      %7504 = vmatmul.mubr.bf16.gmra.mrb[0].mxu0 %v7384
      %v7505 = vpop.f32.mrb[0].mxu0
      %v7506 = vadd.f32 0.0, %v7505
      %v7507 = vpop.f32.mrb[0].mxu0
      %v7508 = vpop.f32.mrb[0].mxu0
      %v7509 = vadd.f32 0.0, %v7508
      %v7510 = vpop.f32.mrb[0].mxu0
      %7511 = vmatprep.mubr.bf16.mxu0 0
      %7512 = vmatmul.mubr.bf16.gmra.mrb[0].mxu0 %v7387
      %v7513 = vpop.f32.mrb[0].mxu0
      %v7514 = vadd.f32 0.0, %v7513
      %v7515 = vpop.f32.mrb[0].mxu0
      %v7516 = vpop.f32.mrb[0].mxu0
      %v7517 = vadd.f32 0.0, %v7516
      %v7518 = vpop.f32.mrb[0].mxu0
      %7519 = vmatprep.mubr.bf16.mxu0 0
      %7520 = vmatmul.mubr.bf16.gmra.mrb[0].mxu0 %v7390
      %v7521 = vpop.f32.mrb[0].mxu0
      %v7522 = vadd.f32 0.0, %v7521
      %v7523 = vpop.f32.mrb[0].mxu0
      %v7524 = vpop.f32.mrb[0].mxu0
      %v7525 = vadd.f32 0.0, %v7524
      %v7526 = vpop.f32.mrb[0].mxu0
      %7527 = vmatprep.mubr.bf16.mxu0 0
      %7528 = vmatmul.mubr.bf16.gmra.mrb[0].mxu0 %v7393
      %v7529 = vpop.f32.mrb[0].mxu0
      %v7530 = vadd.f32 0.0, %v7529
      %v7531 = vpop.f32.mrb[0].mxu0
      %v7532 = vpop.f32.mrb[0].mxu0
      %v7533 = vadd.f32 0.0, %v7532
      %v7534 = vpop.f32.mrb[0].mxu0
      %7535 = vmatprep.mubr.bf16.mxu0 0
      %7536 = vmatmul.mubr.bf16.gmra.mrb[0].mxu0 %v7396
      %v7537 = vpop.f32.mrb[0].mxu0
      %v7538 = vadd.f32 0.0, %v7537
      %v7539 = vpop.f32.mrb[0].mxu0
      %v7540 = vpop.f32.mrb[0].mxu0
      %v7541 = vadd.f32 0.0, %v7540
      %v7542 = vpop.f32.mrb[0].mxu0
      %7543 = vmatprep.mubr.bf16.mxu0 0
      %7544 = vmatmul.mubr.bf16.gmra.mrb[0].mxu0 %v7399
      %v7545 = vpop.f32.mrb[0].mxu0
      %v7546 = vadd.f32 0.0, %v7545
      %v7547 = vpop.f32.mrb[0].mxu0
      %v7548 = vpop.f32.mrb[0].mxu0
      %v7549 = vadd.f32 0.0, %v7548
      %v7550 = vpop.f32.mrb[0].mxu0
      %7551 = vmatprep.mubr.bf16.mxu0 0
      %7552 = vmatmul.mubr.bf16.gmra.mrb[0].mxu0 %v7402
      %v7553 = vpop.f32.mrb[0].mxu0
      %v7554 = vadd.f32 0.0, %v7553
      %v7555 = vpop.f32.mrb[0].mxu0
      %v7556 = vpop.f32.mrb[0].mxu0
      %v7557 = vadd.f32 0.0, %v7556
      %v7558 = vpop.f32.mrb[0].mxu0
      %7559 = vmatprep.mubr.bf16.mxu0 0
      %7560 = vmatmul.mubr.bf16.gmra.mrb[0].mxu0 %v7405
      %v7561 = vpop.f32.mrb[0].mxu0
      %v7562 = vadd.f32 0.0, %v7561
      %v7563 = vpop.f32.mrb[0].mxu0
      %v7564 = vpop.f32.mrb[0].mxu0
      %v7565 = vadd.f32 0.0, %v7564
      %v7566 = vpop.f32.mrb[0].mxu0
      %7567 = vdwg.mxu0
      %v7568 = vld [vmem:[#allocation4] sm:$0xff]
      %v7569 = vld [vmem:[#allocation4 + $0x8] sm:$0xff]
      %v7570 = vld [vmem:[#allocation4 + $0x10] sm:$0xff]
      %v7571 = vld [vmem:[#allocation4 + $0x18] sm:$0xff]
      %v7572 = vld [vmem:[#allocation4 + $0x20] sm:$0xff]
      %v7573 = vld [vmem:[#allocation4 + $0x28] sm:$0xff]
      %v7574 = vld [vmem:[#allocation4 + $0x30] sm:$0xff]
      %v7575 = vld [vmem:[#allocation4 + $0x38] sm:$0xff]
      %v7576 = vld [vmem:[#allocation4 + $0x40] sm:$0xff]
      %v7577 = vld [vmem:[#allocation4 + $0x48] sm:$0xff]
      %v7578 = vld [vmem:[#allocation4 + $0x50] sm:$0xff]
      %v7579 = vld [vmem:[#allocation4 + $0x58] sm:$0xff]
      %v7580 = vld [vmem:[#allocation4 + $0x60] sm:$0xff]
      %v7581 = vld [vmem:[#allocation4 + $0x68] sm:$0xff]
      %v7582 = vld [vmem:[#allocation4 + $0x70] sm:$0xff]
      %v7583 = vld [vmem:[#allocation4 + $0x78] sm:$0xff]
      %v7584 = vld [vmem:[#allocation4 + $0x80] sm:$0xff]
      %v7585 = vld [vmem:[#allocation4 + $0x88] sm:$0xff]
      %v7586 = vld [vmem:[#allocation4 + $0x90] sm:$0xff]
      %v7587 = vld [vmem:[#allocation4 + $0x98] sm:$0xff]
      %v7588 = vld [vmem:[#allocation4 + $0xa0] sm:$0xff]
      %v7589 = vld [vmem:[#allocation4 + $0xa8] sm:$0xff]
      %v7590 = vld [vmem:[#allocation4 + $0xb0] sm:$0xff]
      %v7591 = vld [vmem:[#allocation4 + $0xb8] sm:$0xff]
      %v7592 = vld [vmem:[#allocation4 + $0xc0] sm:$0xff]
      %v7593 = vld [vmem:[#allocation4 + $0xc8] sm:$0xff]
      %v7594 = vld [vmem:[#allocation4 + $0xd0] sm:$0xff]
      %v7595 = vld [vmem:[#allocation4 + $0xd8] sm:$0xff]
      %v7596 = vld [vmem:[#allocation4 + $0xe0] sm:$0xff]
      %v7597 = vld [vmem:[#allocation4 + $0xe8] sm:$0xff]
      %v7598 = vld [vmem:[#allocation4 + $0xf0] sm:$0xff]
      %v7599 = vld [vmem:[#allocation4 + $0xf8] sm:$0xff]
      %v7600 = vadd.f32 %v7568, %v7442
      %v7601 = vadd.f32 %v7569, %v7445
      %v7602 = vadd.f32 %v7570, %v7450
      %v7603 = vadd.f32 %v7571, %v7453
      %v7604 = vadd.f32 %v7572, %v7458
      %v7605 = vadd.f32 %v7573, %v7461
      %v7606 = vadd.f32 %v7574, %v7466
      %v7607 = vadd.f32 %v7575, %v7469
      %v7608 = vadd.f32 %v7576, %v7474
      %v7609 = vadd.f32 %v7577, %v7477
      %v7610 = vadd.f32 %v7578, %v7482
      %v7611 = vadd.f32 %v7579, %v7485
      %v7612 = vadd.f32 %v7580, %v7490
      %v7613 = vadd.f32 %v7581, %v7493
      %v7614 = vadd.f32 %v7582, %v7498
      %v7615 = vadd.f32 %v7583, %v7501
      %v7616 = vadd.f32 %v7584, %v7506
      %v7617 = vadd.f32 %v7585, %v7509
      %v7618 = vadd.f32 %v7586, %v7514
      %v7619 = vadd.f32 %v7587, %v7517
      %v7620 = vadd.f32 %v7588, %v7522
      %v7621 = vadd.f32 %v7589, %v7525
      %v7622 = vadd.f32 %v7590, %v7530
      %v7623 = vadd.f32 %v7591, %v7533
      %v7624 = vadd.f32 %v7592, %v7538
      %v7625 = vadd.f32 %v7593, %v7541
      %v7626 = vadd.f32 %v7594, %v7546
      %v7627 = vadd.f32 %v7595, %v7549
      %v7628 = vadd.f32 %v7596, %v7554
      %v7629 = vadd.f32 %v7597, %v7557
      %v7630 = vadd.f32 %v7598, %v7562
      %v7631 = vadd.f32 %v7599, %v7565
      %7632 = vst.msk [vmem:[#allocation4] sm:$0xff] %vm1490, %v7600
      %7633 = vst.msk [vmem:[#allocation4 + $0x8] sm:$0xff] %vm1490, %v7601
      %7634 = vst.msk [vmem:[#allocation4 + $0x10] sm:$0xff] %vm1490, %v7602
      %7635 = vst.msk [vmem:[#allocation4 + $0x18] sm:$0xff] %vm1490, %v7603
      %7636 = vst.msk [vmem:[#allocation4 + $0x20] sm:$0xff] %vm1490, %v7604
      %7637 = vst.msk [vmem:[#allocation4 + $0x28] sm:$0xff] %vm1490, %v7605
      %7638 = vst.msk [vmem:[#allocation4 + $0x30] sm:$0xff] %vm1490, %v7606
      %7639 = vst.msk [vmem:[#allocation4 + $0x38] sm:$0xff] %vm1490, %v7607
      %7640 = vst.msk [vmem:[#allocation4 + $0x40] sm:$0xff] %vm1490, %v7608
      %7641 = vst.msk [vmem:[#allocation4 + $0x48] sm:$0xff] %vm1490, %v7609
      %7642 = vst.msk [vmem:[#allocation4 + $0x50] sm:$0xff] %vm1490, %v7610
      %7643 = vst.msk [vmem:[#allocation4 + $0x58] sm:$0xff] %vm1490, %v7611
      %7644 = vst.msk [vmem:[#allocation4 + $0x60] sm:$0xff] %vm1490, %v7612
      %7645 = vst.msk [vmem:[#allocation4 + $0x68] sm:$0xff] %vm1490, %v7613
      %7646 = vst.msk [vmem:[#allocation4 + $0x70] sm:$0xff] %vm1490, %v7614
      %7647 = vst.msk [vmem:[#allocation4 + $0x78] sm:$0xff] %vm1490, %v7615
      %7648 = vst.msk [vmem:[#allocation4 + $0x80] sm:$0xff] %vm1490, %v7616
      %7649 = vst.msk [vmem:[#allocation4 + $0x88] sm:$0xff] %vm1490, %v7617
      %7650 = vst.msk [vmem:[#allocation4 + $0x90] sm:$0xff] %vm1490, %v7618
      %7651 = vst.msk [vmem:[#allocation4 + $0x98] sm:$0xff] %vm1490, %v7619
      %7652 = vst.msk [vmem:[#allocation4 + $0xa0] sm:$0xff] %vm1490, %v7620
      %7653 = vst.msk [vmem:[#allocation4 + $0xa8] sm:$0xff] %vm1490, %v7621
      %7654 = vst.msk [vmem:[#allocation4 + $0xb0] sm:$0xff] %vm1490, %v7622
      %7655 = vst.msk [vmem:[#allocation4 + $0xb8] sm:$0xff] %vm1490, %v7623
      %7656 = vst.msk [vmem:[#allocation4 + $0xc0] sm:$0xff] %vm1490, %v7624
      %7657 = vst.msk [vmem:[#allocation4 + $0xc8] sm:$0xff] %vm1490, %v7625
      %7658 = vst.msk [vmem:[#allocation4 + $0xd0] sm:$0xff] %vm1490, %v7626
      %7659 = vst.msk [vmem:[#allocation4 + $0xd8] sm:$0xff] %vm1490, %v7627
      %7660 = vst.msk [vmem:[#allocation4 + $0xe0] sm:$0xff] %vm1490, %v7628
      %7661 = vst.msk [vmem:[#allocation4 + $0xe8] sm:$0xff] %vm1490, %v7629
      %7662 = vst.msk [vmem:[#allocation4 + $0xf0] sm:$0xff] %vm1490, %v7630
      %7663 = vst.msk [vmem:[#allocation4 + $0xf8] sm:$0xff] %vm1490, %v7631
      %s7664 = scalar_lea.vmem [#allocation3], 48
      %v7665 = vld [vmem:[%s7664] sm:$0xff]
      %v7666 = vld [vmem:[%s7664 + $0x8] sm:$0xff]
      %v7667 = vld [vmem:[%s7664 + $0x18] sm:$0xff]
      %v7668 = vld [vmem:[%s7664 + $0x20] sm:$0xff]
      %v7669 = vld [vmem:[%s7664 + $0x30] sm:$0xff]
      %v7670 = vld [vmem:[%s7664 + $0x38] sm:$0xff]
      %v7671 = vld [vmem:[%s7664 + $0x48] sm:$0xff]
      %v7672 = vld [vmem:[%s7664 + $0x50] sm:$0xff]
      %v7673 = vld [vmem:[%s7664 + $0x60] sm:$0xff]
      %v7674 = vld [vmem:[%s7664 + $0x68] sm:$0xff]
      %v7675 = vld [vmem:[%s7664 + $0x78] sm:$0xff]
      %v7676 = vld [vmem:[%s7664 + $0x80] sm:$0xff]
      %v7677 = vld [vmem:[%s7664 + $0x90] sm:$0xff]
      %v7678 = vld [vmem:[%s7664 + $0x98] sm:$0xff]
      %v7679 = vld [vmem:[%s7664 + $0xa8] sm:$0xff]
      %v7680 = vld [vmem:[%s7664 + $0xb0] sm:$0xff]
      %v7681 = vld [vmem:[%s7664 + $0xc0] sm:$0xff]
      %v7682 = vld [vmem:[%s7664 + $0xc8] sm:$0xff]
      %v7683 = vld [vmem:[%s7664 + $0xd8] sm:$0xff]
      %v7684 = vld [vmem:[%s7664 + $0xe0] sm:$0xff]
      %v7685 = vld [vmem:[%s7664 + $0xf0] sm:$0xff]
      %v7686 = vld [vmem:[%s7664 + $0xf8] sm:$0xff]
      %v7687 = vld [vmem:[%s7664 + $0x108] sm:$0xff]
      %v7688 = vld [vmem:[%s7664 + $0x110] sm:$0xff]
      %v7689 = vld [vmem:[%s7664 + $0x120] sm:$0xff]
      %v7690 = vld [vmem:[%s7664 + $0x128] sm:$0xff]
      %v7691 = vld [vmem:[%s7664 + $0x138] sm:$0xff]
      %v7692 = vld [vmem:[%s7664 + $0x140] sm:$0xff]
      %v7693 = vld [vmem:[%s7664 + $0x150] sm:$0xff]
      %v7694 = vld [vmem:[%s7664 + $0x158] sm:$0xff]
      %v7695 = vld [vmem:[%s7664 + $0x168] sm:$0xff]
      %v7696 = vld [vmem:[%s7664 + $0x170] sm:$0xff]
      %v7697 = vpack.c.bf16 %v7666, %v7665
      %v7698 = vpack.c.bf16 %v7668, %v7667
      %v7699 = vpack.c.bf16 %v7670, %v7669
      %v7700 = vpack.c.bf16 %v7672, %v7671
      %v7701 = vpack.c.bf16 %v7674, %v7673
      %v7702 = vpack.c.bf16 %v7676, %v7675
      %v7703 = vpack.c.bf16 %v7678, %v7677
      %v7704 = vpack.c.bf16 %v7680, %v7679
      %v7705 = vpack.c.bf16 %v7682, %v7681
      %v7706 = vpack.c.bf16 %v7684, %v7683
      %v7707 = vpack.c.bf16 %v7686, %v7685
      %v7708 = vpack.c.bf16 %v7688, %v7687
      %v7709 = vpack.c.bf16 %v7690, %v7689
      %v7710 = vpack.c.bf16 %v7692, %v7691
      %v7711 = vpack.c.bf16 %v7694, %v7693
      %v7712 = vpack.c.bf16 %v7696, %v7695
      %s7713 = scalar_lea.vmem %s11, 96
      %v7714 = vld [vmem:[%s7713] sm:$0xf]
      %v7715 = vld [vmem:[%s7713 + $0x4] sm:$0xf]
      %v7716 = vld [vmem:[%s7713 + $0x8] sm:$0xf]
      %v7717 = vld [vmem:[%s7713 + $0xc] sm:$0xf]
      %v7722 = vunpack.c.l.b16 %v7714
      %v7723 = vunpack.c.l.b16 %v7715
      %v7724 = vunpack.c.l.b16 %v7716
      %v7725 = vunpack.c.l.b16 %v7717
      %v7726 = vpack.c.b16 %v7723, %v7722
      %v7727 = vpack.c.b16 %v7725, %v7724
      %v7731 = vsel %vm1490, %v7697, 0
      %v7734 = vsel %vm1490, %v7698, 0
      %v7737 = vsel %vm1490, %v7699, 0
      %v7740 = vsel %vm1490, %v7700, 0
      %v7743 = vsel %vm1490, %v7701, 0
      %v7746 = vsel %vm1490, %v7702, 0
      %v7749 = vsel %vm1490, %v7703, 0
      %v7752 = vsel %vm1490, %v7704, 0
      %v7755 = vsel %vm1490, %v7705, 0
      %v7758 = vsel %vm1490, %v7706, 0
      %v7761 = vsel %vm1490, %v7707, 0
      %v7764 = vsel %vm1490, %v7708, 0
      %v7767 = vsel %vm1490, %v7709, 0
      %v7770 = vsel %vm1490, %v7710, 0
      %v7773 = vsel %vm1490, %v7711, 0
      %v7776 = vsel %vm1490, %v7712, 0
      %7778 = vmatprep.subr.bf16.mxu0 0
      %7779 = vmatpush1.bf16.msra.mxu0 %v7726
      %7780 = vmatprep.subr.bf16.mxu0 0
      %7781 = vmatpush1.bf16.msra.mxu0 %v7727
      %7782 = vmatprep.subr.bf16.mxu0 0
      %7783 = vmatpush1.bf16.msra.mxu0 0
      %7784 = vmatprep.subr.bf16.mxu0 0
      %7785 = vmatpush1.bf16.msra.mxu0 0
      %7786 = vmatprep.subr.bf16.mxu0 0
      %7787 = vmatpush1.bf16.msra.mxu0 0
      %7788 = vmatprep.subr.bf16.mxu0 0
      %7789 = vmatpush1.bf16.msra.mxu0 0
      %7790 = vmatprep.subr.bf16.mxu0 0
      %7791 = vmatpush1.bf16.msra.mxu0 0
      %7792 = vmatprep.subr.bf16.mxu0 0
      %7793 = vmatpush1.bf16.msra.mxu0 0
      %7794 = vmatprep.subr.bf16.mxu0 0
      %7795 = vmatpush1.bf16.msra.mxu0 0
      %7796 = vmatprep.subr.bf16.mxu0 0
      %7797 = vmatpush1.bf16.msra.mxu0 0
      %7798 = vmatprep.subr.bf16.mxu0 0
      %7799 = vmatpush1.bf16.msra.mxu0 0
      %7800 = vmatprep.subr.bf16.mxu0 0
      %7801 = vmatpush1.bf16.msra.mxu0 0
      %7802 = vmatprep.subr.bf16.mxu0 0
      %7803 = vmatpush1.bf16.msra.mxu0 0
      %7804 = vmatprep.subr.bf16.mxu0 0
      %7805 = vmatpush1.bf16.msra.mxu0 0
      %7806 = vmatprep.subr.bf16.mxu0 0
      %7807 = vmatpush1.bf16.msra.mxu0 0
      %7808 = vmatprep.subr.bf16.mxu0 0
      %7809 = vmatpush1.bf16.msra.mxu0 0
      %7810 = vmatprep.mubr.bf16.mxu0 0
      %7811 = vmatmul.mubr.bf16.gmra.mrb[0].mxu0 %v7731
      %v7812 = vpop.f32.mrb[0].mxu0
      %v7813 = vadd.f32 0.0, %v7812
      %v7814 = vpop.f32.mrb[0].mxu0
      %v7815 = vpop.f32.mrb[0].mxu0
      %v7816 = vadd.f32 0.0, %v7815
      %v7817 = vpop.f32.mrb[0].mxu0
      %7818 = vmatprep.mubr.bf16.mxu0 0
      %7819 = vmatmul.mubr.bf16.gmra.mrb[0].mxu0 %v7734
      %v7820 = vpop.f32.mrb[0].mxu0
      %v7821 = vadd.f32 0.0, %v7820
      %v7822 = vpop.f32.mrb[0].mxu0
      %v7823 = vpop.f32.mrb[0].mxu0
      %v7824 = vadd.f32 0.0, %v7823
      %v7825 = vpop.f32.mrb[0].mxu0
      %7826 = vmatprep.mubr.bf16.mxu0 0
      %7827 = vmatmul.mubr.bf16.gmra.mrb[0].mxu0 %v7737
      %v7828 = vpop.f32.mrb[0].mxu0
      %v7829 = vadd.f32 0.0, %v7828
      %v7830 = vpop.f32.mrb[0].mxu0
      %v7831 = vpop.f32.mrb[0].mxu0
      %v7832 = vadd.f32 0.0, %v7831
      %v7833 = vpop.f32.mrb[0].mxu0
      %7834 = vmatprep.mubr.bf16.mxu0 0
      %7835 = vmatmul.mubr.bf16.gmra.mrb[0].mxu0 %v7740
      %v7836 = vpop.f32.mrb[0].mxu0
      %v7837 = vadd.f32 0.0, %v7836
      %v7838 = vpop.f32.mrb[0].mxu0
      %v7839 = vpop.f32.mrb[0].mxu0
      %v7840 = vadd.f32 0.0, %v7839
      %v7841 = vpop.f32.mrb[0].mxu0
      %7842 = vmatprep.mubr.bf16.mxu0 0
      %7843 = vmatmul.mubr.bf16.gmra.mrb[0].mxu0 %v7743
      %v7844 = vpop.f32.mrb[0].mxu0
      %v7845 = vadd.f32 0.0, %v7844
      %v7846 = vpop.f32.mrb[0].mxu0
      %v7847 = vpop.f32.mrb[0].mxu0
      %v7848 = vadd.f32 0.0, %v7847
      %v7849 = vpop.f32.mrb[0].mxu0
      %7850 = vmatprep.mubr.bf16.mxu0 0
      %7851 = vmatmul.mubr.bf16.gmra.mrb[0].mxu0 %v7746
      %v7852 = vpop.f32.mrb[0].mxu0
      %v7853 = vadd.f32 0.0, %v7852
      %v7854 = vpop.f32.mrb[0].mxu0
      %v7855 = vpop.f32.mrb[0].mxu0
      %v7856 = vadd.f32 0.0, %v7855
      %v7857 = vpop.f32.mrb[0].mxu0
      %7858 = vmatprep.mubr.bf16.mxu0 0
      %7859 = vmatmul.mubr.bf16.gmra.mrb[0].mxu0 %v7749
      %v7860 = vpop.f32.mrb[0].mxu0
      %v7861 = vadd.f32 0.0, %v7860
      %v7862 = vpop.f32.mrb[0].mxu0
      %v7863 = vpop.f32.mrb[0].mxu0
      %v7864 = vadd.f32 0.0, %v7863
      %v7865 = vpop.f32.mrb[0].mxu0
      %7866 = vmatprep.mubr.bf16.mxu0 0
      %7867 = vmatmul.mubr.bf16.gmra.mrb[0].mxu0 %v7752
      %v7868 = vpop.f32.mrb[0].mxu0
      %v7869 = vadd.f32 0.0, %v7868
      %v7870 = vpop.f32.mrb[0].mxu0
      %v7871 = vpop.f32.mrb[0].mxu0
      %v7872 = vadd.f32 0.0, %v7871
      %v7873 = vpop.f32.mrb[0].mxu0
      %7874 = vmatprep.mubr.bf16.mxu0 0
      %7875 = vmatmul.mubr.bf16.gmra.mrb[0].mxu0 %v7755
      %v7876 = vpop.f32.mrb[0].mxu0
      %v7877 = vadd.f32 0.0, %v7876
      %v7878 = vpop.f32.mrb[0].mxu0
      %v7879 = vpop.f32.mrb[0].mxu0
      %v7880 = vadd.f32 0.0, %v7879
      %v7881 = vpop.f32.mrb[0].mxu0
      %7882 = vmatprep.mubr.bf16.mxu0 0
      %7883 = vmatmul.mubr.bf16.gmra.mrb[0].mxu0 %v7758
      %v7884 = vpop.f32.mrb[0].mxu0
      %v7885 = vadd.f32 0.0, %v7884
      %v7886 = vpop.f32.mrb[0].mxu0
      %v7887 = vpop.f32.mrb[0].mxu0
      %v7888 = vadd.f32 0.0, %v7887
      %v7889 = vpop.f32.mrb[0].mxu0
      %7890 = vmatprep.mubr.bf16.mxu0 0
      %7891 = vmatmul.mubr.bf16.gmra.mrb[0].mxu0 %v7761
      %v7892 = vpop.f32.mrb[0].mxu0
      %v7893 = vadd.f32 0.0, %v7892
      %v7894 = vpop.f32.mrb[0].mxu0
      %v7895 = vpop.f32.mrb[0].mxu0
      %v7896 = vadd.f32 0.0, %v7895
      %v7897 = vpop.f32.mrb[0].mxu0
      %7898 = vmatprep.mubr.bf16.mxu0 0
      %7899 = vmatmul.mubr.bf16.gmra.mrb[0].mxu0 %v7764
      %v7900 = vpop.f32.mrb[0].mxu0
      %v7901 = vadd.f32 0.0, %v7900
      %v7902 = vpop.f32.mrb[0].mxu0
      %v7903 = vpop.f32.mrb[0].mxu0
      %v7904 = vadd.f32 0.0, %v7903
      %v7905 = vpop.f32.mrb[0].mxu0
      %7906 = vmatprep.mubr.bf16.mxu0 0
      %7907 = vmatmul.mubr.bf16.gmra.mrb[0].mxu0 %v7767
      %v7908 = vpop.f32.mrb[0].mxu0
      %v7909 = vadd.f32 0.0, %v7908
      %v7910 = vpop.f32.mrb[0].mxu0
      %v7911 = vpop.f32.mrb[0].mxu0
      %v7912 = vadd.f32 0.0, %v7911
      %v7913 = vpop.f32.mrb[0].mxu0
      %7914 = vmatprep.mubr.bf16.mxu0 0
      %7915 = vmatmul.mubr.bf16.gmra.mrb[0].mxu0 %v7770
      %v7916 = vpop.f32.mrb[0].mxu0
      %v7917 = vadd.f32 0.0, %v7916
      %v7918 = vpop.f32.mrb[0].mxu0
      %v7919 = vpop.f32.mrb[0].mxu0
      %v7920 = vadd.f32 0.0, %v7919
      %v7921 = vpop.f32.mrb[0].mxu0
      %7922 = vmatprep.mubr.bf16.mxu0 0
      %7923 = vmatmul.mubr.bf16.gmra.mrb[0].mxu0 %v7773
      %v7924 = vpop.f32.mrb[0].mxu0
      %v7925 = vadd.f32 0.0, %v7924
      %v7926 = vpop.f32.mrb[0].mxu0
      %v7927 = vpop.f32.mrb[0].mxu0
      %v7928 = vadd.f32 0.0, %v7927
      %v7929 = vpop.f32.mrb[0].mxu0
      %7930 = vmatprep.mubr.bf16.mxu0 0
      %7931 = vmatmul.mubr.bf16.gmra.mrb[0].mxu0 %v7776
      %v7932 = vpop.f32.mrb[0].mxu0
      %v7933 = vadd.f32 0.0, %v7932
      %v7934 = vpop.f32.mrb[0].mxu0
      %v7935 = vpop.f32.mrb[0].mxu0
      %v7936 = vadd.f32 0.0, %v7935
      %v7937 = vpop.f32.mrb[0].mxu0
      %7938 = vdwg.mxu0
      %v7939 = vld [vmem:[#allocation4] sm:$0xff]
      %v7940 = vld [vmem:[#allocation4 + $0x8] sm:$0xff]
      %v7941 = vld [vmem:[#allocation4 + $0x10] sm:$0xff]
      %v7942 = vld [vmem:[#allocation4 + $0x18] sm:$0xff]
      %v7943 = vld [vmem:[#allocation4 + $0x20] sm:$0xff]
      %v7944 = vld [vmem:[#allocation4 + $0x28] sm:$0xff]
      %v7945 = vld [vmem:[#allocation4 + $0x30] sm:$0xff]
      %v7946 = vld [vmem:[#allocation4 + $0x38] sm:$0xff]
      %v7947 = vld [vmem:[#allocation4 + $0x40] sm:$0xff]
      %v7948 = vld [vmem:[#allocation4 + $0x48] sm:$0xff]
      %v7949 = vld [vmem:[#allocation4 + $0x50] sm:$0xff]
      %v7950 = vld [vmem:[#allocation4 + $0x58] sm:$0xff]
      %v7951 = vld [vmem:[#allocation4 + $0x60] sm:$0xff]
      %v7952 = vld [vmem:[#allocation4 + $0x68] sm:$0xff]
      %v7953 = vld [vmem:[#allocation4 + $0x70] sm:$0xff]
      %v7954 = vld [vmem:[#allocation4 + $0x78] sm:$0xff]
      %v7955 = vld [vmem:[#allocation4 + $0x80] sm:$0xff]
      %v7956 = vld [vmem:[#allocation4 + $0x88] sm:$0xff]
      %v7957 = vld [vmem:[#allocation4 + $0x90] sm:$0xff]
      %v7958 = vld [vmem:[#allocation4 + $0x98] sm:$0xff]
      %v7959 = vld [vmem:[#allocation4 + $0xa0] sm:$0xff]
      %v7960 = vld [vmem:[#allocation4 + $0xa8] sm:$0xff]
      %v7961 = vld [vmem:[#allocation4 + $0xb0] sm:$0xff]
      %v7962 = vld [vmem:[#allocation4 + $0xb8] sm:$0xff]
      %v7963 = vld [vmem:[#allocation4 + $0xc0] sm:$0xff]
      %v7964 = vld [vmem:[#allocation4 + $0xc8] sm:$0xff]
      %v7965 = vld [vmem:[#allocation4 + $0xd0] sm:$0xff]
      %v7966 = vld [vmem:[#allocation4 + $0xd8] sm:$0xff]
      %v7967 = vld [vmem:[#allocation4 + $0xe0] sm:$0xff]
      %v7968 = vld [vmem:[#allocation4 + $0xe8] sm:$0xff]
      %v7969 = vld [vmem:[#allocation4 + $0xf0] sm:$0xff]
      %v7970 = vld [vmem:[#allocation4 + $0xf8] sm:$0xff]
      %v7971 = vadd.f32 %v7939, %v7813
      %v7972 = vadd.f32 %v7940, %v7816
      %v7973 = vadd.f32 %v7941, %v7821
      %v7974 = vadd.f32 %v7942, %v7824
      %v7975 = vadd.f32 %v7943, %v7829
      %v7976 = vadd.f32 %v7944, %v7832
      %v7977 = vadd.f32 %v7945, %v7837
      %v7978 = vadd.f32 %v7946, %v7840
      %v7979 = vadd.f32 %v7947, %v7845
      %v7980 = vadd.f32 %v7948, %v7848
      %v7981 = vadd.f32 %v7949, %v7853
      %v7982 = vadd.f32 %v7950, %v7856
      %v7983 = vadd.f32 %v7951, %v7861
      %v7984 = vadd.f32 %v7952, %v7864
      %v7985 = vadd.f32 %v7953, %v7869
      %v7986 = vadd.f32 %v7954, %v7872
      %v7987 = vadd.f32 %v7955, %v7877
      %v7988 = vadd.f32 %v7956, %v7880
      %v7989 = vadd.f32 %v7957, %v7885
      %v7990 = vadd.f32 %v7958, %v7888
      %v7991 = vadd.f32 %v7959, %v7893
      %v7992 = vadd.f32 %v7960, %v7896
      %v7993 = vadd.f32 %v7961, %v7901
      %v7994 = vadd.f32 %v7962, %v7904
      %v7995 = vadd.f32 %v7963, %v7909
      %v7996 = vadd.f32 %v7964, %v7912
      %v7997 = vadd.f32 %v7965, %v7917
      %v7998 = vadd.f32 %v7966, %v7920
      %v7999 = vadd.f32 %v7967, %v7925
      %v8000 = vadd.f32 %v7968, %v7928
      %v8001 = vadd.f32 %v7969, %v7933
      %v8002 = vadd.f32 %v7970, %v7936
      %8003 = vst.msk [vmem:[#allocation4] sm:$0xff] %vm1490, %v7971
      %8004 = vst.msk [vmem:[#allocation4 + $0x8] sm:$0xff] %vm1490, %v7972
      %8005 = vst.msk [vmem:[#allocation4 + $0x10] sm:$0xff] %vm1490, %v7973
      %8006 = vst.msk [vmem:[#allocation4 + $0x18] sm:$0xff] %vm1490, %v7974
      %8007 = vst.msk [vmem:[#allocation4 + $0x20] sm:$0xff] %vm1490, %v7975
      %8008 = vst.msk [vmem:[#allocation4 + $0x28] sm:$0xff] %vm1490, %v7976
      %8009 = vst.msk [vmem:[#allocation4 + $0x30] sm:$0xff] %vm1490, %v7977
      %8010 = vst.msk [vmem:[#allocation4 + $0x38] sm:$0xff] %vm1490, %v7978
      %8011 = vst.msk [vmem:[#allocation4 + $0x40] sm:$0xff] %vm1490, %v7979
      %8012 = vst.msk [vmem:[#allocation4 + $0x48] sm:$0xff] %vm1490, %v7980
      %8013 = vst.msk [vmem:[#allocation4 + $0x50] sm:$0xff] %vm1490, %v7981
      %8014 = vst.msk [vmem:[#allocation4 + $0x58] sm:$0xff] %vm1490, %v7982
      %8015 = vst.msk [vmem:[#allocation4 + $0x60] sm:$0xff] %vm1490, %v7983
      %8016 = vst.msk [vmem:[#allocation4 + $0x68] sm:$0xff] %vm1490, %v7984
      %8017 = vst.msk [vmem:[#allocation4 + $0x70] sm:$0xff] %vm1490, %v7985
      %8018 = vst.msk [vmem:[#allocation4 + $0x78] sm:$0xff] %vm1490, %v7986
      %8019 = vst.msk [vmem:[#allocation4 + $0x80] sm:$0xff] %vm1490, %v7987
      %8020 = vst.msk [vmem:[#allocation4 + $0x88] sm:$0xff] %vm1490, %v7988
      %8021 = vst.msk [vmem:[#allocation4 + $0x90] sm:$0xff] %vm1490, %v7989
      %8022 = vst.msk [vmem:[#allocation4 + $0x98] sm:$0xff] %vm1490, %v7990
      %8023 = vst.msk [vmem:[#allocation4 + $0xa0] sm:$0xff] %vm1490, %v7991
      %8024 = vst.msk [vmem:[#allocation4 + $0xa8] sm:$0xff] %vm1490, %v7992
      %8025 = vst.msk [vmem:[#allocation4 + $0xb0] sm:$0xff] %vm1490, %v7993
      %8026 = vst.msk [vmem:[#allocation4 + $0xb8] sm:$0xff] %vm1490, %v7994
      %8027 = vst.msk [vmem:[#allocation4 + $0xc0] sm:$0xff] %vm1490, %v7995
      %8028 = vst.msk [vmem:[#allocation4 + $0xc8] sm:$0xff] %vm1490, %v7996
      %8029 = vst.msk [vmem:[#allocation4 + $0xd0] sm:$0xff] %vm1490, %v7997
      %8030 = vst.msk [vmem:[#allocation4 + $0xd8] sm:$0xff] %vm1490, %v7998
      %8031 = vst.msk [vmem:[#allocation4 + $0xe0] sm:$0xff] %vm1490, %v7999
      %8032 = vst.msk [vmem:[#allocation4 + $0xe8] sm:$0xff] %vm1490, %v8000
      %8033 = vst.msk [vmem:[#allocation4 + $0xf0] sm:$0xff] %vm1490, %v8001
      %8034 = vst.msk [vmem:[#allocation4 + $0xf8] sm:$0xff] %vm1490, %v8002
      %v8035 = vld [vmem:[%s7664 + $0x1] sm:$0xff]
      %v8036 = vld [vmem:[%s7664 + $0x9] sm:$0xff]
      %v8037 = vld [vmem:[%s7664 + $0x19] sm:$0xff]
      %v8038 = vld [vmem:[%s7664 + $0x21] sm:$0xff]
      %v8039 = vld [vmem:[%s7664 + $0x31] sm:$0xff]
      %v8040 = vld [vmem:[%s7664 + $0x39] sm:$0xff]
      %v8041 = vld [vmem:[%s7664 + $0x49] sm:$0xff]
      %v8042 = vld [vmem:[%s7664 + $0x51] sm:$0xff]
      %v8043 = vld [vmem:[%s7664 + $0x61] sm:$0xff]
      %v8044 = vld [vmem:[%s7664 + $0x69] sm:$0xff]
      %v8045 = vld [vmem:[%s7664 + $0x79] sm:$0xff]
      %v8046 = vld [vmem:[%s7664 + $0x81] sm:$0xff]
      %v8047 = vld [vmem:[%s7664 + $0x91] sm:$0xff]
      %v8048 = vld [vmem:[%s7664 + $0x99] sm:$0xff]
      %v8049 = vld [vmem:[%s7664 + $0xa9] sm:$0xff]
      %v8050 = vld [vmem:[%s7664 + $0xb1] sm:$0xff]
      %v8051 = vld [vmem:[%s7664 + $0xc1] sm:$0xff]
      %v8052 = vld [vmem:[%s7664 + $0xc9] sm:$0xff]
      %v8053 = vld [vmem:[%s7664 + $0xd9] sm:$0xff]
      %v8054 = vld [vmem:[%s7664 + $0xe1] sm:$0xff]
      %v8055 = vld [vmem:[%s7664 + $0xf1] sm:$0xff]
      %v8056 = vld [vmem:[%s7664 + $0xf9] sm:$0xff]
      %v8057 = vld [vmem:[%s7664 + $0x109] sm:$0xff]
      %v8058 = vld [vmem:[%s7664 + $0x111] sm:$0xff]
      %v8059 = vld [vmem:[%s7664 + $0x121] sm:$0xff]
      %v8060 = vld [vmem:[%s7664 + $0x129] sm:$0xff]
      %v8061 = vld [vmem:[%s7664 + $0x139] sm:$0xff]
      %v8062 = vld [vmem:[%s7664 + $0x141] sm:$0xff]
      %v8063 = vld [vmem:[%s7664 + $0x151] sm:$0xff]
      %v8064 = vld [vmem:[%s7664 + $0x159] sm:$0xff]
      %v8065 = vld [vmem:[%s7664 + $0x169] sm:$0xff]
      %v8066 = vld [vmem:[%s7664 + $0x171] sm:$0xff]
      %v8067 = vpack.c.bf16 %v8036, %v8035
      %v8068 = vpack.c.bf16 %v8038, %v8037
      %v8069 = vpack.c.bf16 %v8040, %v8039
      %v8070 = vpack.c.bf16 %v8042, %v8041
      %v8071 = vpack.c.bf16 %v8044, %v8043
      %v8072 = vpack.c.bf16 %v8046, %v8045
      %v8073 = vpack.c.bf16 %v8048, %v8047
      %v8074 = vpack.c.bf16 %v8050, %v8049
      %v8075 = vpack.c.bf16 %v8052, %v8051
      %v8076 = vpack.c.bf16 %v8054, %v8053
      %v8077 = vpack.c.bf16 %v8056, %v8055
      %v8078 = vpack.c.bf16 %v8058, %v8057
      %v8079 = vpack.c.bf16 %v8060, %v8059
      %v8080 = vpack.c.bf16 %v8062, %v8061
      %v8081 = vpack.c.bf16 %v8064, %v8063
      %v8082 = vpack.c.bf16 %v8066, %v8065
      %s8083 = scalar_lea.vmem %s11, 112
      %v8084 = vld [vmem:[%s8083] sm:$0xf]
      %v8085 = vld [vmem:[%s8083 + $0x4] sm:$0xf]
      %v8086 = vld [vmem:[%s8083 + $0x8] sm:$0xf]
      %v8087 = vld [vmem:[%s8083 + $0xc] sm:$0xf]
      %v8092 = vunpack.c.l.b16 %v8084
      %v8093 = vunpack.c.l.b16 %v8085
      %v8094 = vunpack.c.l.b16 %v8086
      %v8095 = vunpack.c.l.b16 %v8087
      %v8096 = vpack.c.b16 %v8093, %v8092
      %v8097 = vpack.c.b16 %v8095, %v8094
      %v8101 = vsel %vm1490, %v8067, 0
      %v8104 = vsel %vm1490, %v8068, 0
      %v8107 = vsel %vm1490, %v8069, 0
      %v8110 = vsel %vm1490, %v8070, 0
      %v8113 = vsel %vm1490, %v8071, 0
      %v8116 = vsel %vm1490, %v8072, 0
      %v8119 = vsel %vm1490, %v8073, 0
      %v8122 = vsel %vm1490, %v8074, 0
      %v8125 = vsel %vm1490, %v8075, 0
      %v8128 = vsel %vm1490, %v8076, 0
      %v8131 = vsel %vm1490, %v8077, 0
      %v8134 = vsel %vm1490, %v8078, 0
      %v8137 = vsel %vm1490, %v8079, 0
      %v8140 = vsel %vm1490, %v8080, 0
      %v8143 = vsel %vm1490, %v8081, 0
      %v8146 = vsel %vm1490, %v8082, 0
      %8148 = vmatprep.subr.bf16.mxu0 0
      %8149 = vmatpush1.bf16.msra.mxu0 %v8096
      %8150 = vmatprep.subr.bf16.mxu0 0
      %8151 = vmatpush1.bf16.msra.mxu0 %v8097
      %8152 = vmatprep.subr.bf16.mxu0 0
      %8153 = vmatpush1.bf16.msra.mxu0 0
      %8154 = vmatprep.subr.bf16.mxu0 0
      %8155 = vmatpush1.bf16.msra.mxu0 0
      %8156 = vmatprep.subr.bf16.mxu0 0
      %8157 = vmatpush1.bf16.msra.mxu0 0
      %8158 = vmatprep.subr.bf16.mxu0 0
      %8159 = vmatpush1.bf16.msra.mxu0 0
      %8160 = vmatprep.subr.bf16.mxu0 0
      %8161 = vmatpush1.bf16.msra.mxu0 0
      %8162 = vmatprep.subr.bf16.mxu0 0
      %8163 = vmatpush1.bf16.msra.mxu0 0
      %8164 = vmatprep.subr.bf16.mxu0 0
      %8165 = vmatpush1.bf16.msra.mxu0 0
      %8166 = vmatprep.subr.bf16.mxu0 0
      %8167 = vmatpush1.bf16.msra.mxu0 0
      %8168 = vmatprep.subr.bf16.mxu0 0
      %8169 = vmatpush1.bf16.msra.mxu0 0
      %8170 = vmatprep.subr.bf16.mxu0 0
      %8171 = vmatpush1.bf16.msra.mxu0 0
      %8172 = vmatprep.subr.bf16.mxu0 0
      %8173 = vmatpush1.bf16.msra.mxu0 0
      %8174 = vmatprep.subr.bf16.mxu0 0
      %8175 = vmatpush1.bf16.msra.mxu0 0
      %8176 = vmatprep.subr.bf16.mxu0 0
      %8177 = vmatpush1.bf16.msra.mxu0 0
      %8178 = vmatprep.subr.bf16.mxu0 0
      %8179 = vmatpush1.bf16.msra.mxu0 0
      %8180 = vmatprep.mubr.bf16.mxu0 0
      %8181 = vmatmul.mubr.bf16.gmra.mrb[0].mxu0 %v8101
      %v8182 = vpop.f32.mrb[0].mxu0
      %v8183 = vadd.f32 0.0, %v8182
      %v8184 = vpop.f32.mrb[0].mxu0
      %v8185 = vpop.f32.mrb[0].mxu0
      %v8186 = vadd.f32 0.0, %v8185
      %v8187 = vpop.f32.mrb[0].mxu0
      %8188 = vmatprep.mubr.bf16.mxu0 0
      %8189 = vmatmul.mubr.bf16.gmra.mrb[0].mxu0 %v8104
      %v8190 = vpop.f32.mrb[0].mxu0
      %v8191 = vadd.f32 0.0, %v8190
      %v8192 = vpop.f32.mrb[0].mxu0
      %v8193 = vpop.f32.mrb[0].mxu0
      %v8194 = vadd.f32 0.0, %v8193
      %v8195 = vpop.f32.mrb[0].mxu0
      %8196 = vmatprep.mubr.bf16.mxu0 0
      %8197 = vmatmul.mubr.bf16.gmra.mrb[0].mxu0 %v8107
      %v8198 = vpop.f32.mrb[0].mxu0
      %v8199 = vadd.f32 0.0, %v8198
      %v8200 = vpop.f32.mrb[0].mxu0
      %v8201 = vpop.f32.mrb[0].mxu0
      %v8202 = vadd.f32 0.0, %v8201
      %v8203 = vpop.f32.mrb[0].mxu0
      %8204 = vmatprep.mubr.bf16.mxu0 0
      %8205 = vmatmul.mubr.bf16.gmra.mrb[0].mxu0 %v8110
      %v8206 = vpop.f32.mrb[0].mxu0
      %v8207 = vadd.f32 0.0, %v8206
      %v8208 = vpop.f32.mrb[0].mxu0
      %v8209 = vpop.f32.mrb[0].mxu0
      %v8210 = vadd.f32 0.0, %v8209
      %v8211 = vpop.f32.mrb[0].mxu0
      %8212 = vmatprep.mubr.bf16.mxu0 0
      %8213 = vmatmul.mubr.bf16.gmra.mrb[0].mxu0 %v8113
      %v8214 = vpop.f32.mrb[0].mxu0
      %v8215 = vadd.f32 0.0, %v8214
      %v8216 = vpop.f32.mrb[0].mxu0
      %v8217 = vpop.f32.mrb[0].mxu0
      %v8218 = vadd.f32 0.0, %v8217
      %v8219 = vpop.f32.mrb[0].mxu0
      %8220 = vmatprep.mubr.bf16.mxu0 0
      %8221 = vmatmul.mubr.bf16.gmra.mrb[0].mxu0 %v8116
      %v8222 = vpop.f32.mrb[0].mxu0
      %v8223 = vadd.f32 0.0, %v8222
      %v8224 = vpop.f32.mrb[0].mxu0
      %v8225 = vpop.f32.mrb[0].mxu0
      %v8226 = vadd.f32 0.0, %v8225
      %v8227 = vpop.f32.mrb[0].mxu0
      %8228 = vmatprep.mubr.bf16.mxu0 0
      %8229 = vmatmul.mubr.bf16.gmra.mrb[0].mxu0 %v8119
      %v8230 = vpop.f32.mrb[0].mxu0
      %v8231 = vadd.f32 0.0, %v8230
      %v8232 = vpop.f32.mrb[0].mxu0
      %v8233 = vpop.f32.mrb[0].mxu0
      %v8234 = vadd.f32 0.0, %v8233
      %v8235 = vpop.f32.mrb[0].mxu0
      %8236 = vmatprep.mubr.bf16.mxu0 0
      %8237 = vmatmul.mubr.bf16.gmra.mrb[0].mxu0 %v8122
      %v8238 = vpop.f32.mrb[0].mxu0
      %v8239 = vadd.f32 0.0, %v8238
      %v8240 = vpop.f32.mrb[0].mxu0
      %v8241 = vpop.f32.mrb[0].mxu0
      %v8242 = vadd.f32 0.0, %v8241
      %v8243 = vpop.f32.mrb[0].mxu0
      %8244 = vmatprep.mubr.bf16.mxu0 0
      %8245 = vmatmul.mubr.bf16.gmra.mrb[0].mxu0 %v8125
      %v8246 = vpop.f32.mrb[0].mxu0
      %v8247 = vadd.f32 0.0, %v8246
      %v8248 = vpop.f32.mrb[0].mxu0
      %v8249 = vpop.f32.mrb[0].mxu0
      %v8250 = vadd.f32 0.0, %v8249
      %v8251 = vpop.f32.mrb[0].mxu0
      %8252 = vmatprep.mubr.bf16.mxu0 0
      %8253 = vmatmul.mubr.bf16.gmra.mrb[0].mxu0 %v8128
      %v8254 = vpop.f32.mrb[0].mxu0
      %v8255 = vadd.f32 0.0, %v8254
      %v8256 = vpop.f32.mrb[0].mxu0
      %v8257 = vpop.f32.mrb[0].mxu0
      %v8258 = vadd.f32 0.0, %v8257
      %v8259 = vpop.f32.mrb[0].mxu0
      %8260 = vmatprep.mubr.bf16.mxu0 0
      %8261 = vmatmul.mubr.bf16.gmra.mrb[0].mxu0 %v8131
      %v8262 = vpop.f32.mrb[0].mxu0
      %v8263 = vadd.f32 0.0, %v8262
      %v8264 = vpop.f32.mrb[0].mxu0
      %v8265 = vpop.f32.mrb[0].mxu0
      %v8266 = vadd.f32 0.0, %v8265
      %v8267 = vpop.f32.mrb[0].mxu0
      %8268 = vmatprep.mubr.bf16.mxu0 0
      %8269 = vmatmul.mubr.bf16.gmra.mrb[0].mxu0 %v8134
      %v8270 = vpop.f32.mrb[0].mxu0
      %v8271 = vadd.f32 0.0, %v8270
      %v8272 = vpop.f32.mrb[0].mxu0
      %v8273 = vpop.f32.mrb[0].mxu0
      %v8274 = vadd.f32 0.0, %v8273
      %v8275 = vpop.f32.mrb[0].mxu0
      %8276 = vmatprep.mubr.bf16.mxu0 0
      %8277 = vmatmul.mubr.bf16.gmra.mrb[0].mxu0 %v8137
      %v8278 = vpop.f32.mrb[0].mxu0
      %v8279 = vadd.f32 0.0, %v8278
      %v8280 = vpop.f32.mrb[0].mxu0
      %v8281 = vpop.f32.mrb[0].mxu0
      %v8282 = vadd.f32 0.0, %v8281
      %v8283 = vpop.f32.mrb[0].mxu0
      %8284 = vmatprep.mubr.bf16.mxu0 0
      %8285 = vmatmul.mubr.bf16.gmra.mrb[0].mxu0 %v8140
      %v8286 = vpop.f32.mrb[0].mxu0
      %v8287 = vadd.f32 0.0, %v8286
      %v8288 = vpop.f32.mrb[0].mxu0
      %v8289 = vpop.f32.mrb[0].mxu0
      %v8290 = vadd.f32 0.0, %v8289
      %v8291 = vpop.f32.mrb[0].mxu0
      %8292 = vmatprep.mubr.bf16.mxu0 0
      %8293 = vmatmul.mubr.bf16.gmra.mrb[0].mxu0 %v8143
      %v8294 = vpop.f32.mrb[0].mxu0
      %v8295 = vadd.f32 0.0, %v8294
      %v8296 = vpop.f32.mrb[0].mxu0
      %v8297 = vpop.f32.mrb[0].mxu0
      %v8298 = vadd.f32 0.0, %v8297
      %v8299 = vpop.f32.mrb[0].mxu0
      %8300 = vmatprep.mubr.bf16.mxu0 0
      %8301 = vmatmul.mubr.bf16.gmra.mrb[0].mxu0 %v8146
      %v8302 = vpop.f32.mrb[0].mxu0
      %v8303 = vadd.f32 0.0, %v8302
      %v8304 = vpop.f32.mrb[0].mxu0
      %v8305 = vpop.f32.mrb[0].mxu0
      %v8306 = vadd.f32 0.0, %v8305
      %v8307 = vpop.f32.mrb[0].mxu0
      %8308 = vdwg.mxu0
      %v8309 = vld [vmem:[#allocation4] sm:$0xff]
      %v8310 = vld [vmem:[#allocation4 + $0x8] sm:$0xff]
      %v8311 = vld [vmem:[#allocation4 + $0x10] sm:$0xff]
      %v8312 = vld [vmem:[#allocation4 + $0x18] sm:$0xff]
      %v8313 = vld [vmem:[#allocation4 + $0x20] sm:$0xff]
      %v8314 = vld [vmem:[#allocation4 + $0x28] sm:$0xff]
      %v8315 = vld [vmem:[#allocation4 + $0x30] sm:$0xff]
      %v8316 = vld [vmem:[#allocation4 + $0x38] sm:$0xff]
      %v8317 = vld [vmem:[#allocation4 + $0x40] sm:$0xff]
      %v8318 = vld [vmem:[#allocation4 + $0x48] sm:$0xff]
      %v8319 = vld [vmem:[#allocation4 + $0x50] sm:$0xff]
      %v8320 = vld [vmem:[#allocation4 + $0x58] sm:$0xff]
      %v8321 = vld [vmem:[#allocation4 + $0x60] sm:$0xff]
      %v8322 = vld [vmem:[#allocation4 + $0x68] sm:$0xff]
      %v8323 = vld [vmem:[#allocation4 + $0x70] sm:$0xff]
      %v8324 = vld [vmem:[#allocation4 + $0x78] sm:$0xff]
      %v8325 = vld [vmem:[#allocation4 + $0x80] sm:$0xff]
      %v8326 = vld [vmem:[#allocation4 + $0x88] sm:$0xff]
      %v8327 = vld [vmem:[#allocation4 + $0x90] sm:$0xff]
      %v8328 = vld [vmem:[#allocation4 + $0x98] sm:$0xff]
      %v8329 = vld [vmem:[#allocation4 + $0xa0] sm:$0xff]
      %v8330 = vld [vmem:[#allocation4 + $0xa8] sm:$0xff]
      %v8331 = vld [vmem:[#allocation4 + $0xb0] sm:$0xff]
      %v8332 = vld [vmem:[#allocation4 + $0xb8] sm:$0xff]
      %v8333 = vld [vmem:[#allocation4 + $0xc0] sm:$0xff]
      %v8334 = vld [vmem:[#allocation4 + $0xc8] sm:$0xff]
      %v8335 = vld [vmem:[#allocation4 + $0xd0] sm:$0xff]
      %v8336 = vld [vmem:[#allocation4 + $0xd8] sm:$0xff]
      %v8337 = vld [vmem:[#allocation4 + $0xe0] sm:$0xff]
      %v8338 = vld [vmem:[#allocation4 + $0xe8] sm:$0xff]
      %v8339 = vld [vmem:[#allocation4 + $0xf0] sm:$0xff]
      %v8340 = vld [vmem:[#allocation4 + $0xf8] sm:$0xff]
      %v8341 = vadd.f32 %v8309, %v8183
      %v8342 = vadd.f32 %v8310, %v8186
      %v8343 = vadd.f32 %v8311, %v8191
      %v8344 = vadd.f32 %v8312, %v8194
      %v8345 = vadd.f32 %v8313, %v8199
      %v8346 = vadd.f32 %v8314, %v8202
      %v8347 = vadd.f32 %v8315, %v8207
      %v8348 = vadd.f32 %v8316, %v8210
      %v8349 = vadd.f32 %v8317, %v8215
      %v8350 = vadd.f32 %v8318, %v8218
      %v8351 = vadd.f32 %v8319, %v8223
      %v8352 = vadd.f32 %v8320, %v8226
      %v8353 = vadd.f32 %v8321, %v8231
      %v8354 = vadd.f32 %v8322, %v8234
      %v8355 = vadd.f32 %v8323, %v8239
      %v8356 = vadd.f32 %v8324, %v8242
      %v8357 = vadd.f32 %v8325, %v8247
      %v8358 = vadd.f32 %v8326, %v8250
      %v8359 = vadd.f32 %v8327, %v8255
      %v8360 = vadd.f32 %v8328, %v8258
      %v8361 = vadd.f32 %v8329, %v8263
      %v8362 = vadd.f32 %v8330, %v8266
      %v8363 = vadd.f32 %v8331, %v8271
      %v8364 = vadd.f32 %v8332, %v8274
      %v8365 = vadd.f32 %v8333, %v8279
      %v8366 = vadd.f32 %v8334, %v8282
      %v8367 = vadd.f32 %v8335, %v8287
      %v8368 = vadd.f32 %v8336, %v8290
      %v8369 = vadd.f32 %v8337, %v8295
      %v8370 = vadd.f32 %v8338, %v8298
      %v8371 = vadd.f32 %v8339, %v8303
      %v8372 = vadd.f32 %v8340, %v8306
      %8373 = vst.msk [vmem:[#allocation4] sm:$0xff] %vm1490, %v8341
      %8374 = vst.msk [vmem:[#allocation4 + $0x8] sm:$0xff] %vm1490, %v8342
      %8375 = vst.msk [vmem:[#allocation4 + $0x10] sm:$0xff] %vm1490, %v8343
      %8376 = vst.msk [vmem:[#allocation4 + $0x18] sm:$0xff] %vm1490, %v8344
      %8377 = vst.msk [vmem:[#allocation4 + $0x20] sm:$0xff] %vm1490, %v8345
      %8378 = vst.msk [vmem:[#allocation4 + $0x28] sm:$0xff] %vm1490, %v8346
      %8379 = vst.msk [vmem:[#allocation4 + $0x30] sm:$0xff] %vm1490, %v8347
      %8380 = vst.msk [vmem:[#allocation4 + $0x38] sm:$0xff] %vm1490, %v8348
      %8381 = vst.msk [vmem:[#allocation4 + $0x40] sm:$0xff] %vm1490, %v8349
      %8382 = vst.msk [vmem:[#allocation4 + $0x48] sm:$0xff] %vm1490, %v8350
      %8383 = vst.msk [vmem:[#allocation4 + $0x50] sm:$0xff] %vm1490, %v8351
      %8384 = vst.msk [vmem:[#allocation4 + $0x58] sm:$0xff] %vm1490, %v8352
      %8385 = vst.msk [vmem:[#allocation4 + $0x60] sm:$0xff] %vm1490, %v8353
      %8386 = vst.msk [vmem:[#allocation4 + $0x68] sm:$0xff] %vm1490, %v8354
      %8387 = vst.msk [vmem:[#allocation4 + $0x70] sm:$0xff] %vm1490, %v8355
      %8388 = vst.msk [vmem:[#allocation4 + $0x78] sm:$0xff] %vm1490, %v8356
      %8389 = vst.msk [vmem:[#allocation4 + $0x80] sm:$0xff] %vm1490, %v8357
      %8390 = vst.msk [vmem:[#allocation4 + $0x88] sm:$0xff] %vm1490, %v8358
      %8391 = vst.msk [vmem:[#allocation4 + $0x90] sm:$0xff] %vm1490, %v8359
      %8392 = vst.msk [vmem:[#allocation4 + $0x98] sm:$0xff] %vm1490, %v8360
      %8393 = vst.msk [vmem:[#allocation4 + $0xa0] sm:$0xff] %vm1490, %v8361
      %8394 = vst.msk [vmem:[#allocation4 + $0xa8] sm:$0xff] %vm1490, %v8362
      %8395 = vst.msk [vmem:[#allocation4 + $0xb0] sm:$0xff] %vm1490, %v8363
      %8396 = vst.msk [vmem:[#allocation4 + $0xb8] sm:$0xff] %vm1490, %v8364
      %8397 = vst.msk [vmem:[#allocation4 + $0xc0] sm:$0xff] %vm1490, %v8365
      %8398 = vst.msk [vmem:[#allocation4 + $0xc8] sm:$0xff] %vm1490, %v8366
      %8399 = vst.msk [vmem:[#allocation4 + $0xd0] sm:$0xff] %vm1490, %v8367
      %8400 = vst.msk [vmem:[#allocation4 + $0xd8] sm:$0xff] %vm1490, %v8368
      %8401 = vst.msk [vmem:[#allocation4 + $0xe0] sm:$0xff] %vm1490, %v8369
      %8402 = vst.msk [vmem:[#allocation4 + $0xe8] sm:$0xff] %vm1490, %v8370
      %8403 = vst.msk [vmem:[#allocation4 + $0xf0] sm:$0xff] %vm1490, %v8371
      %8404 = vst.msk [vmem:[#allocation4 + $0xf8] sm:$0xff] %vm1490, %v8372
      %v8405 = vld [vmem:[%s7664 + $0x2] sm:$0xff]
      %v8406 = vld [vmem:[%s7664 + $0xa] sm:$0xff]
      %v8407 = vld [vmem:[%s7664 + $0x1a] sm:$0xff]
      %v8408 = vld [vmem:[%s7664 + $0x22] sm:$0xff]
      %v8409 = vld [vmem:[%s7664 + $0x32] sm:$0xff]
      %v8410 = vld [vmem:[%s7664 + $0x3a] sm:$0xff]
      %v8411 = vld [vmem:[%s7664 + $0x4a] sm:$0xff]
      %v8412 = vld [vmem:[%s7664 + $0x52] sm:$0xff]
      %v8413 = vld [vmem:[%s7664 + $0x62] sm:$0xff]
      %v8414 = vld [vmem:[%s7664 + $0x6a] sm:$0xff]
      %v8415 = vld [vmem:[%s7664 + $0x7a] sm:$0xff]
      %v8416 = vld [vmem:[%s7664 + $0x82] sm:$0xff]
      %v8417 = vld [vmem:[%s7664 + $0x92] sm:$0xff]
      %v8418 = vld [vmem:[%s7664 + $0x9a] sm:$0xff]
      %v8419 = vld [vmem:[%s7664 + $0xaa] sm:$0xff]
      %v8420 = vld [vmem:[%s7664 + $0xb2] sm:$0xff]
      %v8421 = vld [vmem:[%s7664 + $0xc2] sm:$0xff]
      %v8422 = vld [vmem:[%s7664 + $0xca] sm:$0xff]
      %v8423 = vld [vmem:[%s7664 + $0xda] sm:$0xff]
      %v8424 = vld [vmem:[%s7664 + $0xe2] sm:$0xff]
      %v8425 = vld [vmem:[%s7664 + $0xf2] sm:$0xff]
      %v8426 = vld [vmem:[%s7664 + $0xfa] sm:$0xff]
      %v8427 = vld [vmem:[%s7664 + $0x10a] sm:$0xff]
      %v8428 = vld [vmem:[%s7664 + $0x112] sm:$0xff]
      %v8429 = vld [vmem:[%s7664 + $0x122] sm:$0xff]
      %v8430 = vld [vmem:[%s7664 + $0x12a] sm:$0xff]
      %v8431 = vld [vmem:[%s7664 + $0x13a] sm:$0xff]
      %v8432 = vld [vmem:[%s7664 + $0x142] sm:$0xff]
      %v8433 = vld [vmem:[%s7664 + $0x152] sm:$0xff]
      %v8434 = vld [vmem:[%s7664 + $0x15a] sm:$0xff]
      %v8435 = vld [vmem:[%s7664 + $0x16a] sm:$0xff]
      %v8436 = vld [vmem:[%s7664 + $0x172] sm:$0xff]
      %v8437 = vpack.c.bf16 %v8406, %v8405
      %v8438 = vpack.c.bf16 %v8408, %v8407
      %v8439 = vpack.c.bf16 %v8410, %v8409
      %v8440 = vpack.c.bf16 %v8412, %v8411
      %v8441 = vpack.c.bf16 %v8414, %v8413
      %v8442 = vpack.c.bf16 %v8416, %v8415
      %v8443 = vpack.c.bf16 %v8418, %v8417
      %v8444 = vpack.c.bf16 %v8420, %v8419
      %v8445 = vpack.c.bf16 %v8422, %v8421
      %v8446 = vpack.c.bf16 %v8424, %v8423
      %v8447 = vpack.c.bf16 %v8426, %v8425
      %v8448 = vpack.c.bf16 %v8428, %v8427
      %v8449 = vpack.c.bf16 %v8430, %v8429
      %v8450 = vpack.c.bf16 %v8432, %v8431
      %v8451 = vpack.c.bf16 %v8434, %v8433
      %v8452 = vpack.c.bf16 %v8436, %v8435
      %s8453 = scalar_lea.vmem %s11, 128
      %v8454 = vld [vmem:[%s8453] sm:$0xf]
      %v8455 = vld [vmem:[%s8453 + $0x4] sm:$0xf]
      %v8456 = vld [vmem:[%s8453 + $0x8] sm:$0xf]
      %v8457 = vld [vmem:[%s8453 + $0xc] sm:$0xf]
      %v8462 = vunpack.c.l.b16 %v8454
      %v8463 = vunpack.c.l.b16 %v8455
      %v8464 = vunpack.c.l.b16 %v8456
      %v8465 = vunpack.c.l.b16 %v8457
      %v8466 = vpack.c.b16 %v8463, %v8462
      %v8467 = vpack.c.b16 %v8465, %v8464
      %v8471 = vsel %vm1490, %v8437, 0
      %v8474 = vsel %vm1490, %v8438, 0
      %v8477 = vsel %vm1490, %v8439, 0
      %v8480 = vsel %vm1490, %v8440, 0
      %v8483 = vsel %vm1490, %v8441, 0
      %v8486 = vsel %vm1490, %v8442, 0
      %v8489 = vsel %vm1490, %v8443, 0
      %v8492 = vsel %vm1490, %v8444, 0
      %v8495 = vsel %vm1490, %v8445, 0
      %v8498 = vsel %vm1490, %v8446, 0
      %v8501 = vsel %vm1490, %v8447, 0
      %v8504 = vsel %vm1490, %v8448, 0
      %v8507 = vsel %vm1490, %v8449, 0
      %v8510 = vsel %vm1490, %v8450, 0
      %v8513 = vsel %vm1490, %v8451, 0
      %v8516 = vsel %vm1490, %v8452, 0
      %8518 = vmatprep.subr.bf16.mxu0 0
      %8519 = vmatpush1.bf16.msra.mxu0 %v8466
      %8520 = vmatprep.subr.bf16.mxu0 0
      %8521 = vmatpush1.bf16.msra.mxu0 %v8467
      %8522 = vmatprep.subr.bf16.mxu0 0
      %8523 = vmatpush1.bf16.msra.mxu0 0
      %8524 = vmatprep.subr.bf16.mxu0 0
      %8525 = vmatpush1.bf16.msra.mxu0 0
      %8526 = vmatprep.subr.bf16.mxu0 0
      %8527 = vmatpush1.bf16.msra.mxu0 0
      %8528 = vmatprep.subr.bf16.mxu0 0
      %8529 = vmatpush1.bf16.msra.mxu0 0
      %8530 = vmatprep.subr.bf16.mxu0 0
      %8531 = vmatpush1.bf16.msra.mxu0 0
      %8532 = vmatprep.subr.bf16.mxu0 0
      %8533 = vmatpush1.bf16.msra.mxu0 0
      %8534 = vmatprep.subr.bf16.mxu0 0
      %8535 = vmatpush1.bf16.msra.mxu0 0
      %8536 = vmatprep.subr.bf16.mxu0 0
      %8537 = vmatpush1.bf16.msra.mxu0 0
      %8538 = vmatprep.subr.bf16.mxu0 0
      %8539 = vmatpush1.bf16.msra.mxu0 0
      %8540 = vmatprep.subr.bf16.mxu0 0
      %8541 = vmatpush1.bf16.msra.mxu0 0
      %8542 = vmatprep.subr.bf16.mxu0 0
      %8543 = vmatpush1.bf16.msra.mxu0 0
      %8544 = vmatprep.subr.bf16.mxu0 0
      %8545 = vmatpush1.bf16.msra.mxu0 0
      %8546 = vmatprep.subr.bf16.mxu0 0
      %8547 = vmatpush1.bf16.msra.mxu0 0
      %8548 = vmatprep.subr.bf16.mxu0 0
      %8549 = vmatpush1.bf16.msra.mxu0 0
      %8550 = vmatprep.mubr.bf16.mxu0 0
      %8551 = vmatmul.mubr.bf16.gmra.mrb[0].mxu0 %v8471
      %v8552 = vpop.f32.mrb[0].mxu0
      %v8553 = vadd.f32 0.0, %v8552
      %v8554 = vpop.f32.mrb[0].mxu0
      %v8555 = vpop.f32.mrb[0].mxu0
      %v8556 = vadd.f32 0.0, %v8555
      %v8557 = vpop.f32.mrb[0].mxu0
      %8558 = vmatprep.mubr.bf16.mxu0 0
      %8559 = vmatmul.mubr.bf16.gmra.mrb[0].mxu0 %v8474
      %v8560 = vpop.f32.mrb[0].mxu0
      %v8561 = vadd.f32 0.0, %v8560
      %v8562 = vpop.f32.mrb[0].mxu0
      %v8563 = vpop.f32.mrb[0].mxu0
      %v8564 = vadd.f32 0.0, %v8563
      %v8565 = vpop.f32.mrb[0].mxu0
      %8566 = vmatprep.mubr.bf16.mxu0 0
      %8567 = vmatmul.mubr.bf16.gmra.mrb[0].mxu0 %v8477
      %v8568 = vpop.f32.mrb[0].mxu0
      %v8569 = vadd.f32 0.0, %v8568
      %v8570 = vpop.f32.mrb[0].mxu0
      %v8571 = vpop.f32.mrb[0].mxu0
      %v8572 = vadd.f32 0.0, %v8571
      %v8573 = vpop.f32.mrb[0].mxu0
      %8574 = vmatprep.mubr.bf16.mxu0 0
      %8575 = vmatmul.mubr.bf16.gmra.mrb[0].mxu0 %v8480
      %v8576 = vpop.f32.mrb[0].mxu0
      %v8577 = vadd.f32 0.0, %v8576
      %v8578 = vpop.f32.mrb[0].mxu0
      %v8579 = vpop.f32.mrb[0].mxu0
      %v8580 = vadd.f32 0.0, %v8579
      %v8581 = vpop.f32.mrb[0].mxu0
      %8582 = vmatprep.mubr.bf16.mxu0 0
      %8583 = vmatmul.mubr.bf16.gmra.mrb[0].mxu0 %v8483
      %v8584 = vpop.f32.mrb[0].mxu0
      %v8585 = vadd.f32 0.0, %v8584
      %v8586 = vpop.f32.mrb[0].mxu0
      %v8587 = vpop.f32.mrb[0].mxu0
      %v8588 = vadd.f32 0.0, %v8587
      %v8589 = vpop.f32.mrb[0].mxu0
      %8590 = vmatprep.mubr.bf16.mxu0 0
      %8591 = vmatmul.mubr.bf16.gmra.mrb[0].mxu0 %v8486
      %v8592 = vpop.f32.mrb[0].mxu0
      %v8593 = vadd.f32 0.0, %v8592
      %v8594 = vpop.f32.mrb[0].mxu0
      %v8595 = vpop.f32.mrb[0].mxu0
      %v8596 = vadd.f32 0.0, %v8595
      %v8597 = vpop.f32.mrb[0].mxu0
      %8598 = vmatprep.mubr.bf16.mxu0 0
      %8599 = vmatmul.mubr.bf16.gmra.mrb[0].mxu0 %v8489
      %v8600 = vpop.f32.mrb[0].mxu0
      %v8601 = vadd.f32 0.0, %v8600
      %v8602 = vpop.f32.mrb[0].mxu0
      %v8603 = vpop.f32.mrb[0].mxu0
      %v8604 = vadd.f32 0.0, %v8603
      %v8605 = vpop.f32.mrb[0].mxu0
      %8606 = vmatprep.mubr.bf16.mxu0 0
      %8607 = vmatmul.mubr.bf16.gmra.mrb[0].mxu0 %v8492
      %v8608 = vpop.f32.mrb[0].mxu0
      %v8609 = vadd.f32 0.0, %v8608
      %v8610 = vpop.f32.mrb[0].mxu0
      %v8611 = vpop.f32.mrb[0].mxu0
      %v8612 = vadd.f32 0.0, %v8611
      %v8613 = vpop.f32.mrb[0].mxu0
      %8614 = vmatprep.mubr.bf16.mxu0 0
      %8615 = vmatmul.mubr.bf16.gmra.mrb[0].mxu0 %v8495
      %v8616 = vpop.f32.mrb[0].mxu0
      %v8617 = vadd.f32 0.0, %v8616
      %v8618 = vpop.f32.mrb[0].mxu0
      %v8619 = vpop.f32.mrb[0].mxu0
      %v8620 = vadd.f32 0.0, %v8619
      %v8621 = vpop.f32.mrb[0].mxu0
      %8622 = vmatprep.mubr.bf16.mxu0 0
      %8623 = vmatmul.mubr.bf16.gmra.mrb[0].mxu0 %v8498
      %v8624 = vpop.f32.mrb[0].mxu0
      %v8625 = vadd.f32 0.0, %v8624
      %v8626 = vpop.f32.mrb[0].mxu0
      %v8627 = vpop.f32.mrb[0].mxu0
      %v8628 = vadd.f32 0.0, %v8627
      %v8629 = vpop.f32.mrb[0].mxu0
      %8630 = vmatprep.mubr.bf16.mxu0 0
      %8631 = vmatmul.mubr.bf16.gmra.mrb[0].mxu0 %v8501
      %v8632 = vpop.f32.mrb[0].mxu0
      %v8633 = vadd.f32 0.0, %v8632
      %v8634 = vpop.f32.mrb[0].mxu0
      %v8635 = vpop.f32.mrb[0].mxu0
      %v8636 = vadd.f32 0.0, %v8635
      %v8637 = vpop.f32.mrb[0].mxu0
      %8638 = vmatprep.mubr.bf16.mxu0 0
      %8639 = vmatmul.mubr.bf16.gmra.mrb[0].mxu0 %v8504
      %v8640 = vpop.f32.mrb[0].mxu0
      %v8641 = vadd.f32 0.0, %v8640
      %v8642 = vpop.f32.mrb[0].mxu0
      %v8643 = vpop.f32.mrb[0].mxu0
      %v8644 = vadd.f32 0.0, %v8643
      %v8645 = vpop.f32.mrb[0].mxu0
      %8646 = vmatprep.mubr.bf16.mxu0 0
      %8647 = vmatmul.mubr.bf16.gmra.mrb[0].mxu0 %v8507
      %v8648 = vpop.f32.mrb[0].mxu0
      %v8649 = vadd.f32 0.0, %v8648
      %v8650 = vpop.f32.mrb[0].mxu0
      %v8651 = vpop.f32.mrb[0].mxu0
      %v8652 = vadd.f32 0.0, %v8651
      %v8653 = vpop.f32.mrb[0].mxu0
      %8654 = vmatprep.mubr.bf16.mxu0 0
      %8655 = vmatmul.mubr.bf16.gmra.mrb[0].mxu0 %v8510
      %v8656 = vpop.f32.mrb[0].mxu0
      %v8657 = vadd.f32 0.0, %v8656
      %v8658 = vpop.f32.mrb[0].mxu0
      %v8659 = vpop.f32.mrb[0].mxu0
      %v8660 = vadd.f32 0.0, %v8659
      %v8661 = vpop.f32.mrb[0].mxu0
      %8662 = vmatprep.mubr.bf16.mxu0 0
      %8663 = vmatmul.mubr.bf16.gmra.mrb[0].mxu0 %v8513
      %v8664 = vpop.f32.mrb[0].mxu0
      %v8665 = vadd.f32 0.0, %v8664
      %v8666 = vpop.f32.mrb[0].mxu0
      %v8667 = vpop.f32.mrb[0].mxu0
      %v8668 = vadd.f32 0.0, %v8667
      %v8669 = vpop.f32.mrb[0].mxu0
      %8670 = vmatprep.mubr.bf16.mxu0 0
      %8671 = vmatmul.mubr.bf16.gmra.mrb[0].mxu0 %v8516
      %v8672 = vpop.f32.mrb[0].mxu0
      %v8673 = vadd.f32 0.0, %v8672
      %v8674 = vpop.f32.mrb[0].mxu0
      %v8675 = vpop.f32.mrb[0].mxu0
      %v8676 = vadd.f32 0.0, %v8675
      %v8677 = vpop.f32.mrb[0].mxu0
      %8678 = vdwg.mxu0
      %v8679 = vld [vmem:[#allocation4] sm:$0xff]
      %v8680 = vld [vmem:[#allocation4 + $0x8] sm:$0xff]
      %v8681 = vld [vmem:[#allocation4 + $0x10] sm:$0xff]
      %v8682 = vld [vmem:[#allocation4 + $0x18] sm:$0xff]
      %v8683 = vld [vmem:[#allocation4 + $0x20] sm:$0xff]
      %v8684 = vld [vmem:[#allocation4 + $0x28] sm:$0xff]
      %v8685 = vld [vmem:[#allocation4 + $0x30] sm:$0xff]
      %v8686 = vld [vmem:[#allocation4 + $0x38] sm:$0xff]
      %v8687 = vld [vmem:[#allocation4 + $0x40] sm:$0xff]
      %v8688 = vld [vmem:[#allocation4 + $0x48] sm:$0xff]
      %v8689 = vld [vmem:[#allocation4 + $0x50] sm:$0xff]
      %v8690 = vld [vmem:[#allocation4 + $0x58] sm:$0xff]
      %v8691 = vld [vmem:[#allocation4 + $0x60] sm:$0xff]
      %v8692 = vld [vmem:[#allocation4 + $0x68] sm:$0xff]
      %v8693 = vld [vmem:[#allocation4 + $0x70] sm:$0xff]
      %v8694 = vld [vmem:[#allocation4 + $0x78] sm:$0xff]
      %v8695 = vld [vmem:[#allocation4 + $0x80] sm:$0xff]
      %v8696 = vld [vmem:[#allocation4 + $0x88] sm:$0xff]
      %v8697 = vld [vmem:[#allocation4 + $0x90] sm:$0xff]
      %v8698 = vld [vmem:[#allocation4 + $0x98] sm:$0xff]
      %v8699 = vld [vmem:[#allocation4 + $0xa0] sm:$0xff]
      %v8700 = vld [vmem:[#allocation4 + $0xa8] sm:$0xff]
      %v8701 = vld [vmem:[#allocation4 + $0xb0] sm:$0xff]
      %v8702 = vld [vmem:[#allocation4 + $0xb8] sm:$0xff]
      %v8703 = vld [vmem:[#allocation4 + $0xc0] sm:$0xff]
      %v8704 = vld [vmem:[#allocation4 + $0xc8] sm:$0xff]
      %v8705 = vld [vmem:[#allocation4 + $0xd0] sm:$0xff]
      %v8706 = vld [vmem:[#allocation4 + $0xd8] sm:$0xff]
      %v8707 = vld [vmem:[#allocation4 + $0xe0] sm:$0xff]
      %v8708 = vld [vmem:[#allocation4 + $0xe8] sm:$0xff]
      %v8709 = vld [vmem:[#allocation4 + $0xf0] sm:$0xff]
      %v8710 = vld [vmem:[#allocation4 + $0xf8] sm:$0xff]
      %v8711 = vadd.f32 %v8679, %v8553
      %v8712 = vadd.f32 %v8680, %v8556
      %v8713 = vadd.f32 %v8681, %v8561
      %v8714 = vadd.f32 %v8682, %v8564
      %v8715 = vadd.f32 %v8683, %v8569
      %v8716 = vadd.f32 %v8684, %v8572
      %v8717 = vadd.f32 %v8685, %v8577
      %v8718 = vadd.f32 %v8686, %v8580
      %v8719 = vadd.f32 %v8687, %v8585
      %v8720 = vadd.f32 %v8688, %v8588
      %v8721 = vadd.f32 %v8689, %v8593
      %v8722 = vadd.f32 %v8690, %v8596
      %v8723 = vadd.f32 %v8691, %v8601
      %v8724 = vadd.f32 %v8692, %v8604
      %v8725 = vadd.f32 %v8693, %v8609
      %v8726 = vadd.f32 %v8694, %v8612
      %v8727 = vadd.f32 %v8695, %v8617
      %v8728 = vadd.f32 %v8696, %v8620
      %v8729 = vadd.f32 %v8697, %v8625
      %v8730 = vadd.f32 %v8698, %v8628
      %v8731 = vadd.f32 %v8699, %v8633
      %v8732 = vadd.f32 %v8700, %v8636
      %v8733 = vadd.f32 %v8701, %v8641
      %v8734 = vadd.f32 %v8702, %v8644
      %v8735 = vadd.f32 %v8703, %v8649
      %v8736 = vadd.f32 %v8704, %v8652
      %v8737 = vadd.f32 %v8705, %v8657
      %v8738 = vadd.f32 %v8706, %v8660
      %v8739 = vadd.f32 %v8707, %v8665
      %v8740 = vadd.f32 %v8708, %v8668
      %v8741 = vadd.f32 %v8709, %v8673
      %v8742 = vadd.f32 %v8710, %v8676
      %8743 = vst.msk [vmem:[#allocation4] sm:$0xff] %vm1490, %v8711
      %8744 = vst.msk [vmem:[#allocation4 + $0x8] sm:$0xff] %vm1490, %v8712
      %8745 = vst.msk [vmem:[#allocation4 + $0x10] sm:$0xff] %vm1490, %v8713
      %8746 = vst.msk [vmem:[#allocation4 + $0x18] sm:$0xff] %vm1490, %v8714
      %8747 = vst.msk [vmem:[#allocation4 + $0x20] sm:$0xff] %vm1490, %v8715
      %8748 = vst.msk [vmem:[#allocation4 + $0x28] sm:$0xff] %vm1490, %v8716
      %8749 = vst.msk [vmem:[#allocation4 + $0x30] sm:$0xff] %vm1490, %v8717
      %8750 = vst.msk [vmem:[#allocation4 + $0x38] sm:$0xff] %vm1490, %v8718
      %8751 = vst.msk [vmem:[#allocation4 + $0x40] sm:$0xff] %vm1490, %v8719
      %8752 = vst.msk [vmem:[#allocation4 + $0x48] sm:$0xff] %vm1490, %v8720
      %8753 = vst.msk [vmem:[#allocation4 + $0x50] sm:$0xff] %vm1490, %v8721
      %8754 = vst.msk [vmem:[#allocation4 + $0x58] sm:$0xff] %vm1490, %v8722
      %8755 = vst.msk [vmem:[#allocation4 + $0x60] sm:$0xff] %vm1490, %v8723
      %8756 = vst.msk [vmem:[#allocation4 + $0x68] sm:$0xff] %vm1490, %v8724
      %8757 = vst.msk [vmem:[#allocation4 + $0x70] sm:$0xff] %vm1490, %v8725
      %8758 = vst.msk [vmem:[#allocation4 + $0x78] sm:$0xff] %vm1490, %v8726
      %8759 = vst.msk [vmem:[#allocation4 + $0x80] sm:$0xff] %vm1490, %v8727
      %8760 = vst.msk [vmem:[#allocation4 + $0x88] sm:$0xff] %vm1490, %v8728
      %8761 = vst.msk [vmem:[#allocation4 + $0x90] sm:$0xff] %vm1490, %v8729
      %8762 = vst.msk [vmem:[#allocation4 + $0x98] sm:$0xff] %vm1490, %v8730
      %8763 = vst.msk [vmem:[#allocation4 + $0xa0] sm:$0xff] %vm1490, %v8731
      %8764 = vst.msk [vmem:[#allocation4 + $0xa8] sm:$0xff] %vm1490, %v8732
      %8765 = vst.msk [vmem:[#allocation4 + $0xb0] sm:$0xff] %vm1490, %v8733
      %8766 = vst.msk [vmem:[#allocation4 + $0xb8] sm:$0xff] %vm1490, %v8734
      %8767 = vst.msk [vmem:[#allocation4 + $0xc0] sm:$0xff] %vm1490, %v8735
      %8768 = vst.msk [vmem:[#allocation4 + $0xc8] sm:$0xff] %vm1490, %v8736
      %8769 = vst.msk [vmem:[#allocation4 + $0xd0] sm:$0xff] %vm1490, %v8737
      %8770 = vst.msk [vmem:[#allocation4 + $0xd8] sm:$0xff] %vm1490, %v8738
      %8771 = vst.msk [vmem:[#allocation4 + $0xe0] sm:$0xff] %vm1490, %v8739
      %8772 = vst.msk [vmem:[#allocation4 + $0xe8] sm:$0xff] %vm1490, %v8740
      %8773 = vst.msk [vmem:[#allocation4 + $0xf0] sm:$0xff] %vm1490, %v8741
      %8774 = vst.msk [vmem:[#allocation4 + $0xf8] sm:$0xff] %vm1490, %v8742
      %v8775 = vld [vmem:[#allocation4] sm:$0xff]
      %v8776 = vld [vmem:[#allocation4 + $0x8] sm:$0xff]
      %v8777 = vld [vmem:[#allocation4 + $0x10] sm:$0xff]
      %v8778 = vld [vmem:[#allocation4 + $0x18] sm:$0xff]
      %v8779 = vld [vmem:[#allocation4 + $0x20] sm:$0xff]
      %v8780 = vld [vmem:[#allocation4 + $0x28] sm:$0xff]
      %v8781 = vld [vmem:[#allocation4 + $0x30] sm:$0xff]
      %v8782 = vld [vmem:[#allocation4 + $0x38] sm:$0xff]
      %v8783 = vld [vmem:[#allocation4 + $0x40] sm:$0xff]
      %v8784 = vld [vmem:[#allocation4 + $0x48] sm:$0xff]
      %v8785 = vld [vmem:[#allocation4 + $0x50] sm:$0xff]
      %v8786 = vld [vmem:[#allocation4 + $0x58] sm:$0xff]
      %v8787 = vld [vmem:[#allocation4 + $0x60] sm:$0xff]
      %v8788 = vld [vmem:[#allocation4 + $0x68] sm:$0xff]
      %v8789 = vld [vmem:[#allocation4 + $0x70] sm:$0xff]
      %v8790 = vld [vmem:[#allocation4 + $0x78] sm:$0xff]
      %v8791 = vld [vmem:[#allocation4 + $0x80] sm:$0xff]
      %v8792 = vld [vmem:[#allocation4 + $0x88] sm:$0xff]
      %v8793 = vld [vmem:[#allocation4 + $0x90] sm:$0xff]
      %v8794 = vld [vmem:[#allocation4 + $0x98] sm:$0xff]
      %v8795 = vld [vmem:[#allocation4 + $0xa0] sm:$0xff]
      %v8796 = vld [vmem:[#allocation4 + $0xa8] sm:$0xff]
      %v8797 = vld [vmem:[#allocation4 + $0xb0] sm:$0xff]
      %v8798 = vld [vmem:[#allocation4 + $0xb8] sm:$0xff]
      %v8799 = vld [vmem:[#allocation4 + $0xc0] sm:$0xff]
      %v8800 = vld [vmem:[#allocation4 + $0xc8] sm:$0xff]
      %v8801 = vld [vmem:[#allocation4 + $0xd0] sm:$0xff]
      %v8802 = vld [vmem:[#allocation4 + $0xd8] sm:$0xff]
      %v8803 = vld [vmem:[#allocation4 + $0xe0] sm:$0xff]
      %v8804 = vld [vmem:[#allocation4 + $0xe8] sm:$0xff]
      %v8805 = vld [vmem:[#allocation4 + $0xf0] sm:$0xff]
      %v8806 = vld [vmem:[#allocation4 + $0xf8] sm:$0xff]
      %8807 = vst.msk [vmem:[%s522] sm:$0xff] %vm1490, %v8775
      %8808 = vst.msk [vmem:[%s522 + $0x8] sm:$0xff] %vm1490, %v8776
      %8809 = vst.msk [vmem:[%s522 + $0x10] sm:$0xff] %vm1490, %v8777
      %8810 = vst.msk [vmem:[%s522 + $0x18] sm:$0xff] %vm1490, %v8778
      %8811 = vst.msk [vmem:[%s522 + $0x20] sm:$0xff] %vm1490, %v8779
      %8812 = vst.msk [vmem:[%s522 + $0x28] sm:$0xff] %vm1490, %v8780
      %8813 = vst.msk [vmem:[%s522 + $0x30] sm:$0xff] %vm1490, %v8781
      %8814 = vst.msk [vmem:[%s522 + $0x38] sm:$0xff] %vm1490, %v8782
      %8815 = vst.msk [vmem:[%s522 + $0x40] sm:$0xff] %vm1490, %v8783
      %8816 = vst.msk [vmem:[%s522 + $0x48] sm:$0xff] %vm1490, %v8784
      %8817 = vst.msk [vmem:[%s522 + $0x50] sm:$0xff] %vm1490, %v8785
      %8818 = vst.msk [vmem:[%s522 + $0x58] sm:$0xff] %vm1490, %v8786
      %8819 = vst.msk [vmem:[%s522 + $0x60] sm:$0xff] %vm1490, %v8787
      %8820 = vst.msk [vmem:[%s522 + $0x68] sm:$0xff] %vm1490, %v8788
      %8821 = vst.msk [vmem:[%s522 + $0x70] sm:$0xff] %vm1490, %v8789
      %8822 = vst.msk [vmem:[%s522 + $0x78] sm:$0xff] %vm1490, %v8790
      %8823 = vst.msk [vmem:[%s522 + $0x80] sm:$0xff] %vm1490, %v8791
      %8824 = vst.msk [vmem:[%s522 + $0x88] sm:$0xff] %vm1490, %v8792
      %8825 = vst.msk [vmem:[%s522 + $0x90] sm:$0xff] %vm1490, %v8793
      %8826 = vst.msk [vmem:[%s522 + $0x98] sm:$0xff] %vm1490, %v8794
      %8827 = vst.msk [vmem:[%s522 + $0xa0] sm:$0xff] %vm1490, %v8795
      %8828 = vst.msk [vmem:[%s522 + $0xa8] sm:$0xff] %vm1490, %v8796
      %8829 = vst.msk [vmem:[%s522 + $0xb0] sm:$0xff] %vm1490, %v8797
      %8830 = vst.msk [vmem:[%s522 + $0xb8] sm:$0xff] %vm1490, %v8798
      %8831 = vst.msk [vmem:[%s522 + $0xc0] sm:$0xff] %vm1490, %v8799
      %8832 = vst.msk [vmem:[%s522 + $0xc8] sm:$0xff] %vm1490, %v8800
      %8833 = vst.msk [vmem:[%s522 + $0xd0] sm:$0xff] %vm1490, %v8801
      %8834 = vst.msk [vmem:[%s522 + $0xd8] sm:$0xff] %vm1490, %v8802
      %8835 = vst.msk [vmem:[%s522 + $0xe0] sm:$0xff] %vm1490, %v8803
      %8836 = vst.msk [vmem:[%s522 + $0xe8] sm:$0xff] %vm1490, %v8804
      %8837 = vst.msk [vmem:[%s522 + $0xf0] sm:$0xff] %vm1490, %v8805
      %8838 = vst.msk [vmem:[%s522 + $0xf8] sm:$0xff] %vm1490, %v8806
      %p8839 = scmp.lt.s32.totalorder %s26, 1
      %s8840 = scalar_select %p8839, %s26, 1
      %s8841 = smul.addr %s8840, 32
      %s8842 = smul.addr %s8841, 8
      %s8843 = scalar_lea.vmem %s15, %s8842
      // Predicated region
      $region81: #{tpu_custom_call.1} parent=79 // pred_check
        %p8844 = pneg %p374
      $region82: #{tpu_custom_call.1} parent=79 // pred_check_branch
        %8846 = sbr.rel (%p8844) target = $region84
      $region83: #{tpu_custom_call.1} parent=79 // pred_region
        _
      $region84: #{tpu_custom_call.1} parent=79 // pred_fallthru
        _
    $region80: #{tpu_custom_call.1} parent=5 // pred_fallthru
      _
    %p8847 = scmp.le.s32.totalorder 2, %s21
    // Predicated region
    $region85: #{tpu_custom_call.1} parent=5 // pred_check
      %p8848 = pneg %p8847
    $region86: #{tpu_custom_call.1} parent=5 // pred_check_branch
      %8850 = sbr.rel (%p8848) target = $region88
    $region87: #{tpu_custom_call.1} parent=5 // pred_region
      %s8851 = ssub.s32 %s21, 2
      // Predicated region
      $region89: #{tpu_custom_call.1} parent=87 // pred_check
        %p8852 = pneg %p380
      $region90: #{tpu_custom_call.1} parent=87 // pred_check_branch
        %8854 = sbr.rel (%p8852) target = $region92
      $region91: #{tpu_custom_call.1} parent=87 // pred_region
        %p8855 = scmp.lt.s32.totalorder %s27, 1
        %s8856 = scalar_select %p8855, %s27, 1
        %s8857 = smul.addr %s8856, 32
        %s8858 = smul.addr %s8857, 8
        %s8859 = scalar_lea.vmem %s15, %s8858
      $region92: #{tpu_custom_call.1} parent=87 // pred_fallthru
        _
    $region88: #{tpu_custom_call.1} parent=5 // pred_fallthru
      _
  $region6: #{tpu_custom_call.1} parent=0 // loop_footer
    %s25 = sadd.s32 1, %s21
  $region7: #{tpu_custom_call.1} parent=0 // loop_footer_branch
    %20 = sbr.rel target = $region3
  $region8: #{tpu_custom_call.1} parent=0 // loop_exit
    _

</llo_original>
